<compile_context>
chip_gen: v5e
topology: v5e:2x2
jax: 0.10.0
libtpu: 0.0.40
codegen_flags: <defaults>
</compile_context>

<pallas_src>
import functools
import math

import jax
import jax.numpy as jnp
from jax.experimental import pallas as pl
from jax.experimental.pallas import tpu as pltpu


_MXU_DTYPE = jnp.bfloat16  # MXU input dtype; all accumulation is f32.


@functools.lru_cache(maxsize=None)
def _vmem_limit_bytes():
    """Scoped VMEM limit derived from the actual chip (v5e/v6e: 128 MiB, v7x: 64 MiB)."""
    try:
        cap = int(pltpu.get_tpu_info().vmem_capacity_bytes)
    except Exception:
        cap = 64 * 1024 * 1024
    return min((cap * 3) // 4, 96 * 1024 * 1024)


def _pick_tile(dim, target, align):
    """Largest divisor of `dim` that is <= target and a multiple of `align`.

    Falls back to the full dim (always legal: block == array extent) only when no
    aligned divisor exists, instead of whenever target doesn't divide dim.
    """
    if dim <= target:
        return dim
    for t in range(min(target, dim), align - 1, -1):
        if dim % t == 0 and t % align == 0:
            return t
    return dim


# ----------------------------------------------------------------------------
# Tiled linear kernel (M, N, K grid + f32 accumulator) — fallback path only
# ----------------------------------------------------------------------------

def _matmul_bias_kernel(x_ref, w_ref, b_ref, o_ref, acc_ref, *, activation):
    k = pl.program_id(2)

    @pl.when(k == 0)
    def _():
        acc_ref[...] = jnp.zeros_like(acc_ref)

    acc_ref[...] += jnp.dot(
        x_ref[...].astype(_MXU_DTYPE),
        w_ref[...].astype(_MXU_DTYPE),
        preferred_element_type=jnp.float32,
    )

    @pl.when(k == pl.num_programs(2) - 1)
    def _():
        y = acc_ref[...] + b_ref[...]
        if activation == "relu":
            y = jnp.maximum(y, 0.0)
        o_ref[...] = y.astype(o_ref.dtype)


def pallas_linear(x, w, b, activation=None, *, tm=512, tn=512, tk=512):
    """x: (N, Din) , w: (Din, Dout) (bf16 ok), b: (Dout,)|(1,Dout) -> (N, Dout)."""
    n, din = x.shape
    dout = w.shape[1]
    bm = _pick_tile(n, tm, 8)
    bn = _pick_tile(dout, tn, 128)
    bk = _pick_tile(din, tk, 128)
    grid = (n // bm, dout // bn, din // bk)
    return pl.pallas_call(
        functools.partial(_matmul_bias_kernel, activation=activation),
        out_shape=jax.ShapeDtypeStruct((n, dout), x.dtype),
        grid=grid,
        in_specs=[
            pl.BlockSpec((bm, bk), lambda i, j, k: (i, k)),
            pl.BlockSpec((bk, bn), lambda i, j, k: (k, j)),
            pl.BlockSpec((1, bn), lambda i, j, k: (0, j)),
        ],
        out_specs=pl.BlockSpec((bm, bn), lambda i, j, k: (i, j)),
        scratch_shapes=[pltpu.VMEM((bm, bn), jnp.float32)],
        compiler_params=pltpu.CompilerParams(
            dimension_semantics=("parallel", "parallel", "arbitrary"),
            vmem_limit_bytes=_vmem_limit_bytes(),
        ),
    )(x, w, b.reshape(1, dout))


# ----------------------------------------------------------------------------
# Fused TransformerEncoderLayer kernel (one grid step per batch element),
# optionally fusing the visual_proj (pre) and llm_proj (post) linears.
# ----------------------------------------------------------------------------

def _layernorm_f32(x, g, b, eps):
    mu = jnp.mean(x, axis=-1, keepdims=True)
    xc = x - mu
    var = jnp.mean(xc * xc, axis=-1, keepdims=True)
    return xc * jax.lax.rsqrt(var + eps) * g + b


def _encoder_layer_kernel(*refs, num_heads, eps, has_pre, has_post):
    refs = list(refs)
    o_ref = refs.pop()  # no scratch -> last ref is the output block
    it = iter(refs)
    x_ref = next(it)
    if has_pre:
        pre_w, pre_b = next(it), next(it)
    wqkv, bqkv, wo, bo, g1, be1, w1, b1, w2, b2, g2, be2 = (
        next(it), next(it), next(it), next(it), next(it), next(it),
        next(it), next(it), next(it), next(it), next(it), next(it))
    if has_post:
        post_w, post_b = next(it), next(it)

    x_in = x_ref[0]                                   # (S, Din)
    if has_pre:                                       # fused visual_proj
        x = (jnp.dot(x_in.astype(_MXU_DTYPE), pre_w[...],
                     preferred_element_type=jnp.float32) + pre_b[...])
    else:
        x = x_in.astype(jnp.float32)
    seq, e = x.shape                                  # residual stream stays f32
    d = e // num_heads

    # --- self-attention --------------------------------------------------------
    # Packed QKV projection; 1/sqrt(d) is pre-folded into the Q weights/bias.
    qkv = (jnp.dot(x.astype(_MXU_DTYPE), wqkv[...],
                   preferred_element_type=jnp.float32) + bqkv[...])
    qkv = qkv.astype(_MXU_DTYPE)                      # keep the (S,3E) live value bf16
    q = qkv[:, :e].reshape(seq, num_heads, d)
    k = qkv[:, e:2 * e].reshape(seq, num_heads, d)
    v = qkv[:, 2 * e:].reshape(seq, num_heads, d)

    # Heads batched on the MXU (bf16 in, f32 accumulate); no explicit K transpose.
    s = jnp.einsum("qhd,khd->hqk", q, k, preferred_element_type=jnp.float32)
    m = jnp.max(s, axis=-1, keepdims=True)
    p = jnp.exp(s - m)
    denom = jnp.sum(p, axis=-1, keepdims=True)
    p = (p * pl.reciprocal(denom, approx=True)).astype(_MXU_DTYPE)   # EUP, not VALU
    attn = jnp.einsum("hqk,khd->qhd", p, v,
                      preferred_element_type=jnp.float32)            # (S, H, d)
    attn = attn.reshape(seq, e).astype(_MXU_DTYPE)

    # out projection + residual + LayerNorm1 (f32 stats)
    attn = (jnp.dot(attn, wo[...], preferred_element_type=jnp.float32) + bo[...])
    x = _layernorm_f32(x + attn, g1[...], be1[...], eps)

    # --- feed-forward: Linear -> ReLU -> Linear, residual + LayerNorm2 ----------
    h = (jnp.dot(x.astype(_MXU_DTYPE), w1[...],
                 preferred_element_type=jnp.float32) + b1[...])
    h = jnp.maximum(h, 0.0).astype(_MXU_DTYPE)        # (S, F) kept bf16
    h = (jnp.dot(h, w2[...], preferred_element_type=jnp.float32) + b2[...])
    x = _layernorm_f32(x + h, g2[...], be2[...], eps)

    if has_post:                                      # fused llm_proj
        x = (jnp.dot(x.astype(_MXU_DTYPE), post_w[...],
                     preferred_element_type=jnp.float32) + post_b[...])

    o_ref[0] = x.astype(o_ref.dtype)


def pallas_encoder_layer(x, p, *, num_heads, pre=None, post=None, eps=1e-5,
                         single_buffer_weights=True):
    """x: (B, S, Din) -> (B, S, Dout); one fused kernel, grid over batch.

    `pre`/`post` optionally fuse an input/output linear ({"w": (Din,E) bf16,
    "b": (1,E) f32}) into the same kernel.
    """
    # TODO(synk): add a q-tile grid axis (flash-style online softmax) for long
    # sequences so per-step VMEM stays bounded on v7x; irrelevant at S=8.
    b, s, d_in = x.shape
    e = p["wqkv"].shape[0]
    f = p["w1"].shape[1]
    d_out = post["w"].shape[1] if post is not None else e

    weight_mode = pl.Buffered(1) if single_buffer_weights else None

    def const_index_map(ndim):
        return lambda i: (0,) * ndim

    def wspec(shape):
        # Weights/biases never change across the batch grid: single-buffer them.
        kwargs = {} if weight_mode is None else {"pipeline_mode": weight_mode}
        return pl.BlockSpec(shape, const_index_map(len(shape)), **kwargs)

    args = [x]
    in_specs = [pl.BlockSpec((1, s, d_in), lambda i: (i, 0, 0))]
    if pre is not None:
        args += [pre["w"], pre["b"]]
        in_specs += [wspec((d_in, e)), wspec((1, e))]
    args += [p["wqkv"], p["bqkv"], p["wo"], p["bo"], p["g1"], p["be1"],
             p["w1"], p["b1"], p["w2"], p["b2"], p["g2"], p["be2"]]
    in_specs += [wspec((e, 3 * e)), wspec((1, 3 * e)),
                 wspec((e, e)), wspec((1, e)),
                 wspec((1, e)), wspec((1, e)),
                 wspec((e, f)), wspec((1, f)),
                 wspec((f, e)), wspec((1, e)),
                 wspec((1, e)), wspec((1, e))]
    if post is not None:
        args += [post["w"], post["b"]]
        in_specs += [wspec((e, d_out)), wspec((1, d_out))]

    return pl.pallas_call(
        functools.partial(_encoder_layer_kernel, num_heads=num_heads, eps=eps,
                          has_pre=pre is not None, has_post=post is not None),
        out_shape=jax.ShapeDtypeStruct((b, s, d_out), x.dtype),
        grid=(b,),
        in_specs=in_specs,
        out_specs=pl.BlockSpec((1, s, d_out), lambda i: (i, 0, 0)),
        compiler_params=pltpu.CompilerParams(
            dimension_semantics=("parallel",),
            vmem_limit_bytes=_vmem_limit_bytes(),
        ),
    )(*args)


# ----------------------------------------------------------------------------
# TransformerBlock forward
# ----------------------------------------------------------------------------

def transformer_block_forward(params, image_features, *, num_heads,
                              single_buffer_weights=True):
    layers = params["layers"]
    if not layers:  # degenerate config: just the two projections
        b, s, dv = image_features.shape
        x = pallas_linear(image_features.reshape(b * s, dv),
                          params["visual_proj"]["w"], params["visual_proj"]["b"])
        x = pallas_linear(x, params["llm_proj"]["w"], params["llm_proj"]["b"])
        return x.reshape(b, s, -1)

    x = image_features
    n = len(layers)
    for li, lp in enumerate(layers):
        x = pallas_encoder_layer(
            x, lp, num_heads=num_heads,
            pre=params["visual_proj"] if li == 0 else None,   # fuse visual_proj
            post=params["llm_proj"] if li == n - 1 else None,  # fuse llm_proj
            single_buffer_weights=single_buffer_weights)
    return x


# ----------------------------------------------------------------------------
# Parameter construction + wrapper-side prep (bf16 weights, folded scale)
# ----------------------------------------------------------------------------

def init_params(key, vision_width, hidden, heads, ffn, layers, proj_out):
    """Torch-layout-equivalent f32 parameters (weights stored (Din, Dout))."""
    def dense(k, din, dout):
        kw, kb = jax.random.split(k)
        w = jax.random.normal(kw, (din, dout), jnp.float32) * 0.02
        b = jax.random.normal(kb, (dout,), jnp.float32) * 0.02
        return {"w": w, "b": b}

    keys = jax.random.split(key, 2 + layers)
    params = {
        "visual_proj": dense(keys[0], vision_width, hidden),
        "llm_proj": dense(keys[1], hidden, proj_out),
        "layers": [],
    }
    for li in range(layers):
        lk = jax.random.split(keys[2 + li], 4)
        inp = dense(lk[0], hidden, 3 * hidden)      # MHA in_proj (q,k,v packed)
        outp = dense(lk[1], hidden, hidden)         # MHA out_proj
        ff1 = dense(lk[2], hidden, ffn)
        ff2 = dense(lk[3], ffn, hidden)
        params["layers"].append({
            "in_proj_w": inp["w"], "in_proj_b": inp["b"],
            "out_proj_w": outp["w"], "out_proj_b": outp["b"],
            "ff1_w": ff1["w"], "ff1_b": ff1["b"],
            "ff2_w": ff2["w"], "ff2_b": ff2["b"],
            "ln1_g": jnp.ones((hidden,), jnp.float32),
            "ln1_b": jnp.zeros((hidden,), jnp.float32),
            "ln2_g": jnp.ones((hidden,), jnp.float32),
            "ln2_b": jnp.zeros((hidden,), jnp.float32),
        })
    return params


def prepare_params(raw, num_heads, mxu_dtype=_MXU_DTYPE):
    """One-time prep: pre-cast all weight matrices to bf16 (halves HBM->VMEM DMA and
    resident weight VMEM), fold 1/sqrt(head_dim) into the Q projection, and reshape
    biases / LN params to f32 row vectors."""
    def w(a): return a.astype(mxu_dtype)
    def row(a): return a.reshape(1, -1).astype(jnp.float32)

    out = {
        "visual_proj": {"w": w(raw["visual_proj"]["w"]), "b": row(raw["visual_proj"]["b"])},
        "llm_proj": {"w": w(raw["llm_proj"]["w"]), "b": row(raw["llm_proj"]["b"])},
        "layers": [],
    }
    for lp in raw["layers"]:
        e = lp["in_proj_w"].shape[0]
        scale = 1.0 / math.sqrt(e // num_heads)
        sc = jnp.concatenate([jnp.full((e,), scale, jnp.float32),
                              jnp.ones((2 * e,), jnp.float32)])
        out["layers"].append({
            "wqkv": w(lp["in_proj_w"] * sc[None, :]),
            "bqkv": row(lp["in_proj_b"] * sc),
            "wo": w(lp["out_proj_w"]), "bo": row(lp["out_proj_b"]),
            "g1": row(lp["ln1_g"]), "be1": row(lp["ln1_b"]),
            "w1": w(lp["ff1_w"]), "b1": row(lp["ff1_b"]),
            "w2": w(lp["ff2_w"]), "b2": row(lp["ff2_b"]),
            "g2": row(lp["ln2_g"]), "be2": row(lp["ln2_b"]),
        })
    return out


# ----------------------------------------------------------------------------
# main
# ----------------------------------------------------------------------------

if __name__ == "__main__":
    # Small config consistent with the module's required attributes.
    vision_width = 32
    bert_hidden_size = 32
    bert_num_attention_heads = 4
    bert_intermediate_size = 64
    bert_num_hidden_layers = 2
    hidden_size_projector = 48
    batch, seq = 2, 8

    key = jax.random.PRNGKey(0)
    k_params, k_input = jax.random.split(key)

    raw_params = init_params(
        k_params, vision_width, bert_hidden_size, bert_num_attention_heads,
        bert_intermediate_size, bert_num_hidden_layers, hidden_size_projector,
    )
    params = prepare_params(raw_params, bert_num_attention_heads)
    image_features = jax.random.normal(k_input, (batch, seq, vision_width), jnp.float32)

    def run(single_buffer_weights):
        fwd = jax.jit(functools.partial(
            transformer_block_forward,
            num_heads=bert_num_attention_heads,
            single_buffer_weights=single_buffer_weights))
        return jax.block_until_ready(fwd(params, image_features))

    try:
        out = run(True)
    except Exception:
        # pipeline_mode=pl.Buffered(1) not supported by this JAX build; fall back to
        # default double-buffered weight BlockSpecs (correctness is unchanged).
        out = run(False)

    assert out.shape == (batch, seq, hidden_size_projector), out.shape
    assert bool(jnp.all(jnp.isfinite(out)))
    # TODO(synk): dropout layers are identity here (inference forward pass).
    print("KERNEL_OK")
</pallas_src>

<mosaic_0001>
module attributes {stable_mosaic.version = 11 : i64} {
  func.func @_encoder_layer_kernel(%arg0: i32, %arg1: memref<1x8x32xf32, #tpu.memory_space<vmem>>, %arg2: memref<32x96xbf16, #tpu.memory_space<vmem>>, %arg3: memref<1x96xf32, #tpu.memory_space<vmem>>, %arg4: memref<32x32xbf16, #tpu.memory_space<vmem>>, %arg5: memref<1x32xf32, #tpu.memory_space<vmem>>, %arg6: memref<1x32xf32, #tpu.memory_space<vmem>>, %arg7: memref<1x32xf32, #tpu.memory_space<vmem>>, %arg8: memref<32x64xbf16, #tpu.memory_space<vmem>>, %arg9: memref<1x64xf32, #tpu.memory_space<vmem>>, %arg10: memref<64x32xbf16, #tpu.memory_space<vmem>>, %arg11: memref<1x32xf32, #tpu.memory_space<vmem>>, %arg12: memref<1x32xf32, #tpu.memory_space<vmem>>, %arg13: memref<1x32xf32, #tpu.memory_space<vmem>>, %arg14: memref<32x48xbf16, #tpu.memory_space<vmem>>, %arg15: memref<1x48xf32, #tpu.memory_space<vmem>>, %arg16: memref<1x8x48xf32, #tpu.memory_space<vmem>>) attributes {dimension_semantics = [#tpu.dimension_semantics<parallel>], iteration_bounds = array<i64: 2>, scalar_prefetch = 0 : i64, scratch_operands = 0 : i64, tpu.core_type = #tpu.core_type<tc>, window_params = [{transform_indices = @transform_0, window_bounds = array<i64: 1, 8, 32>}, {pipeline_mode = #tpu.pipeline_mode<synchronous>, transform_indices = @transform_1, window_bounds = array<i64: 32, 96>}, {pipeline_mode = #tpu.pipeline_mode<synchronous>, transform_indices = @transform_2, window_bounds = array<i64: 1, 96>}, {pipeline_mode = #tpu.pipeline_mode<synchronous>, transform_indices = @transform_3, window_bounds = array<i64: 32, 32>}, {pipeline_mode = #tpu.pipeline_mode<synchronous>, transform_indices = @transform_4, window_bounds = array<i64: 1, 32>}, {pipeline_mode = #tpu.pipeline_mode<synchronous>, transform_indices = @transform_5, window_bounds = array<i64: 1, 32>}, {pipeline_mode = #tpu.pipeline_mode<synchronous>, transform_indices = @transform_6, window_bounds = array<i64: 1, 32>}, {pipeline_mode = #tpu.pipeline_mode<synchronous>, transform_indices = @transform_7, window_bounds = array<i64: 32, 64>}, {pipeline_mode = #tpu.pipeline_mode<synchronous>, transform_indices = @transform_8, window_bounds = array<i64: 1, 64>}, {pipeline_mode = #tpu.pipeline_mode<synchronous>, transform_indices = @transform_9, window_bounds = array<i64: 64, 32>}, {pipeline_mode = #tpu.pipeline_mode<synchronous>, transform_indices = @transform_10, window_bounds = array<i64: 1, 32>}, {pipeline_mode = #tpu.pipeline_mode<synchronous>, transform_indices = @transform_11, window_bounds = array<i64: 1, 32>}, {pipeline_mode = #tpu.pipeline_mode<synchronous>, transform_indices = @transform_12, window_bounds = array<i64: 1, 32>}, {pipeline_mode = #tpu.pipeline_mode<synchronous>, transform_indices = @transform_13, window_bounds = array<i64: 32, 48>}, {pipeline_mode = #tpu.pipeline_mode<synchronous>, transform_indices = @transform_14, window_bounds = array<i64: 1, 48>}, {transform_indices = @transform_15, window_bounds = array<i64: 1, 8, 48>}]} {
    %c0 = arith.constant 0 : index
    %c0_0 = arith.constant 0 : index
    %c0_1 = arith.constant 0 : index
    %0 = vector.load %arg1[%c0, %c0_0, %c0_1] : memref<1x8x32xf32, #tpu.memory_space<vmem>>, vector<1x8x32xf32>
    %1 = vector.shape_cast %0 : vector<1x8x32xf32> to vector<8x32xf32>
    %2 = arith.truncf %1 : vector<8x32xf32> to vector<8x32xbf16>
    %c0_2 = arith.constant 0 : index
    %c0_3 = arith.constant 0 : index
    %3 = vector.load %arg2[%c0_2, %c0_3] : memref<32x96xbf16, #tpu.memory_space<vmem>>, vector<32x96xbf16>
    %cst = arith.constant dense<0.000000e+00> : vector<8x96xf32>
    %4 = tpu.matmul %2, %3, %cst {dimension_numbers = #tpu.dot_dimension_numbers<[1], [0], [0], [1], [0, 0, 1, 1], [], []>} : vector<8x32xbf16>, vector<32x96xbf16>, vector<8x96xf32> -> vector<8x96xf32>
    %c0_4 = arith.constant 0 : index
    %c0_5 = arith.constant 0 : index
    %5 = vector.load %arg3[%c0_4, %c0_5] : memref<1x96xf32, #tpu.memory_space<vmem>>, vector<1x96xf32>
    %6 = vector.broadcast %5 : vector<1x96xf32> to vector<8x96xf32>
    %7 = arith.addf %4, %6 : vector<8x96xf32>
    %8 = arith.truncf %7 : vector<8x96xf32> to vector<8x96xbf16>
    %9 = vector.extract_strided_slice %8 {offsets = [0, 0], sizes = [8, 32], strides = [1, 1]} : vector<8x96xbf16> to vector<8x32xbf16>
    %10 = vector.shape_cast %9 : vector<8x32xbf16> to vector<8x4x8xbf16>
    %11 = vector.extract_strided_slice %8 {offsets = [0, 32], sizes = [8, 32], strides = [1, 1]} : vector<8x96xbf16> to vector<8x32xbf16>
    %12 = vector.shape_cast %11 : vector<8x32xbf16> to vector<8x4x8xbf16>
    %13 = vector.extract_strided_slice %8 {offsets = [0, 64], sizes = [8, 32], strides = [1, 1]} : vector<8x96xbf16> to vector<8x32xbf16>
    %14 = vector.shape_cast %13 : vector<8x32xbf16> to vector<8x4x8xbf16>
    "tpu.trace_start"() <{level = 10 : i32, message = "qhd,khd->hqk"}> : () -> ()
    %cst_6 = arith.constant dense<0.000000e+00> : vector<4x8x8xf32>
    %15 = tpu.matmul %10, %12, %cst_6 {dimension_numbers = #tpu.dot_dimension_numbers<[2], [2], [0], [0], [0, 1, 0, 0, 1, 0], [1], [1]>} : vector<8x4x8xbf16>, vector<8x4x8xbf16>, vector<4x8x8xf32> -> vector<4x8x8xf32>
    "tpu.trace_stop"() : () -> ()
    %cst_7 = arith.constant dense<0xFF800000> : vector<4x8xf32>
    %16 = vector.multi_reduction <maximumf>, %15, %cst_7 [2] : vector<4x8x8xf32> to vector<4x8xf32>
    %17 = vector.shape_cast %16 : vector<4x8xf32> to vector<4x8x1xf32>
    %18 = vector.broadcast %17 : vector<4x8x1xf32> to vector<4x8x8xf32>
    %19 = arith.subf %15, %18 : vector<4x8x8xf32>
    %20 = math.exp %19 : vector<4x8x8xf32>
    %cst_8 = arith.constant dense<0.000000e+00> : vector<4x8xf32>
    %21 = vector.multi_reduction <add>, %20, %cst_8 [2] : vector<4x8x8xf32> to vector<4x8xf32>
    %22 = vector.shape_cast %21 : vector<4x8xf32> to vector<4x8x1xf32>
    %23 = tpu.reciprocal %22 {approx = true} : vector<4x8x1xf32> -> vector<4x8x1xf32>
    %24 = vector.broadcast %23 : vector<4x8x1xf32> to vector<4x8x8xf32>
    %25 = arith.mulf %20, %24 : vector<4x8x8xf32>
    %26 = arith.truncf %25 : vector<4x8x8xf32> to vector<4x8x8xbf16>
    "tpu.trace_start"() <{level = 10 : i32, message = "hqk,khd->qhd"}> : () -> ()
    %cst_9 = arith.constant dense<0.000000e+00> : vector<4x8x8xf32>
    %27 = tpu.matmul %14, %26, %cst_9 {dimension_numbers = #tpu.dot_dimension_numbers<[0], [2], [2], [1], [0, 1, 0, 2, 1, 1], [1], [0]>} : vector<8x4x8xbf16>, vector<4x8x8xbf16>, vector<4x8x8xf32> -> vector<4x8x8xf32>
    %28 = tpu.transpose %27, [2, 0, 1] : vector<4x8x8xf32> -> vector<8x4x8xf32>
    "tpu.trace_stop"() : () -> ()
    %29 = vector.shape_cast %28 : vector<8x4x8xf32> to vector<8x32xf32>
    %30 = arith.truncf %29 : vector<8x32xf32> to vector<8x32xbf16>
    %c0_10 = arith.constant 0 : index
    %c0_11 = arith.constant 0 : index
    %31 = vector.load %arg4[%c0_10, %c0_11] : memref<32x32xbf16, #tpu.memory_space<vmem>>, vector<32x32xbf16>
    %cst_12 = arith.constant dense<0.000000e+00> : vector<8x32xf32>
    %32 = tpu.matmul %30, %31, %cst_12 {dimension_numbers = #tpu.dot_dimension_numbers<[1], [0], [0], [1], [0, 0, 1, 1], [], []>} : vector<8x32xbf16>, vector<32x32xbf16>, vector<8x32xf32> -> vector<8x32xf32>
    %c0_13 = arith.constant 0 : index
    %c0_14 = arith.constant 0 : index
    %33 = vector.load %arg5[%c0_13, %c0_14] : memref<1x32xf32, #tpu.memory_space<vmem>>, vector<1x32xf32>
    %34 = vector.broadcast %33 : vector<1x32xf32> to vector<8x32xf32>
    %35 = arith.addf %32, %34 : vector<8x32xf32>
    %36 = arith.addf %1, %35 : vector<8x32xf32>
    %c0_15 = arith.constant 0 : index
    %c0_16 = arith.constant 0 : index
    %37 = vector.load %arg6[%c0_15, %c0_16] : memref<1x32xf32, #tpu.memory_space<vmem>>, vector<1x32xf32>
    %c0_17 = arith.constant 0 : index
    %c0_18 = arith.constant 0 : index
    %38 = vector.load %arg7[%c0_17, %c0_18] : memref<1x32xf32, #tpu.memory_space<vmem>>, vector<1x32xf32>
    %cst_19 = arith.constant dense<0.000000e+00> : vector<8xf32>
    %39 = vector.multi_reduction <add>, %36, %cst_19 [1] : vector<8x32xf32> to vector<8xf32>
    %40 = vector.shape_cast %39 : vector<8xf32> to vector<8x1xf32>
    %cst_20 = arith.constant 3.200000e+01 : f32
    %41 = vector.broadcast %cst_20 : f32 to vector<8x1xf32>
    %42 = arith.divf %40, %41 : vector<8x1xf32>
    %43 = vector.broadcast %42 : vector<8x1xf32> to vector<8x32xf32>
    %44 = arith.subf %36, %43 : vector<8x32xf32>
    %45 = arith.mulf %44, %44 : vector<8x32xf32>
    %cst_21 = arith.constant dense<0.000000e+00> : vector<8xf32>
    %46 = vector.multi_reduction <add>, %45, %cst_21 [1] : vector<8x32xf32> to vector<8xf32>
    %47 = vector.shape_cast %46 : vector<8xf32> to vector<8x1xf32>
    %cst_22 = arith.constant 3.200000e+01 : f32
    %48 = vector.broadcast %cst_22 : f32 to vector<8x1xf32>
    %49 = arith.divf %47, %48 : vector<8x1xf32>
    %cst_23 = arith.constant 9.99999974E-6 : f32
    %50 = vector.broadcast %cst_23 : f32 to vector<8x1xf32>
    %51 = arith.addf %49, %50 : vector<8x1xf32>
    %52 = math.rsqrt %51 : vector<8x1xf32>
    %53 = vector.broadcast %52 : vector<8x1xf32> to vector<8x32xf32>
    %54 = arith.mulf %44, %53 : vector<8x32xf32>
    %55 = vector.broadcast %37 : vector<1x32xf32> to vector<8x32xf32>
    %56 = arith.mulf %54, %55 : vector<8x32xf32>
    %57 = vector.broadcast %38 : vector<1x32xf32> to vector<8x32xf32>
    %58 = arith.addf %56, %57 : vector<8x32xf32>
    %59 = arith.truncf %58 : vector<8x32xf32> to vector<8x32xbf16>
    %c0_24 = arith.constant 0 : index
    %c0_25 = arith.constant 0 : index
    %60 = vector.load %arg8[%c0_24, %c0_25] : memref<32x64xbf16, #tpu.memory_space<vmem>>, vector<32x64xbf16>
    %cst_26 = arith.constant dense<0.000000e+00> : vector<8x64xf32>
    %61 = tpu.matmul %59, %60, %cst_26 {dimension_numbers = #tpu.dot_dimension_numbers<[1], [0], [0], [1], [0, 0, 1, 1], [], []>} : vector<8x32xbf16>, vector<32x64xbf16>, vector<8x64xf32> -> vector<8x64xf32>
    %c0_27 = arith.constant 0 : index
    %c0_28 = arith.constant 0 : index
    %62 = vector.load %arg9[%c0_27, %c0_28] : memref<1x64xf32, #tpu.memory_space<vmem>>, vector<1x64xf32>
    %63 = vector.broadcast %62 : vector<1x64xf32> to vector<8x64xf32>
    %64 = arith.addf %61, %63 : vector<8x64xf32>
    %cst_29 = arith.constant 0.000000e+00 : f32
    %65 = vector.broadcast %cst_29 : f32 to vector<8x64xf32>
    %66 = arith.maximumf %64, %65 : vector<8x64xf32>
    %67 = arith.truncf %66 : vector<8x64xf32> to vector<8x64xbf16>
    %c0_30 = arith.constant 0 : index
    %c0_31 = arith.constant 0 : index
    %68 = vector.load %arg10[%c0_30, %c0_31] : memref<64x32xbf16, #tpu.memory_space<vmem>>, vector<64x32xbf16>
    %cst_32 = arith.constant dense<0.000000e+00> : vector<8x32xf32>
    %69 = tpu.matmul %67, %68, %cst_32 {dimension_numbers = #tpu.dot_dimension_numbers<[1], [0], [0], [1], [0, 0, 1, 1], [], []>} : vector<8x64xbf16>, vector<64x32xbf16>, vector<8x32xf32> -> vector<8x32xf32>
    %c0_33 = arith.constant 0 : index
    %c0_34 = arith.constant 0 : index
    %70 = vector.load %arg11[%c0_33, %c0_34] : memref<1x32xf32, #tpu.memory_space<vmem>>, vector<1x32xf32>
    %71 = vector.broadcast %70 : vector<1x32xf32> to vector<8x32xf32>
    %72 = arith.addf %69, %71 : vector<8x32xf32>
    %73 = arith.addf %58, %72 : vector<8x32xf32>
    %c0_35 = arith.constant 0 : index
    %c0_36 = arith.constant 0 : index
    %74 = vector.load %arg12[%c0_35, %c0_36] : memref<1x32xf32, #tpu.memory_space<vmem>>, vector<1x32xf32>
    %c0_37 = arith.constant 0 : index
    %c0_38 = arith.constant 0 : index
    %75 = vector.load %arg13[%c0_37, %c0_38] : memref<1x32xf32, #tpu.memory_space<vmem>>, vector<1x32xf32>
    %cst_39 = arith.constant dense<0.000000e+00> : vector<8xf32>
    %76 = vector.multi_reduction <add>, %73, %cst_39 [1] : vector<8x32xf32> to vector<8xf32>
    %77 = vector.shape_cast %76 : vector<8xf32> to vector<8x1xf32>
    %cst_40 = arith.constant 3.200000e+01 : f32
    %78 = vector.broadcast %cst_40 : f32 to vector<8x1xf32>
    %79 = arith.divf %77, %78 : vector<8x1xf32>
    %80 = vector.broadcast %79 : vector<8x1xf32> to vector<8x32xf32>
    %81 = arith.subf %73, %80 : vector<8x32xf32>
    %82 = arith.mulf %81, %81 : vector<8x32xf32>
    %cst_41 = arith.constant dense<0.000000e+00> : vector<8xf32>
    %83 = vector.multi_reduction <add>, %82, %cst_41 [1] : vector<8x32xf32> to vector<8xf32>
    %84 = vector.shape_cast %83 : vector<8xf32> to vector<8x1xf32>
    %cst_42 = arith.constant 3.200000e+01 : f32
    %85 = vector.broadcast %cst_42 : f32 to vector<8x1xf32>
    %86 = arith.divf %84, %85 : vector<8x1xf32>
    %cst_43 = arith.constant 9.99999974E-6 : f32
    %87 = vector.broadcast %cst_43 : f32 to vector<8x1xf32>
    %88 = arith.addf %86, %87 : vector<8x1xf32>
    %89 = math.rsqrt %88 : vector<8x1xf32>
    %90 = vector.broadcast %89 : vector<8x1xf32> to vector<8x32xf32>
    %91 = arith.mulf %81, %90 : vector<8x32xf32>
    %92 = vector.broadcast %74 : vector<1x32xf32> to vector<8x32xf32>
    %93 = arith.mulf %91, %92 : vector<8x32xf32>
    %94 = vector.broadcast %75 : vector<1x32xf32> to vector<8x32xf32>
    %95 = arith.addf %93, %94 : vector<8x32xf32>
    %96 = arith.truncf %95 : vector<8x32xf32> to vector<8x32xbf16>
    %c0_44 = arith.constant 0 : index
    %c0_45 = arith.constant 0 : index
    %97 = vector.load %arg14[%c0_44, %c0_45] : memref<32x48xbf16, #tpu.memory_space<vmem>>, vector<32x48xbf16>
    %cst_46 = arith.constant dense<0.000000e+00> : vector<8x48xf32>
    %98 = tpu.matmul %96, %97, %cst_46 {dimension_numbers = #tpu.dot_dimension_numbers<[1], [0], [0], [1], [0, 0, 1, 1], [], []>} : vector<8x32xbf16>, vector<32x48xbf16>, vector<8x48xf32> -> vector<8x48xf32>
    %c0_47 = arith.constant 0 : index
    %c0_48 = arith.constant 0 : index
    %99 = vector.load %arg15[%c0_47, %c0_48] : memref<1x48xf32, #tpu.memory_space<vmem>>, vector<1x48xf32>
    %100 = vector.broadcast %99 : vector<1x48xf32> to vector<8x48xf32>
    %101 = arith.addf %98, %100 : vector<8x48xf32>
    %c0_49 = arith.constant 0 : index
    %c0_50 = arith.constant 0 : index
    %c0_51 = arith.constant 0 : index
    %102 = vector.load %arg16[%c0_49, %c0_50, %c0_51] : memref<1x8x48xf32, #tpu.memory_space<vmem>>, vector<1x8x48xf32>
    %103 = vector.shape_cast %102 : vector<1x8x48xf32> to vector<8x48xf32>
    %104 = vector.shape_cast %101 : vector<8x48xf32> to vector<1x8x48xf32>
    tpu.vector_store %arg16[%c0_49, %c0_50, %c0_51], %104 {strides = array<i32>} : memref<1x8x48xf32, #tpu.memory_space<vmem>>, vector<1x8x48xf32>,
    return
  }
  func.func @transform_0(%arg0: i32) -> (i32, i32, i32) {
    %c0_i32 = arith.constant 0 : i32
    %c0_i32_0 = arith.constant 0 : i32
    %c0_i32_1 = arith.constant 0 : i32
    return %arg0, %c0_i32, %c0_i32_0 : i32, i32, i32
  }
  func.func @transform_1(%arg0: i32) -> (i32, i32) {
    %c0_i32 = arith.constant 0 : i32
    %c0_i32_0 = arith.constant 0 : i32
    %c0_i32_1 = arith.constant 0 : i32
    return %c0_i32, %c0_i32_0 : i32, i32
  }
  func.func @transform_2(%arg0: i32) -> (i32, i32) {
    %c0_i32 = arith.constant 0 : i32
    %c0_i32_0 = arith.constant 0 : i32
    %c0_i32_1 = arith.constant 0 : i32
    return %c0_i32, %c0_i32_0 : i32, i32
  }
  func.func @transform_3(%arg0: i32) -> (i32, i32) {
    %c0_i32 = arith.constant 0 : i32
    %c0_i32_0 = arith.constant 0 : i32
    %c0_i32_1 = arith.constant 0 : i32
    return %c0_i32, %c0_i32_0 : i32, i32
  }
  func.func @transform_4(%arg0: i32) -> (i32, i32) {
    %c0_i32 = arith.constant 0 : i32
    %c0_i32_0 = arith.constant 0 : i32
    %c0_i32_1 = arith.constant 0 : i32
    return %c0_i32, %c0_i32_0 : i32, i32
  }
  func.func @transform_5(%arg0: i32) -> (i32, i32) {
    %c0_i32 = arith.constant 0 : i32
    %c0_i32_0 = arith.constant 0 : i32
    %c0_i32_1 = arith.constant 0 : i32
    return %c0_i32, %c0_i32_0 : i32, i32
  }
  func.func @transform_6(%arg0: i32) -> (i32, i32) {
    %c0_i32 = arith.constant 0 : i32
    %c0_i32_0 = arith.constant 0 : i32
    %c0_i32_1 = arith.constant 0 : i32
    return %c0_i32, %c0_i32_0 : i32, i32
  }
  func.func @transform_7(%arg0: i32) -> (i32, i32) {
    %c0_i32 = arith.constant 0 : i32
    %c0_i32_0 = arith.constant 0 : i32
    %c0_i32_1 = arith.constant 0 : i32
    return %c0_i32, %c0_i32_0 : i32, i32
  }
  func.func @transform_8(%arg0: i32) -> (i32, i32) {
    %c0_i32 = arith.constant 0 : i32
    %c0_i32_0 = arith.constant 0 : i32
    %c0_i32_1 = arith.constant 0 : i32
    return %c0_i32, %c0_i32_0 : i32, i32
  }
  func.func @transform_9(%arg0: i32) -> (i32, i32) {
    %c0_i32 = arith.constant 0 : i32
    %c0_i32_0 = arith.constant 0 : i32
    %c0_i32_1 = arith.constant 0 : i32
    return %c0_i32, %c0_i32_0 : i32, i32
  }
  func.func @transform_10(%arg0: i32) -> (i32, i32) {
    %c0_i32 = arith.constant 0 : i32
    %c0_i32_0 = arith.constant 0 : i32
    %c0_i32_1 = arith.constant 0 : i32
    return %c0_i32, %c0_i32_0 : i32, i32
  }
  func.func @transform_11(%arg0: i32) -> (i32, i32) {
    %c0_i32 = arith.constant 0 : i32
    %c0_i32_0 = arith.constant 0 : i32
    %c0_i32_1 = arith.constant 0 : i32
    return %c0_i32, %c0_i32_0 : i32, i32
  }
  func.func @transform_12(%arg0: i32) -> (i32, i32) {
    %c0_i32 = arith.constant 0 : i32
    %c0_i32_0 = arith.constant 0 : i32
    %c0_i32_1 = arith.constant 0 : i32
    return %c0_i32, %c0_i32_0 : i32, i32
  }
  func.func @transform_13(%arg0: i32) -> (i32, i32) {
    %c0_i32 = arith.constant 0 : i32
    %c0_i32_0 = arith.constant 0 : i32
    %c0_i32_1 = arith.constant 0 : i32
    return %c0_i32, %c0_i32_0 : i32, i32
  }
  func.func @transform_14(%arg0: i32) -> (i32, i32) {
    %c0_i32 = arith.constant 0 : i32
    %c0_i32_0 = arith.constant 0 : i32
    %c0_i32_1 = arith.constant 0 : i32
    return %c0_i32, %c0_i32_0 : i32, i32
  }
  func.func @transform_15(%arg0: i32) -> (i32, i32, i32) {
    %c0_i32 = arith.constant 0 : i32
    %c0_i32_0 = arith.constant 0 : i32
    %c0_i32_1 = arith.constant 0 : i32
    return %arg0, %c0_i32, %c0_i32_0 : i32, i32, i32
  }
}

module attributes {stable_mosaic.version = 11 : i64} {
  func.func @_encoder_layer_kernel(%arg0: i32, %arg1: memref<1x8x32xf32, #tpu.memory_space<vmem>>, %arg2: memref<32x32xbf16, #tpu.memory_space<vmem>>, %arg3: memref<1x32xf32, #tpu.memory_space<vmem>>, %arg4: memref<32x96xbf16, #tpu.memory_space<vmem>>, %arg5: memref<1x96xf32, #tpu.memory_space<vmem>>, %arg6: memref<32x32xbf16, #tpu.memory_space<vmem>>, %arg7: memref<1x32xf32, #tpu.memory_space<vmem>>, %arg8: memref<1x32xf32, #tpu.memory_space<vmem>>, %arg9: memref<1x32xf32, #tpu.memory_space<vmem>>, %arg10: memref<32x64xbf16, #tpu.memory_space<vmem>>, %arg11: memref<1x64xf32, #tpu.memory_space<vmem>>, %arg12: memref<64x32xbf16, #tpu.memory_space<vmem>>, %arg13: memref<1x32xf32, #tpu.memory_space<vmem>>, %arg14: memref<1x32xf32, #tpu.memory_space<vmem>>, %arg15: memref<1x32xf32, #tpu.memory_space<vmem>>, %arg16: memref<1x8x32xf32, #tpu.memory_space<vmem>>) attributes {dimension_semantics = [#tpu.dimension_semantics<parallel>], iteration_bounds = array<i64: 2>, scalar_prefetch = 0 : i64, scratch_operands = 0 : i64, tpu.core_type = #tpu.core_type<tc>, window_params = [{transform_indices = @transform_0, window_bounds = array<i64: 1, 8, 32>}, {pipeline_mode = #tpu.pipeline_mode<synchronous>, transform_indices = @transform_1, window_bounds = array<i64: 32, 32>}, {pipeline_mode = #tpu.pipeline_mode<synchronous>, transform_indices = @transform_2, window_bounds = array<i64: 1, 32>}, {pipeline_mode = #tpu.pipeline_mode<synchronous>, transform_indices = @transform_3, window_bounds = array<i64: 32, 96>}, {pipeline_mode = #tpu.pipeline_mode<synchronous>, transform_indices = @transform_4, window_bounds = array<i64: 1, 96>}, {pipeline_mode = #tpu.pipeline_mode<synchronous>, transform_indices = @transform_5, window_bounds = array<i64: 32, 32>}, {pipeline_mode = #tpu.pipeline_mode<synchronous>, transform_indices = @transform_6, window_bounds = array<i64: 1, 32>}, {pipeline_mode = #tpu.pipeline_mode<synchronous>, transform_indices = @transform_7, window_bounds = array<i64: 1, 32>}, {pipeline_mode = #tpu.pipeline_mode<synchronous>, transform_indices = @transform_8, window_bounds = array<i64: 1, 32>}, {pipeline_mode = #tpu.pipeline_mode<synchronous>, transform_indices = @transform_9, window_bounds = array<i64: 32, 64>}, {pipeline_mode = #tpu.pipeline_mode<synchronous>, transform_indices = @transform_10, window_bounds = array<i64: 1, 64>}, {pipeline_mode = #tpu.pipeline_mode<synchronous>, transform_indices = @transform_11, window_bounds = array<i64: 64, 32>}, {pipeline_mode = #tpu.pipeline_mode<synchronous>, transform_indices = @transform_12, window_bounds = array<i64: 1, 32>}, {pipeline_mode = #tpu.pipeline_mode<synchronous>, transform_indices = @transform_13, window_bounds = array<i64: 1, 32>}, {pipeline_mode = #tpu.pipeline_mode<synchronous>, transform_indices = @transform_14, window_bounds = array<i64: 1, 32>}, {transform_indices = @transform_15, window_bounds = array<i64: 1, 8, 32>}]} {
    %c0 = arith.constant 0 : index
    %c0_0 = arith.constant 0 : index
    %c0_1 = arith.constant 0 : index
    %0 = vector.load %arg1[%c0, %c0_0, %c0_1] : memref<1x8x32xf32, #tpu.memory_space<vmem>>, vector<1x8x32xf32>
    %1 = vector.shape_cast %0 : vector<1x8x32xf32> to vector<8x32xf32>
    %2 = arith.truncf %1 : vector<8x32xf32> to vector<8x32xbf16>
    %c0_2 = arith.constant 0 : index
    %c0_3 = arith.constant 0 : index
    %3 = vector.load %arg2[%c0_2, %c0_3] : memref<32x32xbf16, #tpu.memory_space<vmem>>, vector<32x32xbf16>
    %cst = arith.constant dense<0.000000e+00> : vector<8x32xf32>
    %4 = tpu.matmul %2, %3, %cst {dimension_numbers = #tpu.dot_dimension_numbers<[1], [0], [0], [1], [0, 0, 1, 1], [], []>} : vector<8x32xbf16>, vector<32x32xbf16>, vector<8x32xf32> -> vector<8x32xf32>
    %c0_4 = arith.constant 0 : index
    %c0_5 = arith.constant 0 : index
    %5 = vector.load %arg3[%c0_4, %c0_5] : memref<1x32xf32, #tpu.memory_space<vmem>>, vector<1x32xf32>
    %6 = vector.broadcast %5 : vector<1x32xf32> to vector<8x32xf32>
    %7 = arith.addf %4, %6 : vector<8x32xf32>
    %8 = arith.truncf %7 : vector<8x32xf32> to vector<8x32xbf16>
    %c0_6 = arith.constant 0 : index
    %c0_7 = arith.constant 0 : index
    %9 = vector.load %arg4[%c0_6, %c0_7] : memref<32x96xbf16, #tpu.memory_space<vmem>>, vector<32x96xbf16>
    %cst_8 = arith.constant dense<0.000000e+00> : vector<8x96xf32>
    %10 = tpu.matmul %8, %9, %cst_8 {dimension_numbers = #tpu.dot_dimension_numbers<[1], [0], [0], [1], [0, 0, 1, 1], [], []>} : vector<8x32xbf16>, vector<32x96xbf16>, vector<8x96xf32> -> vector<8x96xf32>
    %c0_9 = arith.constant 0 : index
    %c0_10 = arith.constant 0 : index
    %11 = vector.load %arg5[%c0_9, %c0_10] : memref<1x96xf32, #tpu.memory_space<vmem>>, vector<1x96xf32>
    %12 = vector.broadcast %11 : vector<1x96xf32> to vector<8x96xf32>
    %13 = arith.addf %10, %12 : vector<8x96xf32>
    %14 = arith.truncf %13 : vector<8x96xf32> to vector<8x96xbf16>
    %15 = vector.extract_strided_slice %14 {offsets = [0, 0], sizes = [8, 32], strides = [1, 1]} : vector<8x96xbf16> to vector<8x32xbf16>
    %16 = vector.shape_cast %15 : vector<8x32xbf16> to vector<8x4x8xbf16>
    %17 = vector.extract_strided_slice %14 {offsets = [0, 32], sizes = [8, 32], strides = [1, 1]} : vector<8x96xbf16> to vector<8x32xbf16>
    %18 = vector.shape_cast %17 : vector<8x32xbf16> to vector<8x4x8xbf16>
    %19 = vector.extract_strided_slice %14 {offsets = [0, 64], sizes = [8, 32], strides = [1, 1]} : vector<8x96xbf16> to vector<8x32xbf16>
    %20 = vector.shape_cast %19 : vector<8x32xbf16> to vector<8x4x8xbf16>
    "tpu.trace_start"() <{level = 10 : i32, message = "qhd,khd->hqk"}> : () -> ()
    %cst_11 = arith.constant dense<0.000000e+00> : vector<4x8x8xf32>
    %21 = tpu.matmul %16, %18, %cst_11 {dimension_numbers = #tpu.dot_dimension_numbers<[2], [2], [0], [0], [0, 1, 0, 0, 1, 0], [1], [1]>} : vector<8x4x8xbf16>, vector<8x4x8xbf16>, vector<4x8x8xf32> -> vector<4x8x8xf32>
    "tpu.trace_stop"() : () -> ()
    %cst_12 = arith.constant dense<0xFF800000> : vector<4x8xf32>
    %22 = vector.multi_reduction <maximumf>, %21, %cst_12 [2] : vector<4x8x8xf32> to vector<4x8xf32>
    %23 = vector.shape_cast %22 : vector<4x8xf32> to vector<4x8x1xf32>
    %24 = vector.broadcast %23 : vector<4x8x1xf32> to vector<4x8x8xf32>
    %25 = arith.subf %21, %24 : vector<4x8x8xf32>
    %26 = math.exp %25 : vector<4x8x8xf32>
    %cst_13 = arith.constant dense<0.000000e+00> : vector<4x8xf32>
    %27 = vector.multi_reduction <add>, %26, %cst_13 [2] : vector<4x8x8xf32> to vector<4x8xf32>
    %28 = vector.shape_cast %27 : vector<4x8xf32> to vector<4x8x1xf32>
    %29 = tpu.reciprocal %28 {approx = true} : vector<4x8x1xf32> -> vector<4x8x1xf32>
    %30 = vector.broadcast %29 : vector<4x8x1xf32> to vector<4x8x8xf32>
    %31 = arith.mulf %26, %30 : vector<4x8x8xf32>
    %32 = arith.truncf %31 : vector<4x8x8xf32> to vector<4x8x8xbf16>
    "tpu.trace_start"() <{level = 10 : i32, message = "hqk,khd->qhd"}> : () -> ()
    %cst_14 = arith.constant dense<0.000000e+00> : vector<4x8x8xf32>
    %33 = tpu.matmul %20, %32, %cst_14 {dimension_numbers = #tpu.dot_dimension_numbers<[0], [2], [2], [1], [0, 1, 0, 2, 1, 1], [1], [0]>} : vector<8x4x8xbf16>, vector<4x8x8xbf16>, vector<4x8x8xf32> -> vector<4x8x8xf32>
    %34 = tpu.transpose %33, [2, 0, 1] : vector<4x8x8xf32> -> vector<8x4x8xf32>
    "tpu.trace_stop"() : () -> ()
    %35 = vector.shape_cast %34 : vector<8x4x8xf32> to vector<8x32xf32>
    %36 = arith.truncf %35 : vector<8x32xf32> to vector<8x32xbf16>
    %c0_15 = arith.constant 0 : index
    %c0_16 = arith.constant 0 : index
    %37 = vector.load %arg6[%c0_15, %c0_16] : memref<32x32xbf16, #tpu.memory_space<vmem>>, vector<32x32xbf16>
    %cst_17 = arith.constant dense<0.000000e+00> : vector<8x32xf32>
    %38 = tpu.matmul %36, %37, %cst_17 {dimension_numbers = #tpu.dot_dimension_numbers<[1], [0], [0], [1], [0, 0, 1, 1], [], []>} : vector<8x32xbf16>, vector<32x32xbf16>, vector<8x32xf32> -> vector<8x32xf32>
    %c0_18 = arith.constant 0 : index
    %c0_19 = arith.constant 0 : index
    %39 = vector.load %arg7[%c0_18, %c0_19] : memref<1x32xf32, #tpu.memory_space<vmem>>, vector<1x32xf32>
    %40 = vector.broadcast %39 : vector<1x32xf32> to vector<8x32xf32>
    %41 = arith.addf %38, %40 : vector<8x32xf32>
    %42 = arith.addf %7, %41 : vector<8x32xf32>
    %c0_20 = arith.constant 0 : index
    %c0_21 = arith.constant 0 : index
    %43 = vector.load %arg8[%c0_20, %c0_21] : memref<1x32xf32, #tpu.memory_space<vmem>>, vector<1x32xf32>
    %c0_22 = arith.constant 0 : index
    %c0_23 = arith.constant 0 : index
    %44 = vector.load %arg9[%c0_22, %c0_23] : memref<1x32xf32, #tpu.memory_space<vmem>>, vector<1x32xf32>
    %cst_24 = arith.constant dense<0.000000e+00> : vector<8xf32>
    %45 = vector.multi_reduction <add>, %42, %cst_24 [1] : vector<8x32xf32> to vector<8xf32>
    %46 = vector.shape_cast %45 : vector<8xf32> to vector<8x1xf32>
    %cst_25 = arith.constant 3.200000e+01 : f32
    %47 = vector.broadcast %cst_25 : f32 to vector<8x1xf32>
    %48 = arith.divf %46, %47 : vector<8x1xf32>
    %49 = vector.broadcast %48 : vector<8x1xf32> to vector<8x32xf32>
    %50 = arith.subf %42, %49 : vector<8x32xf32>
    %51 = arith.mulf %50, %50 : vector<8x32xf32>
    %cst_26 = arith.constant dense<0.000000e+00> : vector<8xf32>
    %52 = vector.multi_reduction <add>, %51, %cst_26 [1] : vector<8x32xf32> to vector<8xf32>
    %53 = vector.shape_cast %52 : vector<8xf32> to vector<8x1xf32>
    %cst_27 = arith.constant 3.200000e+01 : f32
    %54 = vector.broadcast %cst_27 : f32 to vector<8x1xf32>
    %55 = arith.divf %53, %54 : vector<8x1xf32>
    %cst_28 = arith.constant 9.99999974E-6 : f32
    %56 = vector.broadcast %cst_28 : f32 to vector<8x1xf32>
    %57 = arith.addf %55, %56 : vector<8x1xf32>
    %58 = math.rsqrt %57 : vector<8x1xf32>
    %59 = vector.broadcast %58 : vector<8x1xf32> to vector<8x32xf32>
    %60 = arith.mulf %50, %59 : vector<8x32xf32>
    %61 = vector.broadcast %43 : vector<1x32xf32> to vector<8x32xf32>
    %62 = arith.mulf %60, %61 : vector<8x32xf32>
    %63 = vector.broadcast %44 : vector<1x32xf32> to vector<8x32xf32>
    %64 = arith.addf %62, %63 : vector<8x32xf32>
    %65 = arith.truncf %64 : vector<8x32xf32> to vector<8x32xbf16>
    %c0_29 = arith.constant 0 : index
    %c0_30 = arith.constant 0 : index
    %66 = vector.load %arg10[%c0_29, %c0_30] : memref<32x64xbf16, #tpu.memory_space<vmem>>, vector<32x64xbf16>
    %cst_31 = arith.constant dense<0.000000e+00> : vector<8x64xf32>
    %67 = tpu.matmul %65, %66, %cst_31 {dimension_numbers = #tpu.dot_dimension_numbers<[1], [0], [0], [1], [0, 0, 1, 1], [], []>} : vector<8x32xbf16>, vector<32x64xbf16>, vector<8x64xf32> -> vector<8x64xf32>
    %c0_32 = arith.constant 0 : index
    %c0_33 = arith.constant 0 : index
    %68 = vector.load %arg11[%c0_32, %c0_33] : memref<1x64xf32, #tpu.memory_space<vmem>>, vector<1x64xf32>
    %69 = vector.broadcast %68 : vector<1x64xf32> to vector<8x64xf32>
    %70 = arith.addf %67, %69 : vector<8x64xf32>
    %cst_34 = arith.constant 0.000000e+00 : f32
    %71 = vector.broadcast %cst_34 : f32 to vector<8x64xf32>
    %72 = arith.maximumf %70, %71 : vector<8x64xf32>
    %73 = arith.truncf %72 : vector<8x64xf32> to vector<8x64xbf16>
    %c0_35 = arith.constant 0 : index
    %c0_36 = arith.constant 0 : index
    %74 = vector.load %arg12[%c0_35, %c0_36] : memref<64x32xbf16, #tpu.memory_space<vmem>>, vector<64x32xbf16>
    %cst_37 = arith.constant dense<0.000000e+00> : vector<8x32xf32>
    %75 = tpu.matmul %73, %74, %cst_37 {dimension_numbers = #tpu.dot_dimension_numbers<[1], [0], [0], [1], [0, 0, 1, 1], [], []>} : vector<8x64xbf16>, vector<64x32xbf16>, vector<8x32xf32> -> vector<8x32xf32>
    %c0_38 = arith.constant 0 : index
    %c0_39 = arith.constant 0 : index
    %76 = vector.load %arg13[%c0_38, %c0_39] : memref<1x32xf32, #tpu.memory_space<vmem>>, vector<1x32xf32>
    %77 = vector.broadcast %76 : vector<1x32xf32> to vector<8x32xf32>
    %78 = arith.addf %75, %77 : vector<8x32xf32>
    %79 = arith.addf %64, %78 : vector<8x32xf32>
    %c0_40 = arith.constant 0 : index
    %c0_41 = arith.constant 0 : index
    %80 = vector.load %arg14[%c0_40, %c0_41] : memref<1x32xf32, #tpu.memory_space<vmem>>, vector<1x32xf32>
    %c0_42 = arith.constant 0 : index
    %c0_43 = arith.constant 0 : index
    %81 = vector.load %arg15[%c0_42, %c0_43] : memref<1x32xf32, #tpu.memory_space<vmem>>, vector<1x32xf32>
    %cst_44 = arith.constant dense<0.000000e+00> : vector<8xf32>
    %82 = vector.multi_reduction <add>, %79, %cst_44 [1] : vector<8x32xf32> to vector<8xf32>
    %83 = vector.shape_cast %82 : vector<8xf32> to vector<8x1xf32>
    %cst_45 = arith.constant 3.200000e+01 : f32
    %84 = vector.broadcast %cst_45 : f32 to vector<8x1xf32>
    %85 = arith.divf %83, %84 : vector<8x1xf32>
    %86 = vector.broadcast %85 : vector<8x1xf32> to vector<8x32xf32>
    %87 = arith.subf %79, %86 : vector<8x32xf32>
    %88 = arith.mulf %87, %87 : vector<8x32xf32>
    %cst_46 = arith.constant dense<0.000000e+00> : vector<8xf32>
    %89 = vector.multi_reduction <add>, %88, %cst_46 [1] : vector<8x32xf32> to vector<8xf32>
    %90 = vector.shape_cast %89 : vector<8xf32> to vector<8x1xf32>
    %cst_47 = arith.constant 3.200000e+01 : f32
    %91 = vector.broadcast %cst_47 : f32 to vector<8x1xf32>
    %92 = arith.divf %90, %91 : vector<8x1xf32>
    %cst_48 = arith.constant 9.99999974E-6 : f32
    %93 = vector.broadcast %cst_48 : f32 to vector<8x1xf32>
    %94 = arith.addf %92, %93 : vector<8x1xf32>
    %95 = math.rsqrt %94 : vector<8x1xf32>
    %96 = vector.broadcast %95 : vector<8x1xf32> to vector<8x32xf32>
    %97 = arith.mulf %87, %96 : vector<8x32xf32>
    %98 = vector.broadcast %80 : vector<1x32xf32> to vector<8x32xf32>
    %99 = arith.mulf %97, %98 : vector<8x32xf32>
    %100 = vector.broadcast %81 : vector<1x32xf32> to vector<8x32xf32>
    %101 = arith.addf %99, %100 : vector<8x32xf32>
    %c0_49 = arith.constant 0 : index
    %c0_50 = arith.constant 0 : index
    %c0_51 = arith.constant 0 : index
    %102 = vector.load %arg16[%c0_49, %c0_50, %c0_51] : memref<1x8x32xf32, #tpu.memory_space<vmem>>, vector<1x8x32xf32>
    %103 = vector.shape_cast %102 : vector<1x8x32xf32> to vector<8x32xf32>
    %104 = vector.shape_cast %101 : vector<8x32xf32> to vector<1x8x32xf32>
    tpu.vector_store %arg16[%c0_49, %c0_50, %c0_51], %104 {strides = array<i32>} : memref<1x8x32xf32, #tpu.memory_space<vmem>>, vector<1x8x32xf32>,
    return
  }
  func.func @transform_0(%arg0: i32) -> (i32, i32, i32) {
    %c0_i32 = arith.constant 0 : i32
    %c0_i32_0 = arith.constant 0 : i32
    %c0_i32_1 = arith.constant 0 : i32
    return %arg0, %c0_i32, %c0_i32_0 : i32, i32, i32
  }
  func.func @transform_1(%arg0: i32) -> (i32, i32) {
    %c0_i32 = arith.constant 0 : i32
    %c0_i32_0 = arith.constant 0 : i32
    %c0_i32_1 = arith.constant 0 : i32
    return %c0_i32, %c0_i32_0 : i32, i32
  }
  func.func @transform_2(%arg0: i32) -> (i32, i32) {
    %c0_i32 = arith.constant 0 : i32
    %c0_i32_0 = arith.constant 0 : i32
    %c0_i32_1 = arith.constant 0 : i32
    return %c0_i32, %c0_i32_0 : i32, i32
  }
  func.func @transform_3(%arg0: i32) -> (i32, i32) {
    %c0_i32 = arith.constant 0 : i32
    %c0_i32_0 = arith.constant 0 : i32
    %c0_i32_1 = arith.constant 0 : i32
    return %c0_i32, %c0_i32_0 : i32, i32
  }
  func.func @transform_4(%arg0: i32) -> (i32, i32) {
    %c0_i32 = arith.constant 0 : i32
    %c0_i32_0 = arith.constant 0 : i32
    %c0_i32_1 = arith.constant 0 : i32
    return %c0_i32, %c0_i32_0 : i32, i32
  }
  func.func @transform_5(%arg0: i32) -> (i32, i32) {
    %c0_i32 = arith.constant 0 : i32
    %c0_i32_0 = arith.constant 0 : i32
    %c0_i32_1 = arith.constant 0 : i32
    return %c0_i32, %c0_i32_0 : i32, i32
  }
  func.func @transform_6(%arg0: i32) -> (i32, i32) {
    %c0_i32 = arith.constant 0 : i32
    %c0_i32_0 = arith.constant 0 : i32
    %c0_i32_1 = arith.constant 0 : i32
    return %c0_i32, %c0_i32_0 : i32, i32
  }
  func.func @transform_7(%arg0: i32) -> (i32, i32) {
    %c0_i32 = arith.constant 0 : i32
    %c0_i32_0 = arith.constant 0 : i32
    %c0_i32_1 = arith.constant 0 : i32
    return %c0_i32, %c0_i32_0 : i32, i32
  }
  func.func @transform_8(%arg0: i32) -> (i32, i32) {
    %c0_i32 = arith.constant 0 : i32
    %c0_i32_0 = arith.constant 0 : i32
    %c0_i32_1 = arith.constant 0 : i32
    return %c0_i32, %c0_i32_0 : i32, i32
  }
  func.func @transform_9(%arg0: i32) -> (i32, i32) {
    %c0_i32 = arith.constant 0 : i32
    %c0_i32_0 = arith.constant 0 : i32
    %c0_i32_1 = arith.constant 0 : i32
    return %c0_i32, %c0_i32_0 : i32, i32
  }
  func.func @transform_10(%arg0: i32) -> (i32, i32) {
    %c0_i32 = arith.constant 0 : i32
    %c0_i32_0 = arith.constant 0 : i32
    %c0_i32_1 = arith.constant 0 : i32
    return %c0_i32, %c0_i32_0 : i32, i32
  }
  func.func @transform_11(%arg0: i32) -> (i32, i32) {
    %c0_i32 = arith.constant 0 : i32
    %c0_i32_0 = arith.constant 0 : i32
    %c0_i32_1 = arith.constant 0 : i32
    return %c0_i32, %c0_i32_0 : i32, i32
  }
  func.func @transform_12(%arg0: i32) -> (i32, i32) {
    %c0_i32 = arith.constant 0 : i32
    %c0_i32_0 = arith.constant 0 : i32
    %c0_i32_1 = arith.constant 0 : i32
    return %c0_i32, %c0_i32_0 : i32, i32
  }
  func.func @transform_13(%arg0: i32) -> (i32, i32) {
    %c0_i32 = arith.constant 0 : i32
    %c0_i32_0 = arith.constant 0 : i32
    %c0_i32_1 = arith.constant 0 : i32
    return %c0_i32, %c0_i32_0 : i32, i32
  }
  func.func @transform_14(%arg0: i32) -> (i32, i32) {
    %c0_i32 = arith.constant 0 : i32
    %c0_i32_0 = arith.constant 0 : i32
    %c0_i32_1 = arith.constant 0 : i32
    return %c0_i32, %c0_i32_0 : i32, i32
  }
  func.func @transform_15(%arg0: i32) -> (i32, i32, i32) {
    %c0_i32 = arith.constant 0 : i32
    %c0_i32_0 = arith.constant 0 : i32
    %c0_i32_1 = arith.constant 0 : i32
    return %arg0, %c0_i32, %c0_i32_0 : i32, i32, i32
  }
}

module attributes {stable_mosaic.version = 11 : i64} {
  func.func @_encoder_layer_kernel(%arg0: i32, %arg1: memref<1x8x32xf32, #tpu.memory_space<vmem>>, %arg2: memref<32x32xbf16, #tpu.memory_space<vmem>>, %arg3: memref<1x32xf32, #tpu.memory_space<vmem>>, %arg4: memref<32x96xbf16, #tpu.memory_space<vmem>>, %arg5: memref<1x96xf32, #tpu.memory_space<vmem>>, %arg6: memref<32x32xbf16, #tpu.memory_space<vmem>>, %arg7: memref<1x32xf32, #tpu.memory_space<vmem>>, %arg8: memref<1x32xf32, #tpu.memory_space<vmem>>, %arg9: memref<1x32xf32, #tpu.memory_space<vmem>>, %arg10: memref<32x64xbf16, #tpu.memory_space<vmem>>, %arg11: memref<1x64xf32, #tpu.memory_space<vmem>>, %arg12: memref<64x32xbf16, #tpu.memory_space<vmem>>, %arg13: memref<1x32xf32, #tpu.memory_space<vmem>>, %arg14: memref<1x32xf32, #tpu.memory_space<vmem>>, %arg15: memref<1x32xf32, #tpu.memory_space<vmem>>, %arg16: memref<1x8x32xf32, #tpu.memory_space<vmem>>) attributes {dimension_semantics = [#tpu.dimension_semantics<parallel>], iteration_bounds = array<i64: 2>, scalar_prefetch = 0 : i64, scratch_operands = 0 : i64, tpu.core_type = #tpu.core_type<tc>, window_params = [{transform_indices = @transform_0, window_bounds = array<i64: 1, 8, 32>}, {pipeline_mode = #tpu.pipeline_mode<synchronous>, transform_indices = @transform_1, window_bounds = array<i64: 32, 32>}, {pipeline_mode = #tpu.pipeline_mode<synchronous>, transform_indices = @transform_2, window_bounds = array<i64: 1, 32>}, {pipeline_mode = #tpu.pipeline_mode<synchronous>, transform_indices = @transform_3, window_bounds = array<i64: 32, 96>}, {pipeline_mode = #tpu.pipeline_mode<synchronous>, transform_indices = @transform_4, window_bounds = array<i64: 1, 96>}, {pipeline_mode = #tpu.pipeline_mode<synchronous>, transform_indices = @transform_5, window_bounds = array<i64: 32, 32>}, {pipeline_mode = #tpu.pipeline_mode<synchronous>, transform_indices = @transform_6, window_bounds = array<i64: 1, 32>}, {pipeline_mode = #tpu.pipeline_mode<synchronous>, transform_indices = @transform_7, window_bounds = array<i64: 1, 32>}, {pipeline_mode = #tpu.pipeline_mode<synchronous>, transform_indices = @transform_8, window_bounds = array<i64: 1, 32>}, {pipeline_mode = #tpu.pipeline_mode<synchronous>, transform_indices = @transform_9, window_bounds = array<i64: 32, 64>}, {pipeline_mode = #tpu.pipeline_mode<synchronous>, transform_indices = @transform_10, window_bounds = array<i64: 1, 64>}, {pipeline_mode = #tpu.pipeline_mode<synchronous>, transform_indices = @transform_11, window_bounds = array<i64: 64, 32>}, {pipeline_mode = #tpu.pipeline_mode<synchronous>, transform_indices = @transform_12, window_bounds = array<i64: 1, 32>}, {pipeline_mode = #tpu.pipeline_mode<synchronous>, transform_indices = @transform_13, window_bounds = array<i64: 1, 32>}, {pipeline_mode = #tpu.pipeline_mode<synchronous>, transform_indices = @transform_14, window_bounds = array<i64: 1, 32>}, {transform_indices = @transform_15, window_bounds = array<i64: 1, 8, 32>}]} {
    %c0 = arith.constant 0 : index
    %c0_0 = arith.constant 0 : index
    %c0_1 = arith.constant 0 : index
    %0 = vector.load %arg1[%c0, %c0_0, %c0_1] : memref<1x8x32xf32, #tpu.memory_space<vmem>>, vector<1x8x32xf32>
    %1 = vector.shape_cast %0 : vector<1x8x32xf32> to vector<8x32xf32>
    %2 = arith.truncf %1 : vector<8x32xf32> to vector<8x32xbf16>
    %c0_2 = arith.constant 0 : index
    %c0_3 = arith.constant 0 : index
    %3 = vector.load %arg2[%c0_2, %c0_3] : memref<32x32xbf16, #tpu.memory_space<vmem>>, vector<32x32xbf16>
    %cst = arith.constant dense<0.000000e+00> : vector<8x32xf32>
    %4 = tpu.matmul %2, %3, %cst {dimension_numbers = #tpu.dot_dimension_numbers<[1], [0], [0], [1], [0, 0, 1, 1], [], []>} : vector<8x32xbf16>, vector<32x32xbf16>, vector<8x32xf32> -> vector<8x32xf32>
    %c0_4 = arith.constant 0 : index
    %c0_5 = arith.constant 0 : index
    %5 = vector.load %arg3[%c0_4, %c0_5] : memref<1x32xf32, #tpu.memory_space<vmem>>, vector<1x32xf32>
    %6 = vector.broadcast %5 : vector<1x32xf32> to vector<8x32xf32>
    %7 = arith.addf %4, %6 : vector<8x32xf32>
    %8 = arith.truncf %7 : vector<8x32xf32> to vector<8x32xbf16>
    %c0_6 = arith.constant 0 : index
    %c0_7 = arith.constant 0 : index
    %9 = vector.load %arg4[%c0_6, %c0_7] : memref<32x96xbf16, #tpu.memory_space<vmem>>, vector<32x96xbf16>
    %cst_8 = arith.constant dense<0.000000e+00> : vector<8x96xf32>
    %10 = tpu.matmul %8, %9, %cst_8 {dimension_numbers = #tpu.dot_dimension_numbers<[1], [0], [0], [1], [0, 0, 1, 1], [], []>} : vector<8x32xbf16>, vector<32x96xbf16>, vector<8x96xf32> -> vector<8x96xf32>
    %c0_9 = arith.constant 0 : index
    %c0_10 = arith.constant 0 : index
    %11 = vector.load %arg5[%c0_9, %c0_10] : memref<1x96xf32, #tpu.memory_space<vmem>>, vector<1x96xf32>
    %12 = vector.broadcast %11 : vector<1x96xf32> to vector<8x96xf32>
    %13 = arith.addf %10, %12 : vector<8x96xf32>
    %14 = arith.truncf %13 : vector<8x96xf32> to vector<8x96xbf16>
    %15 = vector.extract_strided_slice %14 {offsets = [0, 0], sizes = [8, 32], strides = [1, 1]} : vector<8x96xbf16> to vector<8x32xbf16>
    %16 = vector.shape_cast %15 : vector<8x32xbf16> to vector<8x4x8xbf16>
    %17 = vector.extract_strided_slice %14 {offsets = [0, 32], sizes = [8, 32], strides = [1, 1]} : vector<8x96xbf16> to vector<8x32xbf16>
    %18 = vector.shape_cast %17 : vector<8x32xbf16> to vector<8x4x8xbf16>
    %19 = vector.extract_strided_slice %14 {offsets = [0, 64], sizes = [8, 32], strides = [1, 1]} : vector<8x96xbf16> to vector<8x32xbf16>
    %20 = vector.shape_cast %19 : vector<8x32xbf16> to vector<8x4x8xbf16>
    "tpu.trace_start"() <{level = 10 : i32, message = "qhd,khd->hqk"}> : () -> ()
    %cst_11 = arith.constant dense<0.000000e+00> : vector<4x8x8xf32>
    %21 = tpu.matmul %16, %18, %cst_11 {dimension_numbers = #tpu.dot_dimension_numbers<[2], [2], [0], [0], [0, 1, 0, 0, 1, 0], [1], [1]>} : vector<8x4x8xbf16>, vector<8x4x8xbf16>, vector<4x8x8xf32> -> vector<4x8x8xf32>
    "tpu.trace_stop"() : () -> ()
    %cst_12 = arith.constant dense<0xFF800000> : vector<4x8xf32>
    %22 = vector.multi_reduction <maximumf>, %21, %cst_12 [2] : vector<4x8x8xf32> to vector<4x8xf32>
    %23 = vector.shape_cast %22 : vector<4x8xf32> to vector<4x8x1xf32>
    %24 = vector.broadcast %23 : vector<4x8x1xf32> to vector<4x8x8xf32>
    %25 = arith.subf %21, %24 : vector<4x8x8xf32>
    %26 = math.exp %25 : vector<4x8x8xf32>
    %cst_13 = arith.constant dense<0.000000e+00> : vector<4x8xf32>
    %27 = vector.multi_reduction <add>, %26, %cst_13 [2] : vector<4x8x8xf32> to vector<4x8xf32>
    %28 = vector.shape_cast %27 : vector<4x8xf32> to vector<4x8x1xf32>
    %29 = tpu.reciprocal %28 {approx = true} : vector<4x8x1xf32> -> vector<4x8x1xf32>
    %30 = vector.broadcast %29 : vector<4x8x1xf32> to vector<4x8x8xf32>
    %31 = arith.mulf %26, %30 : vector<4x8x8xf32>
    %32 = arith.truncf %31 : vector<4x8x8xf32> to vector<4x8x8xbf16>
    "tpu.trace_start"() <{level = 10 : i32, message = "hqk,khd->qhd"}> : () -> ()
    %cst_14 = arith.constant dense<0.000000e+00> : vector<4x8x8xf32>
    %33 = tpu.matmul %20, %32, %cst_14 {dimension_numbers = #tpu.dot_dimension_numbers<[0], [2], [2], [1], [0, 1, 0, 2, 1, 1], [1], [0]>} : vector<8x4x8xbf16>, vector<4x8x8xbf16>, vector<4x8x8xf32> -> vector<4x8x8xf32>
    %34 = tpu.transpose %33, [2, 0, 1] : vector<4x8x8xf32> -> vector<8x4x8xf32>
    "tpu.trace_stop"() : () -> ()
    %35 = vector.shape_cast %34 : vector<8x4x8xf32> to vector<8x32xf32>
    %36 = arith.truncf %35 : vector<8x32xf32> to vector<8x32xbf16>
    %c0_15 = arith.constant 0 : index
    %c0_16 = arith.constant 0 : index
    %37 = vector.load %arg6[%c0_15, %c0_16] : memref<32x32xbf16, #tpu.memory_space<vmem>>, vector<32x32xbf16>
    %cst_17 = arith.constant dense<0.000000e+00> : vector<8x32xf32>
    %38 = tpu.matmul %36, %37, %cst_17 {dimension_numbers = #tpu.dot_dimension_numbers<[1], [0], [0], [1], [0, 0, 1, 1], [], []>} : vector<8x32xbf16>, vector<32x32xbf16>, vector<8x32xf32> -> vector<8x32xf32>
    %c0_18 = arith.constant 0 : index
    %c0_19 = arith.constant 0 : index
    %39 = vector.load %arg7[%c0_18, %c0_19] : memref<1x32xf32, #tpu.memory_space<vmem>>, vector<1x32xf32>
    %40 = vector.broadcast %39 : vector<1x32xf32> to vector<8x32xf32>
    %41 = arith.addf %38, %40 : vector<8x32xf32>
    %42 = arith.addf %7, %41 : vector<8x32xf32>
    %c0_20 = arith.constant 0 : index
    %c0_21 = arith.constant 0 : index
    %43 = vector.load %arg8[%c0_20, %c0_21] : memref<1x32xf32, #tpu.memory_space<vmem>>, vector<1x32xf32>
    %c0_22 = arith.constant 0 : index
    %c0_23 = arith.constant 0 : index
    %44 = vector.load %arg9[%c0_22, %c0_23] : memref<1x32xf32, #tpu.memory_space<vmem>>, vector<1x32xf32>
    %cst_24 = arith.constant dense<0.000000e+00> : vector<8xf32>
    %45 = vector.multi_reduction <add>, %42, %cst_24 [1] : vector<8x32xf32> to vector<8xf32>
    %46 = vector.shape_cast %45 : vector<8xf32> to vector<8x1xf32>
    %cst_25 = arith.constant 3.200000e+01 : f32
    %47 = vector.broadcast %cst_25 : f32 to vector<8x1xf32>
    %48 = arith.divf %46, %47 : vector<8x1xf32>
    %49 = vector.broadcast %48 : vector<8x1xf32> to vector<8x32xf32>
    %50 = arith.subf %42, %49 : vector<8x32xf32>
    %51 = arith.mulf %50, %50 : vector<8x32xf32>
    %cst_26 = arith.constant dense<0.000000e+00> : vector<8xf32>
    %52 = vector.multi_reduction <add>, %51, %cst_26 [1] : vector<8x32xf32> to vector<8xf32>
    %53 = vector.shape_cast %52 : vector<8xf32> to vector<8x1xf32>
    %cst_27 = arith.constant 3.200000e+01 : f32
    %54 = vector.broadcast %cst_27 : f32 to vector<8x1xf32>
    %55 = arith.divf %53, %54 : vector<8x1xf32>
    %cst_28 = arith.constant 9.99999974E-6 : f32
    %56 = vector.broadcast %cst_28 : f32 to vector<8x1xf32>
    %57 = arith.addf %55, %56 : vector<8x1xf32>
    %58 = math.rsqrt %57 : vector<8x1xf32>
    %59 = vector.broadcast %58 : vector<8x1xf32> to vector<8x32xf32>
    %60 = arith.mulf %50, %59 : vector<8x32xf32>
    %61 = vector.broadcast %43 : vector<1x32xf32> to vector<8x32xf32>
    %62 = arith.mulf %60, %61 : vector<8x32xf32>
    %63 = vector.broadcast %44 : vector<1x32xf32> to vector<8x32xf32>
    %64 = arith.addf %62, %63 : vector<8x32xf32>
    %65 = arith.truncf %64 : vector<8x32xf32> to vector<8x32xbf16>
    %c0_29 = arith.constant 0 : index
    %c0_30 = arith.constant 0 : index
    %66 = vector.load %arg10[%c0_29, %c0_30] : memref<32x64xbf16, #tpu.memory_space<vmem>>, vector<32x64xbf16>
    %cst_31 = arith.constant dense<0.000000e+00> : vector<8x64xf32>
    %67 = tpu.matmul %65, %66, %cst_31 {dimension_numbers = #tpu.dot_dimension_numbers<[1], [0], [0], [1], [0, 0, 1, 1], [], []>} : vector<8x32xbf16>, vector<32x64xbf16>, vector<8x64xf32> -> vector<8x64xf32>
    %c0_32 = arith.constant 0 : index
    %c0_33 = arith.constant 0 : index
    %68 = vector.load %arg11[%c0_32, %c0_33] : memref<1x64xf32, #tpu.memory_space<vmem>>, vector<1x64xf32>
    %69 = vector.broadcast %68 : vector<1x64xf32> to vector<8x64xf32>
    %70 = arith.addf %67, %69 : vector<8x64xf32>
    %cst_34 = arith.constant 0.000000e+00 : f32
    %71 = vector.broadcast %cst_34 : f32 to vector<8x64xf32>
    %72 = arith.maximumf %70, %71 : vector<8x64xf32>
    %73 = arith.truncf %72 : vector<8x64xf32> to vector<8x64xbf16>
    %c0_35 = arith.constant 0 : index
    %c0_36 = arith.constant 0 : index
    %74 = vector.load %arg12[%c0_35, %c0_36] : memref<64x32xbf16, #tpu.memory_space<vmem>>, vector<64x32xbf16>
    %cst_37 = arith.constant dense<0.000000e+00> : vector<8x32xf32>
    %75 = tpu.matmul %73, %74, %cst_37 {dimension_numbers = #tpu.dot_dimension_numbers<[1], [0], [0], [1], [0, 0, 1, 1], [], []>} : vector<8x64xbf16>, vector<64x32xbf16>, vector<8x32xf32> -> vector<8x32xf32>
    %c0_38 = arith.constant 0 : index
    %c0_39 = arith.constant 0 : index
    %76 = vector.load %arg13[%c0_38, %c0_39] : memref<1x32xf32, #tpu.memory_space<vmem>>, vector<1x32xf32>
    %77 = vector.broadcast %76 : vector<1x32xf32> to vector<8x32xf32>
    %78 = arith.addf %75, %77 : vector<8x32xf32>
    %79 = arith.addf %64, %78 : vector<8x32xf32>
    %c0_40 = arith.constant 0 : index
    %c0_41 = arith.constant 0 : index
    %80 = vector.load %arg14[%c0_40, %c0_41] : memref<1x32xf32, #tpu.memory_space<vmem>>, vector<1x32xf32>
    %c0_42 = arith.constant 0 : index
    %c0_43 = arith.constant 0 : index
    %81 = vector.load %arg15[%c0_42, %c0_43] : memref<1x32xf32, #tpu.memory_space<vmem>>, vector<1x32xf32>
    %cst_44 = arith.constant dense<0.000000e+00> : vector<8xf32>
    %82 = vector.multi_reduction <add>, %79, %cst_44 [1] : vector<8x32xf32> to vector<8xf32>
    %83 = vector.shape_cast %82 : vector<8xf32> to vector<8x1xf32>
    %cst_45 = arith.constant 3.200000e+01 : f32
    %84 = vector.broadcast %cst_45 : f32 to vector<8x1xf32>
    %85 = arith.divf %83, %84 : vector<8x1xf32>
    %86 = vector.broadcast %85 : vector<8x1xf32> to vector<8x32xf32>
    %87 = arith.subf %79, %86 : vector<8x32xf32>
    %88 = arith.mulf %87, %87 : vector<8x32xf32>
    %cst_46 = arith.constant dense<0.000000e+00> : vector<8xf32>
    %89 = vector.multi_reduction <add>, %88, %cst_46 [1] : vector<8x32xf32> to vector<8xf32>
    %90 = vector.shape_cast %89 : vector<8xf32> to vector<8x1xf32>
    %cst_47 = arith.constant 3.200000e+01 : f32
    %91 = vector.broadcast %cst_47 : f32 to vector<8x1xf32>
    %92 = arith.divf %90, %91 : vector<8x1xf32>
    %cst_48 = arith.constant 9.99999974E-6 : f32
    %93 = vector.broadcast %cst_48 : f32 to vector<8x1xf32>
    %94 = arith.addf %92, %93 : vector<8x1xf32>
    %95 = math.rsqrt %94 : vector<8x1xf32>
    %96 = vector.broadcast %95 : vector<8x1xf32> to vector<8x32xf32>
    %97 = arith.mulf %87, %96 : vector<8x32xf32>
    %98 = vector.broadcast %80 : vector<1x32xf32> to vector<8x32xf32>
    %99 = arith.mulf %97, %98 : vector<8x32xf32>
    %100 = vector.broadcast %81 : vector<1x32xf32> to vector<8x32xf32>
    %101 = arith.addf %99, %100 : vector<8x32xf32>
    %c0_49 = arith.constant 0 : index
    %c0_50 = arith.constant 0 : index
    %c0_51 = arith.constant 0 : index
    %102 = vector.load %arg16[%c0_49, %c0_50, %c0_51] : memref<1x8x32xf32, #tpu.memory_space<vmem>>, vector<1x8x32xf32>
    %103 = vector.shape_cast %102 : vector<1x8x32xf32> to vector<8x32xf32>
    %104 = vector.shape_cast %101 : vector<8x32xf32> to vector<1x8x32xf32>
    tpu.vector_store %arg16[%c0_49, %c0_50, %c0_51], %104 {strides = array<i32>} : memref<1x8x32xf32, #tpu.memory_space<vmem>>, vector<1x8x32xf32>,
    return
  }
  func.func @transform_0(%arg0: i32) -> (i32, i32, i32) {
    %c0_i32 = arith.constant 0 : i32
    %c0_i32_0 = arith.constant 0 : i32
    %c0_i32_1 = arith.constant 0 : i32
    return %arg0, %c0_i32, %c0_i32_0 : i32, i32, i32
  }
  func.func @transform_1(%arg0: i32) -> (i32, i32) {
    %c0_i32 = arith.constant 0 : i32
    %c0_i32_0 = arith.constant 0 : i32
    %c0_i32_1 = arith.constant 0 : i32
    return %c0_i32, %c0_i32_0 : i32, i32
  }
  func.func @transform_2(%arg0: i32) -> (i32, i32) {
    %c0_i32 = arith.constant 0 : i32
    %c0_i32_0 = arith.constant 0 : i32
    %c0_i32_1 = arith.constant 0 : i32
    return %c0_i32, %c0_i32_0 : i32, i32
  }
  func.func @transform_3(%arg0: i32) -> (i32, i32) {
    %c0_i32 = arith.constant 0 : i32
    %c0_i32_0 = arith.constant 0 : i32
    %c0_i32_1 = arith.constant 0 : i32
    return %c0_i32, %c0_i32_0 : i32, i32
  }
  func.func @transform_4(%arg0: i32) -> (i32, i32) {
    %c0_i32 = arith.constant 0 : i32
    %c0_i32_0 = arith.constant 0 : i32
    %c0_i32_1 = arith.constant 0 : i32
    return %c0_i32, %c0_i32_0 : i32, i32
  }
  func.func @transform_5(%arg0: i32) -> (i32, i32) {
    %c0_i32 = arith.constant 0 : i32
    %c0_i32_0 = arith.constant 0 : i32
    %c0_i32_1 = arith.constant 0 : i32
    return %c0_i32, %c0_i32_0 : i32, i32
  }
  func.func @transform_6(%arg0: i32) -> (i32, i32) {
    %c0_i32 = arith.constant 0 : i32
    %c0_i32_0 = arith.constant 0 : i32
    %c0_i32_1 = arith.constant 0 : i32
    return %c0_i32, %c0_i32_0 : i32, i32
  }
  func.func @transform_7(%arg0: i32) -> (i32, i32) {
    %c0_i32 = arith.constant 0 : i32
    %c0_i32_0 = arith.constant 0 : i32
    %c0_i32_1 = arith.constant 0 : i32
    return %c0_i32, %c0_i32_0 : i32, i32
  }
  func.func @transform_8(%arg0: i32) -> (i32, i32) {
    %c0_i32 = arith.constant 0 : i32
    %c0_i32_0 = arith.constant 0 : i32
    %c0_i32_1 = arith.constant 0 : i32
    return %c0_i32, %c0_i32_0 : i32, i32
  }
  func.func @transform_9(%arg0: i32) -> (i32, i32) {
    %c0_i32 = arith.constant 0 : i32
    %c0_i32_0 = arith.constant 0 : i32
    %c0_i32_1 = arith.constant 0 : i32
    return %c0_i32, %c0_i32_0 : i32, i32
  }
  func.func @transform_10(%arg0: i32) -> (i32, i32) {
    %c0_i32 = arith.constant 0 : i32
    %c0_i32_0 = arith.constant 0 : i32
    %c0_i32_1 = arith.constant 0 : i32
    return %c0_i32, %c0_i32_0 : i32, i32
  }
  func.func @transform_11(%arg0: i32) -> (i32, i32) {
    %c0_i32 = arith.constant 0 : i32
    %c0_i32_0 = arith.constant 0 : i32
    %c0_i32_1 = arith.constant 0 : i32
    return %c0_i32, %c0_i32_0 : i32, i32
  }
  func.func @transform_12(%arg0: i32) -> (i32, i32) {
    %c0_i32 = arith.constant 0 : i32
    %c0_i32_0 = arith.constant 0 : i32
    %c0_i32_1 = arith.constant 0 : i32
    return %c0_i32, %c0_i32_0 : i32, i32
  }
  func.func @transform_13(%arg0: i32) -> (i32, i32) {
    %c0_i32 = arith.constant 0 : i32
    %c0_i32_0 = arith.constant 0 : i32
    %c0_i32_1 = arith.constant 0 : i32
    return %c0_i32, %c0_i32_0 : i32, i32
  }
  func.func @transform_14(%arg0: i32) -> (i32, i32) {
    %c0_i32 = arith.constant 0 : i32
    %c0_i32_0 = arith.constant 0 : i32
    %c0_i32_1 = arith.constant 0 : i32
    return %c0_i32, %c0_i32_0 : i32, i32
  }
  func.func @transform_15(%arg0: i32) -> (i32, i32, i32) {
    %c0_i32 = arith.constant 0 : i32
    %c0_i32_0 = arith.constant 0 : i32
    %c0_i32_1 = arith.constant 0 : i32
    return %arg0, %c0_i32, %c0_i32_0 : i32, i32, i32
  }
}

module attributes {stable_mosaic.version = 11 : i64} {
  func.func @_encoder_layer_kernel(%arg0: i32, %arg1: memref<1x8x32xf32, #tpu.memory_space<vmem>>, %arg2: memref<32x96xbf16, #tpu.memory_space<vmem>>, %arg3: memref<1x96xf32, #tpu.memory_space<vmem>>, %arg4: memref<32x32xbf16, #tpu.memory_space<vmem>>, %arg5: memref<1x32xf32, #tpu.memory_space<vmem>>, %arg6: memref<1x32xf32, #tpu.memory_space<vmem>>, %arg7: memref<1x32xf32, #tpu.memory_space<vmem>>, %arg8: memref<32x64xbf16, #tpu.memory_space<vmem>>, %arg9: memref<1x64xf32, #tpu.memory_space<vmem>>, %arg10: memref<64x32xbf16, #tpu.memory_space<vmem>>, %arg11: memref<1x32xf32, #tpu.memory_space<vmem>>, %arg12: memref<1x32xf32, #tpu.memory_space<vmem>>, %arg13: memref<1x32xf32, #tpu.memory_space<vmem>>, %arg14: memref<32x48xbf16, #tpu.memory_space<vmem>>, %arg15: memref<1x48xf32, #tpu.memory_space<vmem>>, %arg16: memref<1x8x48xf32, #tpu.memory_space<vmem>>) attributes {dimension_semantics = [#tpu.dimension_semantics<parallel>], iteration_bounds = array<i64: 2>, scalar_prefetch = 0 : i64, scratch_operands = 0 : i64, tpu.core_type = #tpu.core_type<tc>, window_params = [{transform_indices = @transform_0, window_bounds = array<i64: 1, 8, 32>}, {pipeline_mode = #tpu.pipeline_mode<synchronous>, transform_indices = @transform_1, window_bounds = array<i64: 32, 96>}, {pipeline_mode = #tpu.pipeline_mode<synchronous>, transform_indices = @transform_2, window_bounds = array<i64: 1, 96>}, {pipeline_mode = #tpu.pipeline_mode<synchronous>, transform_indices = @transform_3, window_bounds = array<i64: 32, 32>}, {pipeline_mode = #tpu.pipeline_mode<synchronous>, transform_indices = @transform_4, window_bounds = array<i64: 1, 32>}, {pipeline_mode = #tpu.pipeline_mode<synchronous>, transform_indices = @transform_5, window_bounds = array<i64: 1, 32>}, {pipeline_mode = #tpu.pipeline_mode<synchronous>, transform_indices = @transform_6, window_bounds = array<i64: 1, 32>}, {pipeline_mode = #tpu.pipeline_mode<synchronous>, transform_indices = @transform_7, window_bounds = array<i64: 32, 64>}, {pipeline_mode = #tpu.pipeline_mode<synchronous>, transform_indices = @transform_8, window_bounds = array<i64: 1, 64>}, {pipeline_mode = #tpu.pipeline_mode<synchronous>, transform_indices = @transform_9, window_bounds = array<i64: 64, 32>}, {pipeline_mode = #tpu.pipeline_mode<synchronous>, transform_indices = @transform_10, window_bounds = array<i64: 1, 32>}, {pipeline_mode = #tpu.pipeline_mode<synchronous>, transform_indices = @transform_11, window_bounds = array<i64: 1, 32>}, {pipeline_mode = #tpu.pipeline_mode<synchronous>, transform_indices = @transform_12, window_bounds = array<i64: 1, 32>}, {pipeline_mode = #tpu.pipeline_mode<synchronous>, transform_indices = @transform_13, window_bounds = array<i64: 32, 48>}, {pipeline_mode = #tpu.pipeline_mode<synchronous>, transform_indices = @transform_14, window_bounds = array<i64: 1, 48>}, {transform_indices = @transform_15, window_bounds = array<i64: 1, 8, 48>}]} {
    %c0 = arith.constant 0 : index
    %c0_0 = arith.constant 0 : index
    %c0_1 = arith.constant 0 : index
    %0 = vector.load %arg1[%c0, %c0_0, %c0_1] : memref<1x8x32xf32, #tpu.memory_space<vmem>>, vector<1x8x32xf32>
    %1 = vector.shape_cast %0 : vector<1x8x32xf32> to vector<8x32xf32>
    %2 = arith.truncf %1 : vector<8x32xf32> to vector<8x32xbf16>
    %c0_2 = arith.constant 0 : index
    %c0_3 = arith.constant 0 : index
    %3 = vector.load %arg2[%c0_2, %c0_3] : memref<32x96xbf16, #tpu.memory_space<vmem>>, vector<32x96xbf16>
    %cst = arith.constant dense<0.000000e+00> : vector<8x96xf32>
    %4 = tpu.matmul %2, %3, %cst {dimension_numbers = #tpu.dot_dimension_numbers<[1], [0], [0], [1], [0, 0, 1, 1], [], []>} : vector<8x32xbf16>, vector<32x96xbf16>, vector<8x96xf32> -> vector<8x96xf32>
    %c0_4 = arith.constant 0 : index
    %c0_5 = arith.constant 0 : index
    %5 = vector.load %arg3[%c0_4, %c0_5] : memref<1x96xf32, #tpu.memory_space<vmem>>, vector<1x96xf32>
    %6 = vector.broadcast %5 : vector<1x96xf32> to vector<8x96xf32>
    %7 = arith.addf %4, %6 : vector<8x96xf32>
    %8 = arith.truncf %7 : vector<8x96xf32> to vector<8x96xbf16>
    %9 = vector.extract_strided_slice %8 {offsets = [0, 0], sizes = [8, 32], strides = [1, 1]} : vector<8x96xbf16> to vector<8x32xbf16>
    %10 = vector.shape_cast %9 : vector<8x32xbf16> to vector<8x4x8xbf16>
    %11 = vector.extract_strided_slice %8 {offsets = [0, 32], sizes = [8, 32], strides = [1, 1]} : vector<8x96xbf16> to vector<8x32xbf16>
    %12 = vector.shape_cast %11 : vector<8x32xbf16> to vector<8x4x8xbf16>
    %13 = vector.extract_strided_slice %8 {offsets = [0, 64], sizes = [8, 32], strides = [1, 1]} : vector<8x96xbf16> to vector<8x32xbf16>
    %14 = vector.shape_cast %13 : vector<8x32xbf16> to vector<8x4x8xbf16>
    "tpu.trace_start"() <{level = 10 : i32, message = "qhd,khd->hqk"}> : () -> ()
    %cst_6 = arith.constant dense<0.000000e+00> : vector<4x8x8xf32>
    %15 = tpu.matmul %10, %12, %cst_6 {dimension_numbers = #tpu.dot_dimension_numbers<[2], [2], [0], [0], [0, 1, 0, 0, 1, 0], [1], [1]>} : vector<8x4x8xbf16>, vector<8x4x8xbf16>, vector<4x8x8xf32> -> vector<4x8x8xf32>
    "tpu.trace_stop"() : () -> ()
    %cst_7 = arith.constant dense<0xFF800000> : vector<4x8xf32>
    %16 = vector.multi_reduction <maximumf>, %15, %cst_7 [2] : vector<4x8x8xf32> to vector<4x8xf32>
    %17 = vector.shape_cast %16 : vector<4x8xf32> to vector<4x8x1xf32>
    %18 = vector.broadcast %17 : vector<4x8x1xf32> to vector<4x8x8xf32>
    %19 = arith.subf %15, %18 : vector<4x8x8xf32>
    %20 = math.exp %19 : vector<4x8x8xf32>
    %cst_8 = arith.constant dense<0.000000e+00> : vector<4x8xf32>
    %21 = vector.multi_reduction <add>, %20, %cst_8 [2] : vector<4x8x8xf32> to vector<4x8xf32>
    %22 = vector.shape_cast %21 : vector<4x8xf32> to vector<4x8x1xf32>
    %23 = tpu.reciprocal %22 {approx = true} : vector<4x8x1xf32> -> vector<4x8x1xf32>
    %24 = vector.broadcast %23 : vector<4x8x1xf32> to vector<4x8x8xf32>
    %25 = arith.mulf %20, %24 : vector<4x8x8xf32>
    %26 = arith.truncf %25 : vector<4x8x8xf32> to vector<4x8x8xbf16>
    "tpu.trace_start"() <{level = 10 : i32, message = "hqk,khd->qhd"}> : () -> ()
    %cst_9 = arith.constant dense<0.000000e+00> : vector<4x8x8xf32>
    %27 = tpu.matmul %14, %26, %cst_9 {dimension_numbers = #tpu.dot_dimension_numbers<[0], [2], [2], [1], [0, 1, 0, 2, 1, 1], [1], [0]>} : vector<8x4x8xbf16>, vector<4x8x8xbf16>, vector<4x8x8xf32> -> vector<4x8x8xf32>
    %28 = tpu.transpose %27, [2, 0, 1] : vector<4x8x8xf32> -> vector<8x4x8xf32>
    "tpu.trace_stop"() : () -> ()
    %29 = vector.shape_cast %28 : vector<8x4x8xf32> to vector<8x32xf32>
    %30 = arith.truncf %29 : vector<8x32xf32> to vector<8x32xbf16>
    %c0_10 = arith.constant 0 : index
    %c0_11 = arith.constant 0 : index
    %31 = vector.load %arg4[%c0_10, %c0_11] : memref<32x32xbf16, #tpu.memory_space<vmem>>, vector<32x32xbf16>
    %cst_12 = arith.constant dense<0.000000e+00> : vector<8x32xf32>
    %32 = tpu.matmul %30, %31, %cst_12 {dimension_numbers = #tpu.dot_dimension_numbers<[1], [0], [0], [1], [0, 0, 1, 1], [], []>} : vector<8x32xbf16>, vector<32x32xbf16>, vector<8x32xf32> -> vector<8x32xf32>
    %c0_13 = arith.constant 0 : index
    %c0_14 = arith.constant 0 : index
    %33 = vector.load %arg5[%c0_13, %c0_14] : memref<1x32xf32, #tpu.memory_space<vmem>>, vector<1x32xf32>
    %34 = vector.broadcast %33 : vector<1x32xf32> to vector<8x32xf32>
    %35 = arith.addf %32, %34 : vector<8x32xf32>
    %36 = arith.addf %1, %35 : vector<8x32xf32>
    %c0_15 = arith.constant 0 : index
    %c0_16 = arith.constant 0 : index
    %37 = vector.load %arg6[%c0_15, %c0_16] : memref<1x32xf32, #tpu.memory_space<vmem>>, vector<1x32xf32>
    %c0_17 = arith.constant 0 : index
    %c0_18 = arith.constant 0 : index
    %38 = vector.load %arg7[%c0_17, %c0_18] : memref<1x32xf32, #tpu.memory_space<vmem>>, vector<1x32xf32>
    %cst_19 = arith.constant dense<0.000000e+00> : vector<8xf32>
    %39 = vector.multi_reduction <add>, %36, %cst_19 [1] : vector<8x32xf32> to vector<8xf32>
    %40 = vector.shape_cast %39 : vector<8xf32> to vector<8x1xf32>
    %cst_20 = arith.constant 3.200000e+01 : f32
    %41 = vector.broadcast %cst_20 : f32 to vector<8x1xf32>
    %42 = arith.divf %40, %41 : vector<8x1xf32>
    %43 = vector.broadcast %42 : vector<8x1xf32> to vector<8x32xf32>
    %44 = arith.subf %36, %43 : vector<8x32xf32>
    %45 = arith.mulf %44, %44 : vector<8x32xf32>
    %cst_21 = arith.constant dense<0.000000e+00> : vector<8xf32>
    %46 = vector.multi_reduction <add>, %45, %cst_21 [1] : vector<8x32xf32> to vector<8xf32>
    %47 = vector.shape_cast %46 : vector<8xf32> to vector<8x1xf32>
    %cst_22 = arith.constant 3.200000e+01 : f32
    %48 = vector.broadcast %cst_22 : f32 to vector<8x1xf32>
    %49 = arith.divf %47, %48 : vector<8x1xf32>
    %cst_23 = arith.constant 9.99999974E-6 : f32
    %50 = vector.broadcast %cst_23 : f32 to vector<8x1xf32>
    %51 = arith.addf %49, %50 : vector<8x1xf32>
    %52 = math.rsqrt %51 : vector<8x1xf32>
    %53 = vector.broadcast %52 : vector<8x1xf32> to vector<8x32xf32>
    %54 = arith.mulf %44, %53 : vector<8x32xf32>
    %55 = vector.broadcast %37 : vector<1x32xf32> to vector<8x32xf32>
    %56 = arith.mulf %54, %55 : vector<8x32xf32>
    %57 = vector.broadcast %38 : vector<1x32xf32> to vector<8x32xf32>
    %58 = arith.addf %56, %57 : vector<8x32xf32>
    %59 = arith.truncf %58 : vector<8x32xf32> to vector<8x32xbf16>
    %c0_24 = arith.constant 0 : index
    %c0_25 = arith.constant 0 : index
    %60 = vector.load %arg8[%c0_24, %c0_25] : memref<32x64xbf16, #tpu.memory_space<vmem>>, vector<32x64xbf16>
    %cst_26 = arith.constant dense<0.000000e+00> : vector<8x64xf32>
    %61 = tpu.matmul %59, %60, %cst_26 {dimension_numbers = #tpu.dot_dimension_numbers<[1], [0], [0], [1], [0, 0, 1, 1], [], []>} : vector<8x32xbf16>, vector<32x64xbf16>, vector<8x64xf32> -> vector<8x64xf32>
    %c0_27 = arith.constant 0 : index
    %c0_28 = arith.constant 0 : index
    %62 = vector.load %arg9[%c0_27, %c0_28] : memref<1x64xf32, #tpu.memory_space<vmem>>, vector<1x64xf32>
    %63 = vector.broadcast %62 : vector<1x64xf32> to vector<8x64xf32>
    %64 = arith.addf %61, %63 : vector<8x64xf32>
    %cst_29 = arith.constant 0.000000e+00 : f32
    %65 = vector.broadcast %cst_29 : f32 to vector<8x64xf32>
    %66 = arith.maximumf %64, %65 : vector<8x64xf32>
    %67 = arith.truncf %66 : vector<8x64xf32> to vector<8x64xbf16>
    %c0_30 = arith.constant 0 : index
    %c0_31 = arith.constant 0 : index
    %68 = vector.load %arg10[%c0_30, %c0_31] : memref<64x32xbf16, #tpu.memory_space<vmem>>, vector<64x32xbf16>
    %cst_32 = arith.constant dense<0.000000e+00> : vector<8x32xf32>
    %69 = tpu.matmul %67, %68, %cst_32 {dimension_numbers = #tpu.dot_dimension_numbers<[1], [0], [0], [1], [0, 0, 1, 1], [], []>} : vector<8x64xbf16>, vector<64x32xbf16>, vector<8x32xf32> -> vector<8x32xf32>
    %c0_33 = arith.constant 0 : index
    %c0_34 = arith.constant 0 : index
    %70 = vector.load %arg11[%c0_33, %c0_34] : memref<1x32xf32, #tpu.memory_space<vmem>>, vector<1x32xf32>
    %71 = vector.broadcast %70 : vector<1x32xf32> to vector<8x32xf32>
    %72 = arith.addf %69, %71 : vector<8x32xf32>
    %73 = arith.addf %58, %72 : vector<8x32xf32>
    %c0_35 = arith.constant 0 : index
    %c0_36 = arith.constant 0 : index
    %74 = vector.load %arg12[%c0_35, %c0_36] : memref<1x32xf32, #tpu.memory_space<vmem>>, vector<1x32xf32>
    %c0_37 = arith.constant 0 : index
    %c0_38 = arith.constant 0 : index
    %75 = vector.load %arg13[%c0_37, %c0_38] : memref<1x32xf32, #tpu.memory_space<vmem>>, vector<1x32xf32>
    %cst_39 = arith.constant dense<0.000000e+00> : vector<8xf32>
    %76 = vector.multi_reduction <add>, %73, %cst_39 [1] : vector<8x32xf32> to vector<8xf32>
    %77 = vector.shape_cast %76 : vector<8xf32> to vector<8x1xf32>
    %cst_40 = arith.constant 3.200000e+01 : f32
    %78 = vector.broadcast %cst_40 : f32 to vector<8x1xf32>
    %79 = arith.divf %77, %78 : vector<8x1xf32>
    %80 = vector.broadcast %79 : vector<8x1xf32> to vector<8x32xf32>
    %81 = arith.subf %73, %80 : vector<8x32xf32>
    %82 = arith.mulf %81, %81 : vector<8x32xf32>
    %cst_41 = arith.constant dense<0.000000e+00> : vector<8xf32>
    %83 = vector.multi_reduction <add>, %82, %cst_41 [1] : vector<8x32xf32> to vector<8xf32>
    %84 = vector.shape_cast %83 : vector<8xf32> to vector<8x1xf32>
    %cst_42 = arith.constant 3.200000e+01 : f32
    %85 = vector.broadcast %cst_42 : f32 to vector<8x1xf32>
    %86 = arith.divf %84, %85 : vector<8x1xf32>
    %cst_43 = arith.constant 9.99999974E-6 : f32
    %87 = vector.broadcast %cst_43 : f32 to vector<8x1xf32>
    %88 = arith.addf %86, %87 : vector<8x1xf32>
    %89 = math.rsqrt %88 : vector<8x1xf32>
    %90 = vector.broadcast %89 : vector<8x1xf32> to vector<8x32xf32>
    %91 = arith.mulf %81, %90 : vector<8x32xf32>
    %92 = vector.broadcast %74 : vector<1x32xf32> to vector<8x32xf32>
    %93 = arith.mulf %91, %92 : vector<8x32xf32>
    %94 = vector.broadcast %75 : vector<1x32xf32> to vector<8x32xf32>
    %95 = arith.addf %93, %94 : vector<8x32xf32>
    %96 = arith.truncf %95 : vector<8x32xf32> to vector<8x32xbf16>
    %c0_44 = arith.constant 0 : index
    %c0_45 = arith.constant 0 : index
    %97 = vector.load %arg14[%c0_44, %c0_45] : memref<32x48xbf16, #tpu.memory_space<vmem>>, vector<32x48xbf16>
    %cst_46 = arith.constant dense<0.000000e+00> : vector<8x48xf32>
    %98 = tpu.matmul %96, %97, %cst_46 {dimension_numbers = #tpu.dot_dimension_numbers<[1], [0], [0], [1], [0, 0, 1, 1], [], []>} : vector<8x32xbf16>, vector<32x48xbf16>, vector<8x48xf32> -> vector<8x48xf32>
    %c0_47 = arith.constant 0 : index
    %c0_48 = arith.constant 0 : index
    %99 = vector.load %arg15[%c0_47, %c0_48] : memref<1x48xf32, #tpu.memory_space<vmem>>, vector<1x48xf32>
    %100 = vector.broadcast %99 : vector<1x48xf32> to vector<8x48xf32>
    %101 = arith.addf %98, %100 : vector<8x48xf32>
    %c0_49 = arith.constant 0 : index
    %c0_50 = arith.constant 0 : index
    %c0_51 = arith.constant 0 : index
    %102 = vector.load %arg16[%c0_49, %c0_50, %c0_51] : memref<1x8x48xf32, #tpu.memory_space<vmem>>, vector<1x8x48xf32>
    %103 = vector.shape_cast %102 : vector<1x8x48xf32> to vector<8x48xf32>
    %104 = vector.shape_cast %101 : vector<8x48xf32> to vector<1x8x48xf32>
    tpu.vector_store %arg16[%c0_49, %c0_50, %c0_51], %104 {strides = array<i32>} : memref<1x8x48xf32, #tpu.memory_space<vmem>>, vector<1x8x48xf32>,
    return
  }
  func.func @transform_0(%arg0: i32) -> (i32, i32, i32) {
    %c0_i32 = arith.constant 0 : i32
    %c0_i32_0 = arith.constant 0 : i32
    %c0_i32_1 = arith.constant 0 : i32
    return %arg0, %c0_i32, %c0_i32_0 : i32, i32, i32
  }
  func.func @transform_1(%arg0: i32) -> (i32, i32) {
    %c0_i32 = arith.constant 0 : i32
    %c0_i32_0 = arith.constant 0 : i32
    %c0_i32_1 = arith.constant 0 : i32
    return %c0_i32, %c0_i32_0 : i32, i32
  }
  func.func @transform_2(%arg0: i32) -> (i32, i32) {
    %c0_i32 = arith.constant 0 : i32
    %c0_i32_0 = arith.constant 0 : i32
    %c0_i32_1 = arith.constant 0 : i32
    return %c0_i32, %c0_i32_0 : i32, i32
  }
  func.func @transform_3(%arg0: i32) -> (i32, i32) {
    %c0_i32 = arith.constant 0 : i32
    %c0_i32_0 = arith.constant 0 : i32
    %c0_i32_1 = arith.constant 0 : i32
    return %c0_i32, %c0_i32_0 : i32, i32
  }
  func.func @transform_4(%arg0: i32) -> (i32, i32) {
    %c0_i32 = arith.constant 0 : i32
    %c0_i32_0 = arith.constant 0 : i32
    %c0_i32_1 = arith.constant 0 : i32
    return %c0_i32, %c0_i32_0 : i32, i32
  }
  func.func @transform_5(%arg0: i32) -> (i32, i32) {
    %c0_i32 = arith.constant 0 : i32
    %c0_i32_0 = arith.constant 0 : i32
    %c0_i32_1 = arith.constant 0 : i32
    return %c0_i32, %c0_i32_0 : i32, i32
  }
  func.func @transform_6(%arg0: i32) -> (i32, i32) {
    %c0_i32 = arith.constant 0 : i32
    %c0_i32_0 = arith.constant 0 : i32
    %c0_i32_1 = arith.constant 0 : i32
    return %c0_i32, %c0_i32_0 : i32, i32
  }
  func.func @transform_7(%arg0: i32) -> (i32, i32) {
    %c0_i32 = arith.constant 0 : i32
    %c0_i32_0 = arith.constant 0 : i32
    %c0_i32_1 = arith.constant 0 : i32
    return %c0_i32, %c0_i32_0 : i32, i32
  }
  func.func @transform_8(%arg0: i32) -> (i32, i32) {
    %c0_i32 = arith.constant 0 : i32
    %c0_i32_0 = arith.constant 0 : i32
    %c0_i32_1 = arith.constant 0 : i32
    return %c0_i32, %c0_i32_0 : i32, i32
  }
  func.func @transform_9(%arg0: i32) -> (i32, i32) {
    %c0_i32 = arith.constant 0 : i32
    %c0_i32_0 = arith.constant 0 : i32
    %c0_i32_1 = arith.constant 0 : i32
    return %c0_i32, %c0_i32_0 : i32, i32
  }
  func.func @transform_10(%arg0: i32) -> (i32, i32) {
    %c0_i32 = arith.constant 0 : i32
    %c0_i32_0 = arith.constant 0 : i32
    %c0_i32_1 = arith.constant 0 : i32
    return %c0_i32, %c0_i32_0 : i32, i32
  }
  func.func @transform_11(%arg0: i32) -> (i32, i32) {
    %c0_i32 = arith.constant 0 : i32
    %c0_i32_0 = arith.constant 0 : i32
    %c0_i32_1 = arith.constant 0 : i32
    return %c0_i32, %c0_i32_0 : i32, i32
  }
  func.func @transform_12(%arg0: i32) -> (i32, i32) {
    %c0_i32 = arith.constant 0 : i32
    %c0_i32_0 = arith.constant 0 : i32
    %c0_i32_1 = arith.constant 0 : i32
    return %c0_i32, %c0_i32_0 : i32, i32
  }
  func.func @transform_13(%arg0: i32) -> (i32, i32) {
    %c0_i32 = arith.constant 0 : i32
    %c0_i32_0 = arith.constant 0 : i32
    %c0_i32_1 = arith.constant 0 : i32
    return %c0_i32, %c0_i32_0 : i32, i32
  }
  func.func @transform_14(%arg0: i32) -> (i32, i32) {
    %c0_i32 = arith.constant 0 : i32
    %c0_i32_0 = arith.constant 0 : i32
    %c0_i32_1 = arith.constant 0 : i32
    return %c0_i32, %c0_i32_0 : i32, i32
  }
  func.func @transform_15(%arg0: i32) -> (i32, i32, i32) {
    %c0_i32 = arith.constant 0 : i32
    %c0_i32_0 = arith.constant 0 : i32
    %c0_i32_1 = arith.constant 0 : i32
    return %arg0, %c0_i32, %c0_i32_0 : i32, i32, i32
  }
}

</mosaic_0001>

<llo_original>
// kernel: transformer_block_forward.3
$region0: #{transformer_block_forward.3}
  #allocation0 [shape = 'u32[]', space=smem, size = 0x4, offset = 0x4, fixed_abs, tag = 'smem constant byte address 0x4 - core index']
  #allocation1 [shape = 'u32[72,128]{1,0:T(1,128)}', space=vmem, size = 0x9000, scoped, tag = 'internal scratch']
  %s0 = inlined_call_operand.vmem [shape: f32[2,8,32], index: 0, kind: input, shape index: {}]
  %s1 = inlined_call_operand.vmem [shape: bf16[32,96], index: 1, kind: input, shape index: {}]
  %s2 = inlined_call_operand.hbm [shape: f32[1,96], index: 2, kind: input, shape index: {}]
  %s3 = inlined_call_operand.vmem [shape: bf16[32,32], index: 3, kind: input, shape index: {}]
  %s4 = inlined_call_operand.hbm [shape: f32[1,32], index: 4, kind: input, shape index: {}]
  %s5 = inlined_call_operand.hbm [shape: f32[1,32], index: 5, kind: input, shape index: {}]
  %s6 = inlined_call_operand.hbm [shape: f32[1,32], index: 6, kind: input, shape index: {}]
  %s7 = inlined_call_operand.vmem [shape: bf16[32,64], index: 7, kind: input, shape index: {}]
  %s8 = inlined_call_operand.hbm [shape: f32[1,64], index: 8, kind: input, shape index: {}]
  %s9 = inlined_call_operand.vmem [shape: bf16[64,32], index: 9, kind: input, shape index: {}]
  %s10 = inlined_call_operand.hbm [shape: f32[1,32], index: 10, kind: input, shape index: {}]
  %s11 = inlined_call_operand.hbm [shape: f32[1,32], index: 11, kind: input, shape index: {}]
  %s12 = inlined_call_operand.hbm [shape: f32[1,32], index: 12, kind: input, shape index: {}]
  %s13 = inlined_call_operand.vmem [shape: bf16[32,48], index: 13, kind: input, shape index: {}]
  %s14 = inlined_call_operand.vmem [shape: f32[1,48], index: 14, kind: input, shape index: {}]
  %s15 = inlined_call_operand.hbm [shape: f32[2,8,48], index: 15, kind: output, shape index: {}]
  %s16 = sld [smem:[#allocation0]]
  $region125: #{transformer_block_forward.3} parent=0
    _
  %s18 = ssub.s32 1, %s16
  %s19 = scalar_select 0, %s18, %s16
  $region1: #{transformer_block_forward.3} parent=0
    #allocation2 [shape = 'u8[512]{0}', space=vmem, size = 0x400, scoped, tag = 'input window, operand 2, single buffered']
    #allocation3 [shape = 's32[2]{0}', space=sflag, size = 0x8, scoped, tag = 'scoped memory for transformer_block_forward.3']
    #allocation4 [shape = 's32[2]{0}', space=sflag, size = 0x8, scoped, tag = 'scoped memory for transformer_block_forward.3']
    #allocation5 [shape = 'u8[512]{0}', space=vmem, size = 0x400, scoped, tag = 'input window, operand 4, single buffered']
    #allocation6 [shape = 's32[1]{0}', space=sflag, size = 0x4, scoped, tag = 'scoped memory for transformer_block_forward.3']
    #allocation7 [shape = 'u8[512]{0}', space=vmem, size = 0x400, scoped, tag = 'input window, operand 5, single buffered']
    #allocation8 [shape = 'u8[512]{0}', space=vmem, size = 0x400, scoped, tag = 'input window, operand 6, single buffered']
    #allocation9 [shape = 's32[1]{0}', space=sflag, size = 0x4, scoped, tag = 'scoped memory for transformer_block_forward.3']
    #allocation10 [shape = 'u8[512]{0}', space=vmem, size = 0x400, scoped, tag = 'input window, operand 8, single buffered']
    #allocation11 [shape = 'u8[512]{0}', space=vmem, size = 0x400, scoped, tag = 'input window, operand 10, single buffered']
    #allocation12 [shape = 's32[1]{0}', space=sflag, size = 0x4, scoped, tag = 'scoped memory for transformer_block_forward.3']
    #allocation13 [shape = 'u8[512]{0}', space=vmem, size = 0x400, scoped, tag = 'input window, operand 11, single buffered']
    #allocation14 [shape = 'u8[512]{0}', space=vmem, size = 0x400, scoped, tag = 'input window, operand 12, single buffered']
    #allocation15 [shape = 's32[1]{0}', space=sflag, size = 0x4, scoped, tag = 'scoped memory for transformer_block_forward.3']
    #allocation16 [shape = 'u8[8192]{0}', space=vmem, size = 0x2000, scoped, tag = 'output window, operand 0']
    %20 = vsyncpa [#allocation3], 0
    %21 = vsyncpa [#allocation6], 0
    %22 = vsyncpa [#allocation9], 0
    %23 = vsyncpa [#allocation12], 0
    %24 = vsyncpa [#allocation15], 0
    %25 = vsyncpa [#allocation4], 0
    %s26 = scalar_lea.sflag [#allocation4], 1
    %27 = vsyncpa %s26, 0
    loop: start=0, step=1, limit=4
    $region2: #{transformer_block_forward.3} parent=1 // loop_pre_header
      _
    $region3: #{transformer_block_forward.3} parent=1 // loop_header
      %s29 = sphi 0, %s33
      %p30 = scmp.ge.s32.totalorder %s29, 4
      %s39 = sphi 0, %s41
      %s42 = sphi 0, %s39
      %s43 = sphi 0, %s42
      %s59 = sphi 0, %s43
      %s63 = sphi 0, %s63
      %s65 = sphi 0, %s63
      %s66 = sphi 0, %s65
      %s80 = sphi 0, %s66
      %s84 = sphi 0, %s84
      %s86 = sphi 0, %s84
      %s87 = sphi 0, %s86
      %s101 = sphi 0, %s87
      %s105 = sphi 0, %s105
      %s107 = sphi 0, %s105
      %s108 = sphi 0, %s107
      %s122 = sphi 0, %s108
      %s126 = sphi 0, %s126
      %s128 = sphi 0, %s126
      %s129 = sphi 0, %s128
      %s143 = sphi 0, %s129
      %s147 = sphi 0, %s147
      %s149 = sphi 0, %s147
      %s150 = sphi 0, %s149
      %s164 = sphi 0, %s150
      %s168 = sphi 0, %s168
      %s170 = sphi 0, %s168
      %s171 = sphi 0, %s170
      %s185 = sphi 0, %s171
      %s189 = sphi 0, %s189
      %s191 = sphi 0, %s189
      %s192 = sphi 0, %s191
      %s206 = sphi 0, %s192
      %s210 = sphi 0, %s210
      %s212 = sphi 0, %s210
      %s213 = sphi 0, %s212
      %s227 = sphi 0, %s213
      %s231 = sphi 0, %s231
      %s233 = sphi 0, %s231
      %s234 = sphi 0, %s233
      %s248 = sphi 0, %s234
      %s252 = sphi 0, %s252
      %s254 = sphi 0, %s252
      %s255 = sphi 0, %s254
      %s269 = sphi 0, %s255
      %s273 = sphi 0, %s273
      %s275 = sphi 0, %s273
      %s276 = sphi 0, %s275
      %s290 = sphi 0, %s276
      %s294 = sphi 0, %s294
      %s296 = sphi 0, %s294
      %s297 = sphi 0, %s296
      %s311 = sphi 0, %s297
      %s315 = sphi 0, %s315
      %s317 = sphi 0, %s315
      %s318 = sphi 0, %s317
      %s332 = sphi 0, %s318
      %s336 = sphi 0, %s336
      %s338 = sphi 0, %s336
      %s339 = sphi 0, %s338
      %s353 = sphi 0, %s339
      %s359 = sphi 0, %s361
      %s362 = sphi 0, %s359
      %s363 = sphi 0, %s362
      %s379 = sphi 0, %s363
    $region4: #{transformer_block_forward.3} parent=1 // loop_header_branch
      %32 = sbr.rel (%p30) target = $region8
    $region5: #{transformer_block_forward.3} parent=1 // loop_body
      %s34 = ssub.s32 %s29, 1
      %s35 = ssub.s32 %s29, 2
      %s36 = sadd.s32 %s29, 1
      %s37 = ssub.s32 %s29, %s36
      %p38 = scmp.eq.s32.totalorder %s37, 0
      %s40 = sadd.s32 %s39, 1
      %s41 = scalar_select %p38, %s39, %s40
      %p44 = pneg %p38
      %p45 = scmp.eq.s32.totalorder %s29, 1
      %p46 = por %p44, %p45
      %p47 = scmp.ne.s32.totalorder %s39, %s42
      %p48 = scmp.eq.s32.totalorder %s29, 0
      %p49 = por %p47, %p48
      %p50 = scmp.ne.s32.totalorder %s39, %s42
      %p51 = scmp.eq.s32.totalorder %s34, 1
      %p52 = por %p50, %p51
      %p53 = scmp.ne.s32.totalorder %s42, %s43
      %p54 = scmp.eq.s32.totalorder %s34, 0
      %p55 = por %p53, %p54
      %p56 = scmp.ne.s32.totalorder %s42, %s43
      %p57 = scmp.eq.s32.totalorder %s35, 1
      %p58 = por %p56, %p57
      %p60 = scmp.ne.s32.totalorder %s43, %s59
      %p61 = scmp.eq.s32.totalorder %s35, 0
      %p62 = por %p60, %p61
      %s64 = sadd.s32 %s63, 1
      %p67 = scmp.eq.s32.totalorder %s29, 1
      %p68 = scmp.ne.s32.totalorder %s63, %s65
      %p69 = scmp.eq.s32.totalorder %s29, 0
      %p70 = por %p68, %p69
      %p71 = scmp.ne.s32.totalorder %s63, %s65
      %p72 = scmp.eq.s32.totalorder %s34, 1
      %p73 = por %p71, %p72
      %p74 = scmp.ne.s32.totalorder %s65, %s66
      %p75 = scmp.eq.s32.totalorder %s34, 0
      %p76 = por %p74, %p75
      %p77 = scmp.ne.s32.totalorder %s65, %s66
      %p78 = scmp.eq.s32.totalorder %s35, 1
      %p79 = por %p77, %p78
      %p81 = scmp.ne.s32.totalorder %s66, %s80
      %p82 = scmp.eq.s32.totalorder %s35, 0
      %p83 = por %p81, %p82
      %s85 = sadd.s32 %s84, 1
      %p88 = scmp.eq.s32.totalorder %s29, 1
      %p89 = scmp.ne.s32.totalorder %s84, %s86
      %p90 = scmp.eq.s32.totalorder %s29, 0
      %p91 = por %p89, %p90
      %p92 = scmp.ne.s32.totalorder %s84, %s86
      %p93 = scmp.eq.s32.totalorder %s34, 1
      %p94 = por %p92, %p93
      %p95 = scmp.ne.s32.totalorder %s86, %s87
      %p96 = scmp.eq.s32.totalorder %s34, 0
      %p97 = por %p95, %p96
      %p98 = scmp.ne.s32.totalorder %s86, %s87
      %p99 = scmp.eq.s32.totalorder %s35, 1
      %p100 = por %p98, %p99
      %p102 = scmp.ne.s32.totalorder %s87, %s101
      %p103 = scmp.eq.s32.totalorder %s35, 0
      %p104 = por %p102, %p103
      %s106 = sadd.s32 %s105, 1
      %p109 = scmp.eq.s32.totalorder %s29, 1
      %p110 = scmp.ne.s32.totalorder %s105, %s107
      %p111 = scmp.eq.s32.totalorder %s29, 0
      %p112 = por %p110, %p111
      %p113 = scmp.ne.s32.totalorder %s105, %s107
      %p114 = scmp.eq.s32.totalorder %s34, 1
      %p115 = por %p113, %p114
      %p116 = scmp.ne.s32.totalorder %s107, %s108
      %p117 = scmp.eq.s32.totalorder %s34, 0
      %p118 = por %p116, %p117
      %p119 = scmp.ne.s32.totalorder %s107, %s108
      %p120 = scmp.eq.s32.totalorder %s35, 1
      %p121 = por %p119, %p120
      %p123 = scmp.ne.s32.totalorder %s108, %s122
      %p124 = scmp.eq.s32.totalorder %s35, 0
      %p125 = por %p123, %p124
      %s127 = sadd.s32 %s126, 1
      %p130 = scmp.eq.s32.totalorder %s29, 1
      %p131 = scmp.ne.s32.totalorder %s126, %s128
      %p132 = scmp.eq.s32.totalorder %s29, 0
      %p133 = por %p131, %p132
      %p134 = scmp.ne.s32.totalorder %s126, %s128
      %p135 = scmp.eq.s32.totalorder %s34, 1
      %p136 = por %p134, %p135
      %p137 = scmp.ne.s32.totalorder %s128, %s129
      %p138 = scmp.eq.s32.totalorder %s34, 0
      %p139 = por %p137, %p138
      %p140 = scmp.ne.s32.totalorder %s128, %s129
      %p141 = scmp.eq.s32.totalorder %s35, 1
      %p142 = por %p140, %p141
      %p144 = scmp.ne.s32.totalorder %s129, %s143
      %p145 = scmp.eq.s32.totalorder %s35, 0
      %p146 = por %p144, %p145
      %s148 = sadd.s32 %s147, 1
      %p151 = scmp.eq.s32.totalorder %s29, 1
      %p152 = scmp.ne.s32.totalorder %s147, %s149
      %p153 = scmp.eq.s32.totalorder %s29, 0
      %p154 = por %p152, %p153
      %p155 = scmp.ne.s32.totalorder %s147, %s149
      %p156 = scmp.eq.s32.totalorder %s34, 1
      %p157 = por %p155, %p156
      %p158 = scmp.ne.s32.totalorder %s149, %s150
      %p159 = scmp.eq.s32.totalorder %s34, 0
      %p160 = por %p158, %p159
      %p161 = scmp.ne.s32.totalorder %s149, %s150
      %p162 = scmp.eq.s32.totalorder %s35, 1
      %p163 = por %p161, %p162
      %p165 = scmp.ne.s32.totalorder %s150, %s164
      %p166 = scmp.eq.s32.totalorder %s35, 0
      %p167 = por %p165, %p166
      %s169 = sadd.s32 %s168, 1
      %p172 = scmp.eq.s32.totalorder %s29, 1
      %p173 = scmp.ne.s32.totalorder %s168, %s170
      %p174 = scmp.eq.s32.totalorder %s29, 0
      %p175 = por %p173, %p174
      %p176 = scmp.ne.s32.totalorder %s168, %s170
      %p177 = scmp.eq.s32.totalorder %s34, 1
      %p178 = por %p176, %p177
      %p179 = scmp.ne.s32.totalorder %s170, %s171
      %p180 = scmp.eq.s32.totalorder %s34, 0
      %p181 = por %p179, %p180
      %p182 = scmp.ne.s32.totalorder %s170, %s171
      %p183 = scmp.eq.s32.totalorder %s35, 1
      %p184 = por %p182, %p183
      %p186 = scmp.ne.s32.totalorder %s171, %s185
      %p187 = scmp.eq.s32.totalorder %s35, 0
      %p188 = por %p186, %p187
      %s190 = sadd.s32 %s189, 1
      %p193 = scmp.eq.s32.totalorder %s29, 1
      %p194 = scmp.ne.s32.totalorder %s189, %s191
      %p195 = scmp.eq.s32.totalorder %s29, 0
      %p196 = por %p194, %p195
      %p197 = scmp.ne.s32.totalorder %s189, %s191
      %p198 = scmp.eq.s32.totalorder %s34, 1
      %p199 = por %p197, %p198
      %p200 = scmp.ne.s32.totalorder %s191, %s192
      %p201 = scmp.eq.s32.totalorder %s34, 0
      %p202 = por %p200, %p201
      %p203 = scmp.ne.s32.totalorder %s191, %s192
      %p204 = scmp.eq.s32.totalorder %s35, 1
      %p205 = por %p203, %p204
      %p207 = scmp.ne.s32.totalorder %s192, %s206
      %p208 = scmp.eq.s32.totalorder %s35, 0
      %p209 = por %p207, %p208
      %s211 = sadd.s32 %s210, 1
      %p214 = scmp.eq.s32.totalorder %s29, 1
      %p215 = scmp.ne.s32.totalorder %s210, %s212
      %p216 = scmp.eq.s32.totalorder %s29, 0
      %p217 = por %p215, %p216
      %p218 = scmp.ne.s32.totalorder %s210, %s212
      %p219 = scmp.eq.s32.totalorder %s34, 1
      %p220 = por %p218, %p219
      %p221 = scmp.ne.s32.totalorder %s212, %s213
      %p222 = scmp.eq.s32.totalorder %s34, 0
      %p223 = por %p221, %p222
      %p224 = scmp.ne.s32.totalorder %s212, %s213
      %p225 = scmp.eq.s32.totalorder %s35, 1
      %p226 = por %p224, %p225
      %p228 = scmp.ne.s32.totalorder %s213, %s227
      %p229 = scmp.eq.s32.totalorder %s35, 0
      %p230 = por %p228, %p229
      %s232 = sadd.s32 %s231, 1
      %p235 = scmp.eq.s32.totalorder %s29, 1
      %p236 = scmp.ne.s32.totalorder %s231, %s233
      %p237 = scmp.eq.s32.totalorder %s29, 0
      %p238 = por %p236, %p237
      %p239 = scmp.ne.s32.totalorder %s231, %s233
      %p240 = scmp.eq.s32.totalorder %s34, 1
      %p241 = por %p239, %p240
      %p242 = scmp.ne.s32.totalorder %s233, %s234
      %p243 = scmp.eq.s32.totalorder %s34, 0
      %p244 = por %p242, %p243
      %p245 = scmp.ne.s32.totalorder %s233, %s234
      %p246 = scmp.eq.s32.totalorder %s35, 1
      %p247 = por %p245, %p246
      %p249 = scmp.ne.s32.totalorder %s234, %s248
      %p250 = scmp.eq.s32.totalorder %s35, 0
      %p251 = por %p249, %p250
      %s253 = sadd.s32 %s252, 1
      %p256 = scmp.eq.s32.totalorder %s29, 1
      %p257 = scmp.ne.s32.totalorder %s252, %s254
      %p258 = scmp.eq.s32.totalorder %s29, 0
      %p259 = por %p257, %p258
      %p260 = scmp.ne.s32.totalorder %s252, %s254
      %p261 = scmp.eq.s32.totalorder %s34, 1
      %p262 = por %p260, %p261
      %p263 = scmp.ne.s32.totalorder %s254, %s255
      %p264 = scmp.eq.s32.totalorder %s34, 0
      %p265 = por %p263, %p264
      %p266 = scmp.ne.s32.totalorder %s254, %s255
      %p267 = scmp.eq.s32.totalorder %s35, 1
      %p268 = por %p266, %p267
      %p270 = scmp.ne.s32.totalorder %s255, %s269
      %p271 = scmp.eq.s32.totalorder %s35, 0
      %p272 = por %p270, %p271
      %s274 = sadd.s32 %s273, 1
      %p277 = scmp.eq.s32.totalorder %s29, 1
      %p278 = scmp.ne.s32.totalorder %s273, %s275
      %p279 = scmp.eq.s32.totalorder %s29, 0
      %p280 = por %p278, %p279
      %p281 = scmp.ne.s32.totalorder %s273, %s275
      %p282 = scmp.eq.s32.totalorder %s34, 1
      %p283 = por %p281, %p282
      %p284 = scmp.ne.s32.totalorder %s275, %s276
      %p285 = scmp.eq.s32.totalorder %s34, 0
      %p286 = por %p284, %p285
      %p287 = scmp.ne.s32.totalorder %s275, %s276
      %p288 = scmp.eq.s32.totalorder %s35, 1
      %p289 = por %p287, %p288
      %p291 = scmp.ne.s32.totalorder %s276, %s290
      %p292 = scmp.eq.s32.totalorder %s35, 0
      %p293 = por %p291, %p292
      %s295 = sadd.s32 %s294, 1
      %p298 = scmp.eq.s32.totalorder %s29, 1
      %p299 = scmp.ne.s32.totalorder %s294, %s296
      %p300 = scmp.eq.s32.totalorder %s29, 0
      %p301 = por %p299, %p300
      %p302 = scmp.ne.s32.totalorder %s294, %s296
      %p303 = scmp.eq.s32.totalorder %s34, 1
      %p304 = por %p302, %p303
      %p305 = scmp.ne.s32.totalorder %s296, %s297
      %p306 = scmp.eq.s32.totalorder %s34, 0
      %p307 = por %p305, %p306
      %p308 = scmp.ne.s32.totalorder %s296, %s297
      %p309 = scmp.eq.s32.totalorder %s35, 1
      %p310 = por %p308, %p309
      %p312 = scmp.ne.s32.totalorder %s297, %s311
      %p313 = scmp.eq.s32.totalorder %s35, 0
      %p314 = por %p312, %p313
      %s316 = sadd.s32 %s315, 1
      %p319 = scmp.eq.s32.totalorder %s29, 1
      %p320 = scmp.ne.s32.totalorder %s315, %s317
      %p321 = scmp.eq.s32.totalorder %s29, 0
      %p322 = por %p320, %p321
      %p323 = scmp.ne.s32.totalorder %s315, %s317
      %p324 = scmp.eq.s32.totalorder %s34, 1
      %p325 = por %p323, %p324
      %p326 = scmp.ne.s32.totalorder %s317, %s318
      %p327 = scmp.eq.s32.totalorder %s34, 0
      %p328 = por %p326, %p327
      %p329 = scmp.ne.s32.totalorder %s317, %s318
      %p330 = scmp.eq.s32.totalorder %s35, 1
      %p331 = por %p329, %p330
      %p333 = scmp.ne.s32.totalorder %s318, %s332
      %p334 = scmp.eq.s32.totalorder %s35, 0
      %p335 = por %p333, %p334
      %s337 = sadd.s32 %s336, 1
      %p340 = scmp.eq.s32.totalorder %s29, 1
      %p341 = scmp.ne.s32.totalorder %s336, %s338
      %p342 = scmp.eq.s32.totalorder %s29, 0
      %p343 = por %p341, %p342
      %p344 = scmp.ne.s32.totalorder %s336, %s338
      %p345 = scmp.eq.s32.totalorder %s34, 1
      %p346 = por %p344, %p345
      %p347 = scmp.ne.s32.totalorder %s338, %s339
      %p348 = scmp.eq.s32.totalorder %s34, 0
      %p349 = por %p347, %p348
      %p350 = scmp.ne.s32.totalorder %s338, %s339
      %p351 = scmp.eq.s32.totalorder %s35, 1
      %p352 = por %p350, %p351
      %p354 = scmp.ne.s32.totalorder %s339, %s353
      %p355 = scmp.eq.s32.totalorder %s35, 0
      %p356 = por %p354, %p355
      %s357 = ssub.s32 %s29, %s36
      %p358 = scmp.eq.s32.totalorder %s357, 0
      %s360 = sadd.s32 %s359, 1
      %s361 = scalar_select %p358, %s359, %s360
      %p364 = pneg %p358
      %p365 = scmp.eq.s32.totalorder %s29, 1
      %p366 = por %p364, %p365
      %p367 = scmp.ne.s32.totalorder %s359, %s362
      %p368 = scmp.eq.s32.totalorder %s29, 0
      %p369 = por %p367, %p368
      %p370 = scmp.ne.s32.totalorder %s359, %s362
      %p371 = scmp.eq.s32.totalorder %s34, 1
      %p372 = por %p370, %p371
      %p373 = scmp.ne.s32.totalorder %s362, %s363
      %p374 = scmp.eq.s32.totalorder %s34, 0
      %p375 = por %p373, %p374
      %p376 = scmp.ne.s32.totalorder %s362, %s363
      %p377 = scmp.eq.s32.totalorder %s35, 1
      %p378 = por %p376, %p377
      %p380 = scmp.ne.s32.totalorder %s363, %s379
      %p381 = scmp.eq.s32.totalorder %s35, 0
      %p382 = por %p380, %p381
      %p383 = scmp.le.s32.totalorder 1, %s29
      %p384 = scmp.lt.s32.totalorder %s29, 3
      %p385 = pnand %p383, %p384
      %p386 = pneg %p385
      // Predicated region
      $region9: #{transformer_block_forward.3} parent=5 // pred_check
        _
      $region10: #{transformer_block_forward.3} parent=5 // pred_check_branch
        %388 = sbr.rel (%p385) target = $region12
      $region11: #{transformer_block_forward.3} parent=5 // pred_region
        %s389 = ssub.s32 %s29, 1
        // Predicated region
        $region13: #{transformer_block_forward.3} parent=11 // pred_check
          %p390 = pneg %p76
        $region14: #{transformer_block_forward.3} parent=11 // pred_check_branch
          %392 = sbr.rel (%p390) target = $region16
        $region15: #{transformer_block_forward.3} parent=11 // pred_region
          _
        $region16: #{transformer_block_forward.3} parent=11 // pred_fallthru
          _
        // Predicated region
        $region17: #{transformer_block_forward.3} parent=11 // pred_check
          %p393 = pneg %p97
        $region18: #{transformer_block_forward.3} parent=11 // pred_check_branch
          %395 = sbr.rel (%p393) target = $region20
        $region19: #{transformer_block_forward.3} parent=11 // pred_region
          %397 = vsyncadd [#allocation3], 0
          %s399 = sshll.u32 %s2, 4
          %s400 = int_to_ptr.hbm [resolvable:$true] %s399
          %s401 = sshll.u32 [#allocation2], 4
          %s402 = int_to_ptr.vmem [resolvable:$true] %s401
          %404 = dma.hbm_to_vmem [thread:$0]  %s400, 16, %s402, [#allocation3]
        $region20: #{transformer_block_forward.3} parent=11 // pred_fallthru
          _
        // Predicated region
        $region21: #{transformer_block_forward.3} parent=11 // pred_check
          %p405 = pneg %p118
        $region22: #{transformer_block_forward.3} parent=11 // pred_check_branch
          %407 = sbr.rel (%p405) target = $region24
        $region23: #{transformer_block_forward.3} parent=11 // pred_region
          _
        $region24: #{transformer_block_forward.3} parent=11 // pred_fallthru
          _
        // Predicated region
        $region25: #{transformer_block_forward.3} parent=11 // pred_check
          %p408 = pneg %p139
        $region26: #{transformer_block_forward.3} parent=11 // pred_check_branch
          %410 = sbr.rel (%p408) target = $region28
        $region27: #{transformer_block_forward.3} parent=11 // pred_region
          %412 = vsyncadd [#allocation6], 0
          %s414 = sshll.u32 %s4, 4
          %s415 = int_to_ptr.hbm [resolvable:$true] %s414
          %s416 = sshll.u32 [#allocation5], 4
          %s417 = int_to_ptr.vmem [resolvable:$true] %s416
          %419 = dma.hbm_to_vmem [thread:$0]  %s415, 16, %s417, [#allocation6]
        $region28: #{transformer_block_forward.3} parent=11 // pred_fallthru
          _
        // Predicated region
        $region29: #{transformer_block_forward.3} parent=11 // pred_check
          %p420 = pneg %p160
        $region30: #{transformer_block_forward.3} parent=11 // pred_check_branch
          %422 = sbr.rel (%p420) target = $region32
        $region31: #{transformer_block_forward.3} parent=11 // pred_region
          %424 = vsyncadd [#allocation6], 0
          %s426 = sshll.u32 %s5, 4
          %s427 = int_to_ptr.hbm [resolvable:$true] %s426
          %s428 = sshll.u32 [#allocation7], 4
          %s429 = int_to_ptr.vmem [resolvable:$true] %s428
          %431 = dma.hbm_to_vmem [thread:$0]  %s427, 16, %s429, [#allocation6]
        $region32: #{transformer_block_forward.3} parent=11 // pred_fallthru
          _
        // Predicated region
        $region33: #{transformer_block_forward.3} parent=11 // pred_check
          %p432 = pneg %p181
        $region34: #{transformer_block_forward.3} parent=11 // pred_check_branch
          %434 = sbr.rel (%p432) target = $region36
        $region35: #{transformer_block_forward.3} parent=11 // pred_region
          %436 = vsyncadd [#allocation9], 0
          %s438 = sshll.u32 %s6, 4
          %s439 = int_to_ptr.hbm [resolvable:$true] %s438
          %s440 = sshll.u32 [#allocation8], 4
          %s441 = int_to_ptr.vmem [resolvable:$true] %s440
          %443 = dma.hbm_to_vmem [thread:$0]  %s439, 16, %s441, [#allocation9]
        $region36: #{transformer_block_forward.3} parent=11 // pred_fallthru
          _
        // Predicated region
        $region37: #{transformer_block_forward.3} parent=11 // pred_check
          %p444 = pneg %p202
        $region38: #{transformer_block_forward.3} parent=11 // pred_check_branch
          %446 = sbr.rel (%p444) target = $region40
        $region39: #{transformer_block_forward.3} parent=11 // pred_region
          _
        $region40: #{transformer_block_forward.3} parent=11 // pred_fallthru
          _
        // Predicated region
        $region41: #{transformer_block_forward.3} parent=11 // pred_check
          %p447 = pneg %p223
        $region42: #{transformer_block_forward.3} parent=11 // pred_check_branch
          %449 = sbr.rel (%p447) target = $region44
        $region43: #{transformer_block_forward.3} parent=11 // pred_region
          %451 = vsyncadd [#allocation9], 0
          %s453 = sshll.u32 %s8, 4
          %s454 = int_to_ptr.hbm [resolvable:$true] %s453
          %s455 = sshll.u32 [#allocation10], 4
          %s456 = int_to_ptr.vmem [resolvable:$true] %s455
          %458 = dma.hbm_to_vmem [thread:$0]  %s454, 16, %s456, [#allocation9]
        $region44: #{transformer_block_forward.3} parent=11 // pred_fallthru
          _
        // Predicated region
        $region45: #{transformer_block_forward.3} parent=11 // pred_check
          %p459 = pneg %p244
        $region46: #{transformer_block_forward.3} parent=11 // pred_check_branch
          %461 = sbr.rel (%p459) target = $region48
        $region47: #{transformer_block_forward.3} parent=11 // pred_region
          _
        $region48: #{transformer_block_forward.3} parent=11 // pred_fallthru
          _
        // Predicated region
        $region49: #{transformer_block_forward.3} parent=11 // pred_check
          %p462 = pneg %p265
        $region50: #{transformer_block_forward.3} parent=11 // pred_check_branch
          %464 = sbr.rel (%p462) target = $region52
        $region51: #{transformer_block_forward.3} parent=11 // pred_region
          %466 = vsyncadd [#allocation12], 0
          %s468 = sshll.u32 %s10, 4
          %s469 = int_to_ptr.hbm [resolvable:$true] %s468
          %s470 = sshll.u32 [#allocation11], 4
          %s471 = int_to_ptr.vmem [resolvable:$true] %s470
          %473 = dma.hbm_to_vmem [thread:$0]  %s469, 16, %s471, [#allocation12]
        $region52: #{transformer_block_forward.3} parent=11 // pred_fallthru
          _
        // Predicated region
        $region53: #{transformer_block_forward.3} parent=11 // pred_check
          %p474 = pneg %p286
        $region54: #{transformer_block_forward.3} parent=11 // pred_check_branch
          %476 = sbr.rel (%p474) target = $region56
        $region55: #{transformer_block_forward.3} parent=11 // pred_region
          %478 = vsyncadd [#allocation12], 0
          %s480 = sshll.u32 %s11, 4
          %s481 = int_to_ptr.hbm [resolvable:$true] %s480
          %s482 = sshll.u32 [#allocation13], 4
          %s483 = int_to_ptr.vmem [resolvable:$true] %s482
          %485 = dma.hbm_to_vmem [thread:$0]  %s481, 16, %s483, [#allocation12]
        $region56: #{transformer_block_forward.3} parent=11 // pred_fallthru
          _
        // Predicated region
        $region57: #{transformer_block_forward.3} parent=11 // pred_check
          %p486 = pneg %p307
        $region58: #{transformer_block_forward.3} parent=11 // pred_check_branch
          %488 = sbr.rel (%p486) target = $region60
        $region59: #{transformer_block_forward.3} parent=11 // pred_region
          %490 = vsyncadd [#allocation15], 0
          %s492 = sshll.u32 %s12, 4
          %s493 = int_to_ptr.hbm [resolvable:$true] %s492
          %s494 = sshll.u32 [#allocation14], 4
          %s495 = int_to_ptr.vmem [resolvable:$true] %s494
          %497 = dma.hbm_to_vmem [thread:$0]  %s493, 16, %s495, [#allocation15]
        $region60: #{transformer_block_forward.3} parent=11 // pred_fallthru
          _
        // Predicated region
        $region61: #{transformer_block_forward.3} parent=11 // pred_check
          %p498 = pneg %p328
        $region62: #{transformer_block_forward.3} parent=11 // pred_check_branch
          %500 = sbr.rel (%p498) target = $region64
        $region63: #{transformer_block_forward.3} parent=11 // pred_region
          _
        $region64: #{transformer_block_forward.3} parent=11 // pred_fallthru
          _
        // Predicated region
        $region65: #{transformer_block_forward.3} parent=11 // pred_check
          %p501 = pneg %p349
        $region66: #{transformer_block_forward.3} parent=11 // pred_check_branch
          %503 = sbr.rel (%p501) target = $region68
        $region67: #{transformer_block_forward.3} parent=11 // pred_region
          _
        $region68: #{transformer_block_forward.3} parent=11 // pred_fallthru
          _
      $region12: #{transformer_block_forward.3} parent=5 // pred_fallthru
        _
      %p504 = scmp.lt.s32.totalorder %s29, 2
      // Predicated region
      $region69: #{transformer_block_forward.3} parent=5 // pred_check
        %p505 = pneg %p504
      $region70: #{transformer_block_forward.3} parent=5 // pred_check_branch
        %507 = sbr.rel (%p505) target = $region72
      $region71: #{transformer_block_forward.3} parent=5 // pred_region
        // Predicated region
        $region73: #{transformer_block_forward.3} parent=71 // pred_check
          %p508 = pneg %p49
        $region74: #{transformer_block_forward.3} parent=71 // pred_check_branch
          %510 = sbr.rel (%p508) target = $region76
        $region75: #{transformer_block_forward.3} parent=71 // pred_region
          %p511 = scmp.lt.s32.totalorder %s29, 1
          %s512 = scalar_select %p511, %s29, 1
          %s513 = smul.addr %s512, 8
          %s514 = scalar_lea.vmem %s0, %s513
        $region76: #{transformer_block_forward.3} parent=71 // pred_fallthru
          _
      $region72: #{transformer_block_forward.3} parent=5 // pred_fallthru
        _
      %p515 = scmp.le.s32.totalorder 1, %s29
      %p516 = scmp.lt.s32.totalorder %s29, 3
      %p517 = pnand %p515, %p516
      %p518 = pneg %p517
      // Predicated region
      $region77: #{transformer_block_forward.3} parent=5 // pred_check
        _
      $region78: #{transformer_block_forward.3} parent=5 // pred_check_branch
        %520 = sbr.rel (%p517) target = $region80
      $region79: #{transformer_block_forward.3} parent=5 // pred_region
        %s521 = ssub.s32 %s29, 1
        // Predicated region
        $region81: #{transformer_block_forward.3} parent=79 // pred_check
          %p522 = pneg %p97
        $region82: #{transformer_block_forward.3} parent=79 // pred_check_branch
          %524 = sbr.rel (%p522) target = $region84
        $region83: #{transformer_block_forward.3} parent=79 // pred_region
          %526 = dma.done [#allocation3], 16
        $region84: #{transformer_block_forward.3} parent=79 // pred_fallthru
          _
        // Predicated region
        $region85: #{transformer_block_forward.3} parent=79 // pred_check
          %p527 = pneg %p139
        $region86: #{transformer_block_forward.3} parent=79 // pred_check_branch
          %529 = sbr.rel (%p527) target = $region88
        $region87: #{transformer_block_forward.3} parent=79 // pred_region
          %531 = dma.done [#allocation6], 16
        $region88: #{transformer_block_forward.3} parent=79 // pred_fallthru
          _
        // Predicated region
        $region89: #{transformer_block_forward.3} parent=79 // pred_check
          %p532 = pneg %p160
        $region90: #{transformer_block_forward.3} parent=79 // pred_check_branch
          %534 = sbr.rel (%p532) target = $region92
        $region91: #{transformer_block_forward.3} parent=79 // pred_region
          %536 = dma.done [#allocation6], 16
        $region92: #{transformer_block_forward.3} parent=79 // pred_fallthru
          _
        // Predicated region
        $region93: #{transformer_block_forward.3} parent=79 // pred_check
          %p537 = pneg %p181
        $region94: #{transformer_block_forward.3} parent=79 // pred_check_branch
          %539 = sbr.rel (%p537) target = $region96
        $region95: #{transformer_block_forward.3} parent=79 // pred_region
          %541 = dma.done [#allocation9], 16
        $region96: #{transformer_block_forward.3} parent=79 // pred_fallthru
          _
        // Predicated region
        $region97: #{transformer_block_forward.3} parent=79 // pred_check
          %p542 = pneg %p223
        $region98: #{transformer_block_forward.3} parent=79 // pred_check_branch
          %544 = sbr.rel (%p542) target = $region100
        $region99: #{transformer_block_forward.3} parent=79 // pred_region
          %546 = dma.done [#allocation9], 16
        $region100: #{transformer_block_forward.3} parent=79 // pred_fallthru
          _
        // Predicated region
        $region101: #{transformer_block_forward.3} parent=79 // pred_check
          %p547 = pneg %p265
        $region102: #{transformer_block_forward.3} parent=79 // pred_check_branch
          %549 = sbr.rel (%p547) target = $region104
        $region103: #{transformer_block_forward.3} parent=79 // pred_region
          %551 = dma.done [#allocation12], 16
        $region104: #{transformer_block_forward.3} parent=79 // pred_fallthru
          _
        // Predicated region
        $region105: #{transformer_block_forward.3} parent=79 // pred_check
          %p552 = pneg %p286
        $region106: #{transformer_block_forward.3} parent=79 // pred_check_branch
          %554 = sbr.rel (%p552) target = $region108
        $region107: #{transformer_block_forward.3} parent=79 // pred_region
          %556 = dma.done [#allocation12], 16
        $region108: #{transformer_block_forward.3} parent=79 // pred_fallthru
          _
        // Predicated region
        $region109: #{transformer_block_forward.3} parent=79 // pred_check
          %p557 = pneg %p307
        $region110: #{transformer_block_forward.3} parent=79 // pred_check_branch
          %559 = sbr.rel (%p557) target = $region112
        $region111: #{transformer_block_forward.3} parent=79 // pred_region
          %561 = dma.done [#allocation15], 16
        $region112: #{transformer_block_forward.3} parent=79 // pred_fallthru
          _
        %p562 = scmp.lt.s32.totalorder %s34, 1
        %s563 = scalar_select %p562, %s34, 1
        %s564 = smul.addr %s563, 8
        %s565 = scalar_lea.vmem %s0, %s564
        %p566 = pneg %p55
        %p567 = pneg %p52
        %p568 = pneg %p76
        %p569 = pneg %p73
        %p570 = pneg %p97
        %p571 = pneg %p94
        %p572 = pneg %p118
        %p573 = pneg %p115
        %p574 = pneg %p139
        %p575 = pneg %p136
        %p576 = pneg %p160
        %p577 = pneg %p157
        %p578 = pneg %p181
        %p579 = pneg %p178
        %p580 = pneg %p202
        %p581 = pneg %p199
        %p582 = pneg %p223
        %p583 = pneg %p220
        %p584 = pneg %p244
        %p585 = pneg %p241
        %p586 = pneg %p265
        %p587 = pneg %p262
        %p588 = pneg %p286
        %p589 = pneg %p283
        %p590 = pneg %p307
        %p591 = pneg %p304
        %p592 = pneg %p328
        %p593 = pneg %p325
        %p594 = pneg %p349
        %p595 = pneg %p346
        %p596 = pneg %p375
        %p597 = pneg %p372
        %s598 = sand.u32 %s362, 1
        %s599 = scalar_lea.sflag [#allocation4], %s598
        %s600 = sand.u32 %s362, 1
        %s601 = smul.addr %s600, 8
        %s602 = scalar_lea.vmem [#allocation16], %s601
        %p603 = scmp.lt.s32.totalorder %s34, 1
        %s604 = scalar_select %p603, %s34, 1
        %s605 = smul.addr %s604, 8
        %s606 = scalar_lea.vmem %s0, %s605
        %v608 = vld [vmem:[%s606] sm:$0xff]
        %v609 = vpack.c.bf16 %v608, %v608
        %v610 = vld [vmem:[%s1] sm:$0xf]
        %v611 = vld [vmem:[%s1 + $0x4] sm:$0xf]
        %v612 = vld [vmem:[%s1 + $0x8] sm:$0xf]
        %v613 = vld [vmem:[%s1 + $0xc] sm:$0xf]
        %v614 = vld [vmem:[#allocation2] sm:$0x1]
        %v616 = vperm.slane %v614, 0
        %v622 = vunpack.c.l.b16 %v610
        %v623 = vunpack.c.l.b16 %v611
        %v624 = vunpack.c.l.b16 %v612
        %v625 = vunpack.c.l.b16 %v613
        %v626 = vpack.c.b16 %v623, %v622
        %v627 = vpack.c.b16 %v625, %v624
        %vm630 = vcmask 261120
        %v632 = vsel %vm630, %v609, 0
        %634 = vmatpush.bf16.msra.mxu0 0
        %635 = vmatpush.bf16.msra.mxu0 0
        %636 = vmatpush.bf16.msra.mxu0 0
        %637 = vmatpush.bf16.msra.mxu0 0
        %638 = vmatpush.bf16.msra.mxu0 0
        %639 = vmatpush.bf16.msra.mxu0 0
        %640 = vmatpush.bf16.msra.mxu0 %v627
        %641 = vmatpush.bf16.msra.mxu0 %v626
        %642 = vmatmul.bf16.gmra.mxu0 %v632
        %v643 = vpop.f32.mrf.mxu0
        %v644 = vadd.f32 %v616, %v643
        %v645 = vpop.f32.mrf.mxu0
        %646 = vdwg.mxu0
        %v647 = vpack.c.bf16 %v644, %v644
        %649 = vrot.lane.b32.xlu0 %v647, 120
        %v650 = vpop.permute.xlu0 %649
        %651 = vrot.lane.b32.xlu0 %v647, 112
        %v652 = vpop.permute.xlu0 %651
        %653 = vrot.lane.b32.xlu0 %v647, 104
        %v654 = vpop.permute.xlu0 %653
        %v655 = vunpack.c.l.b16 %v647
        %v656 = vunpack.c.l.b16 %v650
        %v657 = vunpack.c.l.b16 %v652
        %v658 = vunpack.c.l.b16 %v654
        %v659 = vpack.c.b16 %v655, %v655
        %v660 = vpack.c.b16 %v656, %v656
        %v661 = vpack.c.b16 %v657, %v657
        %v662 = vpack.c.b16 %v658, %v658
        %663 = vrot.lane.b32.xlu0 %v659, 96
        %v664 = vpop.permute.xlu0 %663
        %665 = vrot.lane.b32.xlu0 %v660, 96
        %v666 = vpop.permute.xlu0 %665
        %667 = vrot.lane.b32.xlu0 %v661, 96
        %v668 = vpop.permute.xlu0 %667
        %669 = vrot.lane.b32.xlu0 %v662, 96
        %v670 = vpop.permute.xlu0 %669
        %675 = vxpose.xlu0.c.b16.start [1/8] %v664, 128
        %676 = vxpose.xlu0.c.b16.cont [2/8] 0, 128
        %677 = vxpose.xlu0.c.b16.cont [3/8] 0, 128
        %678 = vxpose.xlu0.c.b16.cont [4/8] 0, 128
        %679 = vxpose.xlu0.c.b16.cont [5/8] 0, 128
        %680 = vxpose.xlu0.c.b16.cont [6/8] 0, 128
        %681 = vxpose.xlu0.c.b16.cont [7/8] 0, 128
        %682 = vxpose.xlu0.c.b16.end [8/8] 0, 128
        %v683 = vpop.trf.xlu0
        %v684 = vpop.trf.xlu0
        %v685 = vpop.trf.xlu0
        %v686 = vpop.trf.xlu0
        %v687 = vpop.trf.xlu0
        %v688 = vpop.trf.xlu0
        %v689 = vpop.trf.xlu0
        %v690 = vpop.trf.xlu0
        %691 = vxpose.xlu0.c.b16.start [1/8] %v666, 128
        %692 = vxpose.xlu0.c.b16.cont [2/8] 0, 128
        %693 = vxpose.xlu0.c.b16.cont [3/8] 0, 128
        %694 = vxpose.xlu0.c.b16.cont [4/8] 0, 128
        %695 = vxpose.xlu0.c.b16.cont [5/8] 0, 128
        %696 = vxpose.xlu0.c.b16.cont [6/8] 0, 128
        %697 = vxpose.xlu0.c.b16.cont [7/8] 0, 128
        %698 = vxpose.xlu0.c.b16.end [8/8] 0, 128
        %v699 = vpop.trf.xlu0
        %v700 = vpop.trf.xlu0
        %v701 = vpop.trf.xlu0
        %v702 = vpop.trf.xlu0
        %v703 = vpop.trf.xlu0
        %v704 = vpop.trf.xlu0
        %v705 = vpop.trf.xlu0
        %v706 = vpop.trf.xlu0
        %707 = vxpose.xlu0.c.b16.start [1/8] %v668, 128
        %708 = vxpose.xlu0.c.b16.cont [2/8] 0, 128
        %709 = vxpose.xlu0.c.b16.cont [3/8] 0, 128
        %710 = vxpose.xlu0.c.b16.cont [4/8] 0, 128
        %711 = vxpose.xlu0.c.b16.cont [5/8] 0, 128
        %712 = vxpose.xlu0.c.b16.cont [6/8] 0, 128
        %713 = vxpose.xlu0.c.b16.cont [7/8] 0, 128
        %714 = vxpose.xlu0.c.b16.end [8/8] 0, 128
        %v715 = vpop.trf.xlu0
        %v716 = vpop.trf.xlu0
        %v717 = vpop.trf.xlu0
        %v718 = vpop.trf.xlu0
        %v719 = vpop.trf.xlu0
        %v720 = vpop.trf.xlu0
        %v721 = vpop.trf.xlu0
        %v722 = vpop.trf.xlu0
        %723 = vxpose.xlu0.c.b16.start [1/8] %v670, 128
        %724 = vxpose.xlu0.c.b16.cont [2/8] 0, 128
        %725 = vxpose.xlu0.c.b16.cont [3/8] 0, 128
        %726 = vxpose.xlu0.c.b16.cont [4/8] 0, 128
        %727 = vxpose.xlu0.c.b16.cont [5/8] 0, 128
        %728 = vxpose.xlu0.c.b16.cont [6/8] 0, 128
        %729 = vxpose.xlu0.c.b16.cont [7/8] 0, 128
        %730 = vxpose.xlu0.c.b16.end [8/8] 0, 128
        %v731 = vpop.trf.xlu0
        %v732 = vpop.trf.xlu0
        %v733 = vpop.trf.xlu0
        %v734 = vpop.trf.xlu0
        %v735 = vpop.trf.xlu0
        %v736 = vpop.trf.xlu0
        %v737 = vpop.trf.xlu0
        %v738 = vpop.trf.xlu0
        %vm739 = vcmask 64512
        %v741 = vsel %vm739, %v647, 0
        %vm743 = vcmask 1043456
        %v745 = vsel %vm743, %v683, 0
        %747 = vmatpush.bf16.msra.mxu0 0
        %748 = vmatpush.bf16.msra.mxu0 0
        %749 = vmatpush.bf16.msra.mxu0 0
        %750 = vmatpush.bf16.msra.mxu0 0
        %751 = vmatpush.bf16.msra.mxu0 0
        %752 = vmatpush.bf16.msra.mxu0 0
        %753 = vmatpush.bf16.msra.mxu0 0
        %754 = vmatpush.bf16.msra.mxu0 %v745
        %755 = vmatmul.bf16.gmra.mxu0 %v741
        %v756 = vpop.f32.mrf.mxu0
        %v757 = vadd.f32 0.0, %v756
        %v758 = vpop.f32.mrf.mxu0
        %759 = vdwg.mxu0
        %v761 = vsel %vm739, %v650, 0
        %v764 = vsel %vm743, %v699, 0
        %766 = vmatpush.bf16.msra.mxu0 0
        %767 = vmatpush.bf16.msra.mxu0 0
        %768 = vmatpush.bf16.msra.mxu0 0
        %769 = vmatpush.bf16.msra.mxu0 0
        %770 = vmatpush.bf16.msra.mxu0 0
        %771 = vmatpush.bf16.msra.mxu0 0
        %772 = vmatpush.bf16.msra.mxu0 0
        %773 = vmatpush.bf16.msra.mxu0 %v764
        %774 = vmatmul.bf16.gmra.mxu0 %v761
        %v775 = vpop.f32.mrf.mxu0
        %v776 = vadd.f32 0.0, %v775
        %v777 = vpop.f32.mrf.mxu0
        %778 = vdwg.mxu0
        %v780 = vsel %vm739, %v652, 0
        %v783 = vsel %vm743, %v715, 0
        %785 = vmatpush.bf16.msra.mxu0 0
        %786 = vmatpush.bf16.msra.mxu0 0
        %787 = vmatpush.bf16.msra.mxu0 0
        %788 = vmatpush.bf16.msra.mxu0 0
        %789 = vmatpush.bf16.msra.mxu0 0
        %790 = vmatpush.bf16.msra.mxu0 0
        %791 = vmatpush.bf16.msra.mxu0 0
        %792 = vmatpush.bf16.msra.mxu0 %v783
        %793 = vmatmul.bf16.gmra.mxu0 %v780
        %v794 = vpop.f32.mrf.mxu0
        %v795 = vadd.f32 0.0, %v794
        %v796 = vpop.f32.mrf.mxu0
        %797 = vdwg.mxu0
        %v799 = vsel %vm739, %v654, 0
        %v802 = vsel %vm743, %v731, 0
        %804 = vmatpush.bf16.msra.mxu0 0
        %805 = vmatpush.bf16.msra.mxu0 0
        %806 = vmatpush.bf16.msra.mxu0 0
        %807 = vmatpush.bf16.msra.mxu0 0
        %808 = vmatpush.bf16.msra.mxu0 0
        %809 = vmatpush.bf16.msra.mxu0 0
        %810 = vmatpush.bf16.msra.mxu0 0
        %811 = vmatpush.bf16.msra.mxu0 %v802
        %812 = vmatmul.bf16.gmra.mxu0 %v799
        %v813 = vpop.f32.mrf.mxu0
        %v814 = vadd.f32 0.0, %v813
        %v815 = vpop.f32.mrf.mxu0
        %816 = vdwg.mxu0
        %v817 = vsel %vm739, %v757, -inf
        %818 = vmax.xlane.f32.xlu0 %v817
        %v819 = vpop.xlane.xlu0 %818
        %v820 = vsel %vm739, %v776, -inf
        %821 = vmax.xlane.f32.xlu0 %v820
        %v822 = vpop.xlane.xlu0 %821
        %v823 = vsel %vm739, %v795, -inf
        %824 = vmax.xlane.f32.xlu0 %v823
        %v825 = vpop.xlane.xlu0 %824
        %v826 = vsel %vm739, %v814, -inf
        %827 = vmax.xlane.f32.xlu0 %v826
        %v828 = vpop.xlane.xlu0 %827
        %v829 = vsub.f32 %v757, %v819
        %v830 = vsub.f32 %v776, %v822
        %v831 = vsub.f32 %v795, %v825
        %v832 = vsub.f32 %v814, %v828
        %v833 = vmul.f32 %v829, 1.442695
        %v834 = vpow.pop %v833
        %v835 = vmul.f32 %v830, 1.442695
        %v836 = vpow.pop %v835
        %v837 = vmul.f32 %v831, 1.442695
        %v838 = vpow.pop %v837
        %v839 = vmul.f32 %v832, 1.442695
        %v840 = vpow.pop %v839
        %v841 = vsel %vm739, %v834, 0.0
        %842 = vadd.xlane.f32.xlu0 %v841
        %v843 = vpop.xlane.xlu0 %842
        %v844 = vsel %vm739, %v836, 0.0
        %845 = vadd.xlane.f32.xlu0 %v844
        %v846 = vpop.xlane.xlu0 %845
        %v847 = vsel %vm739, %v838, 0.0
        %848 = vadd.xlane.f32.xlu0 %v847
        %v849 = vpop.xlane.xlu0 %848
        %v850 = vsel %vm739, %v840, 0.0
        %851 = vadd.xlane.f32.xlu0 %v850
        %v852 = vpop.xlane.xlu0 %851
        %v853 = vrcp.pop %v843
        %v854 = vrcp.pop %v846
        %v855 = vrcp.pop %v849
        %v856 = vrcp.pop %v852
        %v857 = vmul.f32 %v834, %v853
        %v858 = vmul.f32 %v836, %v854
        %v859 = vmul.f32 %v838, %v855
        %v860 = vmul.f32 %v840, %v856
        %v861 = vpack.c.bf16 %v857, %v857
        %v862 = vpack.c.bf16 %v858, %v858
        %v863 = vpack.c.bf16 %v859, %v859
        %v864 = vpack.c.bf16 %v860, %v860
        %865 = vrot.lane.b32.xlu0 %v659, 64
        %v866 = vpop.permute.xlu0 %865
        %867 = vrot.lane.b32.xlu0 %v660, 64
        %v868 = vpop.permute.xlu0 %867
        %869 = vrot.lane.b32.xlu0 %v661, 64
        %v870 = vpop.permute.xlu0 %869
        %871 = vrot.lane.b32.xlu0 %v662, 64
        %v872 = vpop.permute.xlu0 %871
        %877 = vxpose.xlu0.c.b16.start [1/8] %v866, 128
        %878 = vxpose.xlu0.c.b16.cont [2/8] 0, 128
        %879 = vxpose.xlu0.c.b16.cont [3/8] 0, 128
        %880 = vxpose.xlu0.c.b16.cont [4/8] 0, 128
        %881 = vxpose.xlu0.c.b16.cont [5/8] 0, 128
        %882 = vxpose.xlu0.c.b16.cont [6/8] 0, 128
        %883 = vxpose.xlu0.c.b16.cont [7/8] 0, 128
        %884 = vxpose.xlu0.c.b16.end [8/8] 0, 128
        %v885 = vpop.trf.xlu0
        %v886 = vpop.trf.xlu0
        %v887 = vpop.trf.xlu0
        %v888 = vpop.trf.xlu0
        %v889 = vpop.trf.xlu0
        %v890 = vpop.trf.xlu0
        %v891 = vpop.trf.xlu0
        %v892 = vpop.trf.xlu0
        %893 = vxpose.xlu0.c.b16.start [1/8] %v868, 128
        %894 = vxpose.xlu0.c.b16.cont [2/8] 0, 128
        %895 = vxpose.xlu0.c.b16.cont [3/8] 0, 128
        %896 = vxpose.xlu0.c.b16.cont [4/8] 0, 128
        %897 = vxpose.xlu0.c.b16.cont [5/8] 0, 128
        %898 = vxpose.xlu0.c.b16.cont [6/8] 0, 128
        %899 = vxpose.xlu0.c.b16.cont [7/8] 0, 128
        %900 = vxpose.xlu0.c.b16.end [8/8] 0, 128
        %v901 = vpop.trf.xlu0
        %v902 = vpop.trf.xlu0
        %v903 = vpop.trf.xlu0
        %v904 = vpop.trf.xlu0
        %v905 = vpop.trf.xlu0
        %v906 = vpop.trf.xlu0
        %v907 = vpop.trf.xlu0
        %v908 = vpop.trf.xlu0
        %909 = vxpose.xlu0.c.b16.start [1/8] %v870, 128
        %910 = vxpose.xlu0.c.b16.cont [2/8] 0, 128
        %911 = vxpose.xlu0.c.b16.cont [3/8] 0, 128
        %912 = vxpose.xlu0.c.b16.cont [4/8] 0, 128
        %913 = vxpose.xlu0.c.b16.cont [5/8] 0, 128
        %914 = vxpose.xlu0.c.b16.cont [6/8] 0, 128
        %915 = vxpose.xlu0.c.b16.cont [7/8] 0, 128
        %916 = vxpose.xlu0.c.b16.end [8/8] 0, 128
        %v917 = vpop.trf.xlu0
        %v918 = vpop.trf.xlu0
        %v919 = vpop.trf.xlu0
        %v920 = vpop.trf.xlu0
        %v921 = vpop.trf.xlu0
        %v922 = vpop.trf.xlu0
        %v923 = vpop.trf.xlu0
        %v924 = vpop.trf.xlu0
        %925 = vxpose.xlu0.c.b16.start [1/8] %v872, 128
        %926 = vxpose.xlu0.c.b16.cont [2/8] 0, 128
        %927 = vxpose.xlu0.c.b16.cont [3/8] 0, 128
        %928 = vxpose.xlu0.c.b16.cont [4/8] 0, 128
        %929 = vxpose.xlu0.c.b16.cont [5/8] 0, 128
        %930 = vxpose.xlu0.c.b16.cont [6/8] 0, 128
        %931 = vxpose.xlu0.c.b16.cont [7/8] 0, 128
        %932 = vxpose.xlu0.c.b16.end [8/8] 0, 128
        %v933 = vpop.trf.xlu0
        %v934 = vpop.trf.xlu0
        %v935 = vpop.trf.xlu0
        %v936 = vpop.trf.xlu0
        %v937 = vpop.trf.xlu0
        %v938 = vpop.trf.xlu0
        %v939 = vpop.trf.xlu0
        %v940 = vpop.trf.xlu0
        %v942 = vsel %vm739, %v885, 0
        %v945 = vsel %vm739, %v861, 0
        %947 = vmatpush.bf16.xpose.msra.mxu0 0
        %948 = vmatpush.bf16.xpose.msra.mxu0 0
        %949 = vmatpush.bf16.xpose.msra.mxu0 0
        %950 = vmatpush.bf16.xpose.msra.mxu0 0
        %951 = vmatpush.bf16.xpose.msra.mxu0 0
        %952 = vmatpush.bf16.xpose.msra.mxu0 0
        %953 = vmatpush.bf16.xpose.msra.mxu0 0
        %954 = vmatpush.bf16.xpose.msra.mxu0 %v945
        %955 = vmatmul.bf16.gmra.mxu0 %v942
        %v956 = vpop.f32.mrf.mxu0
        %v957 = vadd.f32 0.0, %v956
        %v958 = vpop.f32.mrf.mxu0
        %959 = vdwg.mxu0
        %v961 = vsel %vm739, %v901, 0
        %v964 = vsel %vm739, %v862, 0
        %966 = vmatpush.bf16.xpose.msra.mxu0 0
        %967 = vmatpush.bf16.xpose.msra.mxu0 0
        %968 = vmatpush.bf16.xpose.msra.mxu0 0
        %969 = vmatpush.bf16.xpose.msra.mxu0 0
        %970 = vmatpush.bf16.xpose.msra.mxu0 0
        %971 = vmatpush.bf16.xpose.msra.mxu0 0
        %972 = vmatpush.bf16.xpose.msra.mxu0 0
        %973 = vmatpush.bf16.xpose.msra.mxu0 %v964
        %974 = vmatmul.bf16.gmra.mxu0 %v961
        %v975 = vpop.f32.mrf.mxu0
        %v976 = vadd.f32 0.0, %v975
        %v977 = vpop.f32.mrf.mxu0
        %978 = vdwg.mxu0
        %v980 = vsel %vm739, %v917, 0
        %v983 = vsel %vm739, %v863, 0
        %985 = vmatpush.bf16.xpose.msra.mxu0 0
        %986 = vmatpush.bf16.xpose.msra.mxu0 0
        %987 = vmatpush.bf16.xpose.msra.mxu0 0
        %988 = vmatpush.bf16.xpose.msra.mxu0 0
        %989 = vmatpush.bf16.xpose.msra.mxu0 0
        %990 = vmatpush.bf16.xpose.msra.mxu0 0
        %991 = vmatpush.bf16.xpose.msra.mxu0 0
        %992 = vmatpush.bf16.xpose.msra.mxu0 %v983
        %993 = vmatmul.bf16.gmra.mxu0 %v980
        %v994 = vpop.f32.mrf.mxu0
        %v995 = vadd.f32 0.0, %v994
        %v996 = vpop.f32.mrf.mxu0
        %997 = vdwg.mxu0
        %v999 = vsel %vm739, %v933, 0
        %v1002 = vsel %vm739, %v864, 0
        %1004 = vmatpush.bf16.xpose.msra.mxu0 0
        %1005 = vmatpush.bf16.xpose.msra.mxu0 0
        %1006 = vmatpush.bf16.xpose.msra.mxu0 0
        %1007 = vmatpush.bf16.xpose.msra.mxu0 0
        %1008 = vmatpush.bf16.xpose.msra.mxu0 0
        %1009 = vmatpush.bf16.xpose.msra.mxu0 0
        %1010 = vmatpush.bf16.xpose.msra.mxu0 0
        %1011 = vmatpush.bf16.xpose.msra.mxu0 %v1002
        %1012 = vmatmul.bf16.gmra.mxu0 %v999
        %v1013 = vpop.f32.mrf.mxu0
        %v1014 = vadd.f32 0.0, %v1013
        %v1015 = vpop.f32.mrf.mxu0
        %1016 = vdwg.mxu0
        %1017 = vxpose.xlu0.b32.start [1/16] %v957, 128
        %1018 = vxpose.xlu0.b32.cont [2/16] 0.0, 128
        %1019 = vxpose.xlu0.b32.cont [3/16] 0.0, 128
        %1020 = vxpose.xlu0.b32.cont [4/16] 0.0, 128
        %1021 = vxpose.xlu0.b32.cont [5/16] 0.0, 128
        %1022 = vxpose.xlu0.b32.cont [6/16] 0.0, 128
        %1023 = vxpose.xlu0.b32.cont [7/16] 0.0, 128
        %1024 = vxpose.xlu0.b32.cont [8/16] 0.0, 128
        %1025 = vxpose.xlu0.b32.cont [9/16] 0.0, 128
        %1026 = vxpose.xlu0.b32.cont [10/16] 0.0, 128
        %1027 = vxpose.xlu0.b32.cont [11/16] 0.0, 128
        %1028 = vxpose.xlu0.b32.cont [12/16] 0.0, 128
        %1029 = vxpose.xlu0.b32.cont [13/16] 0.0, 128
        %1030 = vxpose.xlu0.b32.cont [14/16] 0.0, 128
        %1031 = vxpose.xlu0.b32.cont [15/16] 0.0, 128
        %1032 = vxpose.xlu0.b32.end [16/16] 0.0, 128
        %v1033 = vpop.trf.xlu0
        %v1034 = vpop.trf.xlu0
        %v1035 = vpop.trf.xlu0
        %v1036 = vpop.trf.xlu0
        %v1037 = vpop.trf.xlu0
        %v1038 = vpop.trf.xlu0
        %v1039 = vpop.trf.xlu0
        %v1040 = vpop.trf.xlu0
        %v1041 = vpop.trf.xlu0
        %v1042 = vpop.trf.xlu0
        %v1043 = vpop.trf.xlu0
        %v1044 = vpop.trf.xlu0
        %v1045 = vpop.trf.xlu0
        %v1046 = vpop.trf.xlu0
        %v1047 = vpop.trf.xlu0
        %v1048 = vpop.trf.xlu0
        %1049 = vxpose.xlu0.b32.start [1/16] %v976, 128
        %1050 = vxpose.xlu0.b32.cont [2/16] 0.0, 128
        %1051 = vxpose.xlu0.b32.cont [3/16] 0.0, 128
        %1052 = vxpose.xlu0.b32.cont [4/16] 0.0, 128
        %1053 = vxpose.xlu0.b32.cont [5/16] 0.0, 128
        %1054 = vxpose.xlu0.b32.cont [6/16] 0.0, 128
        %1055 = vxpose.xlu0.b32.cont [7/16] 0.0, 128
        %1056 = vxpose.xlu0.b32.cont [8/16] 0.0, 128
        %1057 = vxpose.xlu0.b32.cont [9/16] 0.0, 128
        %1058 = vxpose.xlu0.b32.cont [10/16] 0.0, 128
        %1059 = vxpose.xlu0.b32.cont [11/16] 0.0, 128
        %1060 = vxpose.xlu0.b32.cont [12/16] 0.0, 128
        %1061 = vxpose.xlu0.b32.cont [13/16] 0.0, 128
        %1062 = vxpose.xlu0.b32.cont [14/16] 0.0, 128
        %1063 = vxpose.xlu0.b32.cont [15/16] 0.0, 128
        %1064 = vxpose.xlu0.b32.end [16/16] 0.0, 128
        %v1065 = vpop.trf.xlu0
        %v1066 = vpop.trf.xlu0
        %v1067 = vpop.trf.xlu0
        %v1068 = vpop.trf.xlu0
        %v1069 = vpop.trf.xlu0
        %v1070 = vpop.trf.xlu0
        %v1071 = vpop.trf.xlu0
        %v1072 = vpop.trf.xlu0
        %v1073 = vpop.trf.xlu0
        %v1074 = vpop.trf.xlu0
        %v1075 = vpop.trf.xlu0
        %v1076 = vpop.trf.xlu0
        %v1077 = vpop.trf.xlu0
        %v1078 = vpop.trf.xlu0
        %v1079 = vpop.trf.xlu0
        %v1080 = vpop.trf.xlu0
        %1081 = vxpose.xlu0.b32.start [1/16] %v995, 128
        %1082 = vxpose.xlu0.b32.cont [2/16] 0.0, 128
        %1083 = vxpose.xlu0.b32.cont [3/16] 0.0, 128
        %1084 = vxpose.xlu0.b32.cont [4/16] 0.0, 128
        %1085 = vxpose.xlu0.b32.cont [5/16] 0.0, 128
        %1086 = vxpose.xlu0.b32.cont [6/16] 0.0, 128
        %1087 = vxpose.xlu0.b32.cont [7/16] 0.0, 128
        %1088 = vxpose.xlu0.b32.cont [8/16] 0.0, 128
        %1089 = vxpose.xlu0.b32.cont [9/16] 0.0, 128
        %1090 = vxpose.xlu0.b32.cont [10/16] 0.0, 128
        %1091 = vxpose.xlu0.b32.cont [11/16] 0.0, 128
        %1092 = vxpose.xlu0.b32.cont [12/16] 0.0, 128
        %1093 = vxpose.xlu0.b32.cont [13/16] 0.0, 128
        %1094 = vxpose.xlu0.b32.cont [14/16] 0.0, 128
        %1095 = vxpose.xlu0.b32.cont [15/16] 0.0, 128
        %1096 = vxpose.xlu0.b32.end [16/16] 0.0, 128
        %v1097 = vpop.trf.xlu0
        %v1098 = vpop.trf.xlu0
        %v1099 = vpop.trf.xlu0
        %v1100 = vpop.trf.xlu0
        %v1101 = vpop.trf.xlu0
        %v1102 = vpop.trf.xlu0
        %v1103 = vpop.trf.xlu0
        %v1104 = vpop.trf.xlu0
        %v1105 = vpop.trf.xlu0
        %v1106 = vpop.trf.xlu0
        %v1107 = vpop.trf.xlu0
        %v1108 = vpop.trf.xlu0
        %v1109 = vpop.trf.xlu0
        %v1110 = vpop.trf.xlu0
        %v1111 = vpop.trf.xlu0
        %v1112 = vpop.trf.xlu0
        %1113 = vxpose.xlu0.b32.start [1/16] %v1014, 128
        %1114 = vxpose.xlu0.b32.cont [2/16] 0.0, 128
        %1115 = vxpose.xlu0.b32.cont [3/16] 0.0, 128
        %1116 = vxpose.xlu0.b32.cont [4/16] 0.0, 128
        %1117 = vxpose.xlu0.b32.cont [5/16] 0.0, 128
        %1118 = vxpose.xlu0.b32.cont [6/16] 0.0, 128
        %1119 = vxpose.xlu0.b32.cont [7/16] 0.0, 128
        %1120 = vxpose.xlu0.b32.cont [8/16] 0.0, 128
        %1121 = vxpose.xlu0.b32.cont [9/16] 0.0, 128
        %1122 = vxpose.xlu0.b32.cont [10/16] 0.0, 128
        %1123 = vxpose.xlu0.b32.cont [11/16] 0.0, 128
        %1124 = vxpose.xlu0.b32.cont [12/16] 0.0, 128
        %1125 = vxpose.xlu0.b32.cont [13/16] 0.0, 128
        %1126 = vxpose.xlu0.b32.cont [14/16] 0.0, 128
        %1127 = vxpose.xlu0.b32.cont [15/16] 0.0, 128
        %1128 = vxpose.xlu0.b32.end [16/16] 0.0, 128
        %v1129 = vpop.trf.xlu0
        %v1130 = vpop.trf.xlu0
        %v1131 = vpop.trf.xlu0
        %v1132 = vpop.trf.xlu0
        %v1133 = vpop.trf.xlu0
        %v1134 = vpop.trf.xlu0
        %v1135 = vpop.trf.xlu0
        %v1136 = vpop.trf.xlu0
        %v1137 = vpop.trf.xlu0
        %v1138 = vpop.trf.xlu0
        %v1139 = vpop.trf.xlu0
        %v1140 = vpop.trf.xlu0
        %v1141 = vpop.trf.xlu0
        %v1142 = vpop.trf.xlu0
        %v1143 = vpop.trf.xlu0
        %v1144 = vpop.trf.xlu0
        %v1145 = vrot.slane %v1097, 4
        %vm1146 = vcmask 1047556
        %v1147 = vsel %vm1146, %v1145, %v1033
        %v1148 = vrot.slane %v1033, 4
        %v1149 = vsel %vm1146, %v1097, %v1148
        %v1151 = vunpack.c.l.s4 1983009808
        %v1152 = vunpack.c.0.s8 %v1151
        %v1153 = vperm.slane %v1147, %v1152
        %v1155 = vunpack.c.l.s4 1983009808
        %v1156 = vunpack.c.0.s8 %v1155
        %v1157 = vperm.slane %v1149, %v1156
        %v1158 = vrot.slane %v1129, 4
        %v1159 = vsel %vm1146, %v1158, %v1065
        %v1160 = vrot.slane %v1065, 4
        %v1161 = vsel %vm1146, %v1129, %v1160
        %v1163 = vunpack.c.l.s4 1983009808
        %v1164 = vunpack.c.0.s8 %v1163
        %v1165 = vperm.slane %v1159, %v1164
        %v1167 = vunpack.c.l.s4 1983009808
        %v1168 = vunpack.c.0.s8 %v1167
        %v1169 = vperm.slane %v1161, %v1168
        %v1170 = vrot.slane %v1165, 4
        %v1171 = vsel %vm1146, %v1170, %v1153
        %v1172 = vrot.slane %v1153, 4
        %v1173 = vsel %vm1146, %v1165, %v1172
        %v1175 = vunpack.c.l.s4 1934713408
        %v1176 = vunpack.c.0.s8 %v1175
        %v1177 = vperm.slane %v1171, %v1176
        %v1179 = vunpack.c.l.s4 1934713408
        %v1180 = vunpack.c.0.s8 %v1179
        %v1181 = vperm.slane %v1173, %v1180
        %v1182 = vrot.slane %v1169, 4
        %v1183 = vsel %vm1146, %v1182, %v1157
        %v1184 = vrot.slane %v1157, 4
        %v1185 = vsel %vm1146, %v1169, %v1184
        %v1187 = vunpack.c.l.s4 1934713408
        %v1188 = vunpack.c.0.s8 %v1187
        %v1189 = vperm.slane %v1183, %v1188
        %v1191 = vunpack.c.l.s4 1934713408
        %v1192 = vunpack.c.0.s8 %v1191
        %v1193 = vperm.slane %v1185, %v1192
        %v1194 = vrot.slane %v1177, 4
        %v1195 = vsel %vm1146, 0.0, %v1194
        %v1196 = vrot.slane %v1181, 4
        %v1197 = vsel %vm1146, 0.0, %v1196
        %v1198 = vrot.slane %v1189, 4
        %v1199 = vsel %vm1146, 0.0, %v1198
        %v1200 = vrot.slane %v1193, 4
        %v1201 = vsel %vm1146, 0.0, %v1200
        %v1202 = vsel %vm1146, %v1196, %v1177
        %v1204 = vunpack.c.l.s4 1983009808
        %v1205 = vunpack.c.0.s8 %v1204
        %v1206 = vperm.slane %v1202, %v1205
        %v1207 = vrot.slane %v1197, 4
        %v1208 = vsel %vm1146, %v1207, %v1195
        %v1210 = vunpack.c.l.s4 1983009808
        %v1211 = vunpack.c.0.s8 %v1210
        %v1212 = vperm.slane %v1208, %v1211
        %v1213 = vsel %vm1146, %v1200, %v1189
        %v1215 = vunpack.c.l.s4 1983009808
        %v1216 = vunpack.c.0.s8 %v1215
        %v1217 = vperm.slane %v1213, %v1216
        %v1218 = vrot.slane %v1201, 4
        %v1219 = vsel %vm1146, %v1218, %v1199
        %v1221 = vunpack.c.l.s4 1983009808
        %v1222 = vunpack.c.0.s8 %v1221
        %v1223 = vperm.slane %v1219, %v1222
        %v1224 = vrot.slane %v1212, 4
        %v1225 = vsel %vm1146, %v1224, %v1206
        %v1226 = vrot.slane %v1206, 4
        %v1227 = vsel %vm1146, %v1212, %v1226
        %v1229 = vunpack.c.l.s4 1934713408
        %v1230 = vunpack.c.0.s8 %v1229
        %v1231 = vperm.slane %v1225, %v1230
        %v1233 = vunpack.c.l.s4 1934713408
        %v1234 = vunpack.c.0.s8 %v1233
        %v1235 = vperm.slane %v1227, %v1234
        %v1236 = vrot.slane %v1223, 4
        %v1237 = vsel %vm1146, %v1236, %v1217
        %v1238 = vrot.slane %v1217, 4
        %v1239 = vsel %vm1146, %v1223, %v1238
        %v1241 = vunpack.c.l.s4 1934713408
        %v1242 = vunpack.c.0.s8 %v1241
        %v1243 = vperm.slane %v1237, %v1242
        %v1245 = vunpack.c.l.s4 1934713408
        %v1246 = vunpack.c.0.s8 %v1245
        %v1247 = vperm.slane %v1239, %v1246
        %v1248 = vrot.slane %v1243, 4
        %v1249 = vsel %vm1146, %v1248, %v1231
        %v1250 = vrot.slane %v1231, 4
        %v1251 = vsel %vm1146, %v1243, %v1250
        %v1252 = vrot.slane %v1247, 4
        %v1253 = vsel %vm1146, %v1252, %v1235
        %v1254 = vrot.slane %v1235, 4
        %v1255 = vsel %vm1146, %v1247, %v1254
        %1257 = vrot.lane.b32.xlu0 %v1251, 8
        %v1258 = vpop.permute.xlu0 %1257
        %1261 = vrot.lane.b32.xlu0 %v1253, 16
        %v1262 = vpop.permute.xlu0 %1261
        %1265 = vrot.lane.b32.xlu0 %v1255, 24
        %v1266 = vpop.permute.xlu0 %1265
        %v1268 = vsel %vm739, %v1249, %v1258
        %vm1269 = vcmask 130048
        %v1270 = vsel %vm1269, %v1268, %v1262
        %vm1271 = vcmask 195584
        %v1272 = vsel %vm1271, %v1270, %v1266
        %v1273 = vpack.c.bf16 %v1272, %v1272
        %v1274 = vld [vmem:[%s3] sm:$0xf]
        %v1275 = vld [vmem:[%s3 + $0x4] sm:$0xf]
        %v1276 = vld [vmem:[%s3 + $0x8] sm:$0xf]
        %v1277 = vld [vmem:[%s3 + $0xc] sm:$0xf]
        %v1278 = vld [vmem:[#allocation5] sm:$0x1]
        %v1280 = vperm.slane %v1278, 0
        %v1286 = vunpack.c.l.b16 %v1274
        %v1287 = vunpack.c.l.b16 %v1275
        %v1288 = vunpack.c.l.b16 %v1276
        %v1289 = vunpack.c.l.b16 %v1277
        %v1290 = vpack.c.b16 %v1287, %v1286
        %v1291 = vpack.c.b16 %v1289, %v1288
        %v1295 = vsel %vm630, %v1273, 0
        %1297 = vmatpush.bf16.msra.mxu0 0
        %1298 = vmatpush.bf16.msra.mxu0 0
        %1299 = vmatpush.bf16.msra.mxu0 0
        %1300 = vmatpush.bf16.msra.mxu0 0
        %1301 = vmatpush.bf16.msra.mxu0 0
        %1302 = vmatpush.bf16.msra.mxu0 0
        %1303 = vmatpush.bf16.msra.mxu0 %v1291
        %1304 = vmatpush.bf16.msra.mxu0 %v1290
        %1305 = vmatmul.bf16.gmra.mxu0 %v1295
        %v1306 = vpop.f32.mrf.mxu0
        %v1307 = vadd.f32 %v1280, %v1306
        %v1308 = vpop.f32.mrf.mxu0
        %1309 = vdwg.mxu0
        %v1310 = vadd.f32 %v608, %v1307
        %v1311 = vld [vmem:[#allocation7] sm:$0x1]
        %v1312 = vld [vmem:[#allocation8] sm:$0x1]
        %v1313 = vsel %vm630, %v1310, 0.0
        %1314 = vadd.xlane.f32.xlu0 %v1313
        %v1315 = vpop.xlane.xlu0 %1314
        %v1316 = vrcp.pop 32.0
        %v1317 = vmul.f32 32.0, %v1316
        %v1318 = vsub.f32 1.0, %v1317
        %v1319 = vmul.f32 %v1316, %v1318
        %v1320 = vadd.f32 %v1316, %v1319
        %vm1321 = vweird.f32 %v1316
        %v1322 = vsel %vm1321, %v1316, %v1320
        %v1323 = vmul.f32 %v1315, %v1322
        %v1324 = vsub.f32 %v1310, %v1323
        %v1325 = vmul.f32 %v1324, %v1324
        %v1326 = vsel %vm630, %v1325, 0.0
        %1327 = vadd.xlane.f32.xlu0 %v1326
        %v1328 = vpop.xlane.xlu0 %1327
        %v1329 = vmul.f32 %v1328, %v1322
        %v1330 = vadd.f32 %v1329, 1e-05
        %v1331 = vrsqrt.pop %v1330
        %v1332 = vmul.f32 %v1331, %v1330
        %v1333 = vmul.f32 %v1332, %v1331
        %v1334 = vmul.f32 0.5, %v1333
        %v1335 = vsub.f32 1.5, %v1334
        %v1336 = vmul.f32 %v1331, %v1335
        %vm1337 = vweird.f32 %v1330
        %vm1338 = vweird.f32 %v1331
        %vm1339 = vmor %vm1337, %vm1338
        %v1340 = vsel %vm1339, %v1331, %v1336
        %v1341 = vmul.f32 %v1324, %v1340
        %v1343 = vperm.slane %v1311, 0
        %v1345 = vmul.f32 %v1341, %v1343
        %v1347 = vperm.slane %v1312, 0
        %v1349 = vadd.f32 %v1345, %v1347
        %v1350 = vpack.c.bf16 %v1349, %v1349
        %v1351 = vld [vmem:[%s7] sm:$0xf]
        %v1352 = vld [vmem:[%s7 + $0x4] sm:$0xf]
        %v1353 = vld [vmem:[%s7 + $0x8] sm:$0xf]
        %v1354 = vld [vmem:[%s7 + $0xc] sm:$0xf]
        %v1355 = vld [vmem:[#allocation10] sm:$0x1]
        %v1357 = vperm.slane %v1355, 0
        %v1363 = vunpack.c.l.b16 %v1351
        %v1364 = vunpack.c.l.b16 %v1352
        %v1365 = vunpack.c.l.b16 %v1353
        %v1366 = vunpack.c.l.b16 %v1354
        %v1367 = vpack.c.b16 %v1364, %v1363
        %v1368 = vpack.c.b16 %v1366, %v1365
        %v1372 = vsel %vm630, %v1350, 0
        %1374 = vmatpush.bf16.msra.mxu0 0
        %1375 = vmatpush.bf16.msra.mxu0 0
        %1376 = vmatpush.bf16.msra.mxu0 0
        %1377 = vmatpush.bf16.msra.mxu0 0
        %1378 = vmatpush.bf16.msra.mxu0 0
        %1379 = vmatpush.bf16.msra.mxu0 0
        %1380 = vmatpush.bf16.msra.mxu0 %v1368
        %1381 = vmatpush.bf16.msra.mxu0 %v1367
        %1382 = vmatmul.bf16.gmra.mxu0 %v1372
        %v1383 = vpop.f32.mrf.mxu0
        %v1384 = vadd.f32 %v1357, %v1383
        %v1385 = vpop.f32.mrf.mxu0
        %1386 = vdwg.mxu0
        %v1387 = vmax.f32 %v1384, 0.0
        %v1388 = vpack.c.bf16 %v1387, %v1387
        %v1389 = vld [vmem:[%s9] sm:$0xf]
        %v1390 = vld [vmem:[%s9 + $0x4] sm:$0xf]
        %v1391 = vld [vmem:[%s9 + $0x8] sm:$0xf]
        %v1392 = vld [vmem:[%s9 + $0xc] sm:$0xf]
        %v1393 = vld [vmem:[%s9 + $0x10] sm:$0xf]
        %v1394 = vld [vmem:[%s9 + $0x14] sm:$0xf]
        %v1395 = vld [vmem:[%s9 + $0x18] sm:$0xf]
        %v1396 = vld [vmem:[%s9 + $0x1c] sm:$0xf]
        %v1397 = vld [vmem:[#allocation11] sm:$0x1]
        %v1399 = vperm.slane %v1397, 0
        %v1409 = vunpack.c.l.b16 %v1389
        %v1410 = vunpack.c.l.b16 %v1390
        %v1411 = vunpack.c.l.b16 %v1391
        %v1412 = vunpack.c.l.b16 %v1392
        %v1413 = vunpack.c.l.b16 %v1393
        %v1414 = vunpack.c.l.b16 %v1394
        %v1415 = vunpack.c.l.b16 %v1395
        %v1416 = vunpack.c.l.b16 %v1396
        %v1417 = vpack.c.b16 %v1410, %v1409
        %v1418 = vpack.c.b16 %v1412, %v1411
        %v1419 = vpack.c.b16 %v1414, %v1413
        %v1420 = vpack.c.b16 %v1416, %v1415
        %vm1425 = vcmask 523264
        %v1427 = vsel %vm1425, %v1388, 0
        %1429 = vmatpush.bf16.msra.mxu0 0
        %1430 = vmatpush.bf16.msra.mxu0 0
        %1431 = vmatpush.bf16.msra.mxu0 0
        %1432 = vmatpush.bf16.msra.mxu0 0
        %1433 = vmatpush.bf16.msra.mxu0 %v1420
        %1434 = vmatpush.bf16.msra.mxu0 %v1419
        %1435 = vmatpush.bf16.msra.mxu0 %v1418
        %1436 = vmatpush.bf16.msra.mxu0 %v1417
        %1437 = vmatmul.bf16.gmra.mxu0 %v1427
        %v1438 = vpop.f32.mrf.mxu0
        %v1439 = vadd.f32 %v1399, %v1438
        %v1440 = vpop.f32.mrf.mxu0
        %1441 = vdwg.mxu0
        %v1442 = vadd.f32 %v1349, %v1439
        %v1443 = vld [vmem:[#allocation13] sm:$0x1]
        %v1444 = vld [vmem:[#allocation14] sm:$0x1]
        %v1445 = vsel %vm630, %v1442, 0.0
        %1446 = vadd.xlane.f32.xlu0 %v1445
        %v1447 = vpop.xlane.xlu0 %1446
        %v1448 = vmul.f32 %v1447, %v1322
        %v1449 = vsub.f32 %v1442, %v1448
        %v1450 = vmul.f32 %v1449, %v1449
        %v1451 = vsel %vm630, %v1450, 0.0
        %1452 = vadd.xlane.f32.xlu0 %v1451
        %v1453 = vpop.xlane.xlu0 %1452
        %v1454 = vmul.f32 %v1453, %v1322
        %v1455 = vadd.f32 %v1454, 1e-05
        %v1456 = vrsqrt.pop %v1455
        %v1457 = vmul.f32 %v1456, %v1455
        %v1458 = vmul.f32 %v1457, %v1456
        %v1459 = vmul.f32 0.5, %v1458
        %v1460 = vsub.f32 1.5, %v1459
        %v1461 = vmul.f32 %v1456, %v1460
        %vm1462 = vweird.f32 %v1455
        %vm1463 = vweird.f32 %v1456
        %vm1464 = vmor %vm1462, %vm1463
        %v1465 = vsel %vm1464, %v1456, %v1461
        %v1466 = vmul.f32 %v1449, %v1465
        %v1468 = vperm.slane %v1443, 0
        %v1470 = vmul.f32 %v1466, %v1468
        %v1472 = vperm.slane %v1444, 0
        %v1474 = vadd.f32 %v1470, %v1472
        %v1475 = vpack.c.bf16 %v1474, %v1474
        %v1476 = vld [vmem:[%s13] sm:$0xf]
        %v1477 = vld [vmem:[%s13 + $0x4] sm:$0xf]
        %v1478 = vld [vmem:[%s13 + $0x8] sm:$0xf]
        %v1479 = vld [vmem:[%s13 + $0xc] sm:$0xf]
        %v1480 = vld [vmem:[%s14] sm:$0x1]
        %v1482 = vperm.slane %v1480, 0
        %v1488 = vunpack.c.l.b16 %v1476
        %v1489 = vunpack.c.l.b16 %v1477
        %v1490 = vunpack.c.l.b16 %v1478
        %v1491 = vunpack.c.l.b16 %v1479
        %v1492 = vpack.c.b16 %v1489, %v1488
        %v1493 = vpack.c.b16 %v1491, %v1490
        %v1497 = vsel %vm630, %v1475, 0
        %1499 = vmatpush.bf16.msra.mxu0 0
        %1500 = vmatpush.bf16.msra.mxu0 0
        %1501 = vmatpush.bf16.msra.mxu0 0
        %1502 = vmatpush.bf16.msra.mxu0 0
        %1503 = vmatpush.bf16.msra.mxu0 0
        %1504 = vmatpush.bf16.msra.mxu0 0
        %1505 = vmatpush.bf16.msra.mxu0 %v1493
        %1506 = vmatpush.bf16.msra.mxu0 %v1492
        %1507 = vmatmul.bf16.gmra.mxu0 %v1497
        %v1508 = vpop.f32.mrf.mxu0
        %v1509 = vadd.f32 %v1482, %v1508
        %v1510 = vpop.f32.mrf.mxu0
        %1511 = vdwg.mxu0
        %vm1512 = vcmask 392192
        %1513 = vst.msk [vmem:[%s602] sm:$0xff] %vm1512, %v1509
        %s1514 = sand.u32 %s362, 1
        %s1515 = scalar_lea.sflag [#allocation4], %s1514
        %s1516 = sand.u32 %s362, 1
        %s1517 = smul.addr %s1516, 8
        %s1518 = scalar_lea.vmem [#allocation16], %s1517
        // Predicated region
        $region113: #{transformer_block_forward.3} parent=79 // pred_check
          %p1519 = pneg %p372
        $region114: #{transformer_block_forward.3} parent=79 // pred_check_branch
          %1521 = sbr.rel (%p1519) target = $region116
        $region115: #{transformer_block_forward.3} parent=79 // pred_region
          %1523 = vsyncadd %s1515, 0
          %s1524 = smul.addr %s34, 8
          %s1525 = scalar_lea.hbm %s15, %s1524
          %s1527 = sshll.u32 %s1518, 4
          %s1528 = int_to_ptr.vmem [resolvable:$true] %s1527
          %s1529 = sshll.u32 %s1525, 4
          %s1530 = int_to_ptr.hbm [resolvable:$true] %s1529
          %1532 = dma.vmem_to_hbm [thread:$0]  %s1528, 128, %s1530, %s1515
        $region116: #{transformer_block_forward.3} parent=79 // pred_fallthru
          _
      $region80: #{transformer_block_forward.3} parent=5 // pred_fallthru
        _
      %p1533 = scmp.le.s32.totalorder 2, %s29
      // Predicated region
      $region117: #{transformer_block_forward.3} parent=5 // pred_check
        %p1534 = pneg %p1533
      $region118: #{transformer_block_forward.3} parent=5 // pred_check_branch
        %1536 = sbr.rel (%p1534) target = $region120
      $region119: #{transformer_block_forward.3} parent=5 // pred_region
        %s1537 = ssub.s32 %s29, 2
        // Predicated region
        $region121: #{transformer_block_forward.3} parent=119 // pred_check
          %p1538 = pneg %p378
        $region122: #{transformer_block_forward.3} parent=119 // pred_check_branch
          %1540 = sbr.rel (%p1538) target = $region124
        $region123: #{transformer_block_forward.3} parent=119 // pred_region
          %s1541 = sand.u32 %s363, 1
          %s1542 = scalar_lea.sflag [#allocation4], %s1541
          %s1543 = sand.u32 %s363, 1
          %s1544 = smul.addr %s1543, 8
          %s1545 = scalar_lea.vmem [#allocation16], %s1544
          %1547 = dma.done %s1542, 128
        $region124: #{transformer_block_forward.3} parent=119 // pred_fallthru
          _
      $region120: #{transformer_block_forward.3} parent=5 // pred_fallthru
        _
    $region6: #{transformer_block_forward.3} parent=1 // loop_footer
      %s33 = sadd.s32 1, %s29
    $region7: #{transformer_block_forward.3} parent=1 // loop_footer_branch
      %28 = sbr.rel target = $region3
    $region8: #{transformer_block_forward.3} parent=1 // loop_exit
      _
    %1548 = vsyncpa [#allocation3], 1
    %s1549 = scalar_lea.sflag [#allocation3], 1
    %1550 = vsyncpa %s1549, 1
    %1551 = vsyncpa [#allocation6], 1
    %1552 = vsyncpa [#allocation9], 1
    %1553 = vsyncpa [#allocation12], 1
    %1554 = vsyncpa [#allocation15], 1
    %1555 = vsyncpa [#allocation4], 1
    %s1556 = scalar_lea.sflag [#allocation4], 1
    %1557 = vsyncpa %s1556, 1

// kernel: transformer_block_forward.2
$region0: #{transformer_block_forward.2}
  #allocation0 [shape = 'u32[]', space=smem, size = 0x4, offset = 0x4, fixed_abs, tag = 'smem constant byte address 0x4 - core index']
  #allocation1 [shape = 'u32[72,128]{1,0:T(1,128)}', space=vmem, size = 0x9000, scoped, tag = 'internal scratch']
  %s0 = inlined_call_operand.vmem [shape: f32[2,8,32], index: 0, kind: input, shape index: {}]
  %s1 = inlined_call_operand.vmem [shape: bf16[32,32], index: 1, kind: input, shape index: {}]
  %s2 = inlined_call_operand.vmem [shape: f32[1,32], index: 2, kind: input, shape index: {}]
  %s3 = inlined_call_operand.hbm [shape: bf16[32,96], index: 3, kind: input, shape index: {}]
  %s4 = inlined_call_operand.hbm [shape: f32[1,96], index: 4, kind: input, shape index: {}]
  %s5 = inlined_call_operand.hbm [shape: bf16[32,32], index: 5, kind: input, shape index: {}]
  %s6 = inlined_call_operand.hbm [shape: f32[1,32], index: 6, kind: input, shape index: {}]
  %s7 = inlined_call_operand.hbm [shape: f32[1,32], index: 7, kind: input, shape index: {}]
  %s8 = inlined_call_operand.hbm [shape: f32[1,32], index: 8, kind: input, shape index: {}]
  %s9 = inlined_call_operand.hbm [shape: bf16[32,64], index: 9, kind: input, shape index: {}]
  %s10 = inlined_call_operand.hbm [shape: f32[1,64], index: 10, kind: input, shape index: {}]
  %s11 = inlined_call_operand.vmem [shape: bf16[64,32], index: 11, kind: input, shape index: {}]
  %s12 = inlined_call_operand.hbm [shape: f32[1,32], index: 12, kind: input, shape index: {}]
  %s13 = inlined_call_operand.hbm [shape: f32[1,32], index: 13, kind: input, shape index: {}]
  %s14 = inlined_call_operand.hbm [shape: f32[1,32], index: 14, kind: input, shape index: {}]
  %s15 = inlined_call_operand.vmem [shape: f32[2,8,32], index: 15, kind: output, shape index: {}]
  %s16 = sld [smem:[#allocation0]]
  $region137: #{transformer_block_forward.2} parent=0
    _
  %s18 = ssub.s32 1, %s16
  %s19 = scalar_select 0, %s18, %s16
  $region1: #{transformer_block_forward.2} parent=0
    #allocation2 [shape = 'u8[8192]{0}', space=vmem, size = 0x2000, scoped, tag = 'input window, operand 3, single buffered']
    #allocation3 [shape = 's32[2]{0}', space=sflag, size = 0x8, scoped, tag = 'scoped memory for transformer_block_forward.2']
    #allocation4 [shape = 'u8[512]{0}', space=vmem, size = 0x400, scoped, tag = 'input window, operand 4, single buffered']
    #allocation5 [shape = 's32[1]{0}', space=sflag, size = 0x4, scoped, tag = 'scoped memory for transformer_block_forward.2']
    #allocation6 [shape = 'u8[8192]{0}', space=vmem, size = 0x2000, scoped, tag = 'input window, operand 5, single buffered']
    #allocation7 [shape = 'u8[512]{0}', space=vmem, size = 0x400, scoped, tag = 'input window, operand 6, single buffered']
    #allocation8 [shape = 's32[1]{0}', space=sflag, size = 0x4, scoped, tag = 'scoped memory for transformer_block_forward.2']
    #allocation9 [shape = 'u8[512]{0}', space=vmem, size = 0x400, scoped, tag = 'input window, operand 7, single buffered']
    #allocation10 [shape = 'u8[512]{0}', space=vmem, size = 0x400, scoped, tag = 'input window, operand 8, single buffered']
    #allocation11 [shape = 's32[1]{0}', space=sflag, size = 0x4, scoped, tag = 'scoped memory for transformer_block_forward.2']
    #allocation12 [shape = 'u8[8192]{0}', space=vmem, size = 0x2000, scoped, tag = 'input window, operand 9, single buffered']
    #allocation13 [shape = 'u8[512]{0}', space=vmem, size = 0x400, scoped, tag = 'input window, operand 10, single buffered']
    #allocation14 [shape = 's32[1]{0}', space=sflag, size = 0x4, scoped, tag = 'scoped memory for transformer_block_forward.2']
    #allocation15 [shape = 'u8[512]{0}', space=vmem, size = 0x400, scoped, tag = 'input window, operand 12, single buffered']
    #allocation16 [shape = 'u8[512]{0}', space=vmem, size = 0x400, scoped, tag = 'input window, operand 13, single buffered']
    #allocation17 [shape = 's32[1]{0}', space=sflag, size = 0x4, scoped, tag = 'scoped memory for transformer_block_forward.2']
    #allocation18 [shape = 'u8[512]{0}', space=vmem, size = 0x400, scoped, tag = 'input window, operand 14, single buffered']
    %20 = vsyncpa [#allocation3], 0
    %21 = vsyncpa [#allocation5], 0
    %22 = vsyncpa [#allocation8], 0
    %23 = vsyncpa [#allocation11], 0
    %24 = vsyncpa [#allocation14], 0
    %25 = vsyncpa [#allocation17], 0
    loop: start=0, step=1, limit=4
    $region2: #{transformer_block_forward.2} parent=1 // loop_pre_header
      _
    $region3: #{transformer_block_forward.2} parent=1 // loop_header
      %s27 = sphi 0, %s31
      %p28 = scmp.ge.s32.totalorder %s27, 4
      %s37 = sphi 0, %s39
      %s40 = sphi 0, %s37
      %s41 = sphi 0, %s40
      %s57 = sphi 0, %s41
      %s61 = sphi 0, %s61
      %s63 = sphi 0, %s61
      %s64 = sphi 0, %s63
      %s78 = sphi 0, %s64
      %s82 = sphi 0, %s82
      %s84 = sphi 0, %s82
      %s85 = sphi 0, %s84
      %s99 = sphi 0, %s85
      %s103 = sphi 0, %s103
      %s105 = sphi 0, %s103
      %s106 = sphi 0, %s105
      %s120 = sphi 0, %s106
      %s124 = sphi 0, %s124
      %s126 = sphi 0, %s124
      %s127 = sphi 0, %s126
      %s141 = sphi 0, %s127
      %s145 = sphi 0, %s145
      %s147 = sphi 0, %s145
      %s148 = sphi 0, %s147
      %s162 = sphi 0, %s148
      %s166 = sphi 0, %s166
      %s168 = sphi 0, %s166
      %s169 = sphi 0, %s168
      %s183 = sphi 0, %s169
      %s187 = sphi 0, %s187
      %s189 = sphi 0, %s187
      %s190 = sphi 0, %s189
      %s204 = sphi 0, %s190
      %s208 = sphi 0, %s208
      %s210 = sphi 0, %s208
      %s211 = sphi 0, %s210
      %s225 = sphi 0, %s211
      %s229 = sphi 0, %s229
      %s231 = sphi 0, %s229
      %s232 = sphi 0, %s231
      %s246 = sphi 0, %s232
      %s250 = sphi 0, %s250
      %s252 = sphi 0, %s250
      %s253 = sphi 0, %s252
      %s267 = sphi 0, %s253
      %s271 = sphi 0, %s271
      %s273 = sphi 0, %s271
      %s274 = sphi 0, %s273
      %s288 = sphi 0, %s274
      %s292 = sphi 0, %s292
      %s294 = sphi 0, %s292
      %s295 = sphi 0, %s294
      %s309 = sphi 0, %s295
      %s313 = sphi 0, %s313
      %s315 = sphi 0, %s313
      %s316 = sphi 0, %s315
      %s330 = sphi 0, %s316
      %s334 = sphi 0, %s334
      %s336 = sphi 0, %s334
      %s337 = sphi 0, %s336
      %s351 = sphi 0, %s337
      %s357 = sphi 0, %s359
      %s360 = sphi 0, %s357
      %s361 = sphi 0, %s360
      %s377 = sphi 0, %s361
    $region4: #{transformer_block_forward.2} parent=1 // loop_header_branch
      %30 = sbr.rel (%p28) target = $region8
    $region5: #{transformer_block_forward.2} parent=1 // loop_body
      %s32 = ssub.s32 %s27, 1
      %s33 = ssub.s32 %s27, 2
      %s34 = sadd.s32 %s27, 1
      %s35 = ssub.s32 %s27, %s34
      %p36 = scmp.eq.s32.totalorder %s35, 0
      %s38 = sadd.s32 %s37, 1
      %s39 = scalar_select %p36, %s37, %s38
      %p42 = pneg %p36
      %p43 = scmp.eq.s32.totalorder %s27, 1
      %p44 = por %p42, %p43
      %p45 = scmp.ne.s32.totalorder %s37, %s40
      %p46 = scmp.eq.s32.totalorder %s27, 0
      %p47 = por %p45, %p46
      %p48 = scmp.ne.s32.totalorder %s37, %s40
      %p49 = scmp.eq.s32.totalorder %s32, 1
      %p50 = por %p48, %p49
      %p51 = scmp.ne.s32.totalorder %s40, %s41
      %p52 = scmp.eq.s32.totalorder %s32, 0
      %p53 = por %p51, %p52
      %p54 = scmp.ne.s32.totalorder %s40, %s41
      %p55 = scmp.eq.s32.totalorder %s33, 1
      %p56 = por %p54, %p55
      %p58 = scmp.ne.s32.totalorder %s41, %s57
      %p59 = scmp.eq.s32.totalorder %s33, 0
      %p60 = por %p58, %p59
      %s62 = sadd.s32 %s61, 1
      %p65 = scmp.eq.s32.totalorder %s27, 1
      %p66 = scmp.ne.s32.totalorder %s61, %s63
      %p67 = scmp.eq.s32.totalorder %s27, 0
      %p68 = por %p66, %p67
      %p69 = scmp.ne.s32.totalorder %s61, %s63
      %p70 = scmp.eq.s32.totalorder %s32, 1
      %p71 = por %p69, %p70
      %p72 = scmp.ne.s32.totalorder %s63, %s64
      %p73 = scmp.eq.s32.totalorder %s32, 0
      %p74 = por %p72, %p73
      %p75 = scmp.ne.s32.totalorder %s63, %s64
      %p76 = scmp.eq.s32.totalorder %s33, 1
      %p77 = por %p75, %p76
      %p79 = scmp.ne.s32.totalorder %s64, %s78
      %p80 = scmp.eq.s32.totalorder %s33, 0
      %p81 = por %p79, %p80
      %s83 = sadd.s32 %s82, 1
      %p86 = scmp.eq.s32.totalorder %s27, 1
      %p87 = scmp.ne.s32.totalorder %s82, %s84
      %p88 = scmp.eq.s32.totalorder %s27, 0
      %p89 = por %p87, %p88
      %p90 = scmp.ne.s32.totalorder %s82, %s84
      %p91 = scmp.eq.s32.totalorder %s32, 1
      %p92 = por %p90, %p91
      %p93 = scmp.ne.s32.totalorder %s84, %s85
      %p94 = scmp.eq.s32.totalorder %s32, 0
      %p95 = por %p93, %p94
      %p96 = scmp.ne.s32.totalorder %s84, %s85
      %p97 = scmp.eq.s32.totalorder %s33, 1
      %p98 = por %p96, %p97
      %p100 = scmp.ne.s32.totalorder %s85, %s99
      %p101 = scmp.eq.s32.totalorder %s33, 0
      %p102 = por %p100, %p101
      %s104 = sadd.s32 %s103, 1
      %p107 = scmp.eq.s32.totalorder %s27, 1
      %p108 = scmp.ne.s32.totalorder %s103, %s105
      %p109 = scmp.eq.s32.totalorder %s27, 0
      %p110 = por %p108, %p109
      %p111 = scmp.ne.s32.totalorder %s103, %s105
      %p112 = scmp.eq.s32.totalorder %s32, 1
      %p113 = por %p111, %p112
      %p114 = scmp.ne.s32.totalorder %s105, %s106
      %p115 = scmp.eq.s32.totalorder %s32, 0
      %p116 = por %p114, %p115
      %p117 = scmp.ne.s32.totalorder %s105, %s106
      %p118 = scmp.eq.s32.totalorder %s33, 1
      %p119 = por %p117, %p118
      %p121 = scmp.ne.s32.totalorder %s106, %s120
      %p122 = scmp.eq.s32.totalorder %s33, 0
      %p123 = por %p121, %p122
      %s125 = sadd.s32 %s124, 1
      %p128 = scmp.eq.s32.totalorder %s27, 1
      %p129 = scmp.ne.s32.totalorder %s124, %s126
      %p130 = scmp.eq.s32.totalorder %s27, 0
      %p131 = por %p129, %p130
      %p132 = scmp.ne.s32.totalorder %s124, %s126
      %p133 = scmp.eq.s32.totalorder %s32, 1
      %p134 = por %p132, %p133
      %p135 = scmp.ne.s32.totalorder %s126, %s127
      %p136 = scmp.eq.s32.totalorder %s32, 0
      %p137 = por %p135, %p136
      %p138 = scmp.ne.s32.totalorder %s126, %s127
      %p139 = scmp.eq.s32.totalorder %s33, 1
      %p140 = por %p138, %p139
      %p142 = scmp.ne.s32.totalorder %s127, %s141
      %p143 = scmp.eq.s32.totalorder %s33, 0
      %p144 = por %p142, %p143
      %s146 = sadd.s32 %s145, 1
      %p149 = scmp.eq.s32.totalorder %s27, 1
      %p150 = scmp.ne.s32.totalorder %s145, %s147
      %p151 = scmp.eq.s32.totalorder %s27, 0
      %p152 = por %p150, %p151
      %p153 = scmp.ne.s32.totalorder %s145, %s147
      %p154 = scmp.eq.s32.totalorder %s32, 1
      %p155 = por %p153, %p154
      %p156 = scmp.ne.s32.totalorder %s147, %s148
      %p157 = scmp.eq.s32.totalorder %s32, 0
      %p158 = por %p156, %p157
      %p159 = scmp.ne.s32.totalorder %s147, %s148
      %p160 = scmp.eq.s32.totalorder %s33, 1
      %p161 = por %p159, %p160
      %p163 = scmp.ne.s32.totalorder %s148, %s162
      %p164 = scmp.eq.s32.totalorder %s33, 0
      %p165 = por %p163, %p164
      %s167 = sadd.s32 %s166, 1
      %p170 = scmp.eq.s32.totalorder %s27, 1
      %p171 = scmp.ne.s32.totalorder %s166, %s168
      %p172 = scmp.eq.s32.totalorder %s27, 0
      %p173 = por %p171, %p172
      %p174 = scmp.ne.s32.totalorder %s166, %s168
      %p175 = scmp.eq.s32.totalorder %s32, 1
      %p176 = por %p174, %p175
      %p177 = scmp.ne.s32.totalorder %s168, %s169
      %p178 = scmp.eq.s32.totalorder %s32, 0
      %p179 = por %p177, %p178
      %p180 = scmp.ne.s32.totalorder %s168, %s169
      %p181 = scmp.eq.s32.totalorder %s33, 1
      %p182 = por %p180, %p181
      %p184 = scmp.ne.s32.totalorder %s169, %s183
      %p185 = scmp.eq.s32.totalorder %s33, 0
      %p186 = por %p184, %p185
      %s188 = sadd.s32 %s187, 1
      %p191 = scmp.eq.s32.totalorder %s27, 1
      %p192 = scmp.ne.s32.totalorder %s187, %s189
      %p193 = scmp.eq.s32.totalorder %s27, 0
      %p194 = por %p192, %p193
      %p195 = scmp.ne.s32.totalorder %s187, %s189
      %p196 = scmp.eq.s32.totalorder %s32, 1
      %p197 = por %p195, %p196
      %p198 = scmp.ne.s32.totalorder %s189, %s190
      %p199 = scmp.eq.s32.totalorder %s32, 0
      %p200 = por %p198, %p199
      %p201 = scmp.ne.s32.totalorder %s189, %s190
      %p202 = scmp.eq.s32.totalorder %s33, 1
      %p203 = por %p201, %p202
      %p205 = scmp.ne.s32.totalorder %s190, %s204
      %p206 = scmp.eq.s32.totalorder %s33, 0
      %p207 = por %p205, %p206
      %s209 = sadd.s32 %s208, 1
      %p212 = scmp.eq.s32.totalorder %s27, 1
      %p213 = scmp.ne.s32.totalorder %s208, %s210
      %p214 = scmp.eq.s32.totalorder %s27, 0
      %p215 = por %p213, %p214
      %p216 = scmp.ne.s32.totalorder %s208, %s210
      %p217 = scmp.eq.s32.totalorder %s32, 1
      %p218 = por %p216, %p217
      %p219 = scmp.ne.s32.totalorder %s210, %s211
      %p220 = scmp.eq.s32.totalorder %s32, 0
      %p221 = por %p219, %p220
      %p222 = scmp.ne.s32.totalorder %s210, %s211
      %p223 = scmp.eq.s32.totalorder %s33, 1
      %p224 = por %p222, %p223
      %p226 = scmp.ne.s32.totalorder %s211, %s225
      %p227 = scmp.eq.s32.totalorder %s33, 0
      %p228 = por %p226, %p227
      %s230 = sadd.s32 %s229, 1
      %p233 = scmp.eq.s32.totalorder %s27, 1
      %p234 = scmp.ne.s32.totalorder %s229, %s231
      %p235 = scmp.eq.s32.totalorder %s27, 0
      %p236 = por %p234, %p235
      %p237 = scmp.ne.s32.totalorder %s229, %s231
      %p238 = scmp.eq.s32.totalorder %s32, 1
      %p239 = por %p237, %p238
      %p240 = scmp.ne.s32.totalorder %s231, %s232
      %p241 = scmp.eq.s32.totalorder %s32, 0
      %p242 = por %p240, %p241
      %p243 = scmp.ne.s32.totalorder %s231, %s232
      %p244 = scmp.eq.s32.totalorder %s33, 1
      %p245 = por %p243, %p244
      %p247 = scmp.ne.s32.totalorder %s232, %s246
      %p248 = scmp.eq.s32.totalorder %s33, 0
      %p249 = por %p247, %p248
      %s251 = sadd.s32 %s250, 1
      %p254 = scmp.eq.s32.totalorder %s27, 1
      %p255 = scmp.ne.s32.totalorder %s250, %s252
      %p256 = scmp.eq.s32.totalorder %s27, 0
      %p257 = por %p255, %p256
      %p258 = scmp.ne.s32.totalorder %s250, %s252
      %p259 = scmp.eq.s32.totalorder %s32, 1
      %p260 = por %p258, %p259
      %p261 = scmp.ne.s32.totalorder %s252, %s253
      %p262 = scmp.eq.s32.totalorder %s32, 0
      %p263 = por %p261, %p262
      %p264 = scmp.ne.s32.totalorder %s252, %s253
      %p265 = scmp.eq.s32.totalorder %s33, 1
      %p266 = por %p264, %p265
      %p268 = scmp.ne.s32.totalorder %s253, %s267
      %p269 = scmp.eq.s32.totalorder %s33, 0
      %p270 = por %p268, %p269
      %s272 = sadd.s32 %s271, 1
      %p275 = scmp.eq.s32.totalorder %s27, 1
      %p276 = scmp.ne.s32.totalorder %s271, %s273
      %p277 = scmp.eq.s32.totalorder %s27, 0
      %p278 = por %p276, %p277
      %p279 = scmp.ne.s32.totalorder %s271, %s273
      %p280 = scmp.eq.s32.totalorder %s32, 1
      %p281 = por %p279, %p280
      %p282 = scmp.ne.s32.totalorder %s273, %s274
      %p283 = scmp.eq.s32.totalorder %s32, 0
      %p284 = por %p282, %p283
      %p285 = scmp.ne.s32.totalorder %s273, %s274
      %p286 = scmp.eq.s32.totalorder %s33, 1
      %p287 = por %p285, %p286
      %p289 = scmp.ne.s32.totalorder %s274, %s288
      %p290 = scmp.eq.s32.totalorder %s33, 0
      %p291 = por %p289, %p290
      %s293 = sadd.s32 %s292, 1
      %p296 = scmp.eq.s32.totalorder %s27, 1
      %p297 = scmp.ne.s32.totalorder %s292, %s294
      %p298 = scmp.eq.s32.totalorder %s27, 0
      %p299 = por %p297, %p298
      %p300 = scmp.ne.s32.totalorder %s292, %s294
      %p301 = scmp.eq.s32.totalorder %s32, 1
      %p302 = por %p300, %p301
      %p303 = scmp.ne.s32.totalorder %s294, %s295
      %p304 = scmp.eq.s32.totalorder %s32, 0
      %p305 = por %p303, %p304
      %p306 = scmp.ne.s32.totalorder %s294, %s295
      %p307 = scmp.eq.s32.totalorder %s33, 1
      %p308 = por %p306, %p307
      %p310 = scmp.ne.s32.totalorder %s295, %s309
      %p311 = scmp.eq.s32.totalorder %s33, 0
      %p312 = por %p310, %p311
      %s314 = sadd.s32 %s313, 1
      %p317 = scmp.eq.s32.totalorder %s27, 1
      %p318 = scmp.ne.s32.totalorder %s313, %s315
      %p319 = scmp.eq.s32.totalorder %s27, 0
      %p320 = por %p318, %p319
      %p321 = scmp.ne.s32.totalorder %s313, %s315
      %p322 = scmp.eq.s32.totalorder %s32, 1
      %p323 = por %p321, %p322
      %p324 = scmp.ne.s32.totalorder %s315, %s316
      %p325 = scmp.eq.s32.totalorder %s32, 0
      %p326 = por %p324, %p325
      %p327 = scmp.ne.s32.totalorder %s315, %s316
      %p328 = scmp.eq.s32.totalorder %s33, 1
      %p329 = por %p327, %p328
      %p331 = scmp.ne.s32.totalorder %s316, %s330
      %p332 = scmp.eq.s32.totalorder %s33, 0
      %p333 = por %p331, %p332
      %s335 = sadd.s32 %s334, 1
      %p338 = scmp.eq.s32.totalorder %s27, 1
      %p339 = scmp.ne.s32.totalorder %s334, %s336
      %p340 = scmp.eq.s32.totalorder %s27, 0
      %p341 = por %p339, %p340
      %p342 = scmp.ne.s32.totalorder %s334, %s336
      %p343 = scmp.eq.s32.totalorder %s32, 1
      %p344 = por %p342, %p343
      %p345 = scmp.ne.s32.totalorder %s336, %s337
      %p346 = scmp.eq.s32.totalorder %s32, 0
      %p347 = por %p345, %p346
      %p348 = scmp.ne.s32.totalorder %s336, %s337
      %p349 = scmp.eq.s32.totalorder %s33, 1
      %p350 = por %p348, %p349
      %p352 = scmp.ne.s32.totalorder %s337, %s351
      %p353 = scmp.eq.s32.totalorder %s33, 0
      %p354 = por %p352, %p353
      %s355 = ssub.s32 %s27, %s34
      %p356 = scmp.eq.s32.totalorder %s355, 0
      %s358 = sadd.s32 %s357, 1
      %s359 = scalar_select %p356, %s357, %s358
      %p362 = pneg %p356
      %p363 = scmp.eq.s32.totalorder %s27, 1
      %p364 = por %p362, %p363
      %p365 = scmp.ne.s32.totalorder %s357, %s360
      %p366 = scmp.eq.s32.totalorder %s27, 0
      %p367 = por %p365, %p366
      %p368 = scmp.ne.s32.totalorder %s357, %s360
      %p369 = scmp.eq.s32.totalorder %s32, 1
      %p370 = por %p368, %p369
      %p371 = scmp.ne.s32.totalorder %s360, %s361
      %p372 = scmp.eq.s32.totalorder %s32, 0
      %p373 = por %p371, %p372
      %p374 = scmp.ne.s32.totalorder %s360, %s361
      %p375 = scmp.eq.s32.totalorder %s33, 1
      %p376 = por %p374, %p375
      %p378 = scmp.ne.s32.totalorder %s361, %s377
      %p379 = scmp.eq.s32.totalorder %s33, 0
      %p380 = por %p378, %p379
      %p381 = scmp.le.s32.totalorder 1, %s27
      %p382 = scmp.lt.s32.totalorder %s27, 3
      %p383 = pnand %p381, %p382
      %p384 = pneg %p383
      // Predicated region
      $region9: #{transformer_block_forward.2} parent=5 // pred_check
        _
      $region10: #{transformer_block_forward.2} parent=5 // pred_check_branch
        %386 = sbr.rel (%p383) target = $region12
      $region11: #{transformer_block_forward.2} parent=5 // pred_region
        %s387 = ssub.s32 %s27, 1
        // Predicated region
        $region13: #{transformer_block_forward.2} parent=11 // pred_check
          %p388 = pneg %p74
        $region14: #{transformer_block_forward.2} parent=11 // pred_check_branch
          %390 = sbr.rel (%p388) target = $region16
        $region15: #{transformer_block_forward.2} parent=11 // pred_region
          _
        $region16: #{transformer_block_forward.2} parent=11 // pred_fallthru
          _
        // Predicated region
        $region17: #{transformer_block_forward.2} parent=11 // pred_check
          %p391 = pneg %p95
        $region18: #{transformer_block_forward.2} parent=11 // pred_check_branch
          %393 = sbr.rel (%p391) target = $region20
        $region19: #{transformer_block_forward.2} parent=11 // pred_region
          _
        $region20: #{transformer_block_forward.2} parent=11 // pred_fallthru
          _
        // Predicated region
        $region21: #{transformer_block_forward.2} parent=11 // pred_check
          %p394 = pneg %p116
        $region22: #{transformer_block_forward.2} parent=11 // pred_check_branch
          %396 = sbr.rel (%p394) target = $region24
        $region23: #{transformer_block_forward.2} parent=11 // pred_region
          %398 = vsyncadd [#allocation3], 0
          %s399 = sshll.u32 %s3, 4
          %s400 = int_to_ptr.hbm [resolvable:$true] %s399
          %s401 = sshll.u32 [#allocation2], 4
          %s402 = int_to_ptr.vmem [resolvable:$true] %s401
          %407 = dma.hbm_to_vmem [thread:$0]  %s400, 256, %s402, [#allocation3], 64, 64, 4
        $region24: #{transformer_block_forward.2} parent=11 // pred_fallthru
          _
        // Predicated region
        $region25: #{transformer_block_forward.2} parent=11 // pred_check
          %p408 = pneg %p137
        $region26: #{transformer_block_forward.2} parent=11 // pred_check_branch
          %410 = sbr.rel (%p408) target = $region28
        $region27: #{transformer_block_forward.2} parent=11 // pred_region
          %412 = vsyncadd [#allocation5], 0
          %s414 = sshll.u32 %s4, 4
          %s415 = int_to_ptr.hbm [resolvable:$true] %s414
          %s416 = sshll.u32 [#allocation4], 4
          %s417 = int_to_ptr.vmem [resolvable:$true] %s416
          %419 = dma.hbm_to_vmem [thread:$0]  %s415, 16, %s417, [#allocation5]
        $region28: #{transformer_block_forward.2} parent=11 // pred_fallthru
          _
        // Predicated region
        $region29: #{transformer_block_forward.2} parent=11 // pred_check
          %p420 = pneg %p158
        $region30: #{transformer_block_forward.2} parent=11 // pred_check_branch
          %422 = sbr.rel (%p420) target = $region32
        $region31: #{transformer_block_forward.2} parent=11 // pred_region
          %424 = vsyncadd [#allocation5], 0
          %s425 = sshll.u32 %s5, 4
          %s426 = int_to_ptr.hbm [resolvable:$true] %s425
          %s427 = sshll.u32 [#allocation6], 4
          %s428 = int_to_ptr.vmem [resolvable:$true] %s427
          %433 = dma.hbm_to_vmem [thread:$0]  %s426, 256, %s428, [#allocation5], 64, 64, 4
        $region32: #{transformer_block_forward.2} parent=11 // pred_fallthru
          _
        // Predicated region
        $region33: #{transformer_block_forward.2} parent=11 // pred_check
          %p434 = pneg %p179
        $region34: #{transformer_block_forward.2} parent=11 // pred_check_branch
          %436 = sbr.rel (%p434) target = $region36
        $region35: #{transformer_block_forward.2} parent=11 // pred_region
          %438 = vsyncadd [#allocation8], 0
          %s440 = sshll.u32 %s6, 4
          %s441 = int_to_ptr.hbm [resolvable:$true] %s440
          %s442 = sshll.u32 [#allocation7], 4
          %s443 = int_to_ptr.vmem [resolvable:$true] %s442
          %445 = dma.hbm_to_vmem [thread:$0]  %s441, 16, %s443, [#allocation8]
        $region36: #{transformer_block_forward.2} parent=11 // pred_fallthru
          _
        // Predicated region
        $region37: #{transformer_block_forward.2} parent=11 // pred_check
          %p446 = pneg %p200
        $region38: #{transformer_block_forward.2} parent=11 // pred_check_branch
          %448 = sbr.rel (%p446) target = $region40
        $region39: #{transformer_block_forward.2} parent=11 // pred_region
          %450 = vsyncadd [#allocation8], 0
          %s452 = sshll.u32 %s7, 4
          %s453 = int_to_ptr.hbm [resolvable:$true] %s452
          %s454 = sshll.u32 [#allocation9], 4
          %s455 = int_to_ptr.vmem [resolvable:$true] %s454
          %457 = dma.hbm_to_vmem [thread:$0]  %s453, 16, %s455, [#allocation8]
        $region40: #{transformer_block_forward.2} parent=11 // pred_fallthru
          _
        // Predicated region
        $region41: #{transformer_block_forward.2} parent=11 // pred_check
          %p458 = pneg %p221
        $region42: #{transformer_block_forward.2} parent=11 // pred_check_branch
          %460 = sbr.rel (%p458) target = $region44
        $region43: #{transformer_block_forward.2} parent=11 // pred_region
          %462 = vsyncadd [#allocation11], 0
          %s464 = sshll.u32 %s8, 4
          %s465 = int_to_ptr.hbm [resolvable:$true] %s464
          %s466 = sshll.u32 [#allocation10], 4
          %s467 = int_to_ptr.vmem [resolvable:$true] %s466
          %469 = dma.hbm_to_vmem [thread:$0]  %s465, 16, %s467, [#allocation11]
        $region44: #{transformer_block_forward.2} parent=11 // pred_fallthru
          _
        // Predicated region
        $region45: #{transformer_block_forward.2} parent=11 // pred_check
          %p470 = pneg %p242
        $region46: #{transformer_block_forward.2} parent=11 // pred_check_branch
          %472 = sbr.rel (%p470) target = $region48
        $region47: #{transformer_block_forward.2} parent=11 // pred_region
          %474 = vsyncadd [#allocation11], 0
          %s475 = sshll.u32 %s9, 4
          %s476 = int_to_ptr.hbm [resolvable:$true] %s475
          %s477 = sshll.u32 [#allocation12], 4
          %s478 = int_to_ptr.vmem [resolvable:$true] %s477
          %483 = dma.hbm_to_vmem [thread:$0]  %s476, 256, %s478, [#allocation11], 64, 64, 4
        $region48: #{transformer_block_forward.2} parent=11 // pred_fallthru
          _
        // Predicated region
        $region49: #{transformer_block_forward.2} parent=11 // pred_check
          %p484 = pneg %p263
        $region50: #{transformer_block_forward.2} parent=11 // pred_check_branch
          %486 = sbr.rel (%p484) target = $region52
        $region51: #{transformer_block_forward.2} parent=11 // pred_region
          %488 = vsyncadd [#allocation14], 0
          %s490 = sshll.u32 %s10, 4
          %s491 = int_to_ptr.hbm [resolvable:$true] %s490
          %s492 = sshll.u32 [#allocation13], 4
          %s493 = int_to_ptr.vmem [resolvable:$true] %s492
          %495 = dma.hbm_to_vmem [thread:$0]  %s491, 16, %s493, [#allocation14]
        $region52: #{transformer_block_forward.2} parent=11 // pred_fallthru
          _
        // Predicated region
        $region53: #{transformer_block_forward.2} parent=11 // pred_check
          %p496 = pneg %p284
        $region54: #{transformer_block_forward.2} parent=11 // pred_check_branch
          %498 = sbr.rel (%p496) target = $region56
        $region55: #{transformer_block_forward.2} parent=11 // pred_region
          _
        $region56: #{transformer_block_forward.2} parent=11 // pred_fallthru
          _
        // Predicated region
        $region57: #{transformer_block_forward.2} parent=11 // pred_check
          %p499 = pneg %p305
        $region58: #{transformer_block_forward.2} parent=11 // pred_check_branch
          %501 = sbr.rel (%p499) target = $region60
        $region59: #{transformer_block_forward.2} parent=11 // pred_region
          %503 = vsyncadd [#allocation14], 0
          %s505 = sshll.u32 %s12, 4
          %s506 = int_to_ptr.hbm [resolvable:$true] %s505
          %s507 = sshll.u32 [#allocation15], 4
          %s508 = int_to_ptr.vmem [resolvable:$true] %s507
          %510 = dma.hbm_to_vmem [thread:$0]  %s506, 16, %s508, [#allocation14]
        $region60: #{transformer_block_forward.2} parent=11 // pred_fallthru
          _
        // Predicated region
        $region61: #{transformer_block_forward.2} parent=11 // pred_check
          %p511 = pneg %p326
        $region62: #{transformer_block_forward.2} parent=11 // pred_check_branch
          %513 = sbr.rel (%p511) target = $region64
        $region63: #{transformer_block_forward.2} parent=11 // pred_region
          %515 = vsyncadd [#allocation17], 0
          %s517 = sshll.u32 %s13, 4
          %s518 = int_to_ptr.hbm [resolvable:$true] %s517
          %s519 = sshll.u32 [#allocation16], 4
          %s520 = int_to_ptr.vmem [resolvable:$true] %s519
          %522 = dma.hbm_to_vmem [thread:$0]  %s518, 16, %s520, [#allocation17]
        $region64: #{transformer_block_forward.2} parent=11 // pred_fallthru
          _
        // Predicated region
        $region65: #{transformer_block_forward.2} parent=11 // pred_check
          %p523 = pneg %p347
        $region66: #{transformer_block_forward.2} parent=11 // pred_check_branch
          %525 = sbr.rel (%p523) target = $region68
        $region67: #{transformer_block_forward.2} parent=11 // pred_region
          %527 = vsyncadd [#allocation17], 0
          %s529 = sshll.u32 %s14, 4
          %s530 = int_to_ptr.hbm [resolvable:$true] %s529
          %s531 = sshll.u32 [#allocation18], 4
          %s532 = int_to_ptr.vmem [resolvable:$true] %s531
          %534 = dma.hbm_to_vmem [thread:$0]  %s530, 16, %s532, [#allocation17]
        $region68: #{transformer_block_forward.2} parent=11 // pred_fallthru
          _
      $region12: #{transformer_block_forward.2} parent=5 // pred_fallthru
        _
      %p535 = scmp.lt.s32.totalorder %s27, 2
      // Predicated region
      $region69: #{transformer_block_forward.2} parent=5 // pred_check
        %p536 = pneg %p535
      $region70: #{transformer_block_forward.2} parent=5 // pred_check_branch
        %538 = sbr.rel (%p536) target = $region72
      $region71: #{transformer_block_forward.2} parent=5 // pred_region
        // Predicated region
        $region73: #{transformer_block_forward.2} parent=71 // pred_check
          %p539 = pneg %p47
        $region74: #{transformer_block_forward.2} parent=71 // pred_check_branch
          %541 = sbr.rel (%p539) target = $region76
        $region75: #{transformer_block_forward.2} parent=71 // pred_region
          %p542 = scmp.lt.s32.totalorder %s27, 1
          %s543 = scalar_select %p542, %s27, 1
          %s544 = smul.addr %s543, 8
          %s545 = scalar_lea.vmem %s0, %s544
        $region76: #{transformer_block_forward.2} parent=71 // pred_fallthru
          _
      $region72: #{transformer_block_forward.2} parent=5 // pred_fallthru
        _
      %p546 = scmp.le.s32.totalorder 1, %s27
      %p547 = scmp.lt.s32.totalorder %s27, 3
      %p548 = pnand %p546, %p547
      %p549 = pneg %p548
      // Predicated region
      $region77: #{transformer_block_forward.2} parent=5 // pred_check
        _
      $region78: #{transformer_block_forward.2} parent=5 // pred_check_branch
        %551 = sbr.rel (%p548) target = $region80
      $region79: #{transformer_block_forward.2} parent=5 // pred_region
        %s552 = ssub.s32 %s27, 1
        // Predicated region
        $region81: #{transformer_block_forward.2} parent=79 // pred_check
          %p553 = pneg %p116
        $region82: #{transformer_block_forward.2} parent=79 // pred_check_branch
          %555 = sbr.rel (%p553) target = $region84
        $region83: #{transformer_block_forward.2} parent=79 // pred_region
          %557 = dma.done [#allocation3], 256
        $region84: #{transformer_block_forward.2} parent=79 // pred_fallthru
          _
        // Predicated region
        $region85: #{transformer_block_forward.2} parent=79 // pred_check
          %p558 = pneg %p137
        $region86: #{transformer_block_forward.2} parent=79 // pred_check_branch
          %560 = sbr.rel (%p558) target = $region88
        $region87: #{transformer_block_forward.2} parent=79 // pred_region
          %562 = dma.done [#allocation5], 16
        $region88: #{transformer_block_forward.2} parent=79 // pred_fallthru
          _
        // Predicated region
        $region89: #{transformer_block_forward.2} parent=79 // pred_check
          %p563 = pneg %p158
        $region90: #{transformer_block_forward.2} parent=79 // pred_check_branch
          %565 = sbr.rel (%p563) target = $region92
        $region91: #{transformer_block_forward.2} parent=79 // pred_region
          %567 = dma.done [#allocation5], 256
        $region92: #{transformer_block_forward.2} parent=79 // pred_fallthru
          _
        // Predicated region
        $region93: #{transformer_block_forward.2} parent=79 // pred_check
          %p568 = pneg %p179
        $region94: #{transformer_block_forward.2} parent=79 // pred_check_branch
          %570 = sbr.rel (%p568) target = $region96
        $region95: #{transformer_block_forward.2} parent=79 // pred_region
          %572 = dma.done [#allocation8], 16
        $region96: #{transformer_block_forward.2} parent=79 // pred_fallthru
          _
        // Predicated region
        $region97: #{transformer_block_forward.2} parent=79 // pred_check
          %p573 = pneg %p200
        $region98: #{transformer_block_forward.2} parent=79 // pred_check_branch
          %575 = sbr.rel (%p573) target = $region100
        $region99: #{transformer_block_forward.2} parent=79 // pred_region
          %577 = dma.done [#allocation8], 16
        $region100: #{transformer_block_forward.2} parent=79 // pred_fallthru
          _
        // Predicated region
        $region101: #{transformer_block_forward.2} parent=79 // pred_check
          %p578 = pneg %p221
        $region102: #{transformer_block_forward.2} parent=79 // pred_check_branch
          %580 = sbr.rel (%p578) target = $region104
        $region103: #{transformer_block_forward.2} parent=79 // pred_region
          %582 = dma.done [#allocation11], 16
        $region104: #{transformer_block_forward.2} parent=79 // pred_fallthru
          _
        // Predicated region
        $region105: #{transformer_block_forward.2} parent=79 // pred_check
          %p583 = pneg %p242
        $region106: #{transformer_block_forward.2} parent=79 // pred_check_branch
          %585 = sbr.rel (%p583) target = $region108
        $region107: #{transformer_block_forward.2} parent=79 // pred_region
          %587 = dma.done [#allocation11], 256
        $region108: #{transformer_block_forward.2} parent=79 // pred_fallthru
          _
        // Predicated region
        $region109: #{transformer_block_forward.2} parent=79 // pred_check
          %p588 = pneg %p263
        $region110: #{transformer_block_forward.2} parent=79 // pred_check_branch
          %590 = sbr.rel (%p588) target = $region112
        $region111: #{transformer_block_forward.2} parent=79 // pred_region
          %592 = dma.done [#allocation14], 16
        $region112: #{transformer_block_forward.2} parent=79 // pred_fallthru
          _
        // Predicated region
        $region113: #{transformer_block_forward.2} parent=79 // pred_check
          %p593 = pneg %p305
        $region114: #{transformer_block_forward.2} parent=79 // pred_check_branch
          %595 = sbr.rel (%p593) target = $region116
        $region115: #{transformer_block_forward.2} parent=79 // pred_region
          %597 = dma.done [#allocation14], 16
        $region116: #{transformer_block_forward.2} parent=79 // pred_fallthru
          _
        // Predicated region
        $region117: #{transformer_block_forward.2} parent=79 // pred_check
          %p598 = pneg %p326
        $region118: #{transformer_block_forward.2} parent=79 // pred_check_branch
          %600 = sbr.rel (%p598) target = $region120
        $region119: #{transformer_block_forward.2} parent=79 // pred_region
          %602 = dma.done [#allocation17], 16
        $region120: #{transformer_block_forward.2} parent=79 // pred_fallthru
          _
        // Predicated region
        $region121: #{transformer_block_forward.2} parent=79 // pred_check
          %p603 = pneg %p347
        $region122: #{transformer_block_forward.2} parent=79 // pred_check_branch
          %605 = sbr.rel (%p603) target = $region124
        $region123: #{transformer_block_forward.2} parent=79 // pred_region
          %607 = dma.done [#allocation17], 16
        $region124: #{transformer_block_forward.2} parent=79 // pred_fallthru
          _
        %p608 = scmp.lt.s32.totalorder %s32, 1
        %s609 = scalar_select %p608, %s32, 1
        %s610 = smul.addr %s609, 8
        %s611 = scalar_lea.vmem %s0, %s610
        %p612 = pneg %p53
        %p613 = pneg %p50
        %p614 = pneg %p74
        %p615 = pneg %p71
        %p616 = pneg %p95
        %p617 = pneg %p92
        %p618 = pneg %p116
        %p619 = pneg %p113
        %p620 = pneg %p137
        %p621 = pneg %p134
        %p622 = pneg %p158
        %p623 = pneg %p155
        %p624 = pneg %p179
        %p625 = pneg %p176
        %p626 = pneg %p200
        %p627 = pneg %p197
        %p628 = pneg %p221
        %p629 = pneg %p218
        %p630 = pneg %p242
        %p631 = pneg %p239
        %p632 = pneg %p263
        %p633 = pneg %p260
        %p634 = pneg %p284
        %p635 = pneg %p281
        %p636 = pneg %p305
        %p637 = pneg %p302
        %p638 = pneg %p326
        %p639 = pneg %p323
        %p640 = pneg %p347
        %p641 = pneg %p344
        %p642 = pneg %p373
        %p643 = pneg %p370
        %p644 = scmp.lt.s32.totalorder %s32, 1
        %s645 = scalar_select %p644, %s32, 1
        %s646 = smul.addr %s645, 8
        %s647 = scalar_lea.vmem %s15, %s646
        %p648 = scmp.lt.s32.totalorder %s32, 1
        %s649 = scalar_select %p648, %s32, 1
        %s650 = smul.addr %s649, 8
        %s651 = scalar_lea.vmem %s0, %s650
        %p652 = scmp.lt.s32.totalorder %s32, 1
        %s653 = scalar_select %p652, %s32, 1
        %s654 = smul.addr %s653, 8
        %s655 = scalar_lea.vmem %s15, %s654
        %v657 = vld [vmem:[%s651] sm:$0xff]
        %v658 = vpack.c.bf16 %v657, %v657
        %v659 = vld [vmem:[%s1] sm:$0xf]
        %v660 = vld [vmem:[%s1 + $0x4] sm:$0xf]
        %v661 = vld [vmem:[%s1 + $0x8] sm:$0xf]
        %v662 = vld [vmem:[%s1 + $0xc] sm:$0xf]
        %v663 = vld [vmem:[%s2] sm:$0x1]
        %v665 = vperm.slane %v663, 0
        %v671 = vunpack.c.l.b16 %v659
        %v672 = vunpack.c.l.b16 %v660
        %v673 = vunpack.c.l.b16 %v661
        %v674 = vunpack.c.l.b16 %v662
        %v675 = vpack.c.b16 %v672, %v671
        %v676 = vpack.c.b16 %v674, %v673
        %vm679 = vcmask 261120
        %v681 = vsel %vm679, %v658, 0
        %683 = vmatpush.bf16.msra.mxu0 0
        %684 = vmatpush.bf16.msra.mxu0 0
        %685 = vmatpush.bf16.msra.mxu0 0
        %686 = vmatpush.bf16.msra.mxu0 0
        %687 = vmatpush.bf16.msra.mxu0 0
        %688 = vmatpush.bf16.msra.mxu0 0
        %689 = vmatpush.bf16.msra.mxu0 %v676
        %690 = vmatpush.bf16.msra.mxu0 %v675
        %691 = vmatmul.bf16.gmra.mxu0 %v681
        %v692 = vpop.f32.mrf.mxu0
        %v693 = vadd.f32 %v665, %v692
        %v694 = vpop.f32.mrf.mxu0
        %695 = vdwg.mxu0
        %v696 = vpack.c.bf16 %v693, %v693
        %v697 = vld [vmem:[#allocation2] sm:$0xf]
        %v698 = vld [vmem:[#allocation2 + $0x4] sm:$0xf]
        %v699 = vld [vmem:[#allocation2 + $0x8] sm:$0xf]
        %v700 = vld [vmem:[#allocation2 + $0xc] sm:$0xf]
        %v701 = vld [vmem:[#allocation4] sm:$0x1]
        %v703 = vperm.slane %v701, 0
        %v709 = vunpack.c.l.b16 %v697
        %v710 = vunpack.c.l.b16 %v698
        %v711 = vunpack.c.l.b16 %v699
        %v712 = vunpack.c.l.b16 %v700
        %v713 = vpack.c.b16 %v710, %v709
        %v714 = vpack.c.b16 %v712, %v711
        %v718 = vsel %vm679, %v696, 0
        %720 = vmatpush.bf16.msra.mxu0 0
        %721 = vmatpush.bf16.msra.mxu0 0
        %722 = vmatpush.bf16.msra.mxu0 0
        %723 = vmatpush.bf16.msra.mxu0 0
        %724 = vmatpush.bf16.msra.mxu0 0
        %725 = vmatpush.bf16.msra.mxu0 0
        %726 = vmatpush.bf16.msra.mxu0 %v714
        %727 = vmatpush.bf16.msra.mxu0 %v713
        %728 = vmatmul.bf16.gmra.mxu0 %v718
        %v729 = vpop.f32.mrf.mxu0
        %v730 = vadd.f32 %v703, %v729
        %v731 = vpop.f32.mrf.mxu0
        %732 = vdwg.mxu0
        %v733 = vpack.c.bf16 %v730, %v730
        %735 = vrot.lane.b32.xlu0 %v733, 120
        %v736 = vpop.permute.xlu0 %735
        %737 = vrot.lane.b32.xlu0 %v733, 112
        %v738 = vpop.permute.xlu0 %737
        %739 = vrot.lane.b32.xlu0 %v733, 104
        %v740 = vpop.permute.xlu0 %739
        %v741 = vunpack.c.l.b16 %v733
        %v742 = vunpack.c.l.b16 %v736
        %v743 = vunpack.c.l.b16 %v738
        %v744 = vunpack.c.l.b16 %v740
        %v745 = vpack.c.b16 %v741, %v741
        %v746 = vpack.c.b16 %v742, %v742
        %v747 = vpack.c.b16 %v743, %v743
        %v748 = vpack.c.b16 %v744, %v744
        %749 = vrot.lane.b32.xlu0 %v745, 96
        %v750 = vpop.permute.xlu0 %749
        %751 = vrot.lane.b32.xlu0 %v746, 96
        %v752 = vpop.permute.xlu0 %751
        %753 = vrot.lane.b32.xlu0 %v747, 96
        %v754 = vpop.permute.xlu0 %753
        %755 = vrot.lane.b32.xlu0 %v748, 96
        %v756 = vpop.permute.xlu0 %755
        %761 = vxpose.xlu0.c.b16.start [1/8] %v750, 128
        %762 = vxpose.xlu0.c.b16.cont [2/8] 0, 128
        %763 = vxpose.xlu0.c.b16.cont [3/8] 0, 128
        %764 = vxpose.xlu0.c.b16.cont [4/8] 0, 128
        %765 = vxpose.xlu0.c.b16.cont [5/8] 0, 128
        %766 = vxpose.xlu0.c.b16.cont [6/8] 0, 128
        %767 = vxpose.xlu0.c.b16.cont [7/8] 0, 128
        %768 = vxpose.xlu0.c.b16.end [8/8] 0, 128
        %v769 = vpop.trf.xlu0
        %v770 = vpop.trf.xlu0
        %v771 = vpop.trf.xlu0
        %v772 = vpop.trf.xlu0
        %v773 = vpop.trf.xlu0
        %v774 = vpop.trf.xlu0
        %v775 = vpop.trf.xlu0
        %v776 = vpop.trf.xlu0
        %777 = vxpose.xlu0.c.b16.start [1/8] %v752, 128
        %778 = vxpose.xlu0.c.b16.cont [2/8] 0, 128
        %779 = vxpose.xlu0.c.b16.cont [3/8] 0, 128
        %780 = vxpose.xlu0.c.b16.cont [4/8] 0, 128
        %781 = vxpose.xlu0.c.b16.cont [5/8] 0, 128
        %782 = vxpose.xlu0.c.b16.cont [6/8] 0, 128
        %783 = vxpose.xlu0.c.b16.cont [7/8] 0, 128
        %784 = vxpose.xlu0.c.b16.end [8/8] 0, 128
        %v785 = vpop.trf.xlu0
        %v786 = vpop.trf.xlu0
        %v787 = vpop.trf.xlu0
        %v788 = vpop.trf.xlu0
        %v789 = vpop.trf.xlu0
        %v790 = vpop.trf.xlu0
        %v791 = vpop.trf.xlu0
        %v792 = vpop.trf.xlu0
        %793 = vxpose.xlu0.c.b16.start [1/8] %v754, 128
        %794 = vxpose.xlu0.c.b16.cont [2/8] 0, 128
        %795 = vxpose.xlu0.c.b16.cont [3/8] 0, 128
        %796 = vxpose.xlu0.c.b16.cont [4/8] 0, 128
        %797 = vxpose.xlu0.c.b16.cont [5/8] 0, 128
        %798 = vxpose.xlu0.c.b16.cont [6/8] 0, 128
        %799 = vxpose.xlu0.c.b16.cont [7/8] 0, 128
        %800 = vxpose.xlu0.c.b16.end [8/8] 0, 128
        %v801 = vpop.trf.xlu0
        %v802 = vpop.trf.xlu0
        %v803 = vpop.trf.xlu0
        %v804 = vpop.trf.xlu0
        %v805 = vpop.trf.xlu0
        %v806 = vpop.trf.xlu0
        %v807 = vpop.trf.xlu0
        %v808 = vpop.trf.xlu0
        %809 = vxpose.xlu0.c.b16.start [1/8] %v756, 128
        %810 = vxpose.xlu0.c.b16.cont [2/8] 0, 128
        %811 = vxpose.xlu0.c.b16.cont [3/8] 0, 128
        %812 = vxpose.xlu0.c.b16.cont [4/8] 0, 128
        %813 = vxpose.xlu0.c.b16.cont [5/8] 0, 128
        %814 = vxpose.xlu0.c.b16.cont [6/8] 0, 128
        %815 = vxpose.xlu0.c.b16.cont [7/8] 0, 128
        %816 = vxpose.xlu0.c.b16.end [8/8] 0, 128
        %v817 = vpop.trf.xlu0
        %v818 = vpop.trf.xlu0
        %v819 = vpop.trf.xlu0
        %v820 = vpop.trf.xlu0
        %v821 = vpop.trf.xlu0
        %v822 = vpop.trf.xlu0
        %v823 = vpop.trf.xlu0
        %v824 = vpop.trf.xlu0
        %vm825 = vcmask 64512
        %v827 = vsel %vm825, %v733, 0
        %vm829 = vcmask 1043456
        %v831 = vsel %vm829, %v769, 0
        %833 = vmatpush.bf16.msra.mxu0 0
        %834 = vmatpush.bf16.msra.mxu0 0
        %835 = vmatpush.bf16.msra.mxu0 0
        %836 = vmatpush.bf16.msra.mxu0 0
        %837 = vmatpush.bf16.msra.mxu0 0
        %838 = vmatpush.bf16.msra.mxu0 0
        %839 = vmatpush.bf16.msra.mxu0 0
        %840 = vmatpush.bf16.msra.mxu0 %v831
        %841 = vmatmul.bf16.gmra.mxu0 %v827
        %v842 = vpop.f32.mrf.mxu0
        %v843 = vadd.f32 0.0, %v842
        %v844 = vpop.f32.mrf.mxu0
        %845 = vdwg.mxu0
        %v847 = vsel %vm825, %v736, 0
        %v850 = vsel %vm829, %v785, 0
        %852 = vmatpush.bf16.msra.mxu0 0
        %853 = vmatpush.bf16.msra.mxu0 0
        %854 = vmatpush.bf16.msra.mxu0 0
        %855 = vmatpush.bf16.msra.mxu0 0
        %856 = vmatpush.bf16.msra.mxu0 0
        %857 = vmatpush.bf16.msra.mxu0 0
        %858 = vmatpush.bf16.msra.mxu0 0
        %859 = vmatpush.bf16.msra.mxu0 %v850
        %860 = vmatmul.bf16.gmra.mxu0 %v847
        %v861 = vpop.f32.mrf.mxu0
        %v862 = vadd.f32 0.0, %v861
        %v863 = vpop.f32.mrf.mxu0
        %864 = vdwg.mxu0
        %v866 = vsel %vm825, %v738, 0
        %v869 = vsel %vm829, %v801, 0
        %871 = vmatpush.bf16.msra.mxu0 0
        %872 = vmatpush.bf16.msra.mxu0 0
        %873 = vmatpush.bf16.msra.mxu0 0
        %874 = vmatpush.bf16.msra.mxu0 0
        %875 = vmatpush.bf16.msra.mxu0 0
        %876 = vmatpush.bf16.msra.mxu0 0
        %877 = vmatpush.bf16.msra.mxu0 0
        %878 = vmatpush.bf16.msra.mxu0 %v869
        %879 = vmatmul.bf16.gmra.mxu0 %v866
        %v880 = vpop.f32.mrf.mxu0
        %v881 = vadd.f32 0.0, %v880
        %v882 = vpop.f32.mrf.mxu0
        %883 = vdwg.mxu0
        %v885 = vsel %vm825, %v740, 0
        %v888 = vsel %vm829, %v817, 0
        %890 = vmatpush.bf16.msra.mxu0 0
        %891 = vmatpush.bf16.msra.mxu0 0
        %892 = vmatpush.bf16.msra.mxu0 0
        %893 = vmatpush.bf16.msra.mxu0 0
        %894 = vmatpush.bf16.msra.mxu0 0
        %895 = vmatpush.bf16.msra.mxu0 0
        %896 = vmatpush.bf16.msra.mxu0 0
        %897 = vmatpush.bf16.msra.mxu0 %v888
        %898 = vmatmul.bf16.gmra.mxu0 %v885
        %v899 = vpop.f32.mrf.mxu0
        %v900 = vadd.f32 0.0, %v899
        %v901 = vpop.f32.mrf.mxu0
        %902 = vdwg.mxu0
        %v903 = vsel %vm825, %v843, -inf
        %904 = vmax.xlane.f32.xlu0 %v903
        %v905 = vpop.xlane.xlu0 %904
        %v906 = vsel %vm825, %v862, -inf
        %907 = vmax.xlane.f32.xlu0 %v906
        %v908 = vpop.xlane.xlu0 %907
        %v909 = vsel %vm825, %v881, -inf
        %910 = vmax.xlane.f32.xlu0 %v909
        %v911 = vpop.xlane.xlu0 %910
        %v912 = vsel %vm825, %v900, -inf
        %913 = vmax.xlane.f32.xlu0 %v912
        %v914 = vpop.xlane.xlu0 %913
        %v915 = vsub.f32 %v843, %v905
        %v916 = vsub.f32 %v862, %v908
        %v917 = vsub.f32 %v881, %v911
        %v918 = vsub.f32 %v900, %v914
        %v919 = vmul.f32 %v915, 1.442695
        %v920 = vpow.pop %v919
        %v921 = vmul.f32 %v916, 1.442695
        %v922 = vpow.pop %v921
        %v923 = vmul.f32 %v917, 1.442695
        %v924 = vpow.pop %v923
        %v925 = vmul.f32 %v918, 1.442695
        %v926 = vpow.pop %v925
        %v927 = vsel %vm825, %v920, 0.0
        %928 = vadd.xlane.f32.xlu0 %v927
        %v929 = vpop.xlane.xlu0 %928
        %v930 = vsel %vm825, %v922, 0.0
        %931 = vadd.xlane.f32.xlu0 %v930
        %v932 = vpop.xlane.xlu0 %931
        %v933 = vsel %vm825, %v924, 0.0
        %934 = vadd.xlane.f32.xlu0 %v933
        %v935 = vpop.xlane.xlu0 %934
        %v936 = vsel %vm825, %v926, 0.0
        %937 = vadd.xlane.f32.xlu0 %v936
        %v938 = vpop.xlane.xlu0 %937
        %v939 = vrcp.pop %v929
        %v940 = vrcp.pop %v932
        %v941 = vrcp.pop %v935
        %v942 = vrcp.pop %v938
        %v943 = vmul.f32 %v920, %v939
        %v944 = vmul.f32 %v922, %v940
        %v945 = vmul.f32 %v924, %v941
        %v946 = vmul.f32 %v926, %v942
        %v947 = vpack.c.bf16 %v943, %v943
        %v948 = vpack.c.bf16 %v944, %v944
        %v949 = vpack.c.bf16 %v945, %v945
        %v950 = vpack.c.bf16 %v946, %v946
        %951 = vrot.lane.b32.xlu0 %v745, 64
        %v952 = vpop.permute.xlu0 %951
        %953 = vrot.lane.b32.xlu0 %v746, 64
        %v954 = vpop.permute.xlu0 %953
        %955 = vrot.lane.b32.xlu0 %v747, 64
        %v956 = vpop.permute.xlu0 %955
        %957 = vrot.lane.b32.xlu0 %v748, 64
        %v958 = vpop.permute.xlu0 %957
        %963 = vxpose.xlu0.c.b16.start [1/8] %v952, 128
        %964 = vxpose.xlu0.c.b16.cont [2/8] 0, 128
        %965 = vxpose.xlu0.c.b16.cont [3/8] 0, 128
        %966 = vxpose.xlu0.c.b16.cont [4/8] 0, 128
        %967 = vxpose.xlu0.c.b16.cont [5/8] 0, 128
        %968 = vxpose.xlu0.c.b16.cont [6/8] 0, 128
        %969 = vxpose.xlu0.c.b16.cont [7/8] 0, 128
        %970 = vxpose.xlu0.c.b16.end [8/8] 0, 128
        %v971 = vpop.trf.xlu0
        %v972 = vpop.trf.xlu0
        %v973 = vpop.trf.xlu0
        %v974 = vpop.trf.xlu0
        %v975 = vpop.trf.xlu0
        %v976 = vpop.trf.xlu0
        %v977 = vpop.trf.xlu0
        %v978 = vpop.trf.xlu0
        %979 = vxpose.xlu0.c.b16.start [1/8] %v954, 128
        %980 = vxpose.xlu0.c.b16.cont [2/8] 0, 128
        %981 = vxpose.xlu0.c.b16.cont [3/8] 0, 128
        %982 = vxpose.xlu0.c.b16.cont [4/8] 0, 128
        %983 = vxpose.xlu0.c.b16.cont [5/8] 0, 128
        %984 = vxpose.xlu0.c.b16.cont [6/8] 0, 128
        %985 = vxpose.xlu0.c.b16.cont [7/8] 0, 128
        %986 = vxpose.xlu0.c.b16.end [8/8] 0, 128
        %v987 = vpop.trf.xlu0
        %v988 = vpop.trf.xlu0
        %v989 = vpop.trf.xlu0
        %v990 = vpop.trf.xlu0
        %v991 = vpop.trf.xlu0
        %v992 = vpop.trf.xlu0
        %v993 = vpop.trf.xlu0
        %v994 = vpop.trf.xlu0
        %995 = vxpose.xlu0.c.b16.start [1/8] %v956, 128
        %996 = vxpose.xlu0.c.b16.cont [2/8] 0, 128
        %997 = vxpose.xlu0.c.b16.cont [3/8] 0, 128
        %998 = vxpose.xlu0.c.b16.cont [4/8] 0, 128
        %999 = vxpose.xlu0.c.b16.cont [5/8] 0, 128
        %1000 = vxpose.xlu0.c.b16.cont [6/8] 0, 128
        %1001 = vxpose.xlu0.c.b16.cont [7/8] 0, 128
        %1002 = vxpose.xlu0.c.b16.end [8/8] 0, 128
        %v1003 = vpop.trf.xlu0
        %v1004 = vpop.trf.xlu0
        %v1005 = vpop.trf.xlu0
        %v1006 = vpop.trf.xlu0
        %v1007 = vpop.trf.xlu0
        %v1008 = vpop.trf.xlu0
        %v1009 = vpop.trf.xlu0
        %v1010 = vpop.trf.xlu0
        %1011 = vxpose.xlu0.c.b16.start [1/8] %v958, 128
        %1012 = vxpose.xlu0.c.b16.cont [2/8] 0, 128
        %1013 = vxpose.xlu0.c.b16.cont [3/8] 0, 128
        %1014 = vxpose.xlu0.c.b16.cont [4/8] 0, 128
        %1015 = vxpose.xlu0.c.b16.cont [5/8] 0, 128
        %1016 = vxpose.xlu0.c.b16.cont [6/8] 0, 128
        %1017 = vxpose.xlu0.c.b16.cont [7/8] 0, 128
        %1018 = vxpose.xlu0.c.b16.end [8/8] 0, 128
        %v1019 = vpop.trf.xlu0
        %v1020 = vpop.trf.xlu0
        %v1021 = vpop.trf.xlu0
        %v1022 = vpop.trf.xlu0
        %v1023 = vpop.trf.xlu0
        %v1024 = vpop.trf.xlu0
        %v1025 = vpop.trf.xlu0
        %v1026 = vpop.trf.xlu0
        %v1028 = vsel %vm825, %v971, 0
        %v1031 = vsel %vm825, %v947, 0
        %1033 = vmatpush.bf16.xpose.msra.mxu0 0
        %1034 = vmatpush.bf16.xpose.msra.mxu0 0
        %1035 = vmatpush.bf16.xpose.msra.mxu0 0
        %1036 = vmatpush.bf16.xpose.msra.mxu0 0
        %1037 = vmatpush.bf16.xpose.msra.mxu0 0
        %1038 = vmatpush.bf16.xpose.msra.mxu0 0
        %1039 = vmatpush.bf16.xpose.msra.mxu0 0
        %1040 = vmatpush.bf16.xpose.msra.mxu0 %v1031
        %1041 = vmatmul.bf16.gmra.mxu0 %v1028
        %v1042 = vpop.f32.mrf.mxu0
        %v1043 = vadd.f32 0.0, %v1042
        %v1044 = vpop.f32.mrf.mxu0
        %1045 = vdwg.mxu0
        %v1047 = vsel %vm825, %v987, 0
        %v1050 = vsel %vm825, %v948, 0
        %1052 = vmatpush.bf16.xpose.msra.mxu0 0
        %1053 = vmatpush.bf16.xpose.msra.mxu0 0
        %1054 = vmatpush.bf16.xpose.msra.mxu0 0
        %1055 = vmatpush.bf16.xpose.msra.mxu0 0
        %1056 = vmatpush.bf16.xpose.msra.mxu0 0
        %1057 = vmatpush.bf16.xpose.msra.mxu0 0
        %1058 = vmatpush.bf16.xpose.msra.mxu0 0
        %1059 = vmatpush.bf16.xpose.msra.mxu0 %v1050
        %1060 = vmatmul.bf16.gmra.mxu0 %v1047
        %v1061 = vpop.f32.mrf.mxu0
        %v1062 = vadd.f32 0.0, %v1061
        %v1063 = vpop.f32.mrf.mxu0
        %1064 = vdwg.mxu0
        %v1066 = vsel %vm825, %v1003, 0
        %v1069 = vsel %vm825, %v949, 0
        %1071 = vmatpush.bf16.xpose.msra.mxu0 0
        %1072 = vmatpush.bf16.xpose.msra.mxu0 0
        %1073 = vmatpush.bf16.xpose.msra.mxu0 0
        %1074 = vmatpush.bf16.xpose.msra.mxu0 0
        %1075 = vmatpush.bf16.xpose.msra.mxu0 0
        %1076 = vmatpush.bf16.xpose.msra.mxu0 0
        %1077 = vmatpush.bf16.xpose.msra.mxu0 0
        %1078 = vmatpush.bf16.xpose.msra.mxu0 %v1069
        %1079 = vmatmul.bf16.gmra.mxu0 %v1066
        %v1080 = vpop.f32.mrf.mxu0
        %v1081 = vadd.f32 0.0, %v1080
        %v1082 = vpop.f32.mrf.mxu0
        %1083 = vdwg.mxu0
        %v1085 = vsel %vm825, %v1019, 0
        %v1088 = vsel %vm825, %v950, 0
        %1090 = vmatpush.bf16.xpose.msra.mxu0 0
        %1091 = vmatpush.bf16.xpose.msra.mxu0 0
        %1092 = vmatpush.bf16.xpose.msra.mxu0 0
        %1093 = vmatpush.bf16.xpose.msra.mxu0 0
        %1094 = vmatpush.bf16.xpose.msra.mxu0 0
        %1095 = vmatpush.bf16.xpose.msra.mxu0 0
        %1096 = vmatpush.bf16.xpose.msra.mxu0 0
        %1097 = vmatpush.bf16.xpose.msra.mxu0 %v1088
        %1098 = vmatmul.bf16.gmra.mxu0 %v1085
        %v1099 = vpop.f32.mrf.mxu0
        %v1100 = vadd.f32 0.0, %v1099
        %v1101 = vpop.f32.mrf.mxu0
        %1102 = vdwg.mxu0
        %1103 = vxpose.xlu0.b32.start [1/16] %v1043, 128
        %1104 = vxpose.xlu0.b32.cont [2/16] 0.0, 128
        %1105 = vxpose.xlu0.b32.cont [3/16] 0.0, 128
        %1106 = vxpose.xlu0.b32.cont [4/16] 0.0, 128
        %1107 = vxpose.xlu0.b32.cont [5/16] 0.0, 128
        %1108 = vxpose.xlu0.b32.cont [6/16] 0.0, 128
        %1109 = vxpose.xlu0.b32.cont [7/16] 0.0, 128
        %1110 = vxpose.xlu0.b32.cont [8/16] 0.0, 128
        %1111 = vxpose.xlu0.b32.cont [9/16] 0.0, 128
        %1112 = vxpose.xlu0.b32.cont [10/16] 0.0, 128
        %1113 = vxpose.xlu0.b32.cont [11/16] 0.0, 128
        %1114 = vxpose.xlu0.b32.cont [12/16] 0.0, 128
        %1115 = vxpose.xlu0.b32.cont [13/16] 0.0, 128
        %1116 = vxpose.xlu0.b32.cont [14/16] 0.0, 128
        %1117 = vxpose.xlu0.b32.cont [15/16] 0.0, 128
        %1118 = vxpose.xlu0.b32.end [16/16] 0.0, 128
        %v1119 = vpop.trf.xlu0
        %v1120 = vpop.trf.xlu0
        %v1121 = vpop.trf.xlu0
        %v1122 = vpop.trf.xlu0
        %v1123 = vpop.trf.xlu0
        %v1124 = vpop.trf.xlu0
        %v1125 = vpop.trf.xlu0
        %v1126 = vpop.trf.xlu0
        %v1127 = vpop.trf.xlu0
        %v1128 = vpop.trf.xlu0
        %v1129 = vpop.trf.xlu0
        %v1130 = vpop.trf.xlu0
        %v1131 = vpop.trf.xlu0
        %v1132 = vpop.trf.xlu0
        %v1133 = vpop.trf.xlu0
        %v1134 = vpop.trf.xlu0
        %1135 = vxpose.xlu0.b32.start [1/16] %v1062, 128
        %1136 = vxpose.xlu0.b32.cont [2/16] 0.0, 128
        %1137 = vxpose.xlu0.b32.cont [3/16] 0.0, 128
        %1138 = vxpose.xlu0.b32.cont [4/16] 0.0, 128
        %1139 = vxpose.xlu0.b32.cont [5/16] 0.0, 128
        %1140 = vxpose.xlu0.b32.cont [6/16] 0.0, 128
        %1141 = vxpose.xlu0.b32.cont [7/16] 0.0, 128
        %1142 = vxpose.xlu0.b32.cont [8/16] 0.0, 128
        %1143 = vxpose.xlu0.b32.cont [9/16] 0.0, 128
        %1144 = vxpose.xlu0.b32.cont [10/16] 0.0, 128
        %1145 = vxpose.xlu0.b32.cont [11/16] 0.0, 128
        %1146 = vxpose.xlu0.b32.cont [12/16] 0.0, 128
        %1147 = vxpose.xlu0.b32.cont [13/16] 0.0, 128
        %1148 = vxpose.xlu0.b32.cont [14/16] 0.0, 128
        %1149 = vxpose.xlu0.b32.cont [15/16] 0.0, 128
        %1150 = vxpose.xlu0.b32.end [16/16] 0.0, 128
        %v1151 = vpop.trf.xlu0
        %v1152 = vpop.trf.xlu0
        %v1153 = vpop.trf.xlu0
        %v1154 = vpop.trf.xlu0
        %v1155 = vpop.trf.xlu0
        %v1156 = vpop.trf.xlu0
        %v1157 = vpop.trf.xlu0
        %v1158 = vpop.trf.xlu0
        %v1159 = vpop.trf.xlu0
        %v1160 = vpop.trf.xlu0
        %v1161 = vpop.trf.xlu0
        %v1162 = vpop.trf.xlu0
        %v1163 = vpop.trf.xlu0
        %v1164 = vpop.trf.xlu0
        %v1165 = vpop.trf.xlu0
        %v1166 = vpop.trf.xlu0
        %1167 = vxpose.xlu0.b32.start [1/16] %v1081, 128
        %1168 = vxpose.xlu0.b32.cont [2/16] 0.0, 128
        %1169 = vxpose.xlu0.b32.cont [3/16] 0.0, 128
        %1170 = vxpose.xlu0.b32.cont [4/16] 0.0, 128
        %1171 = vxpose.xlu0.b32.cont [5/16] 0.0, 128
        %1172 = vxpose.xlu0.b32.cont [6/16] 0.0, 128
        %1173 = vxpose.xlu0.b32.cont [7/16] 0.0, 128
        %1174 = vxpose.xlu0.b32.cont [8/16] 0.0, 128
        %1175 = vxpose.xlu0.b32.cont [9/16] 0.0, 128
        %1176 = vxpose.xlu0.b32.cont [10/16] 0.0, 128
        %1177 = vxpose.xlu0.b32.cont [11/16] 0.0, 128
        %1178 = vxpose.xlu0.b32.cont [12/16] 0.0, 128
        %1179 = vxpose.xlu0.b32.cont [13/16] 0.0, 128
        %1180 = vxpose.xlu0.b32.cont [14/16] 0.0, 128
        %1181 = vxpose.xlu0.b32.cont [15/16] 0.0, 128
        %1182 = vxpose.xlu0.b32.end [16/16] 0.0, 128
        %v1183 = vpop.trf.xlu0
        %v1184 = vpop.trf.xlu0
        %v1185 = vpop.trf.xlu0
        %v1186 = vpop.trf.xlu0
        %v1187 = vpop.trf.xlu0
        %v1188 = vpop.trf.xlu0
        %v1189 = vpop.trf.xlu0
        %v1190 = vpop.trf.xlu0
        %v1191 = vpop.trf.xlu0
        %v1192 = vpop.trf.xlu0
        %v1193 = vpop.trf.xlu0
        %v1194 = vpop.trf.xlu0
        %v1195 = vpop.trf.xlu0
        %v1196 = vpop.trf.xlu0
        %v1197 = vpop.trf.xlu0
        %v1198 = vpop.trf.xlu0
        %1199 = vxpose.xlu0.b32.start [1/16] %v1100, 128
        %1200 = vxpose.xlu0.b32.cont [2/16] 0.0, 128
        %1201 = vxpose.xlu0.b32.cont [3/16] 0.0, 128
        %1202 = vxpose.xlu0.b32.cont [4/16] 0.0, 128
        %1203 = vxpose.xlu0.b32.cont [5/16] 0.0, 128
        %1204 = vxpose.xlu0.b32.cont [6/16] 0.0, 128
        %1205 = vxpose.xlu0.b32.cont [7/16] 0.0, 128
        %1206 = vxpose.xlu0.b32.cont [8/16] 0.0, 128
        %1207 = vxpose.xlu0.b32.cont [9/16] 0.0, 128
        %1208 = vxpose.xlu0.b32.cont [10/16] 0.0, 128
        %1209 = vxpose.xlu0.b32.cont [11/16] 0.0, 128
        %1210 = vxpose.xlu0.b32.cont [12/16] 0.0, 128
        %1211 = vxpose.xlu0.b32.cont [13/16] 0.0, 128
        %1212 = vxpose.xlu0.b32.cont [14/16] 0.0, 128
        %1213 = vxpose.xlu0.b32.cont [15/16] 0.0, 128
        %1214 = vxpose.xlu0.b32.end [16/16] 0.0, 128
        %v1215 = vpop.trf.xlu0
        %v1216 = vpop.trf.xlu0
        %v1217 = vpop.trf.xlu0
        %v1218 = vpop.trf.xlu0
        %v1219 = vpop.trf.xlu0
        %v1220 = vpop.trf.xlu0
        %v1221 = vpop.trf.xlu0
        %v1222 = vpop.trf.xlu0
        %v1223 = vpop.trf.xlu0
        %v1224 = vpop.trf.xlu0
        %v1225 = vpop.trf.xlu0
        %v1226 = vpop.trf.xlu0
        %v1227 = vpop.trf.xlu0
        %v1228 = vpop.trf.xlu0
        %v1229 = vpop.trf.xlu0
        %v1230 = vpop.trf.xlu0
        %v1231 = vrot.slane %v1183, 4
        %vm1232 = vcmask 1047556
        %v1233 = vsel %vm1232, %v1231, %v1119
        %v1234 = vrot.slane %v1119, 4
        %v1235 = vsel %vm1232, %v1183, %v1234
        %v1237 = vunpack.c.l.s4 1983009808
        %v1238 = vunpack.c.0.s8 %v1237
        %v1239 = vperm.slane %v1233, %v1238
        %v1241 = vunpack.c.l.s4 1983009808
        %v1242 = vunpack.c.0.s8 %v1241
        %v1243 = vperm.slane %v1235, %v1242
        %v1244 = vrot.slane %v1215, 4
        %v1245 = vsel %vm1232, %v1244, %v1151
        %v1246 = vrot.slane %v1151, 4
        %v1247 = vsel %vm1232, %v1215, %v1246
        %v1249 = vunpack.c.l.s4 1983009808
        %v1250 = vunpack.c.0.s8 %v1249
        %v1251 = vperm.slane %v1245, %v1250
        %v1253 = vunpack.c.l.s4 1983009808
        %v1254 = vunpack.c.0.s8 %v1253
        %v1255 = vperm.slane %v1247, %v1254
        %v1256 = vrot.slane %v1251, 4
        %v1257 = vsel %vm1232, %v1256, %v1239
        %v1258 = vrot.slane %v1239, 4
        %v1259 = vsel %vm1232, %v1251, %v1258
        %v1261 = vunpack.c.l.s4 1934713408
        %v1262 = vunpack.c.0.s8 %v1261
        %v1263 = vperm.slane %v1257, %v1262
        %v1265 = vunpack.c.l.s4 1934713408
        %v1266 = vunpack.c.0.s8 %v1265
        %v1267 = vperm.slane %v1259, %v1266
        %v1268 = vrot.slane %v1255, 4
        %v1269 = vsel %vm1232, %v1268, %v1243
        %v1270 = vrot.slane %v1243, 4
        %v1271 = vsel %vm1232, %v1255, %v1270
        %v1273 = vunpack.c.l.s4 1934713408
        %v1274 = vunpack.c.0.s8 %v1273
        %v1275 = vperm.slane %v1269, %v1274
        %v1277 = vunpack.c.l.s4 1934713408
        %v1278 = vunpack.c.0.s8 %v1277
        %v1279 = vperm.slane %v1271, %v1278
        %v1280 = vrot.slane %v1263, 4
        %v1281 = vsel %vm1232, 0.0, %v1280
        %v1282 = vrot.slane %v1267, 4
        %v1283 = vsel %vm1232, 0.0, %v1282
        %v1284 = vrot.slane %v1275, 4
        %v1285 = vsel %vm1232, 0.0, %v1284
        %v1286 = vrot.slane %v1279, 4
        %v1287 = vsel %vm1232, 0.0, %v1286
        %v1288 = vsel %vm1232, %v1282, %v1263
        %v1290 = vunpack.c.l.s4 1983009808
        %v1291 = vunpack.c.0.s8 %v1290
        %v1292 = vperm.slane %v1288, %v1291
        %v1293 = vrot.slane %v1283, 4
        %v1294 = vsel %vm1232, %v1293, %v1281
        %v1296 = vunpack.c.l.s4 1983009808
        %v1297 = vunpack.c.0.s8 %v1296
        %v1298 = vperm.slane %v1294, %v1297
        %v1299 = vsel %vm1232, %v1286, %v1275
        %v1301 = vunpack.c.l.s4 1983009808
        %v1302 = vunpack.c.0.s8 %v1301
        %v1303 = vperm.slane %v1299, %v1302
        %v1304 = vrot.slane %v1287, 4
        %v1305 = vsel %vm1232, %v1304, %v1285
        %v1307 = vunpack.c.l.s4 1983009808
        %v1308 = vunpack.c.0.s8 %v1307
        %v1309 = vperm.slane %v1305, %v1308
        %v1310 = vrot.slane %v1298, 4
        %v1311 = vsel %vm1232, %v1310, %v1292
        %v1312 = vrot.slane %v1292, 4
        %v1313 = vsel %vm1232, %v1298, %v1312
        %v1315 = vunpack.c.l.s4 1934713408
        %v1316 = vunpack.c.0.s8 %v1315
        %v1317 = vperm.slane %v1311, %v1316
        %v1319 = vunpack.c.l.s4 1934713408
        %v1320 = vunpack.c.0.s8 %v1319
        %v1321 = vperm.slane %v1313, %v1320
        %v1322 = vrot.slane %v1309, 4
        %v1323 = vsel %vm1232, %v1322, %v1303
        %v1324 = vrot.slane %v1303, 4
        %v1325 = vsel %vm1232, %v1309, %v1324
        %v1327 = vunpack.c.l.s4 1934713408
        %v1328 = vunpack.c.0.s8 %v1327
        %v1329 = vperm.slane %v1323, %v1328
        %v1331 = vunpack.c.l.s4 1934713408
        %v1332 = vunpack.c.0.s8 %v1331
        %v1333 = vperm.slane %v1325, %v1332
        %v1334 = vrot.slane %v1329, 4
        %v1335 = vsel %vm1232, %v1334, %v1317
        %v1336 = vrot.slane %v1317, 4
        %v1337 = vsel %vm1232, %v1329, %v1336
        %v1338 = vrot.slane %v1333, 4
        %v1339 = vsel %vm1232, %v1338, %v1321
        %v1340 = vrot.slane %v1321, 4
        %v1341 = vsel %vm1232, %v1333, %v1340
        %1343 = vrot.lane.b32.xlu0 %v1337, 8
        %v1344 = vpop.permute.xlu0 %1343
        %1347 = vrot.lane.b32.xlu0 %v1339, 16
        %v1348 = vpop.permute.xlu0 %1347
        %1351 = vrot.lane.b32.xlu0 %v1341, 24
        %v1352 = vpop.permute.xlu0 %1351
        %v1354 = vsel %vm825, %v1335, %v1344
        %vm1355 = vcmask 130048
        %v1356 = vsel %vm1355, %v1354, %v1348
        %vm1357 = vcmask 195584
        %v1358 = vsel %vm1357, %v1356, %v1352
        %v1359 = vpack.c.bf16 %v1358, %v1358
        %v1360 = vld [vmem:[#allocation6] sm:$0xf]
        %v1361 = vld [vmem:[#allocation6 + $0x4] sm:$0xf]
        %v1362 = vld [vmem:[#allocation6 + $0x8] sm:$0xf]
        %v1363 = vld [vmem:[#allocation6 + $0xc] sm:$0xf]
        %v1364 = vld [vmem:[#allocation7] sm:$0x1]
        %v1366 = vperm.slane %v1364, 0
        %v1372 = vunpack.c.l.b16 %v1360
        %v1373 = vunpack.c.l.b16 %v1361
        %v1374 = vunpack.c.l.b16 %v1362
        %v1375 = vunpack.c.l.b16 %v1363
        %v1376 = vpack.c.b16 %v1373, %v1372
        %v1377 = vpack.c.b16 %v1375, %v1374
        %v1381 = vsel %vm679, %v1359, 0
        %1383 = vmatpush.bf16.msra.mxu0 0
        %1384 = vmatpush.bf16.msra.mxu0 0
        %1385 = vmatpush.bf16.msra.mxu0 0
        %1386 = vmatpush.bf16.msra.mxu0 0
        %1387 = vmatpush.bf16.msra.mxu0 0
        %1388 = vmatpush.bf16.msra.mxu0 0
        %1389 = vmatpush.bf16.msra.mxu0 %v1377
        %1390 = vmatpush.bf16.msra.mxu0 %v1376
        %1391 = vmatmul.bf16.gmra.mxu0 %v1381
        %v1392 = vpop.f32.mrf.mxu0
        %v1393 = vadd.f32 %v1366, %v1392
        %v1394 = vpop.f32.mrf.mxu0
        %1395 = vdwg.mxu0
        %v1396 = vadd.f32 %v693, %v1393
        %v1397 = vld [vmem:[#allocation9] sm:$0x1]
        %v1398 = vld [vmem:[#allocation10] sm:$0x1]
        %v1399 = vsel %vm679, %v1396, 0.0
        %1400 = vadd.xlane.f32.xlu0 %v1399
        %v1401 = vpop.xlane.xlu0 %1400
        %v1402 = vrcp.pop 32.0
        %v1403 = vmul.f32 32.0, %v1402
        %v1404 = vsub.f32 1.0, %v1403
        %v1405 = vmul.f32 %v1402, %v1404
        %v1406 = vadd.f32 %v1402, %v1405
        %vm1407 = vweird.f32 %v1402
        %v1408 = vsel %vm1407, %v1402, %v1406
        %v1409 = vmul.f32 %v1401, %v1408
        %v1410 = vsub.f32 %v1396, %v1409
        %v1411 = vmul.f32 %v1410, %v1410
        %v1412 = vsel %vm679, %v1411, 0.0
        %1413 = vadd.xlane.f32.xlu0 %v1412
        %v1414 = vpop.xlane.xlu0 %1413
        %v1415 = vmul.f32 %v1414, %v1408
        %v1416 = vadd.f32 %v1415, 1e-05
        %v1417 = vrsqrt.pop %v1416
        %v1418 = vmul.f32 %v1417, %v1416
        %v1419 = vmul.f32 %v1418, %v1417
        %v1420 = vmul.f32 0.5, %v1419
        %v1421 = vsub.f32 1.5, %v1420
        %v1422 = vmul.f32 %v1417, %v1421
        %vm1423 = vweird.f32 %v1416
        %vm1424 = vweird.f32 %v1417
        %vm1425 = vmor %vm1423, %vm1424
        %v1426 = vsel %vm1425, %v1417, %v1422
        %v1427 = vmul.f32 %v1410, %v1426
        %v1429 = vperm.slane %v1397, 0
        %v1431 = vmul.f32 %v1427, %v1429
        %v1433 = vperm.slane %v1398, 0
        %v1435 = vadd.f32 %v1431, %v1433
        %v1436 = vpack.c.bf16 %v1435, %v1435
        %v1437 = vld [vmem:[#allocation12] sm:$0xf]
        %v1438 = vld [vmem:[#allocation12 + $0x4] sm:$0xf]
        %v1439 = vld [vmem:[#allocation12 + $0x8] sm:$0xf]
        %v1440 = vld [vmem:[#allocation12 + $0xc] sm:$0xf]
        %v1441 = vld [vmem:[#allocation13] sm:$0x1]
        %v1443 = vperm.slane %v1441, 0
        %v1449 = vunpack.c.l.b16 %v1437
        %v1450 = vunpack.c.l.b16 %v1438
        %v1451 = vunpack.c.l.b16 %v1439
        %v1452 = vunpack.c.l.b16 %v1440
        %v1453 = vpack.c.b16 %v1450, %v1449
        %v1454 = vpack.c.b16 %v1452, %v1451
        %v1458 = vsel %vm679, %v1436, 0
        %1460 = vmatpush.bf16.msra.mxu0 0
        %1461 = vmatpush.bf16.msra.mxu0 0
        %1462 = vmatpush.bf16.msra.mxu0 0
        %1463 = vmatpush.bf16.msra.mxu0 0
        %1464 = vmatpush.bf16.msra.mxu0 0
        %1465 = vmatpush.bf16.msra.mxu0 0
        %1466 = vmatpush.bf16.msra.mxu0 %v1454
        %1467 = vmatpush.bf16.msra.mxu0 %v1453
        %1468 = vmatmul.bf16.gmra.mxu0 %v1458
        %v1469 = vpop.f32.mrf.mxu0
        %v1470 = vadd.f32 %v1443, %v1469
        %v1471 = vpop.f32.mrf.mxu0
        %1472 = vdwg.mxu0
        %v1473 = vmax.f32 %v1470, 0.0
        %v1474 = vpack.c.bf16 %v1473, %v1473
        %v1475 = vld [vmem:[%s11] sm:$0xf]
        %v1476 = vld [vmem:[%s11 + $0x4] sm:$0xf]
        %v1477 = vld [vmem:[%s11 + $0x8] sm:$0xf]
        %v1478 = vld [vmem:[%s11 + $0xc] sm:$0xf]
        %v1479 = vld [vmem:[%s11 + $0x10] sm:$0xf]
        %v1480 = vld [vmem:[%s11 + $0x14] sm:$0xf]
        %v1481 = vld [vmem:[%s11 + $0x18] sm:$0xf]
        %v1482 = vld [vmem:[%s11 + $0x1c] sm:$0xf]
        %v1483 = vld [vmem:[#allocation15] sm:$0x1]
        %v1485 = vperm.slane %v1483, 0
        %v1495 = vunpack.c.l.b16 %v1475
        %v1496 = vunpack.c.l.b16 %v1476
        %v1497 = vunpack.c.l.b16 %v1477
        %v1498 = vunpack.c.l.b16 %v1478
        %v1499 = vunpack.c.l.b16 %v1479
        %v1500 = vunpack.c.l.b16 %v1480
        %v1501 = vunpack.c.l.b16 %v1481
        %v1502 = vunpack.c.l.b16 %v1482
        %v1503 = vpack.c.b16 %v1496, %v1495
        %v1504 = vpack.c.b16 %v1498, %v1497
        %v1505 = vpack.c.b16 %v1500, %v1499
        %v1506 = vpack.c.b16 %v1502, %v1501
        %vm1511 = vcmask 523264
        %v1513 = vsel %vm1511, %v1474, 0
        %1515 = vmatpush.bf16.msra.mxu0 0
        %1516 = vmatpush.bf16.msra.mxu0 0
        %1517 = vmatpush.bf16.msra.mxu0 0
        %1518 = vmatpush.bf16.msra.mxu0 0
        %1519 = vmatpush.bf16.msra.mxu0 %v1506
        %1520 = vmatpush.bf16.msra.mxu0 %v1505
        %1521 = vmatpush.bf16.msra.mxu0 %v1504
        %1522 = vmatpush.bf16.msra.mxu0 %v1503
        %1523 = vmatmul.bf16.gmra.mxu0 %v1513
        %v1524 = vpop.f32.mrf.mxu0
        %v1525 = vadd.f32 %v1485, %v1524
        %v1526 = vpop.f32.mrf.mxu0
        %1527 = vdwg.mxu0
        %v1528 = vadd.f32 %v1435, %v1525
        %v1529 = vld [vmem:[#allocation16] sm:$0x1]
        %v1530 = vld [vmem:[#allocation18] sm:$0x1]
        %v1531 = vsel %vm679, %v1528, 0.0
        %1532 = vadd.xlane.f32.xlu0 %v1531
        %v1533 = vpop.xlane.xlu0 %1532
        %v1534 = vmul.f32 %v1533, %v1408
        %v1535 = vsub.f32 %v1528, %v1534
        %v1536 = vmul.f32 %v1535, %v1535
        %v1537 = vsel %vm679, %v1536, 0.0
        %1538 = vadd.xlane.f32.xlu0 %v1537
        %v1539 = vpop.xlane.xlu0 %1538
        %v1540 = vmul.f32 %v1539, %v1408
        %v1541 = vadd.f32 %v1540, 1e-05
        %v1542 = vrsqrt.pop %v1541
        %v1543 = vmul.f32 %v1542, %v1541
        %v1544 = vmul.f32 %v1543, %v1542
        %v1545 = vmul.f32 0.5, %v1544
        %v1546 = vsub.f32 1.5, %v1545
        %v1547 = vmul.f32 %v1542, %v1546
        %vm1548 = vweird.f32 %v1541
        %vm1549 = vweird.f32 %v1542
        %vm1550 = vmor %vm1548, %vm1549
        %v1551 = vsel %vm1550, %v1542, %v1547
        %v1552 = vmul.f32 %v1535, %v1551
        %v1554 = vperm.slane %v1529, 0
        %v1556 = vmul.f32 %v1552, %v1554
        %v1558 = vperm.slane %v1530, 0
        %v1560 = vadd.f32 %v1556, %v1558
        %1561 = vst.msk [vmem:[%s655] sm:$0xff] %vm679, %v1560
        %p1562 = scmp.lt.s32.totalorder %s32, 1
        %s1563 = scalar_select %p1562, %s32, 1
        %s1564 = smul.addr %s1563, 8
        %s1565 = scalar_lea.vmem %s15, %s1564
        // Predicated region
        $region125: #{transformer_block_forward.2} parent=79 // pred_check
          %p1566 = pneg %p370
        $region126: #{transformer_block_forward.2} parent=79 // pred_check_branch
          %1568 = sbr.rel (%p1566) target = $region128
        $region127: #{transformer_block_forward.2} parent=79 // pred_region
          _
        $region128: #{transformer_block_forward.2} parent=79 // pred_fallthru
          _
      $region80: #{transformer_block_forward.2} parent=5 // pred_fallthru
        _
      %p1569 = scmp.le.s32.totalorder 2, %s27
      // Predicated region
      $region129: #{transformer_block_forward.2} parent=5 // pred_check
        %p1570 = pneg %p1569
      $region130: #{transformer_block_forward.2} parent=5 // pred_check_branch
        %1572 = sbr.rel (%p1570) target = $region132
      $region131: #{transformer_block_forward.2} parent=5 // pred_region
        %s1573 = ssub.s32 %s27, 2
        // Predicated region
        $region133: #{transformer_block_forward.2} parent=131 // pred_check
          %p1574 = pneg %p376
        $region134: #{transformer_block_forward.2} parent=131 // pred_check_branch
          %1576 = sbr.rel (%p1574) target = $region136
        $region135: #{transformer_block_forward.2} parent=131 // pred_region
          %p1577 = scmp.lt.s32.totalorder %s33, 1
          %s1578 = scalar_select %p1577, %s33, 1
          %s1579 = smul.addr %s1578, 8
          %s1580 = scalar_lea.vmem %s15, %s1579
        $region136: #{transformer_block_forward.2} parent=131 // pred_fallthru
          _
      $region132: #{transformer_block_forward.2} parent=5 // pred_fallthru
        _
    $region6: #{transformer_block_forward.2} parent=1 // loop_footer
      %s31 = sadd.s32 1, %s27
    $region7: #{transformer_block_forward.2} parent=1 // loop_footer_branch
      %26 = sbr.rel target = $region3
    $region8: #{transformer_block_forward.2} parent=1 // loop_exit
      _
    %1581 = vsyncpa [#allocation3], 1
    %s1582 = scalar_lea.sflag [#allocation3], 1
    %1583 = vsyncpa %s1582, 1
    %1584 = vsyncpa [#allocation5], 1
    %1585 = vsyncpa [#allocation8], 1
    %1586 = vsyncpa [#allocation11], 1
    %1587 = vsyncpa [#allocation14], 1
    %1588 = vsyncpa [#allocation17], 1

// kernel: transformer_block_forward.2
$region0: #{transformer_block_forward.2}
  #allocation0 [shape = 'u32[]', space=smem, size = 0x4, offset = 0x4, fixed_abs, tag = 'smem constant byte address 0x4 - core index']
  #allocation1 [shape = 'u32[72,128]{1,0:T(1,128)}', space=vmem, size = 0x9000, scoped, tag = 'internal scratch']
  %s0 = inlined_call_operand.vmem [shape: f32[2,8,32], index: 0, kind: input, shape index: {}]
  %s1 = inlined_call_operand.vmem [shape: bf16[32,32], index: 1, kind: input, shape index: {}]
  %s2 = inlined_call_operand.vmem [shape: f32[1,32], index: 2, kind: input, shape index: {}]
  %s3 = inlined_call_operand.hbm [shape: bf16[32,96], index: 3, kind: input, shape index: {}]
  %s4 = inlined_call_operand.hbm [shape: f32[1,96], index: 4, kind: input, shape index: {}]
  %s5 = inlined_call_operand.hbm [shape: bf16[32,32], index: 5, kind: input, shape index: {}]
  %s6 = inlined_call_operand.hbm [shape: f32[1,32], index: 6, kind: input, shape index: {}]
  %s7 = inlined_call_operand.hbm [shape: f32[1,32], index: 7, kind: input, shape index: {}]
  %s8 = inlined_call_operand.hbm [shape: f32[1,32], index: 8, kind: input, shape index: {}]
  %s9 = inlined_call_operand.hbm [shape: bf16[32,64], index: 9, kind: input, shape index: {}]
  %s10 = inlined_call_operand.hbm [shape: f32[1,64], index: 10, kind: input, shape index: {}]
  %s11 = inlined_call_operand.vmem [shape: bf16[64,32], index: 11, kind: input, shape index: {}]
  %s12 = inlined_call_operand.hbm [shape: f32[1,32], index: 12, kind: input, shape index: {}]
  %s13 = inlined_call_operand.hbm [shape: f32[1,32], index: 13, kind: input, shape index: {}]
  %s14 = inlined_call_operand.hbm [shape: f32[1,32], index: 14, kind: input, shape index: {}]
  %s15 = inlined_call_operand.vmem [shape: f32[2,8,32], index: 15, kind: output, shape index: {}]
  %s16 = sld [smem:[#allocation0]]
  $region137: #{transformer_block_forward.2} parent=0
    _
  %s18 = ssub.s32 1, %s16
  %s19 = scalar_select 0, %s18, %s16
  $region1: #{transformer_block_forward.2} parent=0
    #allocation2 [shape = 'u8[8192]{0}', space=vmem, size = 0x2000, scoped, tag = 'input window, operand 3, single buffered']
    #allocation3 [shape = 's32[2]{0}', space=sflag, size = 0x8, scoped, tag = 'scoped memory for transformer_block_forward.2']
    #allocation4 [shape = 'u8[512]{0}', space=vmem, size = 0x400, scoped, tag = 'input window, operand 4, single buffered']
    #allocation5 [shape = 's32[1]{0}', space=sflag, size = 0x4, scoped, tag = 'scoped memory for transformer_block_forward.2']
    #allocation6 [shape = 'u8[8192]{0}', space=vmem, size = 0x2000, scoped, tag = 'input window, operand 5, single buffered']
    #allocation7 [shape = 'u8[512]{0}', space=vmem, size = 0x400, scoped, tag = 'input window, operand 6, single buffered']
    #allocation8 [shape = 's32[1]{0}', space=sflag, size = 0x4, scoped, tag = 'scoped memory for transformer_block_forward.2']
    #allocation9 [shape = 'u8[512]{0}', space=vmem, size = 0x400, scoped, tag = 'input window, operand 7, single buffered']
    #allocation10 [shape = 'u8[512]{0}', space=vmem, size = 0x400, scoped, tag = 'input window, operand 8, single buffered']
    #allocation11 [shape = 's32[1]{0}', space=sflag, size = 0x4, scoped, tag = 'scoped memory for transformer_block_forward.2']
    #allocation12 [shape = 'u8[8192]{0}', space=vmem, size = 0x2000, scoped, tag = 'input window, operand 9, single buffered']
    #allocation13 [shape = 'u8[512]{0}', space=vmem, size = 0x400, scoped, tag = 'input window, operand 10, single buffered']
    #allocation14 [shape = 's32[1]{0}', space=sflag, size = 0x4, scoped, tag = 'scoped memory for transformer_block_forward.2']
    #allocation15 [shape = 'u8[512]{0}', space=vmem, size = 0x400, scoped, tag = 'input window, operand 12, single buffered']
    #allocation16 [shape = 'u8[512]{0}', space=vmem, size = 0x400, scoped, tag = 'input window, operand 13, single buffered']
    #allocation17 [shape = 's32[1]{0}', space=sflag, size = 0x4, scoped, tag = 'scoped memory for transformer_block_forward.2']
    #allocation18 [shape = 'u8[512]{0}', space=vmem, size = 0x400, scoped, tag = 'input window, operand 14, single buffered']
    %20 = vsyncpa [#allocation3], 0
    %21 = vsyncpa [#allocation5], 0
    %22 = vsyncpa [#allocation8], 0
    %23 = vsyncpa [#allocation11], 0
    %24 = vsyncpa [#allocation14], 0
    %25 = vsyncpa [#allocation17], 0
    loop: start=0, step=1, limit=4
    $region2: #{transformer_block_forward.2} parent=1 // loop_pre_header
      _
    $region3: #{transformer_block_forward.2} parent=1 // loop_header
      %s27 = sphi 0, %s31
      %p28 = scmp.ge.s32.totalorder %s27, 4
      %s37 = sphi 0, %s39
      %s40 = sphi 0, %s37
      %s41 = sphi 0, %s40
      %s57 = sphi 0, %s41
      %s61 = sphi 0, %s61
      %s63 = sphi 0, %s61
      %s64 = sphi 0, %s63
      %s78 = sphi 0, %s64
      %s82 = sphi 0, %s82
      %s84 = sphi 0, %s82
      %s85 = sphi 0, %s84
      %s99 = sphi 0, %s85
      %s103 = sphi 0, %s103
      %s105 = sphi 0, %s103
      %s106 = sphi 0, %s105
      %s120 = sphi 0, %s106
      %s124 = sphi 0, %s124
      %s126 = sphi 0, %s124
      %s127 = sphi 0, %s126
      %s141 = sphi 0, %s127
      %s145 = sphi 0, %s145
      %s147 = sphi 0, %s145
      %s148 = sphi 0, %s147
      %s162 = sphi 0, %s148
      %s166 = sphi 0, %s166
      %s168 = sphi 0, %s166
      %s169 = sphi 0, %s168
      %s183 = sphi 0, %s169
      %s187 = sphi 0, %s187
      %s189 = sphi 0, %s187
      %s190 = sphi 0, %s189
      %s204 = sphi 0, %s190
      %s208 = sphi 0, %s208
      %s210 = sphi 0, %s208
      %s211 = sphi 0, %s210
      %s225 = sphi 0, %s211
      %s229 = sphi 0, %s229
      %s231 = sphi 0, %s229
      %s232 = sphi 0, %s231
      %s246 = sphi 0, %s232
      %s250 = sphi 0, %s250
      %s252 = sphi 0, %s250
      %s253 = sphi 0, %s252
      %s267 = sphi 0, %s253
      %s271 = sphi 0, %s271
      %s273 = sphi 0, %s271
      %s274 = sphi 0, %s273
      %s288 = sphi 0, %s274
      %s292 = sphi 0, %s292
      %s294 = sphi 0, %s292
      %s295 = sphi 0, %s294
      %s309 = sphi 0, %s295
      %s313 = sphi 0, %s313
      %s315 = sphi 0, %s313
      %s316 = sphi 0, %s315
      %s330 = sphi 0, %s316
      %s334 = sphi 0, %s334
      %s336 = sphi 0, %s334
      %s337 = sphi 0, %s336
      %s351 = sphi 0, %s337
      %s357 = sphi 0, %s359
      %s360 = sphi 0, %s357
      %s361 = sphi 0, %s360
      %s377 = sphi 0, %s361
    $region4: #{transformer_block_forward.2} parent=1 // loop_header_branch
      %30 = sbr.rel (%p28) target = $region8
    $region5: #{transformer_block_forward.2} parent=1 // loop_body
      %s32 = ssub.s32 %s27, 1
      %s33 = ssub.s32 %s27, 2
      %s34 = sadd.s32 %s27, 1
      %s35 = ssub.s32 %s27, %s34
      %p36 = scmp.eq.s32.totalorder %s35, 0
      %s38 = sadd.s32 %s37, 1
      %s39 = scalar_select %p36, %s37, %s38
      %p42 = pneg %p36
      %p43 = scmp.eq.s32.totalorder %s27, 1
      %p44 = por %p42, %p43
      %p45 = scmp.ne.s32.totalorder %s37, %s40
      %p46 = scmp.eq.s32.totalorder %s27, 0
      %p47 = por %p45, %p46
      %p48 = scmp.ne.s32.totalorder %s37, %s40
      %p49 = scmp.eq.s32.totalorder %s32, 1
      %p50 = por %p48, %p49
      %p51 = scmp.ne.s32.totalorder %s40, %s41
      %p52 = scmp.eq.s32.totalorder %s32, 0
      %p53 = por %p51, %p52
      %p54 = scmp.ne.s32.totalorder %s40, %s41
      %p55 = scmp.eq.s32.totalorder %s33, 1
      %p56 = por %p54, %p55
      %p58 = scmp.ne.s32.totalorder %s41, %s57
      %p59 = scmp.eq.s32.totalorder %s33, 0
      %p60 = por %p58, %p59
      %s62 = sadd.s32 %s61, 1
      %p65 = scmp.eq.s32.totalorder %s27, 1
      %p66 = scmp.ne.s32.totalorder %s61, %s63
      %p67 = scmp.eq.s32.totalorder %s27, 0
      %p68 = por %p66, %p67
      %p69 = scmp.ne.s32.totalorder %s61, %s63
      %p70 = scmp.eq.s32.totalorder %s32, 1
      %p71 = por %p69, %p70
      %p72 = scmp.ne.s32.totalorder %s63, %s64
      %p73 = scmp.eq.s32.totalorder %s32, 0
      %p74 = por %p72, %p73
      %p75 = scmp.ne.s32.totalorder %s63, %s64
      %p76 = scmp.eq.s32.totalorder %s33, 1
      %p77 = por %p75, %p76
      %p79 = scmp.ne.s32.totalorder %s64, %s78
      %p80 = scmp.eq.s32.totalorder %s33, 0
      %p81 = por %p79, %p80
      %s83 = sadd.s32 %s82, 1
      %p86 = scmp.eq.s32.totalorder %s27, 1
      %p87 = scmp.ne.s32.totalorder %s82, %s84
      %p88 = scmp.eq.s32.totalorder %s27, 0
      %p89 = por %p87, %p88
      %p90 = scmp.ne.s32.totalorder %s82, %s84
      %p91 = scmp.eq.s32.totalorder %s32, 1
      %p92 = por %p90, %p91
      %p93 = scmp.ne.s32.totalorder %s84, %s85
      %p94 = scmp.eq.s32.totalorder %s32, 0
      %p95 = por %p93, %p94
      %p96 = scmp.ne.s32.totalorder %s84, %s85
      %p97 = scmp.eq.s32.totalorder %s33, 1
      %p98 = por %p96, %p97
      %p100 = scmp.ne.s32.totalorder %s85, %s99
      %p101 = scmp.eq.s32.totalorder %s33, 0
      %p102 = por %p100, %p101
      %s104 = sadd.s32 %s103, 1
      %p107 = scmp.eq.s32.totalorder %s27, 1
      %p108 = scmp.ne.s32.totalorder %s103, %s105
      %p109 = scmp.eq.s32.totalorder %s27, 0
      %p110 = por %p108, %p109
      %p111 = scmp.ne.s32.totalorder %s103, %s105
      %p112 = scmp.eq.s32.totalorder %s32, 1
      %p113 = por %p111, %p112
      %p114 = scmp.ne.s32.totalorder %s105, %s106
      %p115 = scmp.eq.s32.totalorder %s32, 0
      %p116 = por %p114, %p115
      %p117 = scmp.ne.s32.totalorder %s105, %s106
      %p118 = scmp.eq.s32.totalorder %s33, 1
      %p119 = por %p117, %p118
      %p121 = scmp.ne.s32.totalorder %s106, %s120
      %p122 = scmp.eq.s32.totalorder %s33, 0
      %p123 = por %p121, %p122
      %s125 = sadd.s32 %s124, 1
      %p128 = scmp.eq.s32.totalorder %s27, 1
      %p129 = scmp.ne.s32.totalorder %s124, %s126
      %p130 = scmp.eq.s32.totalorder %s27, 0
      %p131 = por %p129, %p130
      %p132 = scmp.ne.s32.totalorder %s124, %s126
      %p133 = scmp.eq.s32.totalorder %s32, 1
      %p134 = por %p132, %p133
      %p135 = scmp.ne.s32.totalorder %s126, %s127
      %p136 = scmp.eq.s32.totalorder %s32, 0
      %p137 = por %p135, %p136
      %p138 = scmp.ne.s32.totalorder %s126, %s127
      %p139 = scmp.eq.s32.totalorder %s33, 1
      %p140 = por %p138, %p139
      %p142 = scmp.ne.s32.totalorder %s127, %s141
      %p143 = scmp.eq.s32.totalorder %s33, 0
      %p144 = por %p142, %p143
      %s146 = sadd.s32 %s145, 1
      %p149 = scmp.eq.s32.totalorder %s27, 1
      %p150 = scmp.ne.s32.totalorder %s145, %s147
      %p151 = scmp.eq.s32.totalorder %s27, 0
      %p152 = por %p150, %p151
      %p153 = scmp.ne.s32.totalorder %s145, %s147
      %p154 = scmp.eq.s32.totalorder %s32, 1
      %p155 = por %p153, %p154
      %p156 = scmp.ne.s32.totalorder %s147, %s148
      %p157 = scmp.eq.s32.totalorder %s32, 0
      %p158 = por %p156, %p157
      %p159 = scmp.ne.s32.totalorder %s147, %s148
      %p160 = scmp.eq.s32.totalorder %s33, 1
      %p161 = por %p159, %p160
      %p163 = scmp.ne.s32.totalorder %s148, %s162
      %p164 = scmp.eq.s32.totalorder %s33, 0
      %p165 = por %p163, %p164
      %s167 = sadd.s32 %s166, 1
      %p170 = scmp.eq.s32.totalorder %s27, 1
      %p171 = scmp.ne.s32.totalorder %s166, %s168
      %p172 = scmp.eq.s32.totalorder %s27, 0
      %p173 = por %p171, %p172
      %p174 = scmp.ne.s32.totalorder %s166, %s168
      %p175 = scmp.eq.s32.totalorder %s32, 1
      %p176 = por %p174, %p175
      %p177 = scmp.ne.s32.totalorder %s168, %s169
      %p178 = scmp.eq.s32.totalorder %s32, 0
      %p179 = por %p177, %p178
      %p180 = scmp.ne.s32.totalorder %s168, %s169
      %p181 = scmp.eq.s32.totalorder %s33, 1
      %p182 = por %p180, %p181
      %p184 = scmp.ne.s32.totalorder %s169, %s183
      %p185 = scmp.eq.s32.totalorder %s33, 0
      %p186 = por %p184, %p185
      %s188 = sadd.s32 %s187, 1
      %p191 = scmp.eq.s32.totalorder %s27, 1
      %p192 = scmp.ne.s32.totalorder %s187, %s189
      %p193 = scmp.eq.s32.totalorder %s27, 0
      %p194 = por %p192, %p193
      %p195 = scmp.ne.s32.totalorder %s187, %s189
      %p196 = scmp.eq.s32.totalorder %s32, 1
      %p197 = por %p195, %p196
      %p198 = scmp.ne.s32.totalorder %s189, %s190
      %p199 = scmp.eq.s32.totalorder %s32, 0
      %p200 = por %p198, %p199
      %p201 = scmp.ne.s32.totalorder %s189, %s190
      %p202 = scmp.eq.s32.totalorder %s33, 1
      %p203 = por %p201, %p202
      %p205 = scmp.ne.s32.totalorder %s190, %s204
      %p206 = scmp.eq.s32.totalorder %s33, 0
      %p207 = por %p205, %p206
      %s209 = sadd.s32 %s208, 1
      %p212 = scmp.eq.s32.totalorder %s27, 1
      %p213 = scmp.ne.s32.totalorder %s208, %s210
      %p214 = scmp.eq.s32.totalorder %s27, 0
      %p215 = por %p213, %p214
      %p216 = scmp.ne.s32.totalorder %s208, %s210
      %p217 = scmp.eq.s32.totalorder %s32, 1
      %p218 = por %p216, %p217
      %p219 = scmp.ne.s32.totalorder %s210, %s211
      %p220 = scmp.eq.s32.totalorder %s32, 0
      %p221 = por %p219, %p220
      %p222 = scmp.ne.s32.totalorder %s210, %s211
      %p223 = scmp.eq.s32.totalorder %s33, 1
      %p224 = por %p222, %p223
      %p226 = scmp.ne.s32.totalorder %s211, %s225
      %p227 = scmp.eq.s32.totalorder %s33, 0
      %p228 = por %p226, %p227
      %s230 = sadd.s32 %s229, 1
      %p233 = scmp.eq.s32.totalorder %s27, 1
      %p234 = scmp.ne.s32.totalorder %s229, %s231
      %p235 = scmp.eq.s32.totalorder %s27, 0
      %p236 = por %p234, %p235
      %p237 = scmp.ne.s32.totalorder %s229, %s231
      %p238 = scmp.eq.s32.totalorder %s32, 1
      %p239 = por %p237, %p238
      %p240 = scmp.ne.s32.totalorder %s231, %s232
      %p241 = scmp.eq.s32.totalorder %s32, 0
      %p242 = por %p240, %p241
      %p243 = scmp.ne.s32.totalorder %s231, %s232
      %p244 = scmp.eq.s32.totalorder %s33, 1
      %p245 = por %p243, %p244
      %p247 = scmp.ne.s32.totalorder %s232, %s246
      %p248 = scmp.eq.s32.totalorder %s33, 0
      %p249 = por %p247, %p248
      %s251 = sadd.s32 %s250, 1
      %p254 = scmp.eq.s32.totalorder %s27, 1
      %p255 = scmp.ne.s32.totalorder %s250, %s252
      %p256 = scmp.eq.s32.totalorder %s27, 0
      %p257 = por %p255, %p256
      %p258 = scmp.ne.s32.totalorder %s250, %s252
      %p259 = scmp.eq.s32.totalorder %s32, 1
      %p260 = por %p258, %p259
      %p261 = scmp.ne.s32.totalorder %s252, %s253
      %p262 = scmp.eq.s32.totalorder %s32, 0
      %p263 = por %p261, %p262
      %p264 = scmp.ne.s32.totalorder %s252, %s253
      %p265 = scmp.eq.s32.totalorder %s33, 1
      %p266 = por %p264, %p265
      %p268 = scmp.ne.s32.totalorder %s253, %s267
      %p269 = scmp.eq.s32.totalorder %s33, 0
      %p270 = por %p268, %p269
      %s272 = sadd.s32 %s271, 1
      %p275 = scmp.eq.s32.totalorder %s27, 1
      %p276 = scmp.ne.s32.totalorder %s271, %s273
      %p277 = scmp.eq.s32.totalorder %s27, 0
      %p278 = por %p276, %p277
      %p279 = scmp.ne.s32.totalorder %s271, %s273
      %p280 = scmp.eq.s32.totalorder %s32, 1
      %p281 = por %p279, %p280
      %p282 = scmp.ne.s32.totalorder %s273, %s274
      %p283 = scmp.eq.s32.totalorder %s32, 0
      %p284 = por %p282, %p283
      %p285 = scmp.ne.s32.totalorder %s273, %s274
      %p286 = scmp.eq.s32.totalorder %s33, 1
      %p287 = por %p285, %p286
      %p289 = scmp.ne.s32.totalorder %s274, %s288
      %p290 = scmp.eq.s32.totalorder %s33, 0
      %p291 = por %p289, %p290
      %s293 = sadd.s32 %s292, 1
      %p296 = scmp.eq.s32.totalorder %s27, 1
      %p297 = scmp.ne.s32.totalorder %s292, %s294
      %p298 = scmp.eq.s32.totalorder %s27, 0
      %p299 = por %p297, %p298
      %p300 = scmp.ne.s32.totalorder %s292, %s294
      %p301 = scmp.eq.s32.totalorder %s32, 1
      %p302 = por %p300, %p301
      %p303 = scmp.ne.s32.totalorder %s294, %s295
      %p304 = scmp.eq.s32.totalorder %s32, 0
      %p305 = por %p303, %p304
      %p306 = scmp.ne.s32.totalorder %s294, %s295
      %p307 = scmp.eq.s32.totalorder %s33, 1
      %p308 = por %p306, %p307
      %p310 = scmp.ne.s32.totalorder %s295, %s309
      %p311 = scmp.eq.s32.totalorder %s33, 0
      %p312 = por %p310, %p311
      %s314 = sadd.s32 %s313, 1
      %p317 = scmp.eq.s32.totalorder %s27, 1
      %p318 = scmp.ne.s32.totalorder %s313, %s315
      %p319 = scmp.eq.s32.totalorder %s27, 0
      %p320 = por %p318, %p319
      %p321 = scmp.ne.s32.totalorder %s313, %s315
      %p322 = scmp.eq.s32.totalorder %s32, 1
      %p323 = por %p321, %p322
      %p324 = scmp.ne.s32.totalorder %s315, %s316
      %p325 = scmp.eq.s32.totalorder %s32, 0
      %p326 = por %p324, %p325
      %p327 = scmp.ne.s32.totalorder %s315, %s316
      %p328 = scmp.eq.s32.totalorder %s33, 1
      %p329 = por %p327, %p328
      %p331 = scmp.ne.s32.totalorder %s316, %s330
      %p332 = scmp.eq.s32.totalorder %s33, 0
      %p333 = por %p331, %p332
      %s335 = sadd.s32 %s334, 1
      %p338 = scmp.eq.s32.totalorder %s27, 1
      %p339 = scmp.ne.s32.totalorder %s334, %s336
      %p340 = scmp.eq.s32.totalorder %s27, 0
      %p341 = por %p339, %p340
      %p342 = scmp.ne.s32.totalorder %s334, %s336
      %p343 = scmp.eq.s32.totalorder %s32, 1
      %p344 = por %p342, %p343
      %p345 = scmp.ne.s32.totalorder %s336, %s337
      %p346 = scmp.eq.s32.totalorder %s32, 0
      %p347 = por %p345, %p346
      %p348 = scmp.ne.s32.totalorder %s336, %s337
      %p349 = scmp.eq.s32.totalorder %s33, 1
      %p350 = por %p348, %p349
      %p352 = scmp.ne.s32.totalorder %s337, %s351
      %p353 = scmp.eq.s32.totalorder %s33, 0
      %p354 = por %p352, %p353
      %s355 = ssub.s32 %s27, %s34
      %p356 = scmp.eq.s32.totalorder %s355, 0
      %s358 = sadd.s32 %s357, 1
      %s359 = scalar_select %p356, %s357, %s358
      %p362 = pneg %p356
      %p363 = scmp.eq.s32.totalorder %s27, 1
      %p364 = por %p362, %p363
      %p365 = scmp.ne.s32.totalorder %s357, %s360
      %p366 = scmp.eq.s32.totalorder %s27, 0
      %p367 = por %p365, %p366
      %p368 = scmp.ne.s32.totalorder %s357, %s360
      %p369 = scmp.eq.s32.totalorder %s32, 1
      %p370 = por %p368, %p369
      %p371 = scmp.ne.s32.totalorder %s360, %s361
      %p372 = scmp.eq.s32.totalorder %s32, 0
      %p373 = por %p371, %p372
      %p374 = scmp.ne.s32.totalorder %s360, %s361
      %p375 = scmp.eq.s32.totalorder %s33, 1
      %p376 = por %p374, %p375
      %p378 = scmp.ne.s32.totalorder %s361, %s377
      %p379 = scmp.eq.s32.totalorder %s33, 0
      %p380 = por %p378, %p379
      %p381 = scmp.le.s32.totalorder 1, %s27
      %p382 = scmp.lt.s32.totalorder %s27, 3
      %p383 = pnand %p381, %p382
      %p384 = pneg %p383
      // Predicated region
      $region9: #{transformer_block_forward.2} parent=5 // pred_check
        _
      $region10: #{transformer_block_forward.2} parent=5 // pred_check_branch
        %386 = sbr.rel (%p383) target = $region12
      $region11: #{transformer_block_forward.2} parent=5 // pred_region
        %s387 = ssub.s32 %s27, 1
        // Predicated region
        $region13: #{transformer_block_forward.2} parent=11 // pred_check
          %p388 = pneg %p74
        $region14: #{transformer_block_forward.2} parent=11 // pred_check_branch
          %390 = sbr.rel (%p388) target = $region16
        $region15: #{transformer_block_forward.2} parent=11 // pred_region
          _
        $region16: #{transformer_block_forward.2} parent=11 // pred_fallthru
          _
        // Predicated region
        $region17: #{transformer_block_forward.2} parent=11 // pred_check
          %p391 = pneg %p95
        $region18: #{transformer_block_forward.2} parent=11 // pred_check_branch
          %393 = sbr.rel (%p391) target = $region20
        $region19: #{transformer_block_forward.2} parent=11 // pred_region
          _
        $region20: #{transformer_block_forward.2} parent=11 // pred_fallthru
          _
        // Predicated region
        $region21: #{transformer_block_forward.2} parent=11 // pred_check
          %p394 = pneg %p116
        $region22: #{transformer_block_forward.2} parent=11 // pred_check_branch
          %396 = sbr.rel (%p394) target = $region24
        $region23: #{transformer_block_forward.2} parent=11 // pred_region
          %398 = vsyncadd [#allocation3], 0
          %s399 = sshll.u32 %s3, 4
          %s400 = int_to_ptr.hbm [resolvable:$true] %s399
          %s401 = sshll.u32 [#allocation2], 4
          %s402 = int_to_ptr.vmem [resolvable:$true] %s401
          %407 = dma.hbm_to_vmem [thread:$0]  %s400, 256, %s402, [#allocation3], 64, 64, 4
        $region24: #{transformer_block_forward.2} parent=11 // pred_fallthru
          _
        // Predicated region
        $region25: #{transformer_block_forward.2} parent=11 // pred_check
          %p408 = pneg %p137
        $region26: #{transformer_block_forward.2} parent=11 // pred_check_branch
          %410 = sbr.rel (%p408) target = $region28
        $region27: #{transformer_block_forward.2} parent=11 // pred_region
          %412 = vsyncadd [#allocation5], 0
          %s414 = sshll.u32 %s4, 4
          %s415 = int_to_ptr.hbm [resolvable:$true] %s414
          %s416 = sshll.u32 [#allocation4], 4
          %s417 = int_to_ptr.vmem [resolvable:$true] %s416
          %419 = dma.hbm_to_vmem [thread:$0]  %s415, 16, %s417, [#allocation5]
        $region28: #{transformer_block_forward.2} parent=11 // pred_fallthru
          _
        // Predicated region
        $region29: #{transformer_block_forward.2} parent=11 // pred_check
          %p420 = pneg %p158
        $region30: #{transformer_block_forward.2} parent=11 // pred_check_branch
          %422 = sbr.rel (%p420) target = $region32
        $region31: #{transformer_block_forward.2} parent=11 // pred_region
          %424 = vsyncadd [#allocation5], 0
          %s425 = sshll.u32 %s5, 4
          %s426 = int_to_ptr.hbm [resolvable:$true] %s425
          %s427 = sshll.u32 [#allocation6], 4
          %s428 = int_to_ptr.vmem [resolvable:$true] %s427
          %433 = dma.hbm_to_vmem [thread:$0]  %s426, 256, %s428, [#allocation5], 64, 64, 4
        $region32: #{transformer_block_forward.2} parent=11 // pred_fallthru
          _
        // Predicated region
        $region33: #{transformer_block_forward.2} parent=11 // pred_check
          %p434 = pneg %p179
        $region34: #{transformer_block_forward.2} parent=11 // pred_check_branch
          %436 = sbr.rel (%p434) target = $region36
        $region35: #{transformer_block_forward.2} parent=11 // pred_region
          %438 = vsyncadd [#allocation8], 0
          %s440 = sshll.u32 %s6, 4
          %s441 = int_to_ptr.hbm [resolvable:$true] %s440
          %s442 = sshll.u32 [#allocation7], 4
          %s443 = int_to_ptr.vmem [resolvable:$true] %s442
          %445 = dma.hbm_to_vmem [thread:$0]  %s441, 16, %s443, [#allocation8]
        $region36: #{transformer_block_forward.2} parent=11 // pred_fallthru
          _
        // Predicated region
        $region37: #{transformer_block_forward.2} parent=11 // pred_check
          %p446 = pneg %p200
        $region38: #{transformer_block_forward.2} parent=11 // pred_check_branch
          %448 = sbr.rel (%p446) target = $region40
        $region39: #{transformer_block_forward.2} parent=11 // pred_region
          %450 = vsyncadd [#allocation8], 0
          %s452 = sshll.u32 %s7, 4
          %s453 = int_to_ptr.hbm [resolvable:$true] %s452
          %s454 = sshll.u32 [#allocation9], 4
          %s455 = int_to_ptr.vmem [resolvable:$true] %s454
          %457 = dma.hbm_to_vmem [thread:$0]  %s453, 16, %s455, [#allocation8]
        $region40: #{transformer_block_forward.2} parent=11 // pred_fallthru
          _
        // Predicated region
        $region41: #{transformer_block_forward.2} parent=11 // pred_check
          %p458 = pneg %p221
        $region42: #{transformer_block_forward.2} parent=11 // pred_check_branch
          %460 = sbr.rel (%p458) target = $region44
        $region43: #{transformer_block_forward.2} parent=11 // pred_region
          %462 = vsyncadd [#allocation11], 0
          %s464 = sshll.u32 %s8, 4
          %s465 = int_to_ptr.hbm [resolvable:$true] %s464
          %s466 = sshll.u32 [#allocation10], 4
          %s467 = int_to_ptr.vmem [resolvable:$true] %s466
          %469 = dma.hbm_to_vmem [thread:$0]  %s465, 16, %s467, [#allocation11]
        $region44: #{transformer_block_forward.2} parent=11 // pred_fallthru
          _
        // Predicated region
        $region45: #{transformer_block_forward.2} parent=11 // pred_check
          %p470 = pneg %p242
        $region46: #{transformer_block_forward.2} parent=11 // pred_check_branch
          %472 = sbr.rel (%p470) target = $region48
        $region47: #{transformer_block_forward.2} parent=11 // pred_region
          %474 = vsyncadd [#allocation11], 0
          %s475 = sshll.u32 %s9, 4
          %s476 = int_to_ptr.hbm [resolvable:$true] %s475
          %s477 = sshll.u32 [#allocation12], 4
          %s478 = int_to_ptr.vmem [resolvable:$true] %s477
          %483 = dma.hbm_to_vmem [thread:$0]  %s476, 256, %s478, [#allocation11], 64, 64, 4
        $region48: #{transformer_block_forward.2} parent=11 // pred_fallthru
          _
        // Predicated region
        $region49: #{transformer_block_forward.2} parent=11 // pred_check
          %p484 = pneg %p263
        $region50: #{transformer_block_forward.2} parent=11 // pred_check_branch
          %486 = sbr.rel (%p484) target = $region52
        $region51: #{transformer_block_forward.2} parent=11 // pred_region
          %488 = vsyncadd [#allocation14], 0
          %s490 = sshll.u32 %s10, 4
          %s491 = int_to_ptr.hbm [resolvable:$true] %s490
          %s492 = sshll.u32 [#allocation13], 4
          %s493 = int_to_ptr.vmem [resolvable:$true] %s492
          %495 = dma.hbm_to_vmem [thread:$0]  %s491, 16, %s493, [#allocation14]
        $region52: #{transformer_block_forward.2} parent=11 // pred_fallthru
          _
        // Predicated region
        $region53: #{transformer_block_forward.2} parent=11 // pred_check
          %p496 = pneg %p284
        $region54: #{transformer_block_forward.2} parent=11 // pred_check_branch
          %498 = sbr.rel (%p496) target = $region56
        $region55: #{transformer_block_forward.2} parent=11 // pred_region
          _
        $region56: #{transformer_block_forward.2} parent=11 // pred_fallthru
          _
        // Predicated region
        $region57: #{transformer_block_forward.2} parent=11 // pred_check
          %p499 = pneg %p305
        $region58: #{transformer_block_forward.2} parent=11 // pred_check_branch
          %501 = sbr.rel (%p499) target = $region60
        $region59: #{transformer_block_forward.2} parent=11 // pred_region
          %503 = vsyncadd [#allocation14], 0
          %s505 = sshll.u32 %s12, 4
          %s506 = int_to_ptr.hbm [resolvable:$true] %s505
          %s507 = sshll.u32 [#allocation15], 4
          %s508 = int_to_ptr.vmem [resolvable:$true] %s507
          %510 = dma.hbm_to_vmem [thread:$0]  %s506, 16, %s508, [#allocation14]
        $region60: #{transformer_block_forward.2} parent=11 // pred_fallthru
          _
        // Predicated region
        $region61: #{transformer_block_forward.2} parent=11 // pred_check
          %p511 = pneg %p326
        $region62: #{transformer_block_forward.2} parent=11 // pred_check_branch
          %513 = sbr.rel (%p511) target = $region64
        $region63: #{transformer_block_forward.2} parent=11 // pred_region
          %515 = vsyncadd [#allocation17], 0
          %s517 = sshll.u32 %s13, 4
          %s518 = int_to_ptr.hbm [resolvable:$true] %s517
          %s519 = sshll.u32 [#allocation16], 4
          %s520 = int_to_ptr.vmem [resolvable:$true] %s519
          %522 = dma.hbm_to_vmem [thread:$0]  %s518, 16, %s520, [#allocation17]
        $region64: #{transformer_block_forward.2} parent=11 // pred_fallthru
          _
        // Predicated region
        $region65: #{transformer_block_forward.2} parent=11 // pred_check
          %p523 = pneg %p347
        $region66: #{transformer_block_forward.2} parent=11 // pred_check_branch
          %525 = sbr.rel (%p523) target = $region68
        $region67: #{transformer_block_forward.2} parent=11 // pred_region
          %527 = vsyncadd [#allocation17], 0
          %s529 = sshll.u32 %s14, 4
          %s530 = int_to_ptr.hbm [resolvable:$true] %s529
          %s531 = sshll.u32 [#allocation18], 4
          %s532 = int_to_ptr.vmem [resolvable:$true] %s531
          %534 = dma.hbm_to_vmem [thread:$0]  %s530, 16, %s532, [#allocation17]
        $region68: #{transformer_block_forward.2} parent=11 // pred_fallthru
          _
      $region12: #{transformer_block_forward.2} parent=5 // pred_fallthru
        _
      %p535 = scmp.lt.s32.totalorder %s27, 2
      // Predicated region
      $region69: #{transformer_block_forward.2} parent=5 // pred_check
        %p536 = pneg %p535
      $region70: #{transformer_block_forward.2} parent=5 // pred_check_branch
        %538 = sbr.rel (%p536) target = $region72
      $region71: #{transformer_block_forward.2} parent=5 // pred_region
        // Predicated region
        $region73: #{transformer_block_forward.2} parent=71 // pred_check
          %p539 = pneg %p47
        $region74: #{transformer_block_forward.2} parent=71 // pred_check_branch
          %541 = sbr.rel (%p539) target = $region76
        $region75: #{transformer_block_forward.2} parent=71 // pred_region
          %p542 = scmp.lt.s32.totalorder %s27, 1
          %s543 = scalar_select %p542, %s27, 1
          %s544 = smul.addr %s543, 8
          %s545 = scalar_lea.vmem %s0, %s544
        $region76: #{transformer_block_forward.2} parent=71 // pred_fallthru
          _
      $region72: #{transformer_block_forward.2} parent=5 // pred_fallthru
        _
      %p546 = scmp.le.s32.totalorder 1, %s27
      %p547 = scmp.lt.s32.totalorder %s27, 3
      %p548 = pnand %p546, %p547
      %p549 = pneg %p548
      // Predicated region
      $region77: #{transformer_block_forward.2} parent=5 // pred_check
        _
      $region78: #{transformer_block_forward.2} parent=5 // pred_check_branch
        %551 = sbr.rel (%p548) target = $region80
      $region79: #{transformer_block_forward.2} parent=5 // pred_region
        %s552 = ssub.s32 %s27, 1
        // Predicated region
        $region81: #{transformer_block_forward.2} parent=79 // pred_check
          %p553 = pneg %p116
        $region82: #{transformer_block_forward.2} parent=79 // pred_check_branch
          %555 = sbr.rel (%p553) target = $region84
        $region83: #{transformer_block_forward.2} parent=79 // pred_region
          %557 = dma.done [#allocation3], 256
        $region84: #{transformer_block_forward.2} parent=79 // pred_fallthru
          _
        // Predicated region
        $region85: #{transformer_block_forward.2} parent=79 // pred_check
          %p558 = pneg %p137
        $region86: #{transformer_block_forward.2} parent=79 // pred_check_branch
          %560 = sbr.rel (%p558) target = $region88
        $region87: #{transformer_block_forward.2} parent=79 // pred_region
          %562 = dma.done [#allocation5], 16
        $region88: #{transformer_block_forward.2} parent=79 // pred_fallthru
          _
        // Predicated region
        $region89: #{transformer_block_forward.2} parent=79 // pred_check
          %p563 = pneg %p158
        $region90: #{transformer_block_forward.2} parent=79 // pred_check_branch
          %565 = sbr.rel (%p563) target = $region92
        $region91: #{transformer_block_forward.2} parent=79 // pred_region
          %567 = dma.done [#allocation5], 256
        $region92: #{transformer_block_forward.2} parent=79 // pred_fallthru
          _
        // Predicated region
        $region93: #{transformer_block_forward.2} parent=79 // pred_check
          %p568 = pneg %p179
        $region94: #{transformer_block_forward.2} parent=79 // pred_check_branch
          %570 = sbr.rel (%p568) target = $region96
        $region95: #{transformer_block_forward.2} parent=79 // pred_region
          %572 = dma.done [#allocation8], 16
        $region96: #{transformer_block_forward.2} parent=79 // pred_fallthru
          _
        // Predicated region
        $region97: #{transformer_block_forward.2} parent=79 // pred_check
          %p573 = pneg %p200
        $region98: #{transformer_block_forward.2} parent=79 // pred_check_branch
          %575 = sbr.rel (%p573) target = $region100
        $region99: #{transformer_block_forward.2} parent=79 // pred_region
          %577 = dma.done [#allocation8], 16
        $region100: #{transformer_block_forward.2} parent=79 // pred_fallthru
          _
        // Predicated region
        $region101: #{transformer_block_forward.2} parent=79 // pred_check
          %p578 = pneg %p221
        $region102: #{transformer_block_forward.2} parent=79 // pred_check_branch
          %580 = sbr.rel (%p578) target = $region104
        $region103: #{transformer_block_forward.2} parent=79 // pred_region
          %582 = dma.done [#allocation11], 16
        $region104: #{transformer_block_forward.2} parent=79 // pred_fallthru
          _
        // Predicated region
        $region105: #{transformer_block_forward.2} parent=79 // pred_check
          %p583 = pneg %p242
        $region106: #{transformer_block_forward.2} parent=79 // pred_check_branch
          %585 = sbr.rel (%p583) target = $region108
        $region107: #{transformer_block_forward.2} parent=79 // pred_region
          %587 = dma.done [#allocation11], 256
        $region108: #{transformer_block_forward.2} parent=79 // pred_fallthru
          _
        // Predicated region
        $region109: #{transformer_block_forward.2} parent=79 // pred_check
          %p588 = pneg %p263
        $region110: #{transformer_block_forward.2} parent=79 // pred_check_branch
          %590 = sbr.rel (%p588) target = $region112
        $region111: #{transformer_block_forward.2} parent=79 // pred_region
          %592 = dma.done [#allocation14], 16
        $region112: #{transformer_block_forward.2} parent=79 // pred_fallthru
          _
        // Predicated region
        $region113: #{transformer_block_forward.2} parent=79 // pred_check
          %p593 = pneg %p305
        $region114: #{transformer_block_forward.2} parent=79 // pred_check_branch
          %595 = sbr.rel (%p593) target = $region116
        $region115: #{transformer_block_forward.2} parent=79 // pred_region
          %597 = dma.done [#allocation14], 16
        $region116: #{transformer_block_forward.2} parent=79 // pred_fallthru
          _
        // Predicated region
        $region117: #{transformer_block_forward.2} parent=79 // pred_check
          %p598 = pneg %p326
        $region118: #{transformer_block_forward.2} parent=79 // pred_check_branch
          %600 = sbr.rel (%p598) target = $region120
        $region119: #{transformer_block_forward.2} parent=79 // pred_region
          %602 = dma.done [#allocation17], 16
        $region120: #{transformer_block_forward.2} parent=79 // pred_fallthru
          _
        // Predicated region
        $region121: #{transformer_block_forward.2} parent=79 // pred_check
          %p603 = pneg %p347
        $region122: #{transformer_block_forward.2} parent=79 // pred_check_branch
          %605 = sbr.rel (%p603) target = $region124
        $region123: #{transformer_block_forward.2} parent=79 // pred_region
          %607 = dma.done [#allocation17], 16
        $region124: #{transformer_block_forward.2} parent=79 // pred_fallthru
          _
        %p608 = scmp.lt.s32.totalorder %s32, 1
        %s609 = scalar_select %p608, %s32, 1
        %s610 = smul.addr %s609, 8
        %s611 = scalar_lea.vmem %s0, %s610
        %p612 = pneg %p53
        %p613 = pneg %p50
        %p614 = pneg %p74
        %p615 = pneg %p71
        %p616 = pneg %p95
        %p617 = pneg %p92
        %p618 = pneg %p116
        %p619 = pneg %p113
        %p620 = pneg %p137
        %p621 = pneg %p134
        %p622 = pneg %p158
        %p623 = pneg %p155
        %p624 = pneg %p179
        %p625 = pneg %p176
        %p626 = pneg %p200
        %p627 = pneg %p197
        %p628 = pneg %p221
        %p629 = pneg %p218
        %p630 = pneg %p242
        %p631 = pneg %p239
        %p632 = pneg %p263
        %p633 = pneg %p260
        %p634 = pneg %p284
        %p635 = pneg %p281
        %p636 = pneg %p305
        %p637 = pneg %p302
        %p638 = pneg %p326
        %p639 = pneg %p323
        %p640 = pneg %p347
        %p641 = pneg %p344
        %p642 = pneg %p373
        %p643 = pneg %p370
        %p644 = scmp.lt.s32.totalorder %s32, 1
        %s645 = scalar_select %p644, %s32, 1
        %s646 = smul.addr %s645, 8
        %s647 = scalar_lea.vmem %s15, %s646
        %p648 = scmp.lt.s32.totalorder %s32, 1
        %s649 = scalar_select %p648, %s32, 1
        %s650 = smul.addr %s649, 8
        %s651 = scalar_lea.vmem %s0, %s650
        %p652 = scmp.lt.s32.totalorder %s32, 1
        %s653 = scalar_select %p652, %s32, 1
        %s654 = smul.addr %s653, 8
        %s655 = scalar_lea.vmem %s15, %s654
        %v657 = vld [vmem:[%s651] sm:$0xff]
        %v658 = vpack.c.bf16 %v657, %v657
        %v659 = vld [vmem:[%s1] sm:$0xf]
        %v660 = vld [vmem:[%s1 + $0x4] sm:$0xf]
        %v661 = vld [vmem:[%s1 + $0x8] sm:$0xf]
        %v662 = vld [vmem:[%s1 + $0xc] sm:$0xf]
        %v663 = vld [vmem:[%s2] sm:$0x1]
        %v665 = vperm.slane %v663, 0
        %v671 = vunpack.c.l.b16 %v659
        %v672 = vunpack.c.l.b16 %v660
        %v673 = vunpack.c.l.b16 %v661
        %v674 = vunpack.c.l.b16 %v662
        %v675 = vpack.c.b16 %v672, %v671
        %v676 = vpack.c.b16 %v674, %v673
        %vm679 = vcmask 261120
        %v681 = vsel %vm679, %v658, 0
        %683 = vmatpush.bf16.msra.mxu0 0
        %684 = vmatpush.bf16.msra.mxu0 0
        %685 = vmatpush.bf16.msra.mxu0 0
        %686 = vmatpush.bf16.msra.mxu0 0
        %687 = vmatpush.bf16.msra.mxu0 0
        %688 = vmatpush.bf16.msra.mxu0 0
        %689 = vmatpush.bf16.msra.mxu0 %v676
        %690 = vmatpush.bf16.msra.mxu0 %v675
        %691 = vmatmul.bf16.gmra.mxu0 %v681
        %v692 = vpop.f32.mrf.mxu0
        %v693 = vadd.f32 %v665, %v692
        %v694 = vpop.f32.mrf.mxu0
        %695 = vdwg.mxu0
        %v696 = vpack.c.bf16 %v693, %v693
        %v697 = vld [vmem:[#allocation2] sm:$0xf]
        %v698 = vld [vmem:[#allocation2 + $0x4] sm:$0xf]
        %v699 = vld [vmem:[#allocation2 + $0x8] sm:$0xf]
        %v700 = vld [vmem:[#allocation2 + $0xc] sm:$0xf]
        %v701 = vld [vmem:[#allocation4] sm:$0x1]
        %v703 = vperm.slane %v701, 0
        %v709 = vunpack.c.l.b16 %v697
        %v710 = vunpack.c.l.b16 %v698
        %v711 = vunpack.c.l.b16 %v699
        %v712 = vunpack.c.l.b16 %v700
        %v713 = vpack.c.b16 %v710, %v709
        %v714 = vpack.c.b16 %v712, %v711
        %v718 = vsel %vm679, %v696, 0
        %720 = vmatpush.bf16.msra.mxu0 0
        %721 = vmatpush.bf16.msra.mxu0 0
        %722 = vmatpush.bf16.msra.mxu0 0
        %723 = vmatpush.bf16.msra.mxu0 0
        %724 = vmatpush.bf16.msra.mxu0 0
        %725 = vmatpush.bf16.msra.mxu0 0
        %726 = vmatpush.bf16.msra.mxu0 %v714
        %727 = vmatpush.bf16.msra.mxu0 %v713
        %728 = vmatmul.bf16.gmra.mxu0 %v718
        %v729 = vpop.f32.mrf.mxu0
        %v730 = vadd.f32 %v703, %v729
        %v731 = vpop.f32.mrf.mxu0
        %732 = vdwg.mxu0
        %v733 = vpack.c.bf16 %v730, %v730
        %735 = vrot.lane.b32.xlu0 %v733, 120
        %v736 = vpop.permute.xlu0 %735
        %737 = vrot.lane.b32.xlu0 %v733, 112
        %v738 = vpop.permute.xlu0 %737
        %739 = vrot.lane.b32.xlu0 %v733, 104
        %v740 = vpop.permute.xlu0 %739
        %v741 = vunpack.c.l.b16 %v733
        %v742 = vunpack.c.l.b16 %v736
        %v743 = vunpack.c.l.b16 %v738
        %v744 = vunpack.c.l.b16 %v740
        %v745 = vpack.c.b16 %v741, %v741
        %v746 = vpack.c.b16 %v742, %v742
        %v747 = vpack.c.b16 %v743, %v743
        %v748 = vpack.c.b16 %v744, %v744
        %749 = vrot.lane.b32.xlu0 %v745, 96
        %v750 = vpop.permute.xlu0 %749
        %751 = vrot.lane.b32.xlu0 %v746, 96
        %v752 = vpop.permute.xlu0 %751
        %753 = vrot.lane.b32.xlu0 %v747, 96
        %v754 = vpop.permute.xlu0 %753
        %755 = vrot.lane.b32.xlu0 %v748, 96
        %v756 = vpop.permute.xlu0 %755
        %761 = vxpose.xlu0.c.b16.start [1/8] %v750, 128
        %762 = vxpose.xlu0.c.b16.cont [2/8] 0, 128
        %763 = vxpose.xlu0.c.b16.cont [3/8] 0, 128
        %764 = vxpose.xlu0.c.b16.cont [4/8] 0, 128
        %765 = vxpose.xlu0.c.b16.cont [5/8] 0, 128
        %766 = vxpose.xlu0.c.b16.cont [6/8] 0, 128
        %767 = vxpose.xlu0.c.b16.cont [7/8] 0, 128
        %768 = vxpose.xlu0.c.b16.end [8/8] 0, 128
        %v769 = vpop.trf.xlu0
        %v770 = vpop.trf.xlu0
        %v771 = vpop.trf.xlu0
        %v772 = vpop.trf.xlu0
        %v773 = vpop.trf.xlu0
        %v774 = vpop.trf.xlu0
        %v775 = vpop.trf.xlu0
        %v776 = vpop.trf.xlu0
        %777 = vxpose.xlu0.c.b16.start [1/8] %v752, 128
        %778 = vxpose.xlu0.c.b16.cont [2/8] 0, 128
        %779 = vxpose.xlu0.c.b16.cont [3/8] 0, 128
        %780 = vxpose.xlu0.c.b16.cont [4/8] 0, 128
        %781 = vxpose.xlu0.c.b16.cont [5/8] 0, 128
        %782 = vxpose.xlu0.c.b16.cont [6/8] 0, 128
        %783 = vxpose.xlu0.c.b16.cont [7/8] 0, 128
        %784 = vxpose.xlu0.c.b16.end [8/8] 0, 128
        %v785 = vpop.trf.xlu0
        %v786 = vpop.trf.xlu0
        %v787 = vpop.trf.xlu0
        %v788 = vpop.trf.xlu0
        %v789 = vpop.trf.xlu0
        %v790 = vpop.trf.xlu0
        %v791 = vpop.trf.xlu0
        %v792 = vpop.trf.xlu0
        %793 = vxpose.xlu0.c.b16.start [1/8] %v754, 128
        %794 = vxpose.xlu0.c.b16.cont [2/8] 0, 128
        %795 = vxpose.xlu0.c.b16.cont [3/8] 0, 128
        %796 = vxpose.xlu0.c.b16.cont [4/8] 0, 128
        %797 = vxpose.xlu0.c.b16.cont [5/8] 0, 128
        %798 = vxpose.xlu0.c.b16.cont [6/8] 0, 128
        %799 = vxpose.xlu0.c.b16.cont [7/8] 0, 128
        %800 = vxpose.xlu0.c.b16.end [8/8] 0, 128
        %v801 = vpop.trf.xlu0
        %v802 = vpop.trf.xlu0
        %v803 = vpop.trf.xlu0
        %v804 = vpop.trf.xlu0
        %v805 = vpop.trf.xlu0
        %v806 = vpop.trf.xlu0
        %v807 = vpop.trf.xlu0
        %v808 = vpop.trf.xlu0
        %809 = vxpose.xlu0.c.b16.start [1/8] %v756, 128
        %810 = vxpose.xlu0.c.b16.cont [2/8] 0, 128
        %811 = vxpose.xlu0.c.b16.cont [3/8] 0, 128
        %812 = vxpose.xlu0.c.b16.cont [4/8] 0, 128
        %813 = vxpose.xlu0.c.b16.cont [5/8] 0, 128
        %814 = vxpose.xlu0.c.b16.cont [6/8] 0, 128
        %815 = vxpose.xlu0.c.b16.cont [7/8] 0, 128
        %816 = vxpose.xlu0.c.b16.end [8/8] 0, 128
        %v817 = vpop.trf.xlu0
        %v818 = vpop.trf.xlu0
        %v819 = vpop.trf.xlu0
        %v820 = vpop.trf.xlu0
        %v821 = vpop.trf.xlu0
        %v822 = vpop.trf.xlu0
        %v823 = vpop.trf.xlu0
        %v824 = vpop.trf.xlu0
        %vm825 = vcmask 64512
        %v827 = vsel %vm825, %v733, 0
        %vm829 = vcmask 1043456
        %v831 = vsel %vm829, %v769, 0
        %833 = vmatpush.bf16.msra.mxu0 0
        %834 = vmatpush.bf16.msra.mxu0 0
        %835 = vmatpush.bf16.msra.mxu0 0
        %836 = vmatpush.bf16.msra.mxu0 0
        %837 = vmatpush.bf16.msra.mxu0 0
        %838 = vmatpush.bf16.msra.mxu0 0
        %839 = vmatpush.bf16.msra.mxu0 0
        %840 = vmatpush.bf16.msra.mxu0 %v831
        %841 = vmatmul.bf16.gmra.mxu0 %v827
        %v842 = vpop.f32.mrf.mxu0
        %v843 = vadd.f32 0.0, %v842
        %v844 = vpop.f32.mrf.mxu0
        %845 = vdwg.mxu0
        %v847 = vsel %vm825, %v736, 0
        %v850 = vsel %vm829, %v785, 0
        %852 = vmatpush.bf16.msra.mxu0 0
        %853 = vmatpush.bf16.msra.mxu0 0
        %854 = vmatpush.bf16.msra.mxu0 0
        %855 = vmatpush.bf16.msra.mxu0 0
        %856 = vmatpush.bf16.msra.mxu0 0
        %857 = vmatpush.bf16.msra.mxu0 0
        %858 = vmatpush.bf16.msra.mxu0 0
        %859 = vmatpush.bf16.msra.mxu0 %v850
        %860 = vmatmul.bf16.gmra.mxu0 %v847
        %v861 = vpop.f32.mrf.mxu0
        %v862 = vadd.f32 0.0, %v861
        %v863 = vpop.f32.mrf.mxu0
        %864 = vdwg.mxu0
        %v866 = vsel %vm825, %v738, 0
        %v869 = vsel %vm829, %v801, 0
        %871 = vmatpush.bf16.msra.mxu0 0
        %872 = vmatpush.bf16.msra.mxu0 0
        %873 = vmatpush.bf16.msra.mxu0 0
        %874 = vmatpush.bf16.msra.mxu0 0
        %875 = vmatpush.bf16.msra.mxu0 0
        %876 = vmatpush.bf16.msra.mxu0 0
        %877 = vmatpush.bf16.msra.mxu0 0
        %878 = vmatpush.bf16.msra.mxu0 %v869
        %879 = vmatmul.bf16.gmra.mxu0 %v866
        %v880 = vpop.f32.mrf.mxu0
        %v881 = vadd.f32 0.0, %v880
        %v882 = vpop.f32.mrf.mxu0
        %883 = vdwg.mxu0
        %v885 = vsel %vm825, %v740, 0
        %v888 = vsel %vm829, %v817, 0
        %890 = vmatpush.bf16.msra.mxu0 0
        %891 = vmatpush.bf16.msra.mxu0 0
        %892 = vmatpush.bf16.msra.mxu0 0
        %893 = vmatpush.bf16.msra.mxu0 0
        %894 = vmatpush.bf16.msra.mxu0 0
        %895 = vmatpush.bf16.msra.mxu0 0
        %896 = vmatpush.bf16.msra.mxu0 0
        %897 = vmatpush.bf16.msra.mxu0 %v888
        %898 = vmatmul.bf16.gmra.mxu0 %v885
        %v899 = vpop.f32.mrf.mxu0
        %v900 = vadd.f32 0.0, %v899
        %v901 = vpop.f32.mrf.mxu0
        %902 = vdwg.mxu0
        %v903 = vsel %vm825, %v843, -inf
        %904 = vmax.xlane.f32.xlu0 %v903
        %v905 = vpop.xlane.xlu0 %904
        %v906 = vsel %vm825, %v862, -inf
        %907 = vmax.xlane.f32.xlu0 %v906
        %v908 = vpop.xlane.xlu0 %907
        %v909 = vsel %vm825, %v881, -inf
        %910 = vmax.xlane.f32.xlu0 %v909
        %v911 = vpop.xlane.xlu0 %910
        %v912 = vsel %vm825, %v900, -inf
        %913 = vmax.xlane.f32.xlu0 %v912
        %v914 = vpop.xlane.xlu0 %913
        %v915 = vsub.f32 %v843, %v905
        %v916 = vsub.f32 %v862, %v908
        %v917 = vsub.f32 %v881, %v911
        %v918 = vsub.f32 %v900, %v914
        %v919 = vmul.f32 %v915, 1.442695
        %v920 = vpow.pop %v919
        %v921 = vmul.f32 %v916, 1.442695
        %v922 = vpow.pop %v921
        %v923 = vmul.f32 %v917, 1.442695
        %v924 = vpow.pop %v923
        %v925 = vmul.f32 %v918, 1.442695
        %v926 = vpow.pop %v925
        %v927 = vsel %vm825, %v920, 0.0
        %928 = vadd.xlane.f32.xlu0 %v927
        %v929 = vpop.xlane.xlu0 %928
        %v930 = vsel %vm825, %v922, 0.0
        %931 = vadd.xlane.f32.xlu0 %v930
        %v932 = vpop.xlane.xlu0 %931
        %v933 = vsel %vm825, %v924, 0.0
        %934 = vadd.xlane.f32.xlu0 %v933
        %v935 = vpop.xlane.xlu0 %934
        %v936 = vsel %vm825, %v926, 0.0
        %937 = vadd.xlane.f32.xlu0 %v936
        %v938 = vpop.xlane.xlu0 %937
        %v939 = vrcp.pop %v929
        %v940 = vrcp.pop %v932
        %v941 = vrcp.pop %v935
        %v942 = vrcp.pop %v938
        %v943 = vmul.f32 %v920, %v939
        %v944 = vmul.f32 %v922, %v940
        %v945 = vmul.f32 %v924, %v941
        %v946 = vmul.f32 %v926, %v942
        %v947 = vpack.c.bf16 %v943, %v943
        %v948 = vpack.c.bf16 %v944, %v944
        %v949 = vpack.c.bf16 %v945, %v945
        %v950 = vpack.c.bf16 %v946, %v946
        %951 = vrot.lane.b32.xlu0 %v745, 64
        %v952 = vpop.permute.xlu0 %951
        %953 = vrot.lane.b32.xlu0 %v746, 64
        %v954 = vpop.permute.xlu0 %953
        %955 = vrot.lane.b32.xlu0 %v747, 64
        %v956 = vpop.permute.xlu0 %955
        %957 = vrot.lane.b32.xlu0 %v748, 64
        %v958 = vpop.permute.xlu0 %957
        %963 = vxpose.xlu0.c.b16.start [1/8] %v952, 128
        %964 = vxpose.xlu0.c.b16.cont [2/8] 0, 128
        %965 = vxpose.xlu0.c.b16.cont [3/8] 0, 128
        %966 = vxpose.xlu0.c.b16.cont [4/8] 0, 128
        %967 = vxpose.xlu0.c.b16.cont [5/8] 0, 128
        %968 = vxpose.xlu0.c.b16.cont [6/8] 0, 128
        %969 = vxpose.xlu0.c.b16.cont [7/8] 0, 128
        %970 = vxpose.xlu0.c.b16.end [8/8] 0, 128
        %v971 = vpop.trf.xlu0
        %v972 = vpop.trf.xlu0
        %v973 = vpop.trf.xlu0
        %v974 = vpop.trf.xlu0
        %v975 = vpop.trf.xlu0
        %v976 = vpop.trf.xlu0
        %v977 = vpop.trf.xlu0
        %v978 = vpop.trf.xlu0
        %979 = vxpose.xlu0.c.b16.start [1/8] %v954, 128
        %980 = vxpose.xlu0.c.b16.cont [2/8] 0, 128
        %981 = vxpose.xlu0.c.b16.cont [3/8] 0, 128
        %982 = vxpose.xlu0.c.b16.cont [4/8] 0, 128
        %983 = vxpose.xlu0.c.b16.cont [5/8] 0, 128
        %984 = vxpose.xlu0.c.b16.cont [6/8] 0, 128
        %985 = vxpose.xlu0.c.b16.cont [7/8] 0, 128
        %986 = vxpose.xlu0.c.b16.end [8/8] 0, 128
        %v987 = vpop.trf.xlu0
        %v988 = vpop.trf.xlu0
        %v989 = vpop.trf.xlu0
        %v990 = vpop.trf.xlu0
        %v991 = vpop.trf.xlu0
        %v992 = vpop.trf.xlu0
        %v993 = vpop.trf.xlu0
        %v994 = vpop.trf.xlu0
        %995 = vxpose.xlu0.c.b16.start [1/8] %v956, 128
        %996 = vxpose.xlu0.c.b16.cont [2/8] 0, 128
        %997 = vxpose.xlu0.c.b16.cont [3/8] 0, 128
        %998 = vxpose.xlu0.c.b16.cont [4/8] 0, 128
        %999 = vxpose.xlu0.c.b16.cont [5/8] 0, 128
        %1000 = vxpose.xlu0.c.b16.cont [6/8] 0, 128
        %1001 = vxpose.xlu0.c.b16.cont [7/8] 0, 128
        %1002 = vxpose.xlu0.c.b16.end [8/8] 0, 128
        %v1003 = vpop.trf.xlu0
        %v1004 = vpop.trf.xlu0
        %v1005 = vpop.trf.xlu0
        %v1006 = vpop.trf.xlu0
        %v1007 = vpop.trf.xlu0
        %v1008 = vpop.trf.xlu0
        %v1009 = vpop.trf.xlu0
        %v1010 = vpop.trf.xlu0
        %1011 = vxpose.xlu0.c.b16.start [1/8] %v958, 128
        %1012 = vxpose.xlu0.c.b16.cont [2/8] 0, 128
        %1013 = vxpose.xlu0.c.b16.cont [3/8] 0, 128
        %1014 = vxpose.xlu0.c.b16.cont [4/8] 0, 128
        %1015 = vxpose.xlu0.c.b16.cont [5/8] 0, 128
        %1016 = vxpose.xlu0.c.b16.cont [6/8] 0, 128
        %1017 = vxpose.xlu0.c.b16.cont [7/8] 0, 128
        %1018 = vxpose.xlu0.c.b16.end [8/8] 0, 128
        %v1019 = vpop.trf.xlu0
        %v1020 = vpop.trf.xlu0
        %v1021 = vpop.trf.xlu0
        %v1022 = vpop.trf.xlu0
        %v1023 = vpop.trf.xlu0
        %v1024 = vpop.trf.xlu0
        %v1025 = vpop.trf.xlu0
        %v1026 = vpop.trf.xlu0
        %v1028 = vsel %vm825, %v971, 0
        %v1031 = vsel %vm825, %v947, 0
        %1033 = vmatpush.bf16.xpose.msra.mxu0 0
        %1034 = vmatpush.bf16.xpose.msra.mxu0 0
        %1035 = vmatpush.bf16.xpose.msra.mxu0 0
        %1036 = vmatpush.bf16.xpose.msra.mxu0 0
        %1037 = vmatpush.bf16.xpose.msra.mxu0 0
        %1038 = vmatpush.bf16.xpose.msra.mxu0 0
        %1039 = vmatpush.bf16.xpose.msra.mxu0 0
        %1040 = vmatpush.bf16.xpose.msra.mxu0 %v1031
        %1041 = vmatmul.bf16.gmra.mxu0 %v1028
        %v1042 = vpop.f32.mrf.mxu0
        %v1043 = vadd.f32 0.0, %v1042
        %v1044 = vpop.f32.mrf.mxu0
        %1045 = vdwg.mxu0
        %v1047 = vsel %vm825, %v987, 0
        %v1050 = vsel %vm825, %v948, 0
        %1052 = vmatpush.bf16.xpose.msra.mxu0 0
        %1053 = vmatpush.bf16.xpose.msra.mxu0 0
        %1054 = vmatpush.bf16.xpose.msra.mxu0 0
        %1055 = vmatpush.bf16.xpose.msra.mxu0 0
        %1056 = vmatpush.bf16.xpose.msra.mxu0 0
        %1057 = vmatpush.bf16.xpose.msra.mxu0 0
        %1058 = vmatpush.bf16.xpose.msra.mxu0 0
        %1059 = vmatpush.bf16.xpose.msra.mxu0 %v1050
        %1060 = vmatmul.bf16.gmra.mxu0 %v1047
        %v1061 = vpop.f32.mrf.mxu0
        %v1062 = vadd.f32 0.0, %v1061
        %v1063 = vpop.f32.mrf.mxu0
        %1064 = vdwg.mxu0
        %v1066 = vsel %vm825, %v1003, 0
        %v1069 = vsel %vm825, %v949, 0
        %1071 = vmatpush.bf16.xpose.msra.mxu0 0
        %1072 = vmatpush.bf16.xpose.msra.mxu0 0
        %1073 = vmatpush.bf16.xpose.msra.mxu0 0
        %1074 = vmatpush.bf16.xpose.msra.mxu0 0
        %1075 = vmatpush.bf16.xpose.msra.mxu0 0
        %1076 = vmatpush.bf16.xpose.msra.mxu0 0
        %1077 = vmatpush.bf16.xpose.msra.mxu0 0
        %1078 = vmatpush.bf16.xpose.msra.mxu0 %v1069
        %1079 = vmatmul.bf16.gmra.mxu0 %v1066
        %v1080 = vpop.f32.mrf.mxu0
        %v1081 = vadd.f32 0.0, %v1080
        %v1082 = vpop.f32.mrf.mxu0
        %1083 = vdwg.mxu0
        %v1085 = vsel %vm825, %v1019, 0
        %v1088 = vsel %vm825, %v950, 0
        %1090 = vmatpush.bf16.xpose.msra.mxu0 0
        %1091 = vmatpush.bf16.xpose.msra.mxu0 0
        %1092 = vmatpush.bf16.xpose.msra.mxu0 0
        %1093 = vmatpush.bf16.xpose.msra.mxu0 0
        %1094 = vmatpush.bf16.xpose.msra.mxu0 0
        %1095 = vmatpush.bf16.xpose.msra.mxu0 0
        %1096 = vmatpush.bf16.xpose.msra.mxu0 0
        %1097 = vmatpush.bf16.xpose.msra.mxu0 %v1088
        %1098 = vmatmul.bf16.gmra.mxu0 %v1085
        %v1099 = vpop.f32.mrf.mxu0
        %v1100 = vadd.f32 0.0, %v1099
        %v1101 = vpop.f32.mrf.mxu0
        %1102 = vdwg.mxu0
        %1103 = vxpose.xlu0.b32.start [1/16] %v1043, 128
        %1104 = vxpose.xlu0.b32.cont [2/16] 0.0, 128
        %1105 = vxpose.xlu0.b32.cont [3/16] 0.0, 128
        %1106 = vxpose.xlu0.b32.cont [4/16] 0.0, 128
        %1107 = vxpose.xlu0.b32.cont [5/16] 0.0, 128
        %1108 = vxpose.xlu0.b32.cont [6/16] 0.0, 128
        %1109 = vxpose.xlu0.b32.cont [7/16] 0.0, 128
        %1110 = vxpose.xlu0.b32.cont [8/16] 0.0, 128
        %1111 = vxpose.xlu0.b32.cont [9/16] 0.0, 128
        %1112 = vxpose.xlu0.b32.cont [10/16] 0.0, 128
        %1113 = vxpose.xlu0.b32.cont [11/16] 0.0, 128
        %1114 = vxpose.xlu0.b32.cont [12/16] 0.0, 128
        %1115 = vxpose.xlu0.b32.cont [13/16] 0.0, 128
        %1116 = vxpose.xlu0.b32.cont [14/16] 0.0, 128
        %1117 = vxpose.xlu0.b32.cont [15/16] 0.0, 128
        %1118 = vxpose.xlu0.b32.end [16/16] 0.0, 128
        %v1119 = vpop.trf.xlu0
        %v1120 = vpop.trf.xlu0
        %v1121 = vpop.trf.xlu0
        %v1122 = vpop.trf.xlu0
        %v1123 = vpop.trf.xlu0
        %v1124 = vpop.trf.xlu0
        %v1125 = vpop.trf.xlu0
        %v1126 = vpop.trf.xlu0
        %v1127 = vpop.trf.xlu0
        %v1128 = vpop.trf.xlu0
        %v1129 = vpop.trf.xlu0
        %v1130 = vpop.trf.xlu0
        %v1131 = vpop.trf.xlu0
        %v1132 = vpop.trf.xlu0
        %v1133 = vpop.trf.xlu0
        %v1134 = vpop.trf.xlu0
        %1135 = vxpose.xlu0.b32.start [1/16] %v1062, 128
        %1136 = vxpose.xlu0.b32.cont [2/16] 0.0, 128
        %1137 = vxpose.xlu0.b32.cont [3/16] 0.0, 128
        %1138 = vxpose.xlu0.b32.cont [4/16] 0.0, 128
        %1139 = vxpose.xlu0.b32.cont [5/16] 0.0, 128
        %1140 = vxpose.xlu0.b32.cont [6/16] 0.0, 128
        %1141 = vxpose.xlu0.b32.cont [7/16] 0.0, 128
        %1142 = vxpose.xlu0.b32.cont [8/16] 0.0, 128
        %1143 = vxpose.xlu0.b32.cont [9/16] 0.0, 128
        %1144 = vxpose.xlu0.b32.cont [10/16] 0.0, 128
        %1145 = vxpose.xlu0.b32.cont [11/16] 0.0, 128
        %1146 = vxpose.xlu0.b32.cont [12/16] 0.0, 128
        %1147 = vxpose.xlu0.b32.cont [13/16] 0.0, 128
        %1148 = vxpose.xlu0.b32.cont [14/16] 0.0, 128
        %1149 = vxpose.xlu0.b32.cont [15/16] 0.0, 128
        %1150 = vxpose.xlu0.b32.end [16/16] 0.0, 128
        %v1151 = vpop.trf.xlu0
        %v1152 = vpop.trf.xlu0
        %v1153 = vpop.trf.xlu0
        %v1154 = vpop.trf.xlu0
        %v1155 = vpop.trf.xlu0
        %v1156 = vpop.trf.xlu0
        %v1157 = vpop.trf.xlu0
        %v1158 = vpop.trf.xlu0
        %v1159 = vpop.trf.xlu0
        %v1160 = vpop.trf.xlu0
        %v1161 = vpop.trf.xlu0
        %v1162 = vpop.trf.xlu0
        %v1163 = vpop.trf.xlu0
        %v1164 = vpop.trf.xlu0
        %v1165 = vpop.trf.xlu0
        %v1166 = vpop.trf.xlu0
        %1167 = vxpose.xlu0.b32.start [1/16] %v1081, 128
        %1168 = vxpose.xlu0.b32.cont [2/16] 0.0, 128
        %1169 = vxpose.xlu0.b32.cont [3/16] 0.0, 128
        %1170 = vxpose.xlu0.b32.cont [4/16] 0.0, 128
        %1171 = vxpose.xlu0.b32.cont [5/16] 0.0, 128
        %1172 = vxpose.xlu0.b32.cont [6/16] 0.0, 128
        %1173 = vxpose.xlu0.b32.cont [7/16] 0.0, 128
        %1174 = vxpose.xlu0.b32.cont [8/16] 0.0, 128
        %1175 = vxpose.xlu0.b32.cont [9/16] 0.0, 128
        %1176 = vxpose.xlu0.b32.cont [10/16] 0.0, 128
        %1177 = vxpose.xlu0.b32.cont [11/16] 0.0, 128
        %1178 = vxpose.xlu0.b32.cont [12/16] 0.0, 128
        %1179 = vxpose.xlu0.b32.cont [13/16] 0.0, 128
        %1180 = vxpose.xlu0.b32.cont [14/16] 0.0, 128
        %1181 = vxpose.xlu0.b32.cont [15/16] 0.0, 128
        %1182 = vxpose.xlu0.b32.end [16/16] 0.0, 128
        %v1183 = vpop.trf.xlu0
        %v1184 = vpop.trf.xlu0
        %v1185 = vpop.trf.xlu0
        %v1186 = vpop.trf.xlu0
        %v1187 = vpop.trf.xlu0
        %v1188 = vpop.trf.xlu0
        %v1189 = vpop.trf.xlu0
        %v1190 = vpop.trf.xlu0
        %v1191 = vpop.trf.xlu0
        %v1192 = vpop.trf.xlu0
        %v1193 = vpop.trf.xlu0
        %v1194 = vpop.trf.xlu0
        %v1195 = vpop.trf.xlu0
        %v1196 = vpop.trf.xlu0
        %v1197 = vpop.trf.xlu0
        %v1198 = vpop.trf.xlu0
        %1199 = vxpose.xlu0.b32.start [1/16] %v1100, 128
        %1200 = vxpose.xlu0.b32.cont [2/16] 0.0, 128
        %1201 = vxpose.xlu0.b32.cont [3/16] 0.0, 128
        %1202 = vxpose.xlu0.b32.cont [4/16] 0.0, 128
        %1203 = vxpose.xlu0.b32.cont [5/16] 0.0, 128
        %1204 = vxpose.xlu0.b32.cont [6/16] 0.0, 128
        %1205 = vxpose.xlu0.b32.cont [7/16] 0.0, 128
        %1206 = vxpose.xlu0.b32.cont [8/16] 0.0, 128
        %1207 = vxpose.xlu0.b32.cont [9/16] 0.0, 128
        %1208 = vxpose.xlu0.b32.cont [10/16] 0.0, 128
        %1209 = vxpose.xlu0.b32.cont [11/16] 0.0, 128
        %1210 = vxpose.xlu0.b32.cont [12/16] 0.0, 128
        %1211 = vxpose.xlu0.b32.cont [13/16] 0.0, 128
        %1212 = vxpose.xlu0.b32.cont [14/16] 0.0, 128
        %1213 = vxpose.xlu0.b32.cont [15/16] 0.0, 128
        %1214 = vxpose.xlu0.b32.end [16/16] 0.0, 128
        %v1215 = vpop.trf.xlu0
        %v1216 = vpop.trf.xlu0
        %v1217 = vpop.trf.xlu0
        %v1218 = vpop.trf.xlu0
        %v1219 = vpop.trf.xlu0
        %v1220 = vpop.trf.xlu0
        %v1221 = vpop.trf.xlu0
        %v1222 = vpop.trf.xlu0
        %v1223 = vpop.trf.xlu0
        %v1224 = vpop.trf.xlu0
        %v1225 = vpop.trf.xlu0
        %v1226 = vpop.trf.xlu0
        %v1227 = vpop.trf.xlu0
        %v1228 = vpop.trf.xlu0
        %v1229 = vpop.trf.xlu0
        %v1230 = vpop.trf.xlu0
        %v1231 = vrot.slane %v1183, 4
        %vm1232 = vcmask 1047556
        %v1233 = vsel %vm1232, %v1231, %v1119
        %v1234 = vrot.slane %v1119, 4
        %v1235 = vsel %vm1232, %v1183, %v1234
        %v1237 = vunpack.c.l.s4 1983009808
        %v1238 = vunpack.c.0.s8 %v1237
        %v1239 = vperm.slane %v1233, %v1238
        %v1241 = vunpack.c.l.s4 1983009808
        %v1242 = vunpack.c.0.s8 %v1241
        %v1243 = vperm.slane %v1235, %v1242
        %v1244 = vrot.slane %v1215, 4
        %v1245 = vsel %vm1232, %v1244, %v1151
        %v1246 = vrot.slane %v1151, 4
        %v1247 = vsel %vm1232, %v1215, %v1246
        %v1249 = vunpack.c.l.s4 1983009808
        %v1250 = vunpack.c.0.s8 %v1249
        %v1251 = vperm.slane %v1245, %v1250
        %v1253 = vunpack.c.l.s4 1983009808
        %v1254 = vunpack.c.0.s8 %v1253
        %v1255 = vperm.slane %v1247, %v1254
        %v1256 = vrot.slane %v1251, 4
        %v1257 = vsel %vm1232, %v1256, %v1239
        %v1258 = vrot.slane %v1239, 4
        %v1259 = vsel %vm1232, %v1251, %v1258
        %v1261 = vunpack.c.l.s4 1934713408
        %v1262 = vunpack.c.0.s8 %v1261
        %v1263 = vperm.slane %v1257, %v1262
        %v1265 = vunpack.c.l.s4 1934713408
        %v1266 = vunpack.c.0.s8 %v1265
        %v1267 = vperm.slane %v1259, %v1266
        %v1268 = vrot.slane %v1255, 4
        %v1269 = vsel %vm1232, %v1268, %v1243
        %v1270 = vrot.slane %v1243, 4
        %v1271 = vsel %vm1232, %v1255, %v1270
        %v1273 = vunpack.c.l.s4 1934713408
        %v1274 = vunpack.c.0.s8 %v1273
        %v1275 = vperm.slane %v1269, %v1274
        %v1277 = vunpack.c.l.s4 1934713408
        %v1278 = vunpack.c.0.s8 %v1277
        %v1279 = vperm.slane %v1271, %v1278
        %v1280 = vrot.slane %v1263, 4
        %v1281 = vsel %vm1232, 0.0, %v1280
        %v1282 = vrot.slane %v1267, 4
        %v1283 = vsel %vm1232, 0.0, %v1282
        %v1284 = vrot.slane %v1275, 4
        %v1285 = vsel %vm1232, 0.0, %v1284
        %v1286 = vrot.slane %v1279, 4
        %v1287 = vsel %vm1232, 0.0, %v1286
        %v1288 = vsel %vm1232, %v1282, %v1263
        %v1290 = vunpack.c.l.s4 1983009808
        %v1291 = vunpack.c.0.s8 %v1290
        %v1292 = vperm.slane %v1288, %v1291
        %v1293 = vrot.slane %v1283, 4
        %v1294 = vsel %vm1232, %v1293, %v1281
        %v1296 = vunpack.c.l.s4 1983009808
        %v1297 = vunpack.c.0.s8 %v1296
        %v1298 = vperm.slane %v1294, %v1297
        %v1299 = vsel %vm1232, %v1286, %v1275
        %v1301 = vunpack.c.l.s4 1983009808
        %v1302 = vunpack.c.0.s8 %v1301
        %v1303 = vperm.slane %v1299, %v1302
        %v1304 = vrot.slane %v1287, 4
        %v1305 = vsel %vm1232, %v1304, %v1285
        %v1307 = vunpack.c.l.s4 1983009808
        %v1308 = vunpack.c.0.s8 %v1307
        %v1309 = vperm.slane %v1305, %v1308
        %v1310 = vrot.slane %v1298, 4
        %v1311 = vsel %vm1232, %v1310, %v1292
        %v1312 = vrot.slane %v1292, 4
        %v1313 = vsel %vm1232, %v1298, %v1312
        %v1315 = vunpack.c.l.s4 1934713408
        %v1316 = vunpack.c.0.s8 %v1315
        %v1317 = vperm.slane %v1311, %v1316
        %v1319 = vunpack.c.l.s4 1934713408
        %v1320 = vunpack.c.0.s8 %v1319
        %v1321 = vperm.slane %v1313, %v1320
        %v1322 = vrot.slane %v1309, 4
        %v1323 = vsel %vm1232, %v1322, %v1303
        %v1324 = vrot.slane %v1303, 4
        %v1325 = vsel %vm1232, %v1309, %v1324
        %v1327 = vunpack.c.l.s4 1934713408
        %v1328 = vunpack.c.0.s8 %v1327
        %v1329 = vperm.slane %v1323, %v1328
        %v1331 = vunpack.c.l.s4 1934713408
        %v1332 = vunpack.c.0.s8 %v1331
        %v1333 = vperm.slane %v1325, %v1332
        %v1334 = vrot.slane %v1329, 4
        %v1335 = vsel %vm1232, %v1334, %v1317
        %v1336 = vrot.slane %v1317, 4
        %v1337 = vsel %vm1232, %v1329, %v1336
        %v1338 = vrot.slane %v1333, 4
        %v1339 = vsel %vm1232, %v1338, %v1321
        %v1340 = vrot.slane %v1321, 4
        %v1341 = vsel %vm1232, %v1333, %v1340
        %1343 = vrot.lane.b32.xlu0 %v1337, 8
        %v1344 = vpop.permute.xlu0 %1343
        %1347 = vrot.lane.b32.xlu0 %v1339, 16
        %v1348 = vpop.permute.xlu0 %1347
        %1351 = vrot.lane.b32.xlu0 %v1341, 24
        %v1352 = vpop.permute.xlu0 %1351
        %v1354 = vsel %vm825, %v1335, %v1344
        %vm1355 = vcmask 130048
        %v1356 = vsel %vm1355, %v1354, %v1348
        %vm1357 = vcmask 195584
        %v1358 = vsel %vm1357, %v1356, %v1352
        %v1359 = vpack.c.bf16 %v1358, %v1358
        %v1360 = vld [vmem:[#allocation6] sm:$0xf]
        %v1361 = vld [vmem:[#allocation6 + $0x4] sm:$0xf]
        %v1362 = vld [vmem:[#allocation6 + $0x8] sm:$0xf]
        %v1363 = vld [vmem:[#allocation6 + $0xc] sm:$0xf]
        %v1364 = vld [vmem:[#allocation7] sm:$0x1]
        %v1366 = vperm.slane %v1364, 0
        %v1372 = vunpack.c.l.b16 %v1360
        %v1373 = vunpack.c.l.b16 %v1361
        %v1374 = vunpack.c.l.b16 %v1362
        %v1375 = vunpack.c.l.b16 %v1363
        %v1376 = vpack.c.b16 %v1373, %v1372
        %v1377 = vpack.c.b16 %v1375, %v1374
        %v1381 = vsel %vm679, %v1359, 0
        %1383 = vmatpush.bf16.msra.mxu0 0
        %1384 = vmatpush.bf16.msra.mxu0 0
        %1385 = vmatpush.bf16.msra.mxu0 0
        %1386 = vmatpush.bf16.msra.mxu0 0
        %1387 = vmatpush.bf16.msra.mxu0 0
        %1388 = vmatpush.bf16.msra.mxu0 0
        %1389 = vmatpush.bf16.msra.mxu0 %v1377
        %1390 = vmatpush.bf16.msra.mxu0 %v1376
        %1391 = vmatmul.bf16.gmra.mxu0 %v1381
        %v1392 = vpop.f32.mrf.mxu0
        %v1393 = vadd.f32 %v1366, %v1392
        %v1394 = vpop.f32.mrf.mxu0
        %1395 = vdwg.mxu0
        %v1396 = vadd.f32 %v693, %v1393
        %v1397 = vld [vmem:[#allocation9] sm:$0x1]
        %v1398 = vld [vmem:[#allocation10] sm:$0x1]
        %v1399 = vsel %vm679, %v1396, 0.0
        %1400 = vadd.xlane.f32.xlu0 %v1399
        %v1401 = vpop.xlane.xlu0 %1400
        %v1402 = vrcp.pop 32.0
        %v1403 = vmul.f32 32.0, %v1402
        %v1404 = vsub.f32 1.0, %v1403
        %v1405 = vmul.f32 %v1402, %v1404
        %v1406 = vadd.f32 %v1402, %v1405
        %vm1407 = vweird.f32 %v1402
        %v1408 = vsel %vm1407, %v1402, %v1406
        %v1409 = vmul.f32 %v1401, %v1408
        %v1410 = vsub.f32 %v1396, %v1409
        %v1411 = vmul.f32 %v1410, %v1410
        %v1412 = vsel %vm679, %v1411, 0.0
        %1413 = vadd.xlane.f32.xlu0 %v1412
        %v1414 = vpop.xlane.xlu0 %1413
        %v1415 = vmul.f32 %v1414, %v1408
        %v1416 = vadd.f32 %v1415, 1e-05
        %v1417 = vrsqrt.pop %v1416
        %v1418 = vmul.f32 %v1417, %v1416
        %v1419 = vmul.f32 %v1418, %v1417
        %v1420 = vmul.f32 0.5, %v1419
        %v1421 = vsub.f32 1.5, %v1420
        %v1422 = vmul.f32 %v1417, %v1421
        %vm1423 = vweird.f32 %v1416
        %vm1424 = vweird.f32 %v1417
        %vm1425 = vmor %vm1423, %vm1424
        %v1426 = vsel %vm1425, %v1417, %v1422
        %v1427 = vmul.f32 %v1410, %v1426
        %v1429 = vperm.slane %v1397, 0
        %v1431 = vmul.f32 %v1427, %v1429
        %v1433 = vperm.slane %v1398, 0
        %v1435 = vadd.f32 %v1431, %v1433
        %v1436 = vpack.c.bf16 %v1435, %v1435
        %v1437 = vld [vmem:[#allocation12] sm:$0xf]
        %v1438 = vld [vmem:[#allocation12 + $0x4] sm:$0xf]
        %v1439 = vld [vmem:[#allocation12 + $0x8] sm:$0xf]
        %v1440 = vld [vmem:[#allocation12 + $0xc] sm:$0xf]
        %v1441 = vld [vmem:[#allocation13] sm:$0x1]
        %v1443 = vperm.slane %v1441, 0
        %v1449 = vunpack.c.l.b16 %v1437
        %v1450 = vunpack.c.l.b16 %v1438
        %v1451 = vunpack.c.l.b16 %v1439
        %v1452 = vunpack.c.l.b16 %v1440
        %v1453 = vpack.c.b16 %v1450, %v1449
        %v1454 = vpack.c.b16 %v1452, %v1451
        %v1458 = vsel %vm679, %v1436, 0
        %1460 = vmatpush.bf16.msra.mxu0 0
        %1461 = vmatpush.bf16.msra.mxu0 0
        %1462 = vmatpush.bf16.msra.mxu0 0
        %1463 = vmatpush.bf16.msra.mxu0 0
        %1464 = vmatpush.bf16.msra.mxu0 0
        %1465 = vmatpush.bf16.msra.mxu0 0
        %1466 = vmatpush.bf16.msra.mxu0 %v1454
        %1467 = vmatpush.bf16.msra.mxu0 %v1453
        %1468 = vmatmul.bf16.gmra.mxu0 %v1458
        %v1469 = vpop.f32.mrf.mxu0
        %v1470 = vadd.f32 %v1443, %v1469
        %v1471 = vpop.f32.mrf.mxu0
        %1472 = vdwg.mxu0
        %v1473 = vmax.f32 %v1470, 0.0
        %v1474 = vpack.c.bf16 %v1473, %v1473
        %v1475 = vld [vmem:[%s11] sm:$0xf]
        %v1476 = vld [vmem:[%s11 + $0x4] sm:$0xf]
        %v1477 = vld [vmem:[%s11 + $0x8] sm:$0xf]
        %v1478 = vld [vmem:[%s11 + $0xc] sm:$0xf]
        %v1479 = vld [vmem:[%s11 + $0x10] sm:$0xf]
        %v1480 = vld [vmem:[%s11 + $0x14] sm:$0xf]
        %v1481 = vld [vmem:[%s11 + $0x18] sm:$0xf]
        %v1482 = vld [vmem:[%s11 + $0x1c] sm:$0xf]
        %v1483 = vld [vmem:[#allocation15] sm:$0x1]
        %v1485 = vperm.slane %v1483, 0
        %v1495 = vunpack.c.l.b16 %v1475
        %v1496 = vunpack.c.l.b16 %v1476
        %v1497 = vunpack.c.l.b16 %v1477
        %v1498 = vunpack.c.l.b16 %v1478
        %v1499 = vunpack.c.l.b16 %v1479
        %v1500 = vunpack.c.l.b16 %v1480
        %v1501 = vunpack.c.l.b16 %v1481
        %v1502 = vunpack.c.l.b16 %v1482
        %v1503 = vpack.c.b16 %v1496, %v1495
        %v1504 = vpack.c.b16 %v1498, %v1497
        %v1505 = vpack.c.b16 %v1500, %v1499
        %v1506 = vpack.c.b16 %v1502, %v1501
        %vm1511 = vcmask 523264
        %v1513 = vsel %vm1511, %v1474, 0
        %1515 = vmatpush.bf16.msra.mxu0 0
        %1516 = vmatpush.bf16.msra.mxu0 0
        %1517 = vmatpush.bf16.msra.mxu0 0
        %1518 = vmatpush.bf16.msra.mxu0 0
        %1519 = vmatpush.bf16.msra.mxu0 %v1506
        %1520 = vmatpush.bf16.msra.mxu0 %v1505
        %1521 = vmatpush.bf16.msra.mxu0 %v1504
        %1522 = vmatpush.bf16.msra.mxu0 %v1503
        %1523 = vmatmul.bf16.gmra.mxu0 %v1513
        %v1524 = vpop.f32.mrf.mxu0
        %v1525 = vadd.f32 %v1485, %v1524
        %v1526 = vpop.f32.mrf.mxu0
        %1527 = vdwg.mxu0
        %v1528 = vadd.f32 %v1435, %v1525
        %v1529 = vld [vmem:[#allocation16] sm:$0x1]
        %v1530 = vld [vmem:[#allocation18] sm:$0x1]
        %v1531 = vsel %vm679, %v1528, 0.0
        %1532 = vadd.xlane.f32.xlu0 %v1531
        %v1533 = vpop.xlane.xlu0 %1532
        %v1534 = vmul.f32 %v1533, %v1408
        %v1535 = vsub.f32 %v1528, %v1534
        %v1536 = vmul.f32 %v1535, %v1535
        %v1537 = vsel %vm679, %v1536, 0.0
        %1538 = vadd.xlane.f32.xlu0 %v1537
        %v1539 = vpop.xlane.xlu0 %1538
        %v1540 = vmul.f32 %v1539, %v1408
        %v1541 = vadd.f32 %v1540, 1e-05
        %v1542 = vrsqrt.pop %v1541
        %v1543 = vmul.f32 %v1542, %v1541
        %v1544 = vmul.f32 %v1543, %v1542
        %v1545 = vmul.f32 0.5, %v1544
        %v1546 = vsub.f32 1.5, %v1545
        %v1547 = vmul.f32 %v1542, %v1546
        %vm1548 = vweird.f32 %v1541
        %vm1549 = vweird.f32 %v1542
        %vm1550 = vmor %vm1548, %vm1549
        %v1551 = vsel %vm1550, %v1542, %v1547
        %v1552 = vmul.f32 %v1535, %v1551
        %v1554 = vperm.slane %v1529, 0
        %v1556 = vmul.f32 %v1552, %v1554
        %v1558 = vperm.slane %v1530, 0
        %v1560 = vadd.f32 %v1556, %v1558
        %1561 = vst.msk [vmem:[%s655] sm:$0xff] %vm679, %v1560
        %p1562 = scmp.lt.s32.totalorder %s32, 1
        %s1563 = scalar_select %p1562, %s32, 1
        %s1564 = smul.addr %s1563, 8
        %s1565 = scalar_lea.vmem %s15, %s1564
        // Predicated region
        $region125: #{transformer_block_forward.2} parent=79 // pred_check
          %p1566 = pneg %p370
        $region126: #{transformer_block_forward.2} parent=79 // pred_check_branch
          %1568 = sbr.rel (%p1566) target = $region128
        $region127: #{transformer_block_forward.2} parent=79 // pred_region
          _
        $region128: #{transformer_block_forward.2} parent=79 // pred_fallthru
          _
      $region80: #{transformer_block_forward.2} parent=5 // pred_fallthru
        _
      %p1569 = scmp.le.s32.totalorder 2, %s27
      // Predicated region
      $region129: #{transformer_block_forward.2} parent=5 // pred_check
        %p1570 = pneg %p1569
      $region130: #{transformer_block_forward.2} parent=5 // pred_check_branch
        %1572 = sbr.rel (%p1570) target = $region132
      $region131: #{transformer_block_forward.2} parent=5 // pred_region
        %s1573 = ssub.s32 %s27, 2
        // Predicated region
        $region133: #{transformer_block_forward.2} parent=131 // pred_check
          %p1574 = pneg %p376
        $region134: #{transformer_block_forward.2} parent=131 // pred_check_branch
          %1576 = sbr.rel (%p1574) target = $region136
        $region135: #{transformer_block_forward.2} parent=131 // pred_region
          %p1577 = scmp.lt.s32.totalorder %s33, 1
          %s1578 = scalar_select %p1577, %s33, 1
          %s1579 = smul.addr %s1578, 8
          %s1580 = scalar_lea.vmem %s15, %s1579
        $region136: #{transformer_block_forward.2} parent=131 // pred_fallthru
          _
      $region132: #{transformer_block_forward.2} parent=5 // pred_fallthru
        _
    $region6: #{transformer_block_forward.2} parent=1 // loop_footer
      %s31 = sadd.s32 1, %s27
    $region7: #{transformer_block_forward.2} parent=1 // loop_footer_branch
      %26 = sbr.rel target = $region3
    $region8: #{transformer_block_forward.2} parent=1 // loop_exit
      _
    %1581 = vsyncpa [#allocation3], 1
    %s1582 = scalar_lea.sflag [#allocation3], 1
    %1583 = vsyncpa %s1582, 1
    %1584 = vsyncpa [#allocation5], 1
    %1585 = vsyncpa [#allocation8], 1
    %1586 = vsyncpa [#allocation11], 1
    %1587 = vsyncpa [#allocation14], 1
    %1588 = vsyncpa [#allocation17], 1

// kernel: transformer_block_forward.3
$region0: #{transformer_block_forward.3}
  #allocation0 [shape = 'u32[]', space=smem, size = 0x4, offset = 0x4, fixed_abs, tag = 'smem constant byte address 0x4 - core index']
  #allocation1 [shape = 'u32[72,128]{1,0:T(1,128)}', space=vmem, size = 0x9000, scoped, tag = 'internal scratch']
  %s0 = inlined_call_operand.vmem [shape: f32[2,8,32], index: 0, kind: input, shape index: {}]
  %s1 = inlined_call_operand.vmem [shape: bf16[32,96], index: 1, kind: input, shape index: {}]
  %s2 = inlined_call_operand.hbm [shape: f32[1,96], index: 2, kind: input, shape index: {}]
  %s3 = inlined_call_operand.vmem [shape: bf16[32,32], index: 3, kind: input, shape index: {}]
  %s4 = inlined_call_operand.hbm [shape: f32[1,32], index: 4, kind: input, shape index: {}]
  %s5 = inlined_call_operand.hbm [shape: f32[1,32], index: 5, kind: input, shape index: {}]
  %s6 = inlined_call_operand.hbm [shape: f32[1,32], index: 6, kind: input, shape index: {}]
  %s7 = inlined_call_operand.vmem [shape: bf16[32,64], index: 7, kind: input, shape index: {}]
  %s8 = inlined_call_operand.hbm [shape: f32[1,64], index: 8, kind: input, shape index: {}]
  %s9 = inlined_call_operand.vmem [shape: bf16[64,32], index: 9, kind: input, shape index: {}]
  %s10 = inlined_call_operand.hbm [shape: f32[1,32], index: 10, kind: input, shape index: {}]
  %s11 = inlined_call_operand.hbm [shape: f32[1,32], index: 11, kind: input, shape index: {}]
  %s12 = inlined_call_operand.hbm [shape: f32[1,32], index: 12, kind: input, shape index: {}]
  %s13 = inlined_call_operand.vmem [shape: bf16[32,48], index: 13, kind: input, shape index: {}]
  %s14 = inlined_call_operand.vmem [shape: f32[1,48], index: 14, kind: input, shape index: {}]
  %s15 = inlined_call_operand.hbm [shape: f32[2,8,48], index: 15, kind: output, shape index: {}]
  %s16 = sld [smem:[#allocation0]]
  $region125: #{transformer_block_forward.3} parent=0
    _
  %s18 = ssub.s32 1, %s16
  %s19 = scalar_select 0, %s18, %s16
  $region1: #{transformer_block_forward.3} parent=0
    #allocation2 [shape = 'u8[512]{0}', space=vmem, size = 0x400, scoped, tag = 'input window, operand 2, single buffered']
    #allocation3 [shape = 's32[2]{0}', space=sflag, size = 0x8, scoped, tag = 'scoped memory for transformer_block_forward.3']
    #allocation4 [shape = 's32[2]{0}', space=sflag, size = 0x8, scoped, tag = 'scoped memory for transformer_block_forward.3']
    #allocation5 [shape = 'u8[512]{0}', space=vmem, size = 0x400, scoped, tag = 'input window, operand 4, single buffered']
    #allocation6 [shape = 's32[1]{0}', space=sflag, size = 0x4, scoped, tag = 'scoped memory for transformer_block_forward.3']
    #allocation7 [shape = 'u8[512]{0}', space=vmem, size = 0x400, scoped, tag = 'input window, operand 5, single buffered']
    #allocation8 [shape = 'u8[512]{0}', space=vmem, size = 0x400, scoped, tag = 'input window, operand 6, single buffered']
    #allocation9 [shape = 's32[1]{0}', space=sflag, size = 0x4, scoped, tag = 'scoped memory for transformer_block_forward.3']
    #allocation10 [shape = 'u8[512]{0}', space=vmem, size = 0x400, scoped, tag = 'input window, operand 8, single buffered']
    #allocation11 [shape = 'u8[512]{0}', space=vmem, size = 0x400, scoped, tag = 'input window, operand 10, single buffered']
    #allocation12 [shape = 's32[1]{0}', space=sflag, size = 0x4, scoped, tag = 'scoped memory for transformer_block_forward.3']
    #allocation13 [shape = 'u8[512]{0}', space=vmem, size = 0x400, scoped, tag = 'input window, operand 11, single buffered']
    #allocation14 [shape = 'u8[512]{0}', space=vmem, size = 0x400, scoped, tag = 'input window, operand 12, single buffered']
    #allocation15 [shape = 's32[1]{0}', space=sflag, size = 0x4, scoped, tag = 'scoped memory for transformer_block_forward.3']
    #allocation16 [shape = 'u8[8192]{0}', space=vmem, size = 0x2000, scoped, tag = 'output window, operand 0']
    %20 = vsyncpa [#allocation3], 0
    %21 = vsyncpa [#allocation6], 0
    %22 = vsyncpa [#allocation9], 0
    %23 = vsyncpa [#allocation12], 0
    %24 = vsyncpa [#allocation15], 0
    %25 = vsyncpa [#allocation4], 0
    %s26 = scalar_lea.sflag [#allocation4], 1
    %27 = vsyncpa %s26, 0
    loop: start=0, step=1, limit=4
    $region2: #{transformer_block_forward.3} parent=1 // loop_pre_header
      _
    $region3: #{transformer_block_forward.3} parent=1 // loop_header
      %s29 = sphi 0, %s33
      %p30 = scmp.ge.s32.totalorder %s29, 4
      %s39 = sphi 0, %s41
      %s42 = sphi 0, %s39
      %s43 = sphi 0, %s42
      %s59 = sphi 0, %s43
      %s63 = sphi 0, %s63
      %s65 = sphi 0, %s63
      %s66 = sphi 0, %s65
      %s80 = sphi 0, %s66
      %s84 = sphi 0, %s84
      %s86 = sphi 0, %s84
      %s87 = sphi 0, %s86
      %s101 = sphi 0, %s87
      %s105 = sphi 0, %s105
      %s107 = sphi 0, %s105
      %s108 = sphi 0, %s107
      %s122 = sphi 0, %s108
      %s126 = sphi 0, %s126
      %s128 = sphi 0, %s126
      %s129 = sphi 0, %s128
      %s143 = sphi 0, %s129
      %s147 = sphi 0, %s147
      %s149 = sphi 0, %s147
      %s150 = sphi 0, %s149
      %s164 = sphi 0, %s150
      %s168 = sphi 0, %s168
      %s170 = sphi 0, %s168
      %s171 = sphi 0, %s170
      %s185 = sphi 0, %s171
      %s189 = sphi 0, %s189
      %s191 = sphi 0, %s189
      %s192 = sphi 0, %s191
      %s206 = sphi 0, %s192
      %s210 = sphi 0, %s210
      %s212 = sphi 0, %s210
      %s213 = sphi 0, %s212
      %s227 = sphi 0, %s213
      %s231 = sphi 0, %s231
      %s233 = sphi 0, %s231
      %s234 = sphi 0, %s233
      %s248 = sphi 0, %s234
      %s252 = sphi 0, %s252
      %s254 = sphi 0, %s252
      %s255 = sphi 0, %s254
      %s269 = sphi 0, %s255
      %s273 = sphi 0, %s273
      %s275 = sphi 0, %s273
      %s276 = sphi 0, %s275
      %s290 = sphi 0, %s276
      %s294 = sphi 0, %s294
      %s296 = sphi 0, %s294
      %s297 = sphi 0, %s296
      %s311 = sphi 0, %s297
      %s315 = sphi 0, %s315
      %s317 = sphi 0, %s315
      %s318 = sphi 0, %s317
      %s332 = sphi 0, %s318
      %s336 = sphi 0, %s336
      %s338 = sphi 0, %s336
      %s339 = sphi 0, %s338
      %s353 = sphi 0, %s339
      %s359 = sphi 0, %s361
      %s362 = sphi 0, %s359
      %s363 = sphi 0, %s362
      %s379 = sphi 0, %s363
    $region4: #{transformer_block_forward.3} parent=1 // loop_header_branch
      %32 = sbr.rel (%p30) target = $region8
    $region5: #{transformer_block_forward.3} parent=1 // loop_body
      %s34 = ssub.s32 %s29, 1
      %s35 = ssub.s32 %s29, 2
      %s36 = sadd.s32 %s29, 1
      %s37 = ssub.s32 %s29, %s36
      %p38 = scmp.eq.s32.totalorder %s37, 0
      %s40 = sadd.s32 %s39, 1
      %s41 = scalar_select %p38, %s39, %s40
      %p44 = pneg %p38
      %p45 = scmp.eq.s32.totalorder %s29, 1
      %p46 = por %p44, %p45
      %p47 = scmp.ne.s32.totalorder %s39, %s42
      %p48 = scmp.eq.s32.totalorder %s29, 0
      %p49 = por %p47, %p48
      %p50 = scmp.ne.s32.totalorder %s39, %s42
      %p51 = scmp.eq.s32.totalorder %s34, 1
      %p52 = por %p50, %p51
      %p53 = scmp.ne.s32.totalorder %s42, %s43
      %p54 = scmp.eq.s32.totalorder %s34, 0
      %p55 = por %p53, %p54
      %p56 = scmp.ne.s32.totalorder %s42, %s43
      %p57 = scmp.eq.s32.totalorder %s35, 1
      %p58 = por %p56, %p57
      %p60 = scmp.ne.s32.totalorder %s43, %s59
      %p61 = scmp.eq.s32.totalorder %s35, 0
      %p62 = por %p60, %p61
      %s64 = sadd.s32 %s63, 1
      %p67 = scmp.eq.s32.totalorder %s29, 1
      %p68 = scmp.ne.s32.totalorder %s63, %s65
      %p69 = scmp.eq.s32.totalorder %s29, 0
      %p70 = por %p68, %p69
      %p71 = scmp.ne.s32.totalorder %s63, %s65
      %p72 = scmp.eq.s32.totalorder %s34, 1
      %p73 = por %p71, %p72
      %p74 = scmp.ne.s32.totalorder %s65, %s66
      %p75 = scmp.eq.s32.totalorder %s34, 0
      %p76 = por %p74, %p75
      %p77 = scmp.ne.s32.totalorder %s65, %s66
      %p78 = scmp.eq.s32.totalorder %s35, 1
      %p79 = por %p77, %p78
      %p81 = scmp.ne.s32.totalorder %s66, %s80
      %p82 = scmp.eq.s32.totalorder %s35, 0
      %p83 = por %p81, %p82
      %s85 = sadd.s32 %s84, 1
      %p88 = scmp.eq.s32.totalorder %s29, 1
      %p89 = scmp.ne.s32.totalorder %s84, %s86
      %p90 = scmp.eq.s32.totalorder %s29, 0
      %p91 = por %p89, %p90
      %p92 = scmp.ne.s32.totalorder %s84, %s86
      %p93 = scmp.eq.s32.totalorder %s34, 1
      %p94 = por %p92, %p93
      %p95 = scmp.ne.s32.totalorder %s86, %s87
      %p96 = scmp.eq.s32.totalorder %s34, 0
      %p97 = por %p95, %p96
      %p98 = scmp.ne.s32.totalorder %s86, %s87
      %p99 = scmp.eq.s32.totalorder %s35, 1
      %p100 = por %p98, %p99
      %p102 = scmp.ne.s32.totalorder %s87, %s101
      %p103 = scmp.eq.s32.totalorder %s35, 0
      %p104 = por %p102, %p103
      %s106 = sadd.s32 %s105, 1
      %p109 = scmp.eq.s32.totalorder %s29, 1
      %p110 = scmp.ne.s32.totalorder %s105, %s107
      %p111 = scmp.eq.s32.totalorder %s29, 0
      %p112 = por %p110, %p111
      %p113 = scmp.ne.s32.totalorder %s105, %s107
      %p114 = scmp.eq.s32.totalorder %s34, 1
      %p115 = por %p113, %p114
      %p116 = scmp.ne.s32.totalorder %s107, %s108
      %p117 = scmp.eq.s32.totalorder %s34, 0
      %p118 = por %p116, %p117
      %p119 = scmp.ne.s32.totalorder %s107, %s108
      %p120 = scmp.eq.s32.totalorder %s35, 1
      %p121 = por %p119, %p120
      %p123 = scmp.ne.s32.totalorder %s108, %s122
      %p124 = scmp.eq.s32.totalorder %s35, 0
      %p125 = por %p123, %p124
      %s127 = sadd.s32 %s126, 1
      %p130 = scmp.eq.s32.totalorder %s29, 1
      %p131 = scmp.ne.s32.totalorder %s126, %s128
      %p132 = scmp.eq.s32.totalorder %s29, 0
      %p133 = por %p131, %p132
      %p134 = scmp.ne.s32.totalorder %s126, %s128
      %p135 = scmp.eq.s32.totalorder %s34, 1
      %p136 = por %p134, %p135
      %p137 = scmp.ne.s32.totalorder %s128, %s129
      %p138 = scmp.eq.s32.totalorder %s34, 0
      %p139 = por %p137, %p138
      %p140 = scmp.ne.s32.totalorder %s128, %s129
      %p141 = scmp.eq.s32.totalorder %s35, 1
      %p142 = por %p140, %p141
      %p144 = scmp.ne.s32.totalorder %s129, %s143
      %p145 = scmp.eq.s32.totalorder %s35, 0
      %p146 = por %p144, %p145
      %s148 = sadd.s32 %s147, 1
      %p151 = scmp.eq.s32.totalorder %s29, 1
      %p152 = scmp.ne.s32.totalorder %s147, %s149
      %p153 = scmp.eq.s32.totalorder %s29, 0
      %p154 = por %p152, %p153
      %p155 = scmp.ne.s32.totalorder %s147, %s149
      %p156 = scmp.eq.s32.totalorder %s34, 1
      %p157 = por %p155, %p156
      %p158 = scmp.ne.s32.totalorder %s149, %s150
      %p159 = scmp.eq.s32.totalorder %s34, 0
      %p160 = por %p158, %p159
      %p161 = scmp.ne.s32.totalorder %s149, %s150
      %p162 = scmp.eq.s32.totalorder %s35, 1
      %p163 = por %p161, %p162
      %p165 = scmp.ne.s32.totalorder %s150, %s164
      %p166 = scmp.eq.s32.totalorder %s35, 0
      %p167 = por %p165, %p166
      %s169 = sadd.s32 %s168, 1
      %p172 = scmp.eq.s32.totalorder %s29, 1
      %p173 = scmp.ne.s32.totalorder %s168, %s170
      %p174 = scmp.eq.s32.totalorder %s29, 0
      %p175 = por %p173, %p174
      %p176 = scmp.ne.s32.totalorder %s168, %s170
      %p177 = scmp.eq.s32.totalorder %s34, 1
      %p178 = por %p176, %p177
      %p179 = scmp.ne.s32.totalorder %s170, %s171
      %p180 = scmp.eq.s32.totalorder %s34, 0
      %p181 = por %p179, %p180
      %p182 = scmp.ne.s32.totalorder %s170, %s171
      %p183 = scmp.eq.s32.totalorder %s35, 1
      %p184 = por %p182, %p183
      %p186 = scmp.ne.s32.totalorder %s171, %s185
      %p187 = scmp.eq.s32.totalorder %s35, 0
      %p188 = por %p186, %p187
      %s190 = sadd.s32 %s189, 1
      %p193 = scmp.eq.s32.totalorder %s29, 1
      %p194 = scmp.ne.s32.totalorder %s189, %s191
      %p195 = scmp.eq.s32.totalorder %s29, 0
      %p196 = por %p194, %p195
      %p197 = scmp.ne.s32.totalorder %s189, %s191
      %p198 = scmp.eq.s32.totalorder %s34, 1
      %p199 = por %p197, %p198
      %p200 = scmp.ne.s32.totalorder %s191, %s192
      %p201 = scmp.eq.s32.totalorder %s34, 0
      %p202 = por %p200, %p201
      %p203 = scmp.ne.s32.totalorder %s191, %s192
      %p204 = scmp.eq.s32.totalorder %s35, 1
      %p205 = por %p203, %p204
      %p207 = scmp.ne.s32.totalorder %s192, %s206
      %p208 = scmp.eq.s32.totalorder %s35, 0
      %p209 = por %p207, %p208
      %s211 = sadd.s32 %s210, 1
      %p214 = scmp.eq.s32.totalorder %s29, 1
      %p215 = scmp.ne.s32.totalorder %s210, %s212
      %p216 = scmp.eq.s32.totalorder %s29, 0
      %p217 = por %p215, %p216
      %p218 = scmp.ne.s32.totalorder %s210, %s212
      %p219 = scmp.eq.s32.totalorder %s34, 1
      %p220 = por %p218, %p219
      %p221 = scmp.ne.s32.totalorder %s212, %s213
      %p222 = scmp.eq.s32.totalorder %s34, 0
      %p223 = por %p221, %p222
      %p224 = scmp.ne.s32.totalorder %s212, %s213
      %p225 = scmp.eq.s32.totalorder %s35, 1
      %p226 = por %p224, %p225
      %p228 = scmp.ne.s32.totalorder %s213, %s227
      %p229 = scmp.eq.s32.totalorder %s35, 0
      %p230 = por %p228, %p229
      %s232 = sadd.s32 %s231, 1
      %p235 = scmp.eq.s32.totalorder %s29, 1
      %p236 = scmp.ne.s32.totalorder %s231, %s233
      %p237 = scmp.eq.s32.totalorder %s29, 0
      %p238 = por %p236, %p237
      %p239 = scmp.ne.s32.totalorder %s231, %s233
      %p240 = scmp.eq.s32.totalorder %s34, 1
      %p241 = por %p239, %p240
      %p242 = scmp.ne.s32.totalorder %s233, %s234
      %p243 = scmp.eq.s32.totalorder %s34, 0
      %p244 = por %p242, %p243
      %p245 = scmp.ne.s32.totalorder %s233, %s234
      %p246 = scmp.eq.s32.totalorder %s35, 1
      %p247 = por %p245, %p246
      %p249 = scmp.ne.s32.totalorder %s234, %s248
      %p250 = scmp.eq.s32.totalorder %s35, 0
      %p251 = por %p249, %p250
      %s253 = sadd.s32 %s252, 1
      %p256 = scmp.eq.s32.totalorder %s29, 1
      %p257 = scmp.ne.s32.totalorder %s252, %s254
      %p258 = scmp.eq.s32.totalorder %s29, 0
      %p259 = por %p257, %p258
      %p260 = scmp.ne.s32.totalorder %s252, %s254
      %p261 = scmp.eq.s32.totalorder %s34, 1
      %p262 = por %p260, %p261
      %p263 = scmp.ne.s32.totalorder %s254, %s255
      %p264 = scmp.eq.s32.totalorder %s34, 0
      %p265 = por %p263, %p264
      %p266 = scmp.ne.s32.totalorder %s254, %s255
      %p267 = scmp.eq.s32.totalorder %s35, 1
      %p268 = por %p266, %p267
      %p270 = scmp.ne.s32.totalorder %s255, %s269
      %p271 = scmp.eq.s32.totalorder %s35, 0
      %p272 = por %p270, %p271
      %s274 = sadd.s32 %s273, 1
      %p277 = scmp.eq.s32.totalorder %s29, 1
      %p278 = scmp.ne.s32.totalorder %s273, %s275
      %p279 = scmp.eq.s32.totalorder %s29, 0
      %p280 = por %p278, %p279
      %p281 = scmp.ne.s32.totalorder %s273, %s275
      %p282 = scmp.eq.s32.totalorder %s34, 1
      %p283 = por %p281, %p282
      %p284 = scmp.ne.s32.totalorder %s275, %s276
      %p285 = scmp.eq.s32.totalorder %s34, 0
      %p286 = por %p284, %p285
      %p287 = scmp.ne.s32.totalorder %s275, %s276
      %p288 = scmp.eq.s32.totalorder %s35, 1
      %p289 = por %p287, %p288
      %p291 = scmp.ne.s32.totalorder %s276, %s290
      %p292 = scmp.eq.s32.totalorder %s35, 0
      %p293 = por %p291, %p292
      %s295 = sadd.s32 %s294, 1
      %p298 = scmp.eq.s32.totalorder %s29, 1
      %p299 = scmp.ne.s32.totalorder %s294, %s296
      %p300 = scmp.eq.s32.totalorder %s29, 0
      %p301 = por %p299, %p300
      %p302 = scmp.ne.s32.totalorder %s294, %s296
      %p303 = scmp.eq.s32.totalorder %s34, 1
      %p304 = por %p302, %p303
      %p305 = scmp.ne.s32.totalorder %s296, %s297
      %p306 = scmp.eq.s32.totalorder %s34, 0
      %p307 = por %p305, %p306
      %p308 = scmp.ne.s32.totalorder %s296, %s297
      %p309 = scmp.eq.s32.totalorder %s35, 1
      %p310 = por %p308, %p309
      %p312 = scmp.ne.s32.totalorder %s297, %s311
      %p313 = scmp.eq.s32.totalorder %s35, 0
      %p314 = por %p312, %p313
      %s316 = sadd.s32 %s315, 1
      %p319 = scmp.eq.s32.totalorder %s29, 1
      %p320 = scmp.ne.s32.totalorder %s315, %s317
      %p321 = scmp.eq.s32.totalorder %s29, 0
      %p322 = por %p320, %p321
      %p323 = scmp.ne.s32.totalorder %s315, %s317
      %p324 = scmp.eq.s32.totalorder %s34, 1
      %p325 = por %p323, %p324
      %p326 = scmp.ne.s32.totalorder %s317, %s318
      %p327 = scmp.eq.s32.totalorder %s34, 0
      %p328 = por %p326, %p327
      %p329 = scmp.ne.s32.totalorder %s317, %s318
      %p330 = scmp.eq.s32.totalorder %s35, 1
      %p331 = por %p329, %p330
      %p333 = scmp.ne.s32.totalorder %s318, %s332
      %p334 = scmp.eq.s32.totalorder %s35, 0
      %p335 = por %p333, %p334
      %s337 = sadd.s32 %s336, 1
      %p340 = scmp.eq.s32.totalorder %s29, 1
      %p341 = scmp.ne.s32.totalorder %s336, %s338
      %p342 = scmp.eq.s32.totalorder %s29, 0
      %p343 = por %p341, %p342
      %p344 = scmp.ne.s32.totalorder %s336, %s338
      %p345 = scmp.eq.s32.totalorder %s34, 1
      %p346 = por %p344, %p345
      %p347 = scmp.ne.s32.totalorder %s338, %s339
      %p348 = scmp.eq.s32.totalorder %s34, 0
      %p349 = por %p347, %p348
      %p350 = scmp.ne.s32.totalorder %s338, %s339
      %p351 = scmp.eq.s32.totalorder %s35, 1
      %p352 = por %p350, %p351
      %p354 = scmp.ne.s32.totalorder %s339, %s353
      %p355 = scmp.eq.s32.totalorder %s35, 0
      %p356 = por %p354, %p355
      %s357 = ssub.s32 %s29, %s36
      %p358 = scmp.eq.s32.totalorder %s357, 0
      %s360 = sadd.s32 %s359, 1
      %s361 = scalar_select %p358, %s359, %s360
      %p364 = pneg %p358
      %p365 = scmp.eq.s32.totalorder %s29, 1
      %p366 = por %p364, %p365
      %p367 = scmp.ne.s32.totalorder %s359, %s362
      %p368 = scmp.eq.s32.totalorder %s29, 0
      %p369 = por %p367, %p368
      %p370 = scmp.ne.s32.totalorder %s359, %s362
      %p371 = scmp.eq.s32.totalorder %s34, 1
      %p372 = por %p370, %p371
      %p373 = scmp.ne.s32.totalorder %s362, %s363
      %p374 = scmp.eq.s32.totalorder %s34, 0
      %p375 = por %p373, %p374
      %p376 = scmp.ne.s32.totalorder %s362, %s363
      %p377 = scmp.eq.s32.totalorder %s35, 1
      %p378 = por %p376, %p377
      %p380 = scmp.ne.s32.totalorder %s363, %s379
      %p381 = scmp.eq.s32.totalorder %s35, 0
      %p382 = por %p380, %p381
      %p383 = scmp.le.s32.totalorder 1, %s29
      %p384 = scmp.lt.s32.totalorder %s29, 3
      %p385 = pnand %p383, %p384
      %p386 = pneg %p385
      // Predicated region
      $region9: #{transformer_block_forward.3} parent=5 // pred_check
        _
      $region10: #{transformer_block_forward.3} parent=5 // pred_check_branch
        %388 = sbr.rel (%p385) target = $region12
      $region11: #{transformer_block_forward.3} parent=5 // pred_region
        %s389 = ssub.s32 %s29, 1
        // Predicated region
        $region13: #{transformer_block_forward.3} parent=11 // pred_check
          %p390 = pneg %p76
        $region14: #{transformer_block_forward.3} parent=11 // pred_check_branch
          %392 = sbr.rel (%p390) target = $region16
        $region15: #{transformer_block_forward.3} parent=11 // pred_region
          _
        $region16: #{transformer_block_forward.3} parent=11 // pred_fallthru
          _
        // Predicated region
        $region17: #{transformer_block_forward.3} parent=11 // pred_check
          %p393 = pneg %p97
        $region18: #{transformer_block_forward.3} parent=11 // pred_check_branch
          %395 = sbr.rel (%p393) target = $region20
        $region19: #{transformer_block_forward.3} parent=11 // pred_region
          %397 = vsyncadd [#allocation3], 0
          %s399 = sshll.u32 %s2, 4
          %s400 = int_to_ptr.hbm [resolvable:$true] %s399
          %s401 = sshll.u32 [#allocation2], 4
          %s402 = int_to_ptr.vmem [resolvable:$true] %s401
          %404 = dma.hbm_to_vmem [thread:$0]  %s400, 16, %s402, [#allocation3]
        $region20: #{transformer_block_forward.3} parent=11 // pred_fallthru
          _
        // Predicated region
        $region21: #{transformer_block_forward.3} parent=11 // pred_check
          %p405 = pneg %p118
        $region22: #{transformer_block_forward.3} parent=11 // pred_check_branch
          %407 = sbr.rel (%p405) target = $region24
        $region23: #{transformer_block_forward.3} parent=11 // pred_region
          _
        $region24: #{transformer_block_forward.3} parent=11 // pred_fallthru
          _
        // Predicated region
        $region25: #{transformer_block_forward.3} parent=11 // pred_check
          %p408 = pneg %p139
        $region26: #{transformer_block_forward.3} parent=11 // pred_check_branch
          %410 = sbr.rel (%p408) target = $region28
        $region27: #{transformer_block_forward.3} parent=11 // pred_region
          %412 = vsyncadd [#allocation6], 0
          %s414 = sshll.u32 %s4, 4
          %s415 = int_to_ptr.hbm [resolvable:$true] %s414
          %s416 = sshll.u32 [#allocation5], 4
          %s417 = int_to_ptr.vmem [resolvable:$true] %s416
          %419 = dma.hbm_to_vmem [thread:$0]  %s415, 16, %s417, [#allocation6]
        $region28: #{transformer_block_forward.3} parent=11 // pred_fallthru
          _
        // Predicated region
        $region29: #{transformer_block_forward.3} parent=11 // pred_check
          %p420 = pneg %p160
        $region30: #{transformer_block_forward.3} parent=11 // pred_check_branch
          %422 = sbr.rel (%p420) target = $region32
        $region31: #{transformer_block_forward.3} parent=11 // pred_region
          %424 = vsyncadd [#allocation6], 0
          %s426 = sshll.u32 %s5, 4
          %s427 = int_to_ptr.hbm [resolvable:$true] %s426
          %s428 = sshll.u32 [#allocation7], 4
          %s429 = int_to_ptr.vmem [resolvable:$true] %s428
          %431 = dma.hbm_to_vmem [thread:$0]  %s427, 16, %s429, [#allocation6]
        $region32: #{transformer_block_forward.3} parent=11 // pred_fallthru
          _
        // Predicated region
        $region33: #{transformer_block_forward.3} parent=11 // pred_check
          %p432 = pneg %p181
        $region34: #{transformer_block_forward.3} parent=11 // pred_check_branch
          %434 = sbr.rel (%p432) target = $region36
        $region35: #{transformer_block_forward.3} parent=11 // pred_region
          %436 = vsyncadd [#allocation9], 0
          %s438 = sshll.u32 %s6, 4
          %s439 = int_to_ptr.hbm [resolvable:$true] %s438
          %s440 = sshll.u32 [#allocation8], 4
          %s441 = int_to_ptr.vmem [resolvable:$true] %s440
          %443 = dma.hbm_to_vmem [thread:$0]  %s439, 16, %s441, [#allocation9]
        $region36: #{transformer_block_forward.3} parent=11 // pred_fallthru
          _
        // Predicated region
        $region37: #{transformer_block_forward.3} parent=11 // pred_check
          %p444 = pneg %p202
        $region38: #{transformer_block_forward.3} parent=11 // pred_check_branch
          %446 = sbr.rel (%p444) target = $region40
        $region39: #{transformer_block_forward.3} parent=11 // pred_region
          _
        $region40: #{transformer_block_forward.3} parent=11 // pred_fallthru
          _
        // Predicated region
        $region41: #{transformer_block_forward.3} parent=11 // pred_check
          %p447 = pneg %p223
        $region42: #{transformer_block_forward.3} parent=11 // pred_check_branch
          %449 = sbr.rel (%p447) target = $region44
        $region43: #{transformer_block_forward.3} parent=11 // pred_region
          %451 = vsyncadd [#allocation9], 0
          %s453 = sshll.u32 %s8, 4
          %s454 = int_to_ptr.hbm [resolvable:$true] %s453
          %s455 = sshll.u32 [#allocation10], 4
          %s456 = int_to_ptr.vmem [resolvable:$true] %s455
          %458 = dma.hbm_to_vmem [thread:$0]  %s454, 16, %s456, [#allocation9]
        $region44: #{transformer_block_forward.3} parent=11 // pred_fallthru
          _
        // Predicated region
        $region45: #{transformer_block_forward.3} parent=11 // pred_check
          %p459 = pneg %p244
        $region46: #{transformer_block_forward.3} parent=11 // pred_check_branch
          %461 = sbr.rel (%p459) target = $region48
        $region47: #{transformer_block_forward.3} parent=11 // pred_region
          _
        $region48: #{transformer_block_forward.3} parent=11 // pred_fallthru
          _
        // Predicated region
        $region49: #{transformer_block_forward.3} parent=11 // pred_check
          %p462 = pneg %p265
        $region50: #{transformer_block_forward.3} parent=11 // pred_check_branch
          %464 = sbr.rel (%p462) target = $region52
        $region51: #{transformer_block_forward.3} parent=11 // pred_region
          %466 = vsyncadd [#allocation12], 0
          %s468 = sshll.u32 %s10, 4
          %s469 = int_to_ptr.hbm [resolvable:$true] %s468
          %s470 = sshll.u32 [#allocation11], 4
          %s471 = int_to_ptr.vmem [resolvable:$true] %s470
          %473 = dma.hbm_to_vmem [thread:$0]  %s469, 16, %s471, [#allocation12]
        $region52: #{transformer_block_forward.3} parent=11 // pred_fallthru
          _
        // Predicated region
        $region53: #{transformer_block_forward.3} parent=11 // pred_check
          %p474 = pneg %p286
        $region54: #{transformer_block_forward.3} parent=11 // pred_check_branch
          %476 = sbr.rel (%p474) target = $region56
        $region55: #{transformer_block_forward.3} parent=11 // pred_region
          %478 = vsyncadd [#allocation12], 0
          %s480 = sshll.u32 %s11, 4
          %s481 = int_to_ptr.hbm [resolvable:$true] %s480
          %s482 = sshll.u32 [#allocation13], 4
          %s483 = int_to_ptr.vmem [resolvable:$true] %s482
          %485 = dma.hbm_to_vmem [thread:$0]  %s481, 16, %s483, [#allocation12]
        $region56: #{transformer_block_forward.3} parent=11 // pred_fallthru
          _
        // Predicated region
        $region57: #{transformer_block_forward.3} parent=11 // pred_check
          %p486 = pneg %p307
        $region58: #{transformer_block_forward.3} parent=11 // pred_check_branch
          %488 = sbr.rel (%p486) target = $region60
        $region59: #{transformer_block_forward.3} parent=11 // pred_region
          %490 = vsyncadd [#allocation15], 0
          %s492 = sshll.u32 %s12, 4
          %s493 = int_to_ptr.hbm [resolvable:$true] %s492
          %s494 = sshll.u32 [#allocation14], 4
          %s495 = int_to_ptr.vmem [resolvable:$true] %s494
          %497 = dma.hbm_to_vmem [thread:$0]  %s493, 16, %s495, [#allocation15]
        $region60: #{transformer_block_forward.3} parent=11 // pred_fallthru
          _
        // Predicated region
        $region61: #{transformer_block_forward.3} parent=11 // pred_check
          %p498 = pneg %p328
        $region62: #{transformer_block_forward.3} parent=11 // pred_check_branch
          %500 = sbr.rel (%p498) target = $region64
        $region63: #{transformer_block_forward.3} parent=11 // pred_region
          _
        $region64: #{transformer_block_forward.3} parent=11 // pred_fallthru
          _
        // Predicated region
        $region65: #{transformer_block_forward.3} parent=11 // pred_check
          %p501 = pneg %p349
        $region66: #{transformer_block_forward.3} parent=11 // pred_check_branch
          %503 = sbr.rel (%p501) target = $region68
        $region67: #{transformer_block_forward.3} parent=11 // pred_region
          _
        $region68: #{transformer_block_forward.3} parent=11 // pred_fallthru
          _
      $region12: #{transformer_block_forward.3} parent=5 // pred_fallthru
        _
      %p504 = scmp.lt.s32.totalorder %s29, 2
      // Predicated region
      $region69: #{transformer_block_forward.3} parent=5 // pred_check
        %p505 = pneg %p504
      $region70: #{transformer_block_forward.3} parent=5 // pred_check_branch
        %507 = sbr.rel (%p505) target = $region72
      $region71: #{transformer_block_forward.3} parent=5 // pred_region
        // Predicated region
        $region73: #{transformer_block_forward.3} parent=71 // pred_check
          %p508 = pneg %p49
        $region74: #{transformer_block_forward.3} parent=71 // pred_check_branch
          %510 = sbr.rel (%p508) target = $region76
        $region75: #{transformer_block_forward.3} parent=71 // pred_region
          %p511 = scmp.lt.s32.totalorder %s29, 1
          %s512 = scalar_select %p511, %s29, 1
          %s513 = smul.addr %s512, 8
          %s514 = scalar_lea.vmem %s0, %s513
        $region76: #{transformer_block_forward.3} parent=71 // pred_fallthru
          _
      $region72: #{transformer_block_forward.3} parent=5 // pred_fallthru
        _
      %p515 = scmp.le.s32.totalorder 1, %s29
      %p516 = scmp.lt.s32.totalorder %s29, 3
      %p517 = pnand %p515, %p516
      %p518 = pneg %p517
      // Predicated region
      $region77: #{transformer_block_forward.3} parent=5 // pred_check
        _
      $region78: #{transformer_block_forward.3} parent=5 // pred_check_branch
        %520 = sbr.rel (%p517) target = $region80
      $region79: #{transformer_block_forward.3} parent=5 // pred_region
        %s521 = ssub.s32 %s29, 1
        // Predicated region
        $region81: #{transformer_block_forward.3} parent=79 // pred_check
          %p522 = pneg %p97
        $region82: #{transformer_block_forward.3} parent=79 // pred_check_branch
          %524 = sbr.rel (%p522) target = $region84
        $region83: #{transformer_block_forward.3} parent=79 // pred_region
          %526 = dma.done [#allocation3], 16
        $region84: #{transformer_block_forward.3} parent=79 // pred_fallthru
          _
        // Predicated region
        $region85: #{transformer_block_forward.3} parent=79 // pred_check
          %p527 = pneg %p139
        $region86: #{transformer_block_forward.3} parent=79 // pred_check_branch
          %529 = sbr.rel (%p527) target = $region88
        $region87: #{transformer_block_forward.3} parent=79 // pred_region
          %531 = dma.done [#allocation6], 16
        $region88: #{transformer_block_forward.3} parent=79 // pred_fallthru
          _
        // Predicated region
        $region89: #{transformer_block_forward.3} parent=79 // pred_check
          %p532 = pneg %p160
        $region90: #{transformer_block_forward.3} parent=79 // pred_check_branch
          %534 = sbr.rel (%p532) target = $region92
        $region91: #{transformer_block_forward.3} parent=79 // pred_region
          %536 = dma.done [#allocation6], 16
        $region92: #{transformer_block_forward.3} parent=79 // pred_fallthru
          _
        // Predicated region
        $region93: #{transformer_block_forward.3} parent=79 // pred_check
          %p537 = pneg %p181
        $region94: #{transformer_block_forward.3} parent=79 // pred_check_branch
          %539 = sbr.rel (%p537) target = $region96
        $region95: #{transformer_block_forward.3} parent=79 // pred_region
          %541 = dma.done [#allocation9], 16
        $region96: #{transformer_block_forward.3} parent=79 // pred_fallthru
          _
        // Predicated region
        $region97: #{transformer_block_forward.3} parent=79 // pred_check
          %p542 = pneg %p223
        $region98: #{transformer_block_forward.3} parent=79 // pred_check_branch
          %544 = sbr.rel (%p542) target = $region100
        $region99: #{transformer_block_forward.3} parent=79 // pred_region
          %546 = dma.done [#allocation9], 16
        $region100: #{transformer_block_forward.3} parent=79 // pred_fallthru
          _
        // Predicated region
        $region101: #{transformer_block_forward.3} parent=79 // pred_check
          %p547 = pneg %p265
        $region102: #{transformer_block_forward.3} parent=79 // pred_check_branch
          %549 = sbr.rel (%p547) target = $region104
        $region103: #{transformer_block_forward.3} parent=79 // pred_region
          %551 = dma.done [#allocation12], 16
        $region104: #{transformer_block_forward.3} parent=79 // pred_fallthru
          _
        // Predicated region
        $region105: #{transformer_block_forward.3} parent=79 // pred_check
          %p552 = pneg %p286
        $region106: #{transformer_block_forward.3} parent=79 // pred_check_branch
          %554 = sbr.rel (%p552) target = $region108
        $region107: #{transformer_block_forward.3} parent=79 // pred_region
          %556 = dma.done [#allocation12], 16
        $region108: #{transformer_block_forward.3} parent=79 // pred_fallthru
          _
        // Predicated region
        $region109: #{transformer_block_forward.3} parent=79 // pred_check
          %p557 = pneg %p307
        $region110: #{transformer_block_forward.3} parent=79 // pred_check_branch
          %559 = sbr.rel (%p557) target = $region112
        $region111: #{transformer_block_forward.3} parent=79 // pred_region
          %561 = dma.done [#allocation15], 16
        $region112: #{transformer_block_forward.3} parent=79 // pred_fallthru
          _
        %p562 = scmp.lt.s32.totalorder %s34, 1
        %s563 = scalar_select %p562, %s34, 1
        %s564 = smul.addr %s563, 8
        %s565 = scalar_lea.vmem %s0, %s564
        %p566 = pneg %p55
        %p567 = pneg %p52
        %p568 = pneg %p76
        %p569 = pneg %p73
        %p570 = pneg %p97
        %p571 = pneg %p94
        %p572 = pneg %p118
        %p573 = pneg %p115
        %p574 = pneg %p139
        %p575 = pneg %p136
        %p576 = pneg %p160
        %p577 = pneg %p157
        %p578 = pneg %p181
        %p579 = pneg %p178
        %p580 = pneg %p202
        %p581 = pneg %p199
        %p582 = pneg %p223
        %p583 = pneg %p220
        %p584 = pneg %p244
        %p585 = pneg %p241
        %p586 = pneg %p265
        %p587 = pneg %p262
        %p588 = pneg %p286
        %p589 = pneg %p283
        %p590 = pneg %p307
        %p591 = pneg %p304
        %p592 = pneg %p328
        %p593 = pneg %p325
        %p594 = pneg %p349
        %p595 = pneg %p346
        %p596 = pneg %p375
        %p597 = pneg %p372
        %s598 = sand.u32 %s362, 1
        %s599 = scalar_lea.sflag [#allocation4], %s598
        %s600 = sand.u32 %s362, 1
        %s601 = smul.addr %s600, 8
        %s602 = scalar_lea.vmem [#allocation16], %s601
        %p603 = scmp.lt.s32.totalorder %s34, 1
        %s604 = scalar_select %p603, %s34, 1
        %s605 = smul.addr %s604, 8
        %s606 = scalar_lea.vmem %s0, %s605
        %v608 = vld [vmem:[%s606] sm:$0xff]
        %v609 = vpack.c.bf16 %v608, %v608
        %v610 = vld [vmem:[%s1] sm:$0xf]
        %v611 = vld [vmem:[%s1 + $0x4] sm:$0xf]
        %v612 = vld [vmem:[%s1 + $0x8] sm:$0xf]
        %v613 = vld [vmem:[%s1 + $0xc] sm:$0xf]
        %v614 = vld [vmem:[#allocation2] sm:$0x1]
        %v616 = vperm.slane %v614, 0
        %v622 = vunpack.c.l.b16 %v610
        %v623 = vunpack.c.l.b16 %v611
        %v624 = vunpack.c.l.b16 %v612
        %v625 = vunpack.c.l.b16 %v613
        %v626 = vpack.c.b16 %v623, %v622
        %v627 = vpack.c.b16 %v625, %v624
        %vm630 = vcmask 261120
        %v632 = vsel %vm630, %v609, 0
        %634 = vmatpush.bf16.msra.mxu0 0
        %635 = vmatpush.bf16.msra.mxu0 0
        %636 = vmatpush.bf16.msra.mxu0 0
        %637 = vmatpush.bf16.msra.mxu0 0
        %638 = vmatpush.bf16.msra.mxu0 0
        %639 = vmatpush.bf16.msra.mxu0 0
        %640 = vmatpush.bf16.msra.mxu0 %v627
        %641 = vmatpush.bf16.msra.mxu0 %v626
        %642 = vmatmul.bf16.gmra.mxu0 %v632
        %v643 = vpop.f32.mrf.mxu0
        %v644 = vadd.f32 %v616, %v643
        %v645 = vpop.f32.mrf.mxu0
        %646 = vdwg.mxu0
        %v647 = vpack.c.bf16 %v644, %v644
        %649 = vrot.lane.b32.xlu0 %v647, 120
        %v650 = vpop.permute.xlu0 %649
        %651 = vrot.lane.b32.xlu0 %v647, 112
        %v652 = vpop.permute.xlu0 %651
        %653 = vrot.lane.b32.xlu0 %v647, 104
        %v654 = vpop.permute.xlu0 %653
        %v655 = vunpack.c.l.b16 %v647
        %v656 = vunpack.c.l.b16 %v650
        %v657 = vunpack.c.l.b16 %v652
        %v658 = vunpack.c.l.b16 %v654
        %v659 = vpack.c.b16 %v655, %v655
        %v660 = vpack.c.b16 %v656, %v656
        %v661 = vpack.c.b16 %v657, %v657
        %v662 = vpack.c.b16 %v658, %v658
        %663 = vrot.lane.b32.xlu0 %v659, 96
        %v664 = vpop.permute.xlu0 %663
        %665 = vrot.lane.b32.xlu0 %v660, 96
        %v666 = vpop.permute.xlu0 %665
        %667 = vrot.lane.b32.xlu0 %v661, 96
        %v668 = vpop.permute.xlu0 %667
        %669 = vrot.lane.b32.xlu0 %v662, 96
        %v670 = vpop.permute.xlu0 %669
        %675 = vxpose.xlu0.c.b16.start [1/8] %v664, 128
        %676 = vxpose.xlu0.c.b16.cont [2/8] 0, 128
        %677 = vxpose.xlu0.c.b16.cont [3/8] 0, 128
        %678 = vxpose.xlu0.c.b16.cont [4/8] 0, 128
        %679 = vxpose.xlu0.c.b16.cont [5/8] 0, 128
        %680 = vxpose.xlu0.c.b16.cont [6/8] 0, 128
        %681 = vxpose.xlu0.c.b16.cont [7/8] 0, 128
        %682 = vxpose.xlu0.c.b16.end [8/8] 0, 128
        %v683 = vpop.trf.xlu0
        %v684 = vpop.trf.xlu0
        %v685 = vpop.trf.xlu0
        %v686 = vpop.trf.xlu0
        %v687 = vpop.trf.xlu0
        %v688 = vpop.trf.xlu0
        %v689 = vpop.trf.xlu0
        %v690 = vpop.trf.xlu0
        %691 = vxpose.xlu0.c.b16.start [1/8] %v666, 128
        %692 = vxpose.xlu0.c.b16.cont [2/8] 0, 128
        %693 = vxpose.xlu0.c.b16.cont [3/8] 0, 128
        %694 = vxpose.xlu0.c.b16.cont [4/8] 0, 128
        %695 = vxpose.xlu0.c.b16.cont [5/8] 0, 128
        %696 = vxpose.xlu0.c.b16.cont [6/8] 0, 128
        %697 = vxpose.xlu0.c.b16.cont [7/8] 0, 128
        %698 = vxpose.xlu0.c.b16.end [8/8] 0, 128
        %v699 = vpop.trf.xlu0
        %v700 = vpop.trf.xlu0
        %v701 = vpop.trf.xlu0
        %v702 = vpop.trf.xlu0
        %v703 = vpop.trf.xlu0
        %v704 = vpop.trf.xlu0
        %v705 = vpop.trf.xlu0
        %v706 = vpop.trf.xlu0
        %707 = vxpose.xlu0.c.b16.start [1/8] %v668, 128
        %708 = vxpose.xlu0.c.b16.cont [2/8] 0, 128
        %709 = vxpose.xlu0.c.b16.cont [3/8] 0, 128
        %710 = vxpose.xlu0.c.b16.cont [4/8] 0, 128
        %711 = vxpose.xlu0.c.b16.cont [5/8] 0, 128
        %712 = vxpose.xlu0.c.b16.cont [6/8] 0, 128
        %713 = vxpose.xlu0.c.b16.cont [7/8] 0, 128
        %714 = vxpose.xlu0.c.b16.end [8/8] 0, 128
        %v715 = vpop.trf.xlu0
        %v716 = vpop.trf.xlu0
        %v717 = vpop.trf.xlu0
        %v718 = vpop.trf.xlu0
        %v719 = vpop.trf.xlu0
        %v720 = vpop.trf.xlu0
        %v721 = vpop.trf.xlu0
        %v722 = vpop.trf.xlu0
        %723 = vxpose.xlu0.c.b16.start [1/8] %v670, 128
        %724 = vxpose.xlu0.c.b16.cont [2/8] 0, 128
        %725 = vxpose.xlu0.c.b16.cont [3/8] 0, 128
        %726 = vxpose.xlu0.c.b16.cont [4/8] 0, 128
        %727 = vxpose.xlu0.c.b16.cont [5/8] 0, 128
        %728 = vxpose.xlu0.c.b16.cont [6/8] 0, 128
        %729 = vxpose.xlu0.c.b16.cont [7/8] 0, 128
        %730 = vxpose.xlu0.c.b16.end [8/8] 0, 128
        %v731 = vpop.trf.xlu0
        %v732 = vpop.trf.xlu0
        %v733 = vpop.trf.xlu0
        %v734 = vpop.trf.xlu0
        %v735 = vpop.trf.xlu0
        %v736 = vpop.trf.xlu0
        %v737 = vpop.trf.xlu0
        %v738 = vpop.trf.xlu0
        %vm739 = vcmask 64512
        %v741 = vsel %vm739, %v647, 0
        %vm743 = vcmask 1043456
        %v745 = vsel %vm743, %v683, 0
        %747 = vmatpush.bf16.msra.mxu0 0
        %748 = vmatpush.bf16.msra.mxu0 0
        %749 = vmatpush.bf16.msra.mxu0 0
        %750 = vmatpush.bf16.msra.mxu0 0
        %751 = vmatpush.bf16.msra.mxu0 0
        %752 = vmatpush.bf16.msra.mxu0 0
        %753 = vmatpush.bf16.msra.mxu0 0
        %754 = vmatpush.bf16.msra.mxu0 %v745
        %755 = vmatmul.bf16.gmra.mxu0 %v741
        %v756 = vpop.f32.mrf.mxu0
        %v757 = vadd.f32 0.0, %v756
        %v758 = vpop.f32.mrf.mxu0
        %759 = vdwg.mxu0
        %v761 = vsel %vm739, %v650, 0
        %v764 = vsel %vm743, %v699, 0
        %766 = vmatpush.bf16.msra.mxu0 0
        %767 = vmatpush.bf16.msra.mxu0 0
        %768 = vmatpush.bf16.msra.mxu0 0
        %769 = vmatpush.bf16.msra.mxu0 0
        %770 = vmatpush.bf16.msra.mxu0 0
        %771 = vmatpush.bf16.msra.mxu0 0
        %772 = vmatpush.bf16.msra.mxu0 0
        %773 = vmatpush.bf16.msra.mxu0 %v764
        %774 = vmatmul.bf16.gmra.mxu0 %v761
        %v775 = vpop.f32.mrf.mxu0
        %v776 = vadd.f32 0.0, %v775
        %v777 = vpop.f32.mrf.mxu0
        %778 = vdwg.mxu0
        %v780 = vsel %vm739, %v652, 0
        %v783 = vsel %vm743, %v715, 0
        %785 = vmatpush.bf16.msra.mxu0 0
        %786 = vmatpush.bf16.msra.mxu0 0
        %787 = vmatpush.bf16.msra.mxu0 0
        %788 = vmatpush.bf16.msra.mxu0 0
        %789 = vmatpush.bf16.msra.mxu0 0
        %790 = vmatpush.bf16.msra.mxu0 0
        %791 = vmatpush.bf16.msra.mxu0 0
        %792 = vmatpush.bf16.msra.mxu0 %v783
        %793 = vmatmul.bf16.gmra.mxu0 %v780
        %v794 = vpop.f32.mrf.mxu0
        %v795 = vadd.f32 0.0, %v794
        %v796 = vpop.f32.mrf.mxu0
        %797 = vdwg.mxu0
        %v799 = vsel %vm739, %v654, 0
        %v802 = vsel %vm743, %v731, 0
        %804 = vmatpush.bf16.msra.mxu0 0
        %805 = vmatpush.bf16.msra.mxu0 0
        %806 = vmatpush.bf16.msra.mxu0 0
        %807 = vmatpush.bf16.msra.mxu0 0
        %808 = vmatpush.bf16.msra.mxu0 0
        %809 = vmatpush.bf16.msra.mxu0 0
        %810 = vmatpush.bf16.msra.mxu0 0
        %811 = vmatpush.bf16.msra.mxu0 %v802
        %812 = vmatmul.bf16.gmra.mxu0 %v799
        %v813 = vpop.f32.mrf.mxu0
        %v814 = vadd.f32 0.0, %v813
        %v815 = vpop.f32.mrf.mxu0
        %816 = vdwg.mxu0
        %v817 = vsel %vm739, %v757, -inf
        %818 = vmax.xlane.f32.xlu0 %v817
        %v819 = vpop.xlane.xlu0 %818
        %v820 = vsel %vm739, %v776, -inf
        %821 = vmax.xlane.f32.xlu0 %v820
        %v822 = vpop.xlane.xlu0 %821
        %v823 = vsel %vm739, %v795, -inf
        %824 = vmax.xlane.f32.xlu0 %v823
        %v825 = vpop.xlane.xlu0 %824
        %v826 = vsel %vm739, %v814, -inf
        %827 = vmax.xlane.f32.xlu0 %v826
        %v828 = vpop.xlane.xlu0 %827
        %v829 = vsub.f32 %v757, %v819
        %v830 = vsub.f32 %v776, %v822
        %v831 = vsub.f32 %v795, %v825
        %v832 = vsub.f32 %v814, %v828
        %v833 = vmul.f32 %v829, 1.442695
        %v834 = vpow.pop %v833
        %v835 = vmul.f32 %v830, 1.442695
        %v836 = vpow.pop %v835
        %v837 = vmul.f32 %v831, 1.442695
        %v838 = vpow.pop %v837
        %v839 = vmul.f32 %v832, 1.442695
        %v840 = vpow.pop %v839
        %v841 = vsel %vm739, %v834, 0.0
        %842 = vadd.xlane.f32.xlu0 %v841
        %v843 = vpop.xlane.xlu0 %842
        %v844 = vsel %vm739, %v836, 0.0
        %845 = vadd.xlane.f32.xlu0 %v844
        %v846 = vpop.xlane.xlu0 %845
        %v847 = vsel %vm739, %v838, 0.0
        %848 = vadd.xlane.f32.xlu0 %v847
        %v849 = vpop.xlane.xlu0 %848
        %v850 = vsel %vm739, %v840, 0.0
        %851 = vadd.xlane.f32.xlu0 %v850
        %v852 = vpop.xlane.xlu0 %851
        %v853 = vrcp.pop %v843
        %v854 = vrcp.pop %v846
        %v855 = vrcp.pop %v849
        %v856 = vrcp.pop %v852
        %v857 = vmul.f32 %v834, %v853
        %v858 = vmul.f32 %v836, %v854
        %v859 = vmul.f32 %v838, %v855
        %v860 = vmul.f32 %v840, %v856
        %v861 = vpack.c.bf16 %v857, %v857
        %v862 = vpack.c.bf16 %v858, %v858
        %v863 = vpack.c.bf16 %v859, %v859
        %v864 = vpack.c.bf16 %v860, %v860
        %865 = vrot.lane.b32.xlu0 %v659, 64
        %v866 = vpop.permute.xlu0 %865
        %867 = vrot.lane.b32.xlu0 %v660, 64
        %v868 = vpop.permute.xlu0 %867
        %869 = vrot.lane.b32.xlu0 %v661, 64
        %v870 = vpop.permute.xlu0 %869
        %871 = vrot.lane.b32.xlu0 %v662, 64
        %v872 = vpop.permute.xlu0 %871
        %877 = vxpose.xlu0.c.b16.start [1/8] %v866, 128
        %878 = vxpose.xlu0.c.b16.cont [2/8] 0, 128
        %879 = vxpose.xlu0.c.b16.cont [3/8] 0, 128
        %880 = vxpose.xlu0.c.b16.cont [4/8] 0, 128
        %881 = vxpose.xlu0.c.b16.cont [5/8] 0, 128
        %882 = vxpose.xlu0.c.b16.cont [6/8] 0, 128
        %883 = vxpose.xlu0.c.b16.cont [7/8] 0, 128
        %884 = vxpose.xlu0.c.b16.end [8/8] 0, 128
        %v885 = vpop.trf.xlu0
        %v886 = vpop.trf.xlu0
        %v887 = vpop.trf.xlu0
        %v888 = vpop.trf.xlu0
        %v889 = vpop.trf.xlu0
        %v890 = vpop.trf.xlu0
        %v891 = vpop.trf.xlu0
        %v892 = vpop.trf.xlu0
        %893 = vxpose.xlu0.c.b16.start [1/8] %v868, 128
        %894 = vxpose.xlu0.c.b16.cont [2/8] 0, 128
        %895 = vxpose.xlu0.c.b16.cont [3/8] 0, 128
        %896 = vxpose.xlu0.c.b16.cont [4/8] 0, 128
        %897 = vxpose.xlu0.c.b16.cont [5/8] 0, 128
        %898 = vxpose.xlu0.c.b16.cont [6/8] 0, 128
        %899 = vxpose.xlu0.c.b16.cont [7/8] 0, 128
        %900 = vxpose.xlu0.c.b16.end [8/8] 0, 128
        %v901 = vpop.trf.xlu0
        %v902 = vpop.trf.xlu0
        %v903 = vpop.trf.xlu0
        %v904 = vpop.trf.xlu0
        %v905 = vpop.trf.xlu0
        %v906 = vpop.trf.xlu0
        %v907 = vpop.trf.xlu0
        %v908 = vpop.trf.xlu0
        %909 = vxpose.xlu0.c.b16.start [1/8] %v870, 128
        %910 = vxpose.xlu0.c.b16.cont [2/8] 0, 128
        %911 = vxpose.xlu0.c.b16.cont [3/8] 0, 128
        %912 = vxpose.xlu0.c.b16.cont [4/8] 0, 128
        %913 = vxpose.xlu0.c.b16.cont [5/8] 0, 128
        %914 = vxpose.xlu0.c.b16.cont [6/8] 0, 128
        %915 = vxpose.xlu0.c.b16.cont [7/8] 0, 128
        %916 = vxpose.xlu0.c.b16.end [8/8] 0, 128
        %v917 = vpop.trf.xlu0
        %v918 = vpop.trf.xlu0
        %v919 = vpop.trf.xlu0
        %v920 = vpop.trf.xlu0
        %v921 = vpop.trf.xlu0
        %v922 = vpop.trf.xlu0
        %v923 = vpop.trf.xlu0
        %v924 = vpop.trf.xlu0
        %925 = vxpose.xlu0.c.b16.start [1/8] %v872, 128
        %926 = vxpose.xlu0.c.b16.cont [2/8] 0, 128
        %927 = vxpose.xlu0.c.b16.cont [3/8] 0, 128
        %928 = vxpose.xlu0.c.b16.cont [4/8] 0, 128
        %929 = vxpose.xlu0.c.b16.cont [5/8] 0, 128
        %930 = vxpose.xlu0.c.b16.cont [6/8] 0, 128
        %931 = vxpose.xlu0.c.b16.cont [7/8] 0, 128
        %932 = vxpose.xlu0.c.b16.end [8/8] 0, 128
        %v933 = vpop.trf.xlu0
        %v934 = vpop.trf.xlu0
        %v935 = vpop.trf.xlu0
        %v936 = vpop.trf.xlu0
        %v937 = vpop.trf.xlu0
        %v938 = vpop.trf.xlu0
        %v939 = vpop.trf.xlu0
        %v940 = vpop.trf.xlu0
        %v942 = vsel %vm739, %v885, 0
        %v945 = vsel %vm739, %v861, 0
        %947 = vmatpush.bf16.xpose.msra.mxu0 0
        %948 = vmatpush.bf16.xpose.msra.mxu0 0
        %949 = vmatpush.bf16.xpose.msra.mxu0 0
        %950 = vmatpush.bf16.xpose.msra.mxu0 0
        %951 = vmatpush.bf16.xpose.msra.mxu0 0
        %952 = vmatpush.bf16.xpose.msra.mxu0 0
        %953 = vmatpush.bf16.xpose.msra.mxu0 0
        %954 = vmatpush.bf16.xpose.msra.mxu0 %v945
        %955 = vmatmul.bf16.gmra.mxu0 %v942
        %v956 = vpop.f32.mrf.mxu0
        %v957 = vadd.f32 0.0, %v956
        %v958 = vpop.f32.mrf.mxu0
        %959 = vdwg.mxu0
        %v961 = vsel %vm739, %v901, 0
        %v964 = vsel %vm739, %v862, 0
        %966 = vmatpush.bf16.xpose.msra.mxu0 0
        %967 = vmatpush.bf16.xpose.msra.mxu0 0
        %968 = vmatpush.bf16.xpose.msra.mxu0 0
        %969 = vmatpush.bf16.xpose.msra.mxu0 0
        %970 = vmatpush.bf16.xpose.msra.mxu0 0
        %971 = vmatpush.bf16.xpose.msra.mxu0 0
        %972 = vmatpush.bf16.xpose.msra.mxu0 0
        %973 = vmatpush.bf16.xpose.msra.mxu0 %v964
        %974 = vmatmul.bf16.gmra.mxu0 %v961
        %v975 = vpop.f32.mrf.mxu0
        %v976 = vadd.f32 0.0, %v975
        %v977 = vpop.f32.mrf.mxu0
        %978 = vdwg.mxu0
        %v980 = vsel %vm739, %v917, 0
        %v983 = vsel %vm739, %v863, 0
        %985 = vmatpush.bf16.xpose.msra.mxu0 0
        %986 = vmatpush.bf16.xpose.msra.mxu0 0
        %987 = vmatpush.bf16.xpose.msra.mxu0 0
        %988 = vmatpush.bf16.xpose.msra.mxu0 0
        %989 = vmatpush.bf16.xpose.msra.mxu0 0
        %990 = vmatpush.bf16.xpose.msra.mxu0 0
        %991 = vmatpush.bf16.xpose.msra.mxu0 0
        %992 = vmatpush.bf16.xpose.msra.mxu0 %v983
        %993 = vmatmul.bf16.gmra.mxu0 %v980
        %v994 = vpop.f32.mrf.mxu0
        %v995 = vadd.f32 0.0, %v994
        %v996 = vpop.f32.mrf.mxu0
        %997 = vdwg.mxu0
        %v999 = vsel %vm739, %v933, 0
        %v1002 = vsel %vm739, %v864, 0
        %1004 = vmatpush.bf16.xpose.msra.mxu0 0
        %1005 = vmatpush.bf16.xpose.msra.mxu0 0
        %1006 = vmatpush.bf16.xpose.msra.mxu0 0
        %1007 = vmatpush.bf16.xpose.msra.mxu0 0
        %1008 = vmatpush.bf16.xpose.msra.mxu0 0
        %1009 = vmatpush.bf16.xpose.msra.mxu0 0
        %1010 = vmatpush.bf16.xpose.msra.mxu0 0
        %1011 = vmatpush.bf16.xpose.msra.mxu0 %v1002
        %1012 = vmatmul.bf16.gmra.mxu0 %v999
        %v1013 = vpop.f32.mrf.mxu0
        %v1014 = vadd.f32 0.0, %v1013
        %v1015 = vpop.f32.mrf.mxu0
        %1016 = vdwg.mxu0
        %1017 = vxpose.xlu0.b32.start [1/16] %v957, 128
        %1018 = vxpose.xlu0.b32.cont [2/16] 0.0, 128
        %1019 = vxpose.xlu0.b32.cont [3/16] 0.0, 128
        %1020 = vxpose.xlu0.b32.cont [4/16] 0.0, 128
        %1021 = vxpose.xlu0.b32.cont [5/16] 0.0, 128
        %1022 = vxpose.xlu0.b32.cont [6/16] 0.0, 128
        %1023 = vxpose.xlu0.b32.cont [7/16] 0.0, 128
        %1024 = vxpose.xlu0.b32.cont [8/16] 0.0, 128
        %1025 = vxpose.xlu0.b32.cont [9/16] 0.0, 128
        %1026 = vxpose.xlu0.b32.cont [10/16] 0.0, 128
        %1027 = vxpose.xlu0.b32.cont [11/16] 0.0, 128
        %1028 = vxpose.xlu0.b32.cont [12/16] 0.0, 128
        %1029 = vxpose.xlu0.b32.cont [13/16] 0.0, 128
        %1030 = vxpose.xlu0.b32.cont [14/16] 0.0, 128
        %1031 = vxpose.xlu0.b32.cont [15/16] 0.0, 128
        %1032 = vxpose.xlu0.b32.end [16/16] 0.0, 128
        %v1033 = vpop.trf.xlu0
        %v1034 = vpop.trf.xlu0
        %v1035 = vpop.trf.xlu0
        %v1036 = vpop.trf.xlu0
        %v1037 = vpop.trf.xlu0
        %v1038 = vpop.trf.xlu0
        %v1039 = vpop.trf.xlu0
        %v1040 = vpop.trf.xlu0
        %v1041 = vpop.trf.xlu0
        %v1042 = vpop.trf.xlu0
        %v1043 = vpop.trf.xlu0
        %v1044 = vpop.trf.xlu0
        %v1045 = vpop.trf.xlu0
        %v1046 = vpop.trf.xlu0
        %v1047 = vpop.trf.xlu0
        %v1048 = vpop.trf.xlu0
        %1049 = vxpose.xlu0.b32.start [1/16] %v976, 128
        %1050 = vxpose.xlu0.b32.cont [2/16] 0.0, 128
        %1051 = vxpose.xlu0.b32.cont [3/16] 0.0, 128
        %1052 = vxpose.xlu0.b32.cont [4/16] 0.0, 128
        %1053 = vxpose.xlu0.b32.cont [5/16] 0.0, 128
        %1054 = vxpose.xlu0.b32.cont [6/16] 0.0, 128
        %1055 = vxpose.xlu0.b32.cont [7/16] 0.0, 128
        %1056 = vxpose.xlu0.b32.cont [8/16] 0.0, 128
        %1057 = vxpose.xlu0.b32.cont [9/16] 0.0, 128
        %1058 = vxpose.xlu0.b32.cont [10/16] 0.0, 128
        %1059 = vxpose.xlu0.b32.cont [11/16] 0.0, 128
        %1060 = vxpose.xlu0.b32.cont [12/16] 0.0, 128
        %1061 = vxpose.xlu0.b32.cont [13/16] 0.0, 128
        %1062 = vxpose.xlu0.b32.cont [14/16] 0.0, 128
        %1063 = vxpose.xlu0.b32.cont [15/16] 0.0, 128
        %1064 = vxpose.xlu0.b32.end [16/16] 0.0, 128
        %v1065 = vpop.trf.xlu0
        %v1066 = vpop.trf.xlu0
        %v1067 = vpop.trf.xlu0
        %v1068 = vpop.trf.xlu0
        %v1069 = vpop.trf.xlu0
        %v1070 = vpop.trf.xlu0
        %v1071 = vpop.trf.xlu0
        %v1072 = vpop.trf.xlu0
        %v1073 = vpop.trf.xlu0
        %v1074 = vpop.trf.xlu0
        %v1075 = vpop.trf.xlu0
        %v1076 = vpop.trf.xlu0
        %v1077 = vpop.trf.xlu0
        %v1078 = vpop.trf.xlu0
        %v1079 = vpop.trf.xlu0
        %v1080 = vpop.trf.xlu0
        %1081 = vxpose.xlu0.b32.start [1/16] %v995, 128
        %1082 = vxpose.xlu0.b32.cont [2/16] 0.0, 128
        %1083 = vxpose.xlu0.b32.cont [3/16] 0.0, 128
        %1084 = vxpose.xlu0.b32.cont [4/16] 0.0, 128
        %1085 = vxpose.xlu0.b32.cont [5/16] 0.0, 128
        %1086 = vxpose.xlu0.b32.cont [6/16] 0.0, 128
        %1087 = vxpose.xlu0.b32.cont [7/16] 0.0, 128
        %1088 = vxpose.xlu0.b32.cont [8/16] 0.0, 128
        %1089 = vxpose.xlu0.b32.cont [9/16] 0.0, 128
        %1090 = vxpose.xlu0.b32.cont [10/16] 0.0, 128
        %1091 = vxpose.xlu0.b32.cont [11/16] 0.0, 128
        %1092 = vxpose.xlu0.b32.cont [12/16] 0.0, 128
        %1093 = vxpose.xlu0.b32.cont [13/16] 0.0, 128
        %1094 = vxpose.xlu0.b32.cont [14/16] 0.0, 128
        %1095 = vxpose.xlu0.b32.cont [15/16] 0.0, 128
        %1096 = vxpose.xlu0.b32.end [16/16] 0.0, 128
        %v1097 = vpop.trf.xlu0
        %v1098 = vpop.trf.xlu0
        %v1099 = vpop.trf.xlu0
        %v1100 = vpop.trf.xlu0
        %v1101 = vpop.trf.xlu0
        %v1102 = vpop.trf.xlu0
        %v1103 = vpop.trf.xlu0
        %v1104 = vpop.trf.xlu0
        %v1105 = vpop.trf.xlu0
        %v1106 = vpop.trf.xlu0
        %v1107 = vpop.trf.xlu0
        %v1108 = vpop.trf.xlu0
        %v1109 = vpop.trf.xlu0
        %v1110 = vpop.trf.xlu0
        %v1111 = vpop.trf.xlu0
        %v1112 = vpop.trf.xlu0
        %1113 = vxpose.xlu0.b32.start [1/16] %v1014, 128
        %1114 = vxpose.xlu0.b32.cont [2/16] 0.0, 128
        %1115 = vxpose.xlu0.b32.cont [3/16] 0.0, 128
        %1116 = vxpose.xlu0.b32.cont [4/16] 0.0, 128
        %1117 = vxpose.xlu0.b32.cont [5/16] 0.0, 128
        %1118 = vxpose.xlu0.b32.cont [6/16] 0.0, 128
        %1119 = vxpose.xlu0.b32.cont [7/16] 0.0, 128
        %1120 = vxpose.xlu0.b32.cont [8/16] 0.0, 128
        %1121 = vxpose.xlu0.b32.cont [9/16] 0.0, 128
        %1122 = vxpose.xlu0.b32.cont [10/16] 0.0, 128
        %1123 = vxpose.xlu0.b32.cont [11/16] 0.0, 128
        %1124 = vxpose.xlu0.b32.cont [12/16] 0.0, 128
        %1125 = vxpose.xlu0.b32.cont [13/16] 0.0, 128
        %1126 = vxpose.xlu0.b32.cont [14/16] 0.0, 128
        %1127 = vxpose.xlu0.b32.cont [15/16] 0.0, 128
        %1128 = vxpose.xlu0.b32.end [16/16] 0.0, 128
        %v1129 = vpop.trf.xlu0
        %v1130 = vpop.trf.xlu0
        %v1131 = vpop.trf.xlu0
        %v1132 = vpop.trf.xlu0
        %v1133 = vpop.trf.xlu0
        %v1134 = vpop.trf.xlu0
        %v1135 = vpop.trf.xlu0
        %v1136 = vpop.trf.xlu0
        %v1137 = vpop.trf.xlu0
        %v1138 = vpop.trf.xlu0
        %v1139 = vpop.trf.xlu0
        %v1140 = vpop.trf.xlu0
        %v1141 = vpop.trf.xlu0
        %v1142 = vpop.trf.xlu0
        %v1143 = vpop.trf.xlu0
        %v1144 = vpop.trf.xlu0
        %v1145 = vrot.slane %v1097, 4
        %vm1146 = vcmask 1047556
        %v1147 = vsel %vm1146, %v1145, %v1033
        %v1148 = vrot.slane %v1033, 4
        %v1149 = vsel %vm1146, %v1097, %v1148
        %v1151 = vunpack.c.l.s4 1983009808
        %v1152 = vunpack.c.0.s8 %v1151
        %v1153 = vperm.slane %v1147, %v1152
        %v1155 = vunpack.c.l.s4 1983009808
        %v1156 = vunpack.c.0.s8 %v1155
        %v1157 = vperm.slane %v1149, %v1156
        %v1158 = vrot.slane %v1129, 4
        %v1159 = vsel %vm1146, %v1158, %v1065
        %v1160 = vrot.slane %v1065, 4
        %v1161 = vsel %vm1146, %v1129, %v1160
        %v1163 = vunpack.c.l.s4 1983009808
        %v1164 = vunpack.c.0.s8 %v1163
        %v1165 = vperm.slane %v1159, %v1164
        %v1167 = vunpack.c.l.s4 1983009808
        %v1168 = vunpack.c.0.s8 %v1167
        %v1169 = vperm.slane %v1161, %v1168
        %v1170 = vrot.slane %v1165, 4
        %v1171 = vsel %vm1146, %v1170, %v1153
        %v1172 = vrot.slane %v1153, 4
        %v1173 = vsel %vm1146, %v1165, %v1172
        %v1175 = vunpack.c.l.s4 1934713408
        %v1176 = vunpack.c.0.s8 %v1175
        %v1177 = vperm.slane %v1171, %v1176
        %v1179 = vunpack.c.l.s4 1934713408
        %v1180 = vunpack.c.0.s8 %v1179
        %v1181 = vperm.slane %v1173, %v1180
        %v1182 = vrot.slane %v1169, 4
        %v1183 = vsel %vm1146, %v1182, %v1157
        %v1184 = vrot.slane %v1157, 4
        %v1185 = vsel %vm1146, %v1169, %v1184
        %v1187 = vunpack.c.l.s4 1934713408
        %v1188 = vunpack.c.0.s8 %v1187
        %v1189 = vperm.slane %v1183, %v1188
        %v1191 = vunpack.c.l.s4 1934713408
        %v1192 = vunpack.c.0.s8 %v1191
        %v1193 = vperm.slane %v1185, %v1192
        %v1194 = vrot.slane %v1177, 4
        %v1195 = vsel %vm1146, 0.0, %v1194
        %v1196 = vrot.slane %v1181, 4
        %v1197 = vsel %vm1146, 0.0, %v1196
        %v1198 = vrot.slane %v1189, 4
        %v1199 = vsel %vm1146, 0.0, %v1198
        %v1200 = vrot.slane %v1193, 4
        %v1201 = vsel %vm1146, 0.0, %v1200
        %v1202 = vsel %vm1146, %v1196, %v1177
        %v1204 = vunpack.c.l.s4 1983009808
        %v1205 = vunpack.c.0.s8 %v1204
        %v1206 = vperm.slane %v1202, %v1205
        %v1207 = vrot.slane %v1197, 4
        %v1208 = vsel %vm1146, %v1207, %v1195
        %v1210 = vunpack.c.l.s4 1983009808
        %v1211 = vunpack.c.0.s8 %v1210
        %v1212 = vperm.slane %v1208, %v1211
        %v1213 = vsel %vm1146, %v1200, %v1189
        %v1215 = vunpack.c.l.s4 1983009808
        %v1216 = vunpack.c.0.s8 %v1215
        %v1217 = vperm.slane %v1213, %v1216
        %v1218 = vrot.slane %v1201, 4
        %v1219 = vsel %vm1146, %v1218, %v1199
        %v1221 = vunpack.c.l.s4 1983009808
        %v1222 = vunpack.c.0.s8 %v1221
        %v1223 = vperm.slane %v1219, %v1222
        %v1224 = vrot.slane %v1212, 4
        %v1225 = vsel %vm1146, %v1224, %v1206
        %v1226 = vrot.slane %v1206, 4
        %v1227 = vsel %vm1146, %v1212, %v1226
        %v1229 = vunpack.c.l.s4 1934713408
        %v1230 = vunpack.c.0.s8 %v1229
        %v1231 = vperm.slane %v1225, %v1230
        %v1233 = vunpack.c.l.s4 1934713408
        %v1234 = vunpack.c.0.s8 %v1233
        %v1235 = vperm.slane %v1227, %v1234
        %v1236 = vrot.slane %v1223, 4
        %v1237 = vsel %vm1146, %v1236, %v1217
        %v1238 = vrot.slane %v1217, 4
        %v1239 = vsel %vm1146, %v1223, %v1238
        %v1241 = vunpack.c.l.s4 1934713408
        %v1242 = vunpack.c.0.s8 %v1241
        %v1243 = vperm.slane %v1237, %v1242
        %v1245 = vunpack.c.l.s4 1934713408
        %v1246 = vunpack.c.0.s8 %v1245
        %v1247 = vperm.slane %v1239, %v1246
        %v1248 = vrot.slane %v1243, 4
        %v1249 = vsel %vm1146, %v1248, %v1231
        %v1250 = vrot.slane %v1231, 4
        %v1251 = vsel %vm1146, %v1243, %v1250
        %v1252 = vrot.slane %v1247, 4
        %v1253 = vsel %vm1146, %v1252, %v1235
        %v1254 = vrot.slane %v1235, 4
        %v1255 = vsel %vm1146, %v1247, %v1254
        %1257 = vrot.lane.b32.xlu0 %v1251, 8
        %v1258 = vpop.permute.xlu0 %1257
        %1261 = vrot.lane.b32.xlu0 %v1253, 16
        %v1262 = vpop.permute.xlu0 %1261
        %1265 = vrot.lane.b32.xlu0 %v1255, 24
        %v1266 = vpop.permute.xlu0 %1265
        %v1268 = vsel %vm739, %v1249, %v1258
        %vm1269 = vcmask 130048
        %v1270 = vsel %vm1269, %v1268, %v1262
        %vm1271 = vcmask 195584
        %v1272 = vsel %vm1271, %v1270, %v1266
        %v1273 = vpack.c.bf16 %v1272, %v1272
        %v1274 = vld [vmem:[%s3] sm:$0xf]
        %v1275 = vld [vmem:[%s3 + $0x4] sm:$0xf]
        %v1276 = vld [vmem:[%s3 + $0x8] sm:$0xf]
        %v1277 = vld [vmem:[%s3 + $0xc] sm:$0xf]
        %v1278 = vld [vmem:[#allocation5] sm:$0x1]
        %v1280 = vperm.slane %v1278, 0
        %v1286 = vunpack.c.l.b16 %v1274
        %v1287 = vunpack.c.l.b16 %v1275
        %v1288 = vunpack.c.l.b16 %v1276
        %v1289 = vunpack.c.l.b16 %v1277
        %v1290 = vpack.c.b16 %v1287, %v1286
        %v1291 = vpack.c.b16 %v1289, %v1288
        %v1295 = vsel %vm630, %v1273, 0
        %1297 = vmatpush.bf16.msra.mxu0 0
        %1298 = vmatpush.bf16.msra.mxu0 0
        %1299 = vmatpush.bf16.msra.mxu0 0
        %1300 = vmatpush.bf16.msra.mxu0 0
        %1301 = vmatpush.bf16.msra.mxu0 0
        %1302 = vmatpush.bf16.msra.mxu0 0
        %1303 = vmatpush.bf16.msra.mxu0 %v1291
        %1304 = vmatpush.bf16.msra.mxu0 %v1290
        %1305 = vmatmul.bf16.gmra.mxu0 %v1295
        %v1306 = vpop.f32.mrf.mxu0
        %v1307 = vadd.f32 %v1280, %v1306
        %v1308 = vpop.f32.mrf.mxu0
        %1309 = vdwg.mxu0
        %v1310 = vadd.f32 %v608, %v1307
        %v1311 = vld [vmem:[#allocation7] sm:$0x1]
        %v1312 = vld [vmem:[#allocation8] sm:$0x1]
        %v1313 = vsel %vm630, %v1310, 0.0
        %1314 = vadd.xlane.f32.xlu0 %v1313
        %v1315 = vpop.xlane.xlu0 %1314
        %v1316 = vrcp.pop 32.0
        %v1317 = vmul.f32 32.0, %v1316
        %v1318 = vsub.f32 1.0, %v1317
        %v1319 = vmul.f32 %v1316, %v1318
        %v1320 = vadd.f32 %v1316, %v1319
        %vm1321 = vweird.f32 %v1316
        %v1322 = vsel %vm1321, %v1316, %v1320
        %v1323 = vmul.f32 %v1315, %v1322
        %v1324 = vsub.f32 %v1310, %v1323
        %v1325 = vmul.f32 %v1324, %v1324
        %v1326 = vsel %vm630, %v1325, 0.0
        %1327 = vadd.xlane.f32.xlu0 %v1326
        %v1328 = vpop.xlane.xlu0 %1327
        %v1329 = vmul.f32 %v1328, %v1322
        %v1330 = vadd.f32 %v1329, 1e-05
        %v1331 = vrsqrt.pop %v1330
        %v1332 = vmul.f32 %v1331, %v1330
        %v1333 = vmul.f32 %v1332, %v1331
        %v1334 = vmul.f32 0.5, %v1333
        %v1335 = vsub.f32 1.5, %v1334
        %v1336 = vmul.f32 %v1331, %v1335
        %vm1337 = vweird.f32 %v1330
        %vm1338 = vweird.f32 %v1331
        %vm1339 = vmor %vm1337, %vm1338
        %v1340 = vsel %vm1339, %v1331, %v1336
        %v1341 = vmul.f32 %v1324, %v1340
        %v1343 = vperm.slane %v1311, 0
        %v1345 = vmul.f32 %v1341, %v1343
        %v1347 = vperm.slane %v1312, 0
        %v1349 = vadd.f32 %v1345, %v1347
        %v1350 = vpack.c.bf16 %v1349, %v1349
        %v1351 = vld [vmem:[%s7] sm:$0xf]
        %v1352 = vld [vmem:[%s7 + $0x4] sm:$0xf]
        %v1353 = vld [vmem:[%s7 + $0x8] sm:$0xf]
        %v1354 = vld [vmem:[%s7 + $0xc] sm:$0xf]
        %v1355 = vld [vmem:[#allocation10] sm:$0x1]
        %v1357 = vperm.slane %v1355, 0
        %v1363 = vunpack.c.l.b16 %v1351
        %v1364 = vunpack.c.l.b16 %v1352
        %v1365 = vunpack.c.l.b16 %v1353
        %v1366 = vunpack.c.l.b16 %v1354
        %v1367 = vpack.c.b16 %v1364, %v1363
        %v1368 = vpack.c.b16 %v1366, %v1365
        %v1372 = vsel %vm630, %v1350, 0
        %1374 = vmatpush.bf16.msra.mxu0 0
        %1375 = vmatpush.bf16.msra.mxu0 0
        %1376 = vmatpush.bf16.msra.mxu0 0
        %1377 = vmatpush.bf16.msra.mxu0 0
        %1378 = vmatpush.bf16.msra.mxu0 0
        %1379 = vmatpush.bf16.msra.mxu0 0
        %1380 = vmatpush.bf16.msra.mxu0 %v1368
        %1381 = vmatpush.bf16.msra.mxu0 %v1367
        %1382 = vmatmul.bf16.gmra.mxu0 %v1372
        %v1383 = vpop.f32.mrf.mxu0
        %v1384 = vadd.f32 %v1357, %v1383
        %v1385 = vpop.f32.mrf.mxu0
        %1386 = vdwg.mxu0
        %v1387 = vmax.f32 %v1384, 0.0
        %v1388 = vpack.c.bf16 %v1387, %v1387
        %v1389 = vld [vmem:[%s9] sm:$0xf]
        %v1390 = vld [vmem:[%s9 + $0x4] sm:$0xf]
        %v1391 = vld [vmem:[%s9 + $0x8] sm:$0xf]
        %v1392 = vld [vmem:[%s9 + $0xc] sm:$0xf]
        %v1393 = vld [vmem:[%s9 + $0x10] sm:$0xf]
        %v1394 = vld [vmem:[%s9 + $0x14] sm:$0xf]
        %v1395 = vld [vmem:[%s9 + $0x18] sm:$0xf]
        %v1396 = vld [vmem:[%s9 + $0x1c] sm:$0xf]
        %v1397 = vld [vmem:[#allocation11] sm:$0x1]
        %v1399 = vperm.slane %v1397, 0
        %v1409 = vunpack.c.l.b16 %v1389
        %v1410 = vunpack.c.l.b16 %v1390
        %v1411 = vunpack.c.l.b16 %v1391
        %v1412 = vunpack.c.l.b16 %v1392
        %v1413 = vunpack.c.l.b16 %v1393
        %v1414 = vunpack.c.l.b16 %v1394
        %v1415 = vunpack.c.l.b16 %v1395
        %v1416 = vunpack.c.l.b16 %v1396
        %v1417 = vpack.c.b16 %v1410, %v1409
        %v1418 = vpack.c.b16 %v1412, %v1411
        %v1419 = vpack.c.b16 %v1414, %v1413
        %v1420 = vpack.c.b16 %v1416, %v1415
        %vm1425 = vcmask 523264
        %v1427 = vsel %vm1425, %v1388, 0
        %1429 = vmatpush.bf16.msra.mxu0 0
        %1430 = vmatpush.bf16.msra.mxu0 0
        %1431 = vmatpush.bf16.msra.mxu0 0
        %1432 = vmatpush.bf16.msra.mxu0 0
        %1433 = vmatpush.bf16.msra.mxu0 %v1420
        %1434 = vmatpush.bf16.msra.mxu0 %v1419
        %1435 = vmatpush.bf16.msra.mxu0 %v1418
        %1436 = vmatpush.bf16.msra.mxu0 %v1417
        %1437 = vmatmul.bf16.gmra.mxu0 %v1427
        %v1438 = vpop.f32.mrf.mxu0
        %v1439 = vadd.f32 %v1399, %v1438
        %v1440 = vpop.f32.mrf.mxu0
        %1441 = vdwg.mxu0
        %v1442 = vadd.f32 %v1349, %v1439
        %v1443 = vld [vmem:[#allocation13] sm:$0x1]
        %v1444 = vld [vmem:[#allocation14] sm:$0x1]
        %v1445 = vsel %vm630, %v1442, 0.0
        %1446 = vadd.xlane.f32.xlu0 %v1445
        %v1447 = vpop.xlane.xlu0 %1446
        %v1448 = vmul.f32 %v1447, %v1322
        %v1449 = vsub.f32 %v1442, %v1448
        %v1450 = vmul.f32 %v1449, %v1449
        %v1451 = vsel %vm630, %v1450, 0.0
        %1452 = vadd.xlane.f32.xlu0 %v1451
        %v1453 = vpop.xlane.xlu0 %1452
        %v1454 = vmul.f32 %v1453, %v1322
        %v1455 = vadd.f32 %v1454, 1e-05
        %v1456 = vrsqrt.pop %v1455
        %v1457 = vmul.f32 %v1456, %v1455
        %v1458 = vmul.f32 %v1457, %v1456
        %v1459 = vmul.f32 0.5, %v1458
        %v1460 = vsub.f32 1.5, %v1459
        %v1461 = vmul.f32 %v1456, %v1460
        %vm1462 = vweird.f32 %v1455
        %vm1463 = vweird.f32 %v1456
        %vm1464 = vmor %vm1462, %vm1463
        %v1465 = vsel %vm1464, %v1456, %v1461
        %v1466 = vmul.f32 %v1449, %v1465
        %v1468 = vperm.slane %v1443, 0
        %v1470 = vmul.f32 %v1466, %v1468
        %v1472 = vperm.slane %v1444, 0
        %v1474 = vadd.f32 %v1470, %v1472
        %v1475 = vpack.c.bf16 %v1474, %v1474
        %v1476 = vld [vmem:[%s13] sm:$0xf]
        %v1477 = vld [vmem:[%s13 + $0x4] sm:$0xf]
        %v1478 = vld [vmem:[%s13 + $0x8] sm:$0xf]
        %v1479 = vld [vmem:[%s13 + $0xc] sm:$0xf]
        %v1480 = vld [vmem:[%s14] sm:$0x1]
        %v1482 = vperm.slane %v1480, 0
        %v1488 = vunpack.c.l.b16 %v1476
        %v1489 = vunpack.c.l.b16 %v1477
        %v1490 = vunpack.c.l.b16 %v1478
        %v1491 = vunpack.c.l.b16 %v1479
        %v1492 = vpack.c.b16 %v1489, %v1488
        %v1493 = vpack.c.b16 %v1491, %v1490
        %v1497 = vsel %vm630, %v1475, 0
        %1499 = vmatpush.bf16.msra.mxu0 0
        %1500 = vmatpush.bf16.msra.mxu0 0
        %1501 = vmatpush.bf16.msra.mxu0 0
        %1502 = vmatpush.bf16.msra.mxu0 0
        %1503 = vmatpush.bf16.msra.mxu0 0
        %1504 = vmatpush.bf16.msra.mxu0 0
        %1505 = vmatpush.bf16.msra.mxu0 %v1493
        %1506 = vmatpush.bf16.msra.mxu0 %v1492
        %1507 = vmatmul.bf16.gmra.mxu0 %v1497
        %v1508 = vpop.f32.mrf.mxu0
        %v1509 = vadd.f32 %v1482, %v1508
        %v1510 = vpop.f32.mrf.mxu0
        %1511 = vdwg.mxu0
        %vm1512 = vcmask 392192
        %1513 = vst.msk [vmem:[%s602] sm:$0xff] %vm1512, %v1509
        %s1514 = sand.u32 %s362, 1
        %s1515 = scalar_lea.sflag [#allocation4], %s1514
        %s1516 = sand.u32 %s362, 1
        %s1517 = smul.addr %s1516, 8
        %s1518 = scalar_lea.vmem [#allocation16], %s1517
        // Predicated region
        $region113: #{transformer_block_forward.3} parent=79 // pred_check
          %p1519 = pneg %p372
        $region114: #{transformer_block_forward.3} parent=79 // pred_check_branch
          %1521 = sbr.rel (%p1519) target = $region116
        $region115: #{transformer_block_forward.3} parent=79 // pred_region
          %1523 = vsyncadd %s1515, 0
          %s1524 = smul.addr %s34, 8
          %s1525 = scalar_lea.hbm %s15, %s1524
          %s1527 = sshll.u32 %s1518, 4
          %s1528 = int_to_ptr.vmem [resolvable:$true] %s1527
          %s1529 = sshll.u32 %s1525, 4
          %s1530 = int_to_ptr.hbm [resolvable:$true] %s1529
          %1532 = dma.vmem_to_hbm [thread:$0]  %s1528, 128, %s1530, %s1515
        $region116: #{transformer_block_forward.3} parent=79 // pred_fallthru
          _
      $region80: #{transformer_block_forward.3} parent=5 // pred_fallthru
        _
      %p1533 = scmp.le.s32.totalorder 2, %s29
      // Predicated region
      $region117: #{transformer_block_forward.3} parent=5 // pred_check
        %p1534 = pneg %p1533
      $region118: #{transformer_block_forward.3} parent=5 // pred_check_branch
        %1536 = sbr.rel (%p1534) target = $region120
      $region119: #{transformer_block_forward.3} parent=5 // pred_region
        %s1537 = ssub.s32 %s29, 2
        // Predicated region
        $region121: #{transformer_block_forward.3} parent=119 // pred_check
          %p1538 = pneg %p378
        $region122: #{transformer_block_forward.3} parent=119 // pred_check_branch
          %1540 = sbr.rel (%p1538) target = $region124
        $region123: #{transformer_block_forward.3} parent=119 // pred_region
          %s1541 = sand.u32 %s363, 1
          %s1542 = scalar_lea.sflag [#allocation4], %s1541
          %s1543 = sand.u32 %s363, 1
          %s1544 = smul.addr %s1543, 8
          %s1545 = scalar_lea.vmem [#allocation16], %s1544
          %1547 = dma.done %s1542, 128
        $region124: #{transformer_block_forward.3} parent=119 // pred_fallthru
          _
      $region120: #{transformer_block_forward.3} parent=5 // pred_fallthru
        _
    $region6: #{transformer_block_forward.3} parent=1 // loop_footer
      %s33 = sadd.s32 1, %s29
    $region7: #{transformer_block_forward.3} parent=1 // loop_footer_branch
      %28 = sbr.rel target = $region3
    $region8: #{transformer_block_forward.3} parent=1 // loop_exit
      _
    %1548 = vsyncpa [#allocation3], 1
    %s1549 = scalar_lea.sflag [#allocation3], 1
    %1550 = vsyncpa %s1549, 1
    %1551 = vsyncpa [#allocation6], 1
    %1552 = vsyncpa [#allocation9], 1
    %1553 = vsyncpa [#allocation12], 1
    %1554 = vsyncpa [#allocation15], 1
    %1555 = vsyncpa [#allocation4], 1
    %s1556 = scalar_lea.sflag [#allocation4], 1
    %1557 = vsyncpa %s1556, 1

</llo_original>
